<compile_context>
chip_gen: v7x
topology: tpu7x:2x2x1
jax: 0.10.0
libtpu: 0.0.40
codegen_flags: <defaults>
</compile_context>

<pallas_src>
import functools

import jax
import jax.numpy as jnp
from jax.experimental import pallas as pl
from jax.experimental.pallas import tpu as pltpu


# ----------------------------------------------------------------------------
# Small helpers
# ----------------------------------------------------------------------------
def _round_up(x, m):
    return ((x + m - 1) // m) * m


def _vmem_limit_bytes(requested):
    """Scoped-VMEM limit derived from the chip's real capacity (v7x: 64 MiB,
    v5e/v6e: 128 MiB) with ~12 MiB headroom for compiler-internal scratch."""
    try:
        cap = int(getattr(pltpu.get_tpu_info(), "vmem_capacity_bytes", 64 << 20))
    except Exception:
        cap = 64 << 20
    hi = max(cap - (12 << 20), 16 << 20)
    return int(min(max(int(requested), 16 << 20), hi))


def _pick_tile(n, max_tile, unit=8, prefer_split=True):
    """Largest `unit`-multiple divisor of n that is <= max_tile; keeps >=2 grid
    steps when possible (megacore) and falls back to the full extent if n is
    not a multiple of `unit` (full-extent blocks are always legal)."""
    if n % unit != 0 or n <= unit:
        return n
    cap = min(max_tile, n)
    if prefer_split and n >= 2 * unit:
        cap = min(cap, n // 2)
    cap = max(unit, (cap // unit) * unit)
    for t in range(cap, unit - 1, -unit):
        if n % t == 0:
            return t
    return n


def _maybe_single_buffered(block_shape, index_map, single_buffer):
    # Grid-invariant operands: double-buffering buys nothing; at the real
    # FEAT=2048, halving the W_hh residency (24 MiB bf16) is what lets the GRU
    # fit v7x's 64 MiB VMEM without K-tiling.
    if single_buffer:
        return pl.BlockSpec(block_shape, index_map, pipeline_mode=pl.Buffered(1))
    return pl.BlockSpec(block_shape, index_map)


# ----------------------------------------------------------------------------
# Pallas kernels
# ----------------------------------------------------------------------------
def conv_pool_fc_kernel(p_ref, wc_ref, wf_ref, bf_ref, o_ref, acc_ref, *,
                        inv_spatial):
    # p:   (nb, st, Kp) bf16 im2col patch tile (nb images x st spatial rows)
    # wc:  (Kp, 128)    bf16 zero-padded conv1 weight
    # wf:  (128, FEAT)  bf16 zero-padded image-FC weight
    # bf:  (1, FEAT)    f32  image-FC bias
    # o:   (nb, FEAT)   bf16 pooled image features (written on last spatial step)
    # acc: (nb, 128)    f32  running pooled sum across the spatial grid axis
    j = pl.program_id(1)

    @pl.when(j == 0)
    def _():
        acc_ref[...] = jnp.zeros_like(acc_ref)

    nb, st, kp = p_ref.shape
    conv = jnp.maximum(
        jnp.dot(p_ref[...].reshape(nb * st, kp), wc_ref[...],
                preferred_element_type=jnp.float32),
        0.0,
    )                                                     # (nb*st, 128) f32
    acc_ref[...] += conv.reshape(nb, st, -1).sum(axis=1)

    @pl.when(j == pl.num_programs(1) - 1)
    def _():
        pooled = (acc_ref[...] * inv_spatial).astype(jnp.bfloat16)
        o_ref[...] = (
            jnp.dot(pooled, wf_ref[...], preferred_element_type=jnp.float32)
            + bf_ref[...]
        ).astype(o_ref.dtype)


def linear_kernel(x_ref, w_ref, b_ref, o_ref):
    # Generic row/col-tiled dense layer: o = x @ w + b (bf16 operands, f32 acc).
    x = x_ref[...]
    if x.dtype != jnp.bfloat16:
        x = x.astype(jnp.bfloat16)
    o_ref[...] = (
        jnp.dot(x, w_ref[...], preferred_element_type=jnp.float32) + b_ref[...]
    ).astype(o_ref.dtype)


def gru_kernel(gx_ref, x_ref, h0_ref, whh_ref, bhh_ref, y_ref, h_scr):
    # One grid step == one time step t (sequential carry in VMEM scratch).
    # gx already holds x_t @ W_ih^T + b_ih (hoisted out of the time loop).
    t = pl.program_id(0)

    @pl.when(t == 0)
    def _():
        h_scr[...] = h0_ref[...]

    h = h_scr[...]                              # (Bp, F) f32 carry
    f = h.shape[-1]
    gx = gx_ref[...]                            # (Bp, 3F) f32, b_ih folded in

    gh = (
        jnp.dot(h.astype(jnp.bfloat16), whh_ref[...],
                preferred_element_type=jnp.float32)
        + bhh_ref[...]
    )

    # PyTorch GRU gate order: r, z, n ; gate math kept in f32.
    r = jax.nn.sigmoid(gx[:, :f] + gh[:, :f])
    z = jax.nn.sigmoid(gx[:, f:2 * f] + gh[:, f:2 * f])
    n = jnp.tanh(gx[:, 2 * f:] + r * gh[:, 2 * f:])
    h_new = (1.0 - z) * n + z * h

    h_scr[...] = h_new
    # use_residual=True and hidden_size == feature size -> residual add.
    y_ref[...] = (h_new + x_ref[...].astype(jnp.float32)).astype(y_ref.dtype)


# ----------------------------------------------------------------------------
# pallas_call wrappers
# ----------------------------------------------------------------------------
def conv_pool_fc(patches, wc, wf, bf, *, feat, max_img_tile=32,
                 max_spatial_tile=256):
    n, s, kp = patches.shape
    cpad = wc.shape[1]
    # bf16 output rows -> image tile is a multiple of 16 sublanes (or full).
    nb = _pick_tile(n, max_img_tile, unit=16, prefer_split=True)
    st = _pick_tile(s, max_spatial_tile, unit=16, prefer_split=True)
    kernel = functools.partial(conv_pool_fc_kernel, inv_spatial=1.0 / s)
    vmem_req = (2 * nb * st * kp * 2          # patch blocks (bf16, double buf)
                + kp * cpad * 2 + cpad * feat * 2 + feat * 4   # weights/bias
                + 2 * nb * feat * 2           # output blocks (bf16)
                + nb * cpad * 4)              # pooled-sum scratch
    return pl.pallas_call(
        kernel,
        out_shape=jax.ShapeDtypeStruct((n, feat), jnp.bfloat16),
        grid=(n // nb, s // st),
        in_specs=[
            pl.BlockSpec((nb, st, kp), lambda i, j: (i, j, 0)),
            pl.BlockSpec(wc.shape, lambda i, j: (0, 0)),
            pl.BlockSpec(wf.shape, lambda i, j: (0, 0)),
            pl.BlockSpec(bf.shape, lambda i, j: (0, 0)),
        ],
        out_specs=pl.BlockSpec((nb, feat), lambda i, j: (i, 0)),
        scratch_shapes=[pltpu.VMEM((nb, cpad), jnp.float32)],
        compiler_params=pltpu.CompilerParams(
            dimension_semantics=("parallel", "arbitrary"),
            vmem_limit_bytes=_vmem_limit_bytes(2 * vmem_req),
        ),
    )(patches, wc, wf, bf)


def tiled_linear(x, w, b, *, out_dtype=jnp.float32, row_tile=512, col_tile=2048):
    rows, k = x.shape
    n = w.shape[1]
    unit = 16 if x.dtype == jnp.bfloat16 else 8
    rt = _pick_tile(rows, row_tile, unit=unit, prefer_split=True)
    tn = _pick_tile(n, col_tile, unit=128, prefer_split=False)
    out_size = jnp.dtype(out_dtype).itemsize
    vmem_req = 2 * (rt * k * x.dtype.itemsize + k * tn * w.dtype.itemsize
                    + tn * 4 + rt * tn * out_size)
    return pl.pallas_call(
        linear_kernel,
        out_shape=jax.ShapeDtypeStruct((rows, n), out_dtype),
        grid=(rows // rt, n // tn),
        in_specs=[
            pl.BlockSpec((rt, k), lambda i, j: (i, 0)),
            pl.BlockSpec((k, tn), lambda i, j: (0, j)),
            pl.BlockSpec((1, tn), lambda i, j: (0, j)),
        ],
        out_specs=pl.BlockSpec((rt, tn), lambda i, j: (i, j)),
        compiler_params=pltpu.CompilerParams(
            dimension_semantics=("parallel", "parallel"),
            vmem_limit_bytes=_vmem_limit_bytes(2 * vmem_req),
        ),
    )(x, w, b)


def gru_forward(gx_btf, x_btf, h0, whhT, bhh, *, seq_len, feat, single_buffer):
    # Column-blocked layout: gx (Bp, T*3F) f32, x (Bp, T*F) bf16 -> y (Bp, T*F)
    # bf16; no (T, B, F) transposes anywhere.
    Bp = x_btf.shape[0]
    F = feat
    T = seq_len
    whh_buf = 1 if single_buffer else 2
    vmem_req = (2 * Bp * 3 * F * 4            # gx blocks (f32)
                + 2 * Bp * F * 2 * 2          # x + y blocks (bf16)
                + whh_buf * (Bp * F * 4 + F * 3 * F * 2 + 3 * F * 4)  # invariants
                + Bp * F * 4)                 # carry scratch
    return pl.pallas_call(
        gru_kernel,
        out_shape=jax.ShapeDtypeStruct((Bp, T * F), jnp.bfloat16),
        grid=(T,),
        in_specs=[
            pl.BlockSpec((Bp, 3 * F), lambda t: (0, t)),
            pl.BlockSpec((Bp, F), lambda t: (0, t)),
            _maybe_single_buffered((Bp, F), lambda t: (0, 0), single_buffer),
            _maybe_single_buffered((F, 3 * F), lambda t: (0, 0), single_buffer),
            _maybe_single_buffered((1, 3 * F), lambda t: (0, 0), single_buffer),
        ],
        out_specs=pl.BlockSpec((Bp, F), lambda t: (0, t)),
        scratch_shapes=[pltpu.VMEM((Bp, F), jnp.float32)],
        compiler_params=pltpu.CompilerParams(
            dimension_semantics=("arbitrary",),
            vmem_limit_bytes=_vmem_limit_bytes(2 * vmem_req),
        ),
    )(gx_btf, x_btf, h0, whhT, bhh)


# ----------------------------------------------------------------------------
# Plain-JAX glue (geometry / reshapes)
# ----------------------------------------------------------------------------
def im2col_7x7_s2_p3(x, kp):
    # x: (N, C, H, W) -> bf16 patches (N, OH*OW, Kp) (K zero-padded to kp),
    # matching torch conv-weight layout (C-major, then the 7x7 taps).
    n, c, h, w = x.shape
    oh, ow = (h + 6 - 7) // 2 + 1, (w + 6 - 7) // 2 + 1
    xp = jnp.pad(x, ((0, 0), (0, 0), (3, 3), (3, 3)))
    cols = []
    for di in range(7):
        for dj in range(7):
            cols.append(xp[:, :, di:di + 2 * (oh - 1) + 1:2,
                           dj:dj + 2 * (ow - 1) + 1:2])
    patches = jnp.stack(cols, axis=2)                     # (N, C, 49, OH, OW)
    patches = patches.transpose(0, 3, 4, 1, 2)            # (N, OH, OW, C, 49)
    patches = patches.reshape(n, oh * ow, c * 49)
    patches = jnp.pad(patches, ((0, 0), (0, 0), (0, kp - c * 49)))
    return patches.astype(jnp.bfloat16), (oh, ow)


def rot6d_to_rotmat(x):
    x = x.reshape(-1, 3, 2)
    a1, a2 = x[..., 0], x[..., 1]
    b1 = a1 / (jnp.linalg.norm(a1, axis=-1, keepdims=True) + 1e-8)
    b2u = a2 - jnp.sum(b1 * a2, axis=-1, keepdims=True) * b1
    b2 = b2u / (jnp.linalg.norm(b2u, axis=-1, keepdims=True) + 1e-8)
    b3 = jnp.cross(b1, b2)
    return jnp.stack([b1, b2, b3], axis=-1)               # (M, 3, 3)


def batch_rodrigues(theta):
    # theta: (M, 3) axis-angle -> (M, 3, 3) rotation matrices
    angle = jnp.linalg.norm(theta + 1e-8, axis=1, keepdims=True)
    axis = theta / angle
    ax, ay, az = axis[:, 0], axis[:, 1], axis[:, 2]
    zeros = jnp.zeros_like(ax)
    K = jnp.stack(
        [zeros, -az, ay, az, zeros, -ax, -ay, ax, zeros], axis=1
    ).reshape(-1, 3, 3)
    c = jnp.cos(angle)[..., None]
    s = jnp.sin(angle)[..., None]
    eye = jnp.eye(3, dtype=theta.dtype)[None]
    return eye + s * K + (1.0 - c) * jnp.matmul(K, K)


def delta_rotmat_to_rotmat(init_R, delta_R):
    # TODO(synk): delta_rotmat_to_rotmat source not provided; assume cumulative
    # composition R_t = delta_t @ R_{t-1}, R_{-1} = init.
    def step(r_prev, dr_t):
        r_t = jnp.einsum("bkij,bkjl->bkil", dr_t, r_prev)
        return r_t, r_t

    _, rs = jax.lax.scan(step, init_R, jnp.moveaxis(delta_R, 1, 0))
    return jnp.moveaxis(rs, 0, 1)                          # (B, T, 24, 3, 3)


# ----------------------------------------------------------------------------
# EventTrackNet forward
# ----------------------------------------------------------------------------
def event_track_net_forward(params, events, init_shape, pred_flow, hidden_feats,
                            pose_dim=24 * 6, gru_single_buffer=True):
    B, T, C_ev, H, W = events.shape
    FEAT = hidden_feats.shape[-1]
    N = B * T

    # --- image encoder (stand-in for ResNet-50), fused conv1+pool+fc ---------
    if pred_flow is not None:
        x = jnp.concatenate([events, pred_flow], axis=2).reshape(N, -1, H, W)
    else:
        x = events.reshape(N, C_ev, H, W)
    kp = params["conv1_wT"].shape[0]
    patches, _ = im2col_7x7_s2_p3(x, kp)
    feats = conv_pool_fc(
        patches, params["conv1_wT"], params["fc_img_wT"], params["fc_img_b"],
        feat=FEAT,
    )                                                      # (B*T, FEAT) bf16

    # --- GRU input projection hoisted out of the time loop -------------------
    gx = tiled_linear(feats, params["gru_wihT"], params["gru_bih"],
                      out_dtype=jnp.float32)               # (N, 3F) f32

    # --- temporal encoder (GRU, batch_first, 1 layer, unidirectional) --------
    # Column-blocked (B, T*F)/(B, T*3F) layouts (free reshapes; rows already
    # b-major); batch padded to 8 sublanes for unmasked per-step stores.
    Bp = max(8, _round_up(B, 8))
    pad = Bp - B
    feats_bt = jnp.pad(feats.reshape(B, T * FEAT), ((0, pad), (0, 0)))
    gx_bt = jnp.pad(gx.reshape(B, T * 3 * FEAT), ((0, pad), (0, 0)))
    h0 = jnp.pad(hidden_feats, ((0, pad), (0, 0)))
    y_bt = gru_forward(gx_bt, feats_bt, h0,
                       params["gru_whhT"], params["gru_bhh"],
                       seq_len=T, feat=FEAT, single_buffer=gru_single_buffer)
    y = y_bt[:B].reshape(N, FEAT)                          # (B*T, F) bf16

    # --- regressor heads (merged decpose+dectrans, lane-dense padded) --------
    head = tiled_linear(y, params["dec_wT"], params["dec_b"],
                        out_dtype=jnp.float32)             # (N, 256) f32
    delta_pose = head[:, :pose_dim].reshape(B, T, pose_dim)
    delta_tran = head[:, pose_dim:pose_dim + 3].reshape(B, T, 3)

    # --- pose / translation composition --------------------------------------
    trans = init_shape[:, :, 0:3] + jnp.cumsum(delta_tran, axis=1)
    trans = trans[:, :, None, :]                           # (B, T, 1, 3)

    delta_rotmats = rot6d_to_rotmat(delta_pose).reshape(B, T, 24, 3, 3)
    init_rotmats = batch_rodrigues(
        init_shape[:, 0, 3:75].reshape(-1, 3)).reshape(B, 24, 3, 3)
    pred_rotmats = delta_rotmat_to_rotmat(init_rotmats, delta_rotmats)

    # TODO(synk): SMPL skinning (verts / joints3d) requires the external SMPL
    # model file and is not translated; cam_intr is None so joints2d is skipped.
    return {
        "delta_tran": delta_tran,
        "pred_rotmats": pred_rotmats,
        "tran": trans,
    }


# ----------------------------------------------------------------------------
# Deterministic parameter init + demo run
# ----------------------------------------------------------------------------
def init_params(key, in_ch, feat, pose_dim):
    ks = jax.random.split(key, 6)
    s = 0.02
    k_conv = in_ch * 49
    kp = _round_up(k_conv, 128)          # 490 -> 512
    cout, cout_pad = 64, 128             # conv1 channels padded 64 -> 128 (one MXU tile)
    head = pose_dim + 3
    head_pad = _round_up(head, 128)      # 147 -> 256

    # conv1: (64, in_ch, 7, 7) -> matmul form (in_ch*49, 64), zero-padded
    conv_w = s * jax.random.normal(ks[0], (cout, in_ch, 7, 7), jnp.float32)
    conv_wT = jnp.zeros((kp, cout_pad), jnp.float32)
    conv_wT = conv_wT.at[:k_conv, :cout].set(conv_w.reshape(cout, k_conv).T)

    # image FC: (64, feat) zero-padded to (128, feat); padded rows are inert
    fc_w = jnp.zeros((cout_pad, feat), jnp.float32)
    fc_w = fc_w.at[:cout, :].set(
        s * jax.random.normal(ks[1], (cout, feat), jnp.float32))

    # merged regressor head: decpose (feat, 144) ++ dectrans (feat, 3), padded
    dec_w = jnp.zeros((feat, head_pad), jnp.float32)
    dec_w = dec_w.at[:, :pose_dim].set(
        s * jax.random.normal(ks[4], (feat, pose_dim), jnp.float32))
    dec_w = dec_w.at[:, pose_dim:head].set(
        s * jax.random.normal(ks[5], (feat, 3), jnp.float32))

    return {
        "conv1_wT": conv_wT.astype(jnp.bfloat16),
        "fc_img_wT": fc_w.astype(jnp.bfloat16),
        "fc_img_b": jnp.zeros((1, feat), jnp.float32),
        # GRU: torch weight_ih (3F, F) -> transposed (F, 3F); gate order r,z,n
        "gru_wihT": (s * jax.random.normal(ks[2], (feat, 3 * feat), jnp.float32)
                     ).astype(jnp.bfloat16),
        "gru_whhT": (s * jax.random.normal(ks[3], (feat, 3 * feat), jnp.float32)
                     ).astype(jnp.bfloat16),
        "gru_bih": jnp.zeros((1, 3 * feat), jnp.float32),
        "gru_bhh": jnp.zeros((1, 3 * feat), jnp.float32),
        "dec_wT": dec_w.astype(jnp.bfloat16),
        "dec_b": jnp.zeros((1, head_pad), jnp.float32),
    }


if __name__ == "__main__":
    B, T = 2, 8
    C_EV, C_FLOW = 8, 2
    H = W = 16
    FEAT = 256          # stand-in for the module's 2048-dim feature/hidden size
    POSE_DIM = 24 * 6

    key = jax.random.PRNGKey(0)
    k_ev, k_fl, k_init, k_h, k_p = jax.random.split(key, 5)

    events = jax.random.normal(k_ev, (B, T, C_EV, H, W), jnp.float32)
    pred_flow = jax.random.normal(k_fl, (B, T, C_FLOW, H, W), jnp.float32)
    init_shape = 0.1 * jax.random.normal(k_init, (B, 1, 85), jnp.float32)
    hidden_feats = jax.random.normal(k_h, (B, FEAT), jnp.float32)

    params = init_params(k_p, C_EV + C_FLOW, FEAT, POSE_DIM)

    def run(single_buffer):
        fwd = jax.jit(functools.partial(event_track_net_forward, params,
                                        gru_single_buffer=single_buffer))
        out = fwd(events, init_shape, pred_flow, hidden_feats)
        jax.block_until_ready(out)
        return out

    try:
        results = run(True)
    except Exception:
        # Fallback: if pipeline_mode=pl.Buffered(1) is rejected by this
        # jax/libtpu build, rerun with default double-buffering of the
        # grid-invariant GRU operands (identical semantics).
        results = run(False)

    assert results["delta_tran"].shape == (B, T, 3)
    assert results["pred_rotmats"].shape == (B, T, 24, 3, 3)
    assert results["tran"].shape == (B, T, 1, 3)
    print("KERNEL_OK")
</pallas_src>

<mosaic_0001>
module attributes {stable_mosaic.version = 11 : i64} {
  func.func @conv_pool_fc_kernel(%arg0: i32, %arg1: i32, %arg2: memref<16x32x512xbf16, #tpu.memory_space<vmem>>, %arg3: memref<512x128xbf16, #tpu.memory_space<vmem>>, %arg4: memref<128x256xbf16, #tpu.memory_space<vmem>>, %arg5: memref<1x256xf32, #tpu.memory_space<vmem>>, %arg6: memref<16x256xbf16, #tpu.memory_space<vmem>>, %arg7: memref<16x128xf32, #tpu.memory_space<vmem>>) attributes {dimension_semantics = [#tpu.dimension_semantics<parallel>, #tpu.dimension_semantics<arbitrary>], iteration_bounds = array<i64: 1, 2>, scalar_prefetch = 0 : i64, scratch_operands = 1 : i64, tpu.core_type = #tpu.core_type<tc>, window_params = [{transform_indices = @transform_0, window_bounds = array<i64: 16, 32, 512>}, {pipeline_mode = #tpu.pipeline_mode<synchronous>, transform_indices = @transform_1, window_bounds = array<i64: 512, 128>}, {pipeline_mode = #tpu.pipeline_mode<synchronous>, transform_indices = @transform_2, window_bounds = array<i64: 128, 256>}, {pipeline_mode = #tpu.pipeline_mode<synchronous>, transform_indices = @transform_3, window_bounds = array<i64: 1, 256>}, {transform_indices = @transform_4, window_bounds = array<i64: 16, 256>}]} {
    %c0_i32 = arith.constant 0 : i32
    %0 = arith.cmpi eq, %arg1, %c0_i32 : i32
    %1 = arith.extui %0 : i1 to i32
    %c0_i32_0 = arith.constant 0 : i32
    %2 = arith.cmpi ne, %1, %c0_i32_0 : i32
    scf.if %2 {
      %cst_12 = arith.constant 0.000000e+00 : f32
      %17 = vector.broadcast %cst_12 : f32 to vector<16x128xf32>
      %c0_13 = arith.constant 0 : index
      %c0_14 = arith.constant 0 : index
      %18 = vector.load %arg7[%c0_13, %c0_14] : memref<16x128xf32, #tpu.memory_space<vmem>>, vector<16x128xf32>
      tpu.vector_store %arg7[%c0_13, %c0_14], %17 {strides = array<i32>} : memref<16x128xf32, #tpu.memory_space<vmem>>, vector<16x128xf32>,
    } else {
    }
    %c0 = arith.constant 0 : index
    %c0_1 = arith.constant 0 : index
    %c0_2 = arith.constant 0 : index
    %3 = vector.load %arg2[%c0, %c0_1, %c0_2] : memref<16x32x512xbf16, #tpu.memory_space<vmem>>, vector<16x32x512xbf16>
    %4 = vector.shape_cast %3 : vector<16x32x512xbf16> to vector<512x512xbf16>
    %c0_3 = arith.constant 0 : index
    %c0_4 = arith.constant 0 : index
    %5 = vector.load %arg3[%c0_3, %c0_4] : memref<512x128xbf16, #tpu.memory_space<vmem>>, vector<512x128xbf16>
    %cst = arith.constant dense<0.000000e+00> : vector<512x128xf32>
    %6 = tpu.matmul %4, %5, %cst {dimension_numbers = #tpu.dot_dimension_numbers<[1], [0], [0], [1], [0, 0, 1, 1], [], []>} : vector<512x512xbf16>, vector<512x128xbf16>, vector<512x128xf32> -> vector<512x128xf32>
    %cst_5 = arith.constant 0.000000e+00 : f32
    %7 = vector.broadcast %cst_5 : f32 to vector<512x128xf32>
    %8 = arith.maximumf %6, %7 : vector<512x128xf32>
    %c0_6 = arith.constant 0 : index
    %c0_7 = arith.constant 0 : index
    %9 = vector.load %arg7[%c0_6, %c0_7] : memref<16x128xf32, #tpu.memory_space<vmem>>, vector<16x128xf32>
    %10 = vector.shape_cast %8 : vector<512x128xf32> to vector<16x32x128xf32>
    %cst_8 = arith.constant dense<0.000000e+00> : vector<16x128xf32>
    %11 = vector.multi_reduction <add>, %10, %cst_8 [1] : vector<16x32x128xf32> to vector<16x128xf32>
    %12 = arith.addf %9, %11 : vector<16x128xf32>
    %c0_9 = arith.constant 0 : index
    %c0_10 = arith.constant 0 : index
    %13 = vector.load %arg7[%c0_9, %c0_10] : memref<16x128xf32, #tpu.memory_space<vmem>>, vector<16x128xf32>
    tpu.vector_store %arg7[%c0_9, %c0_10], %12 {strides = array<i32>} : memref<16x128xf32, #tpu.memory_space<vmem>>, vector<16x128xf32>,
    %c1_i32 = arith.constant 1 : i32
    %14 = arith.cmpi eq, %arg1, %c1_i32 : i32
    %15 = arith.extui %14 : i1 to i32
    %c0_i32_11 = arith.constant 0 : i32
    %16 = arith.cmpi ne, %15, %c0_i32_11 : i32
    scf.if %16 {
      %c0_12 = arith.constant 0 : index
      %c0_13 = arith.constant 0 : index
      %17 = vector.load %arg7[%c0_12, %c0_13] : memref<16x128xf32, #tpu.memory_space<vmem>>, vector<16x128xf32>
      %cst_14 = arith.constant 1.562500e-02 : f32
      %18 = vector.broadcast %cst_14 : f32 to vector<16x128xf32>
      %19 = arith.mulf %17, %18 : vector<16x128xf32>
      %20 = arith.truncf %19 : vector<16x128xf32> to vector<16x128xbf16>
      %c0_15 = arith.constant 0 : index
      %c0_16 = arith.constant 0 : index
      %21 = vector.load %arg4[%c0_15, %c0_16] : memref<128x256xbf16, #tpu.memory_space<vmem>>, vector<128x256xbf16>
      %cst_17 = arith.constant dense<0.000000e+00> : vector<16x256xf32>
      %22 = tpu.matmul %20, %21, %cst_17 {dimension_numbers = #tpu.dot_dimension_numbers<[1], [0], [0], [1], [0, 0, 1, 1], [], []>} : vector<16x128xbf16>, vector<128x256xbf16>, vector<16x256xf32> -> vector<16x256xf32>
      %c0_18 = arith.constant 0 : index
      %c0_19 = arith.constant 0 : index
      %23 = vector.load %arg5[%c0_18, %c0_19] : memref<1x256xf32, #tpu.memory_space<vmem>>, vector<1x256xf32>
      %24 = vector.broadcast %23 : vector<1x256xf32> to vector<16x256xf32>
      %25 = arith.addf %22, %24 : vector<16x256xf32>
      %26 = arith.truncf %25 : vector<16x256xf32> to vector<16x256xbf16>
      %c0_20 = arith.constant 0 : index
      %c0_21 = arith.constant 0 : index
      %27 = vector.load %arg6[%c0_20, %c0_21] : memref<16x256xbf16, #tpu.memory_space<vmem>>, vector<16x256xbf16>
      tpu.vector_store %arg6[%c0_20, %c0_21], %26 {strides = array<i32>} : memref<16x256xbf16, #tpu.memory_space<vmem>>, vector<16x256xbf16>,
    } else {
    }
    return
  }
  func.func @transform_0(%arg0: i32, %arg1: i32) -> (i32, i32, i32) {
    %c0_i32 = arith.constant 0 : i32
    %c0_i32_0 = arith.constant 0 : i32
    return %arg0, %arg1, %c0_i32 : i32, i32, i32
  }
  func.func @transform_1(%arg0: i32, %arg1: i32) -> (i32, i32) {
    %c0_i32 = arith.constant 0 : i32
    %c0_i32_0 = arith.constant 0 : i32
    %c0_i32_1 = arith.constant 0 : i32
    return %c0_i32, %c0_i32_0 : i32, i32
  }
  func.func @transform_2(%arg0: i32, %arg1: i32) -> (i32, i32) {
    %c0_i32 = arith.constant 0 : i32
    %c0_i32_0 = arith.constant 0 : i32
    %c0_i32_1 = arith.constant 0 : i32
    return %c0_i32, %c0_i32_0 : i32, i32
  }
  func.func @transform_3(%arg0: i32, %arg1: i32) -> (i32, i32) {
    %c0_i32 = arith.constant 0 : i32
    %c0_i32_0 = arith.constant 0 : i32
    %c0_i32_1 = arith.constant 0 : i32
    return %c0_i32, %c0_i32_0 : i32, i32
  }
  func.func @transform_4(%arg0: i32, %arg1: i32) -> (i32, i32) {
    %c0_i32 = arith.constant 0 : i32
    %c0_i32_0 = arith.constant 0 : i32
    return %arg0, %c0_i32 : i32, i32
  }
}

module attributes {stable_mosaic.version = 11 : i64} {
  func.func @linear_kernel(%arg0: i32, %arg1: i32, %arg2: memref<16x256xbf16, #tpu.memory_space<vmem>>, %arg3: memref<256x768xbf16, #tpu.memory_space<vmem>>, %arg4: memref<1x768xf32, #tpu.memory_space<vmem>>, %arg5: memref<16x768xf32, #tpu.memory_space<vmem>>) attributes {dimension_semantics = [#tpu.dimension_semantics<parallel>, #tpu.dimension_semantics<parallel>], iteration_bounds = array<i64: 1, 1>, scalar_prefetch = 0 : i64, scratch_operands = 0 : i64, tpu.core_type = #tpu.core_type<tc>, window_params = [{transform_indices = @transform_0, window_bounds = array<i64: 16, 256>}, {transform_indices = @transform_1, window_bounds = array<i64: 256, 768>}, {transform_indices = @transform_2, window_bounds = array<i64: 1, 768>}, {transform_indices = @transform_3, window_bounds = array<i64: 16, 768>}]} {
    %c0 = arith.constant 0 : index
    %c0_0 = arith.constant 0 : index
    %0 = vector.load %arg2[%c0, %c0_0] : memref<16x256xbf16, #tpu.memory_space<vmem>>, vector<16x256xbf16>
    %c0_1 = arith.constant 0 : index
    %c0_2 = arith.constant 0 : index
    %1 = vector.load %arg3[%c0_1, %c0_2] : memref<256x768xbf16, #tpu.memory_space<vmem>>, vector<256x768xbf16>
    %cst = arith.constant dense<0.000000e+00> : vector<16x768xf32>
    %2 = tpu.matmul %0, %1, %cst {dimension_numbers = #tpu.dot_dimension_numbers<[1], [0], [0], [1], [0, 0, 1, 1], [], []>} : vector<16x256xbf16>, vector<256x768xbf16>, vector<16x768xf32> -> vector<16x768xf32>
    %c0_3 = arith.constant 0 : index
    %c0_4 = arith.constant 0 : index
    %3 = vector.load %arg4[%c0_3, %c0_4] : memref<1x768xf32, #tpu.memory_space<vmem>>, vector<1x768xf32>
    %4 = vector.broadcast %3 : vector<1x768xf32> to vector<16x768xf32>
    %5 = arith.addf %2, %4 : vector<16x768xf32>
    %c0_5 = arith.constant 0 : index
    %c0_6 = arith.constant 0 : index
    %6 = vector.load %arg5[%c0_5, %c0_6] : memref<16x768xf32, #tpu.memory_space<vmem>>, vector<16x768xf32>
    tpu.vector_store %arg5[%c0_5, %c0_6], %5 {strides = array<i32>} : memref<16x768xf32, #tpu.memory_space<vmem>>, vector<16x768xf32>,
    return
  }
  func.func @transform_0(%arg0: i32, %arg1: i32) -> (i32, i32) {
    %c0_i32 = arith.constant 0 : i32
    %c0_i32_0 = arith.constant 0 : i32
    return %arg0, %c0_i32 : i32, i32
  }
  func.func @transform_1(%arg0: i32, %arg1: i32) -> (i32, i32) {
    %c0_i32 = arith.constant 0 : i32
    %c0_i32_0 = arith.constant 0 : i32
    return %c0_i32, %arg1 : i32, i32
  }
  func.func @transform_2(%arg0: i32, %arg1: i32) -> (i32, i32) {
    %c0_i32 = arith.constant 0 : i32
    %c0_i32_0 = arith.constant 0 : i32
    return %c0_i32, %arg1 : i32, i32
  }
  func.func @transform_3(%arg0: i32, %arg1: i32) -> (i32, i32) {
    %c0_i32 = arith.constant 0 : i32
    return %arg0, %arg1 : i32, i32
  }
}

module attributes {stable_mosaic.version = 11 : i64} {
  func.func @gru_kernel(%arg0: i32, %arg1: memref<8x768xf32, #tpu.memory_space<vmem>>, %arg2: memref<8x256xbf16, #tpu.memory_space<vmem>>, %arg3: memref<8x256xf32, #tpu.memory_space<vmem>>, %arg4: memref<256x768xbf16, #tpu.memory_space<vmem>>, %arg5: memref<1x768xf32, #tpu.memory_space<vmem>>, %arg6: memref<8x256xbf16, #tpu.memory_space<vmem>>, %arg7: memref<8x256xf32, #tpu.memory_space<vmem>>) attributes {dimension_semantics = [#tpu.dimension_semantics<arbitrary>], iteration_bounds = array<i64: 8>, scalar_prefetch = 0 : i64, scratch_operands = 1 : i64, tpu.core_type = #tpu.core_type<tc>, window_params = [{transform_indices = @transform_0, window_bounds = array<i64: 8, 768>}, {transform_indices = @transform_1, window_bounds = array<i64: 8, 256>}, {pipeline_mode = #tpu.pipeline_mode<synchronous>, transform_indices = @transform_2, window_bounds = array<i64: 8, 256>}, {pipeline_mode = #tpu.pipeline_mode<synchronous>, transform_indices = @transform_3, window_bounds = array<i64: 256, 768>}, {pipeline_mode = #tpu.pipeline_mode<synchronous>, transform_indices = @transform_4, window_bounds = array<i64: 1, 768>}, {transform_indices = @transform_5, window_bounds = array<i64: 8, 256>}]} {
    %c0_i32 = arith.constant 0 : i32
    %0 = arith.cmpi eq, %arg0, %c0_i32 : i32
    %1 = arith.extui %0 : i1 to i32
    %c0_i32_0 = arith.constant 0 : i32
    %2 = arith.cmpi ne, %1, %c0_i32_0 : i32
    scf.if %2 {
      %c0_17 = arith.constant 0 : index
      %c0_18 = arith.constant 0 : index
      %43 = vector.load %arg3[%c0_17, %c0_18] : memref<8x256xf32, #tpu.memory_space<vmem>>, vector<8x256xf32>
      %c0_19 = arith.constant 0 : index
      %c0_20 = arith.constant 0 : index
      %44 = vector.load %arg7[%c0_19, %c0_20] : memref<8x256xf32, #tpu.memory_space<vmem>>, vector<8x256xf32>
      tpu.vector_store %arg7[%c0_19, %c0_20], %43 {strides = array<i32>} : memref<8x256xf32, #tpu.memory_space<vmem>>, vector<8x256xf32>,
    } else {
    }
    %c0 = arith.constant 0 : index
    %c0_1 = arith.constant 0 : index
    %3 = vector.load %arg7[%c0, %c0_1] : memref<8x256xf32, #tpu.memory_space<vmem>>, vector<8x256xf32>
    %c0_2 = arith.constant 0 : index
    %c0_3 = arith.constant 0 : index
    %4 = vector.load %arg1[%c0_2, %c0_3] : memref<8x768xf32, #tpu.memory_space<vmem>>, vector<8x768xf32>
    %5 = arith.truncf %3 : vector<8x256xf32> to vector<8x256xbf16>
    %c0_4 = arith.constant 0 : index
    %c0_5 = arith.constant 0 : index
    %6 = vector.load %arg4[%c0_4, %c0_5] : memref<256x768xbf16, #tpu.memory_space<vmem>>, vector<256x768xbf16>
    %cst = arith.constant dense<0.000000e+00> : vector<8x768xf32>
    %7 = tpu.matmul %5, %6, %cst {dimension_numbers = #tpu.dot_dimension_numbers<[1], [0], [0], [1], [0, 0, 1, 1], [], []>} : vector<8x256xbf16>, vector<256x768xbf16>, vector<8x768xf32> -> vector<8x768xf32>
    %c0_6 = arith.constant 0 : index
    %c0_7 = arith.constant 0 : index
    %8 = vector.load %arg5[%c0_6, %c0_7] : memref<1x768xf32, #tpu.memory_space<vmem>>, vector<1x768xf32>
    %9 = vector.broadcast %8 : vector<1x768xf32> to vector<8x768xf32>
    %10 = arith.addf %7, %9 : vector<8x768xf32>
    %11 = vector.extract_strided_slice %4 {offsets = [0, 0], sizes = [8, 256], strides = [1, 1]} : vector<8x768xf32> to vector<8x256xf32>
    %12 = vector.extract_strided_slice %10 {offsets = [0, 0], sizes = [8, 256], strides = [1, 1]} : vector<8x768xf32> to vector<8x256xf32>
    %13 = arith.addf %11, %12 : vector<8x256xf32>
    %14 = arith.negf %13 : vector<8x256xf32>
    %15 = math.exp %14 : vector<8x256xf32>
    %cst_8 = arith.constant 1.000000e+00 : f32
    %16 = vector.broadcast %cst_8 : f32 to vector<8x256xf32>
    %17 = arith.addf %16, %15 : vector<8x256xf32>
    %18 = arith.divf %16, %17 : vector<8x256xf32>
    %19 = vector.extract_strided_slice %4 {offsets = [0, 256], sizes = [8, 256], strides = [1, 1]} : vector<8x768xf32> to vector<8x256xf32>
    %20 = vector.extract_strided_slice %10 {offsets = [0, 256], sizes = [8, 256], strides = [1, 1]} : vector<8x768xf32> to vector<8x256xf32>
    %21 = arith.addf %19, %20 : vector<8x256xf32>
    %22 = arith.negf %21 : vector<8x256xf32>
    %23 = math.exp %22 : vector<8x256xf32>
    %cst_9 = arith.constant 1.000000e+00 : f32
    %24 = vector.broadcast %cst_9 : f32 to vector<8x256xf32>
    %25 = arith.addf %24, %23 : vector<8x256xf32>
    %26 = arith.divf %24, %25 : vector<8x256xf32>
    %27 = vector.extract_strided_slice %4 {offsets = [0, 512], sizes = [8, 256], strides = [1, 1]} : vector<8x768xf32> to vector<8x256xf32>
    %28 = vector.extract_strided_slice %10 {offsets = [0, 512], sizes = [8, 256], strides = [1, 1]} : vector<8x768xf32> to vector<8x256xf32>
    %29 = arith.mulf %18, %28 : vector<8x256xf32>
    %30 = arith.addf %27, %29 : vector<8x256xf32>
    %31 = math.tanh %30 : vector<8x256xf32>
    %cst_10 = arith.constant 1.000000e+00 : f32
    %32 = vector.broadcast %cst_10 : f32 to vector<8x256xf32>
    %33 = arith.subf %32, %26 : vector<8x256xf32>
    %34 = arith.mulf %33, %31 : vector<8x256xf32>
    %35 = arith.mulf %26, %3 : vector<8x256xf32>
    %36 = arith.addf %34, %35 : vector<8x256xf32>
    %c0_11 = arith.constant 0 : index
    %c0_12 = arith.constant 0 : index
    %37 = vector.load %arg7[%c0_11, %c0_12] : memref<8x256xf32, #tpu.memory_space<vmem>>, vector<8x256xf32>
    tpu.vector_store %arg7[%c0_11, %c0_12], %36 {strides = array<i32>} : memref<8x256xf32, #tpu.memory_space<vmem>>, vector<8x256xf32>,
    %c0_13 = arith.constant 0 : index
    %c0_14 = arith.constant 0 : index
    %38 = vector.load %arg2[%c0_13, %c0_14] : memref<8x256xbf16, #tpu.memory_space<vmem>>, vector<8x256xbf16>
    %39 = arith.extf %38 : vector<8x256xbf16> to vector<8x256xf32>
    %40 = arith.addf %36, %39 : vector<8x256xf32>
    %41 = arith.truncf %40 : vector<8x256xf32> to vector<8x256xbf16>
    %c0_15 = arith.constant 0 : index
    %c0_16 = arith.constant 0 : index
    %42 = vector.load %arg6[%c0_15, %c0_16] : memref<8x256xbf16, #tpu.memory_space<vmem>>, vector<8x256xbf16>
    tpu.vector_store %arg6[%c0_15, %c0_16], %41 {strides = array<i32>} : memref<8x256xbf16, #tpu.memory_space<vmem>>, vector<8x256xbf16>,
    return
  }
  func.func @transform_0(%arg0: i32) -> (i32, i32) {
    %c0_i32 = arith.constant 0 : i32
    %c0_i32_0 = arith.constant 0 : i32
    return %c0_i32, %arg0 : i32, i32
  }
  func.func @transform_1(%arg0: i32) -> (i32, i32) {
    %c0_i32 = arith.constant 0 : i32
    %c0_i32_0 = arith.constant 0 : i32
    return %c0_i32, %arg0 : i32, i32
  }
  func.func @transform_2(%arg0: i32) -> (i32, i32) {
    %c0_i32 = arith.constant 0 : i32
    %c0_i32_0 = arith.constant 0 : i32
    %c0_i32_1 = arith.constant 0 : i32
    return %c0_i32, %c0_i32_0 : i32, i32
  }
  func.func @transform_3(%arg0: i32) -> (i32, i32) {
    %c0_i32 = arith.constant 0 : i32
    %c0_i32_0 = arith.constant 0 : i32
    %c0_i32_1 = arith.constant 0 : i32
    return %c0_i32, %c0_i32_0 : i32, i32
  }
  func.func @transform_4(%arg0: i32) -> (i32, i32) {
    %c0_i32 = arith.constant 0 : i32
    %c0_i32_0 = arith.constant 0 : i32
    %c0_i32_1 = arith.constant 0 : i32
    return %c0_i32, %c0_i32_0 : i32, i32
  }
  func.func @transform_5(%arg0: i32) -> (i32, i32) {
    %c0_i32 = arith.constant 0 : i32
    %c0_i32_0 = arith.constant 0 : i32
    return %c0_i32, %arg0 : i32, i32
  }
}

module attributes {stable_mosaic.version = 11 : i64} {
  func.func @linear_kernel(%arg0: i32, %arg1: i32, %arg2: memref<16x256xbf16, #tpu.memory_space<vmem>>, %arg3: memref<256x256xbf16, #tpu.memory_space<vmem>>, %arg4: memref<1x256xf32, #tpu.memory_space<vmem>>, %arg5: memref<16x256xf32, #tpu.memory_space<vmem>>) attributes {dimension_semantics = [#tpu.dimension_semantics<parallel>, #tpu.dimension_semantics<parallel>], iteration_bounds = array<i64: 1, 1>, scalar_prefetch = 0 : i64, scratch_operands = 0 : i64, tpu.core_type = #tpu.core_type<tc>, window_params = [{transform_indices = @transform_0, window_bounds = array<i64: 16, 256>}, {transform_indices = @transform_1, window_bounds = array<i64: 256, 256>}, {transform_indices = @transform_2, window_bounds = array<i64: 1, 256>}, {transform_indices = @transform_3, window_bounds = array<i64: 16, 256>}]} {
    %c0 = arith.constant 0 : index
    %c0_0 = arith.constant 0 : index
    %0 = vector.load %arg2[%c0, %c0_0] : memref<16x256xbf16, #tpu.memory_space<vmem>>, vector<16x256xbf16>
    %c0_1 = arith.constant 0 : index
    %c0_2 = arith.constant 0 : index
    %1 = vector.load %arg3[%c0_1, %c0_2] : memref<256x256xbf16, #tpu.memory_space<vmem>>, vector<256x256xbf16>
    %cst = arith.constant dense<0.000000e+00> : vector<16x256xf32>
    %2 = tpu.matmul %0, %1, %cst {dimension_numbers = #tpu.dot_dimension_numbers<[1], [0], [0], [1], [0, 0, 1, 1], [], []>} : vector<16x256xbf16>, vector<256x256xbf16>, vector<16x256xf32> -> vector<16x256xf32>
    %c0_3 = arith.constant 0 : index
    %c0_4 = arith.constant 0 : index
    %3 = vector.load %arg4[%c0_3, %c0_4] : memref<1x256xf32, #tpu.memory_space<vmem>>, vector<1x256xf32>
    %4 = vector.broadcast %3 : vector<1x256xf32> to vector<16x256xf32>
    %5 = arith.addf %2, %4 : vector<16x256xf32>
    %c0_5 = arith.constant 0 : index
    %c0_6 = arith.constant 0 : index
    %6 = vector.load %arg5[%c0_5, %c0_6] : memref<16x256xf32, #tpu.memory_space<vmem>>, vector<16x256xf32>
    tpu.vector_store %arg5[%c0_5, %c0_6], %5 {strides = array<i32>} : memref<16x256xf32, #tpu.memory_space<vmem>>, vector<16x256xf32>,
    return
  }
  func.func @transform_0(%arg0: i32, %arg1: i32) -> (i32, i32) {
    %c0_i32 = arith.constant 0 : i32
    %c0_i32_0 = arith.constant 0 : i32
    return %arg0, %c0_i32 : i32, i32
  }
  func.func @transform_1(%arg0: i32, %arg1: i32) -> (i32, i32) {
    %c0_i32 = arith.constant 0 : i32
    %c0_i32_0 = arith.constant 0 : i32
    return %c0_i32, %arg1 : i32, i32
  }
  func.func @transform_2(%arg0: i32, %arg1: i32) -> (i32, i32) {
    %c0_i32 = arith.constant 0 : i32
    %c0_i32_0 = arith.constant 0 : i32
    return %c0_i32, %arg1 : i32, i32
  }
  func.func @transform_3(%arg0: i32, %arg1: i32) -> (i32, i32) {
    %c0_i32 = arith.constant 0 : i32
    return %arg0, %arg1 : i32, i32
  }
}

module attributes {stable_mosaic.version = 11 : i64} {
  func.func @conv_pool_fc_kernel(%arg0: i32, %arg1: i32, %arg2: memref<16x32x512xbf16, #tpu.memory_space<vmem>>, %arg3: memref<512x128xbf16, #tpu.memory_space<vmem>>, %arg4: memref<128x256xbf16, #tpu.memory_space<vmem>>, %arg5: memref<1x256xf32, #tpu.memory_space<vmem>>, %arg6: memref<16x256xbf16, #tpu.memory_space<vmem>>, %arg7: memref<16x128xf32, #tpu.memory_space<vmem>>) attributes {dimension_semantics = [#tpu.dimension_semantics<parallel>, #tpu.dimension_semantics<arbitrary>], iteration_bounds = array<i64: 1, 2>, scalar_prefetch = 0 : i64, scratch_operands = 1 : i64, tpu.core_type = #tpu.core_type<tc>, window_params = [{transform_indices = @transform_0, window_bounds = array<i64: 16, 32, 512>}, {pipeline_mode = #tpu.pipeline_mode<synchronous>, transform_indices = @transform_1, window_bounds = array<i64: 512, 128>}, {pipeline_mode = #tpu.pipeline_mode<synchronous>, transform_indices = @transform_2, window_bounds = array<i64: 128, 256>}, {pipeline_mode = #tpu.pipeline_mode<synchronous>, transform_indices = @transform_3, window_bounds = array<i64: 1, 256>}, {transform_indices = @transform_4, window_bounds = array<i64: 16, 256>}]} {
    %c0_i32 = arith.constant 0 : i32
    %0 = arith.cmpi eq, %arg1, %c0_i32 : i32
    %1 = arith.extui %0 : i1 to i32
    %c0_i32_0 = arith.constant 0 : i32
    %2 = arith.cmpi ne, %1, %c0_i32_0 : i32
    scf.if %2 {
      %cst_12 = arith.constant 0.000000e+00 : f32
      %17 = vector.broadcast %cst_12 : f32 to vector<16x128xf32>
      %c0_13 = arith.constant 0 : index
      %c0_14 = arith.constant 0 : index
      %18 = vector.load %arg7[%c0_13, %c0_14] : memref<16x128xf32, #tpu.memory_space<vmem>>, vector<16x128xf32>
      tpu.vector_store %arg7[%c0_13, %c0_14], %17 {strides = array<i32>} : memref<16x128xf32, #tpu.memory_space<vmem>>, vector<16x128xf32>,
    } else {
    }
    %c0 = arith.constant 0 : index
    %c0_1 = arith.constant 0 : index
    %c0_2 = arith.constant 0 : index
    %3 = vector.load %arg2[%c0, %c0_1, %c0_2] : memref<16x32x512xbf16, #tpu.memory_space<vmem>>, vector<16x32x512xbf16>
    %4 = vector.shape_cast %3 : vector<16x32x512xbf16> to vector<512x512xbf16>
    %c0_3 = arith.constant 0 : index
    %c0_4 = arith.constant 0 : index
    %5 = vector.load %arg3[%c0_3, %c0_4] : memref<512x128xbf16, #tpu.memory_space<vmem>>, vector<512x128xbf16>
    %cst = arith.constant dense<0.000000e+00> : vector<512x128xf32>
    %6 = tpu.matmul %4, %5, %cst {dimension_numbers = #tpu.dot_dimension_numbers<[1], [0], [0], [1], [0, 0, 1, 1], [], []>} : vector<512x512xbf16>, vector<512x128xbf16>, vector<512x128xf32> -> vector<512x128xf32>
    %cst_5 = arith.constant 0.000000e+00 : f32
    %7 = vector.broadcast %cst_5 : f32 to vector<512x128xf32>
    %8 = arith.maximumf %6, %7 : vector<512x128xf32>
    %c0_6 = arith.constant 0 : index
    %c0_7 = arith.constant 0 : index
    %9 = vector.load %arg7[%c0_6, %c0_7] : memref<16x128xf32, #tpu.memory_space<vmem>>, vector<16x128xf32>
    %10 = vector.shape_cast %8 : vector<512x128xf32> to vector<16x32x128xf32>
    %cst_8 = arith.constant dense<0.000000e+00> : vector<16x128xf32>
    %11 = vector.multi_reduction <add>, %10, %cst_8 [1] : vector<16x32x128xf32> to vector<16x128xf32>
    %12 = arith.addf %9, %11 : vector<16x128xf32>
    %c0_9 = arith.constant 0 : index
    %c0_10 = arith.constant 0 : index
    %13 = vector.load %arg7[%c0_9, %c0_10] : memref<16x128xf32, #tpu.memory_space<vmem>>, vector<16x128xf32>
    tpu.vector_store %arg7[%c0_9, %c0_10], %12 {strides = array<i32>} : memref<16x128xf32, #tpu.memory_space<vmem>>, vector<16x128xf32>,
    %c1_i32 = arith.constant 1 : i32
    %14 = arith.cmpi eq, %arg1, %c1_i32 : i32
    %15 = arith.extui %14 : i1 to i32
    %c0_i32_11 = arith.constant 0 : i32
    %16 = arith.cmpi ne, %15, %c0_i32_11 : i32
    scf.if %16 {
      %c0_12 = arith.constant 0 : index
      %c0_13 = arith.constant 0 : index
      %17 = vector.load %arg7[%c0_12, %c0_13] : memref<16x128xf32, #tpu.memory_space<vmem>>, vector<16x128xf32>
      %cst_14 = arith.constant 1.562500e-02 : f32
      %18 = vector.broadcast %cst_14 : f32 to vector<16x128xf32>
      %19 = arith.mulf %17, %18 : vector<16x128xf32>
      %20 = arith.truncf %19 : vector<16x128xf32> to vector<16x128xbf16>
      %c0_15 = arith.constant 0 : index
      %c0_16 = arith.constant 0 : index
      %21 = vector.load %arg4[%c0_15, %c0_16] : memref<128x256xbf16, #tpu.memory_space<vmem>>, vector<128x256xbf16>
      %cst_17 = arith.constant dense<0.000000e+00> : vector<16x256xf32>
      %22 = tpu.matmul %20, %21, %cst_17 {dimension_numbers = #tpu.dot_dimension_numbers<[1], [0], [0], [1], [0, 0, 1, 1], [], []>} : vector<16x128xbf16>, vector<128x256xbf16>, vector<16x256xf32> -> vector<16x256xf32>
      %c0_18 = arith.constant 0 : index
      %c0_19 = arith.constant 0 : index
      %23 = vector.load %arg5[%c0_18, %c0_19] : memref<1x256xf32, #tpu.memory_space<vmem>>, vector<1x256xf32>
      %24 = vector.broadcast %23 : vector<1x256xf32> to vector<16x256xf32>
      %25 = arith.addf %22, %24 : vector<16x256xf32>
      %26 = arith.truncf %25 : vector<16x256xf32> to vector<16x256xbf16>
      %c0_20 = arith.constant 0 : index
      %c0_21 = arith.constant 0 : index
      %27 = vector.load %arg6[%c0_20, %c0_21] : memref<16x256xbf16, #tpu.memory_space<vmem>>, vector<16x256xbf16>
      tpu.vector_store %arg6[%c0_20, %c0_21], %26 {strides = array<i32>} : memref<16x256xbf16, #tpu.memory_space<vmem>>, vector<16x256xbf16>,
    } else {
    }
    return
  }
  func.func @transform_0(%arg0: i32, %arg1: i32) -> (i32, i32, i32) {
    %c0_i32 = arith.constant 0 : i32
    %c0_i32_0 = arith.constant 0 : i32
    return %arg0, %arg1, %c0_i32 : i32, i32, i32
  }
  func.func @transform_1(%arg0: i32, %arg1: i32) -> (i32, i32) {
    %c0_i32 = arith.constant 0 : i32
    %c0_i32_0 = arith.constant 0 : i32
    %c0_i32_1 = arith.constant 0 : i32
    return %c0_i32, %c0_i32_0 : i32, i32
  }
  func.func @transform_2(%arg0: i32, %arg1: i32) -> (i32, i32) {
    %c0_i32 = arith.constant 0 : i32
    %c0_i32_0 = arith.constant 0 : i32
    %c0_i32_1 = arith.constant 0 : i32
    return %c0_i32, %c0_i32_0 : i32, i32
  }
  func.func @transform_3(%arg0: i32, %arg1: i32) -> (i32, i32) {
    %c0_i32 = arith.constant 0 : i32
    %c0_i32_0 = arith.constant 0 : i32
    %c0_i32_1 = arith.constant 0 : i32
    return %c0_i32, %c0_i32_0 : i32, i32
  }
  func.func @transform_4(%arg0: i32, %arg1: i32) -> (i32, i32) {
    %c0_i32 = arith.constant 0 : i32
    %c0_i32_0 = arith.constant 0 : i32
    return %arg0, %c0_i32 : i32, i32
  }
}

module attributes {stable_mosaic.version = 11 : i64} {
  func.func @linear_kernel(%arg0: i32, %arg1: i32, %arg2: memref<16x256xbf16, #tpu.memory_space<vmem>>, %arg3: memref<256x768xbf16, #tpu.memory_space<vmem>>, %arg4: memref<1x768xf32, #tpu.memory_space<vmem>>, %arg5: memref<16x768xf32, #tpu.memory_space<vmem>>) attributes {dimension_semantics = [#tpu.dimension_semantics<parallel>, #tpu.dimension_semantics<parallel>], iteration_bounds = array<i64: 1, 1>, scalar_prefetch = 0 : i64, scratch_operands = 0 : i64, tpu.core_type = #tpu.core_type<tc>, window_params = [{transform_indices = @transform_0, window_bounds = array<i64: 16, 256>}, {transform_indices = @transform_1, window_bounds = array<i64: 256, 768>}, {transform_indices = @transform_2, window_bounds = array<i64: 1, 768>}, {transform_indices = @transform_3, window_bounds = array<i64: 16, 768>}]} {
    %c0 = arith.constant 0 : index
    %c0_0 = arith.constant 0 : index
    %0 = vector.load %arg2[%c0, %c0_0] : memref<16x256xbf16, #tpu.memory_space<vmem>>, vector<16x256xbf16>
    %c0_1 = arith.constant 0 : index
    %c0_2 = arith.constant 0 : index
    %1 = vector.load %arg3[%c0_1, %c0_2] : memref<256x768xbf16, #tpu.memory_space<vmem>>, vector<256x768xbf16>
    %cst = arith.constant dense<0.000000e+00> : vector<16x768xf32>
    %2 = tpu.matmul %0, %1, %cst {dimension_numbers = #tpu.dot_dimension_numbers<[1], [0], [0], [1], [0, 0, 1, 1], [], []>} : vector<16x256xbf16>, vector<256x768xbf16>, vector<16x768xf32> -> vector<16x768xf32>
    %c0_3 = arith.constant 0 : index
    %c0_4 = arith.constant 0 : index
    %3 = vector.load %arg4[%c0_3, %c0_4] : memref<1x768xf32, #tpu.memory_space<vmem>>, vector<1x768xf32>
    %4 = vector.broadcast %3 : vector<1x768xf32> to vector<16x768xf32>
    %5 = arith.addf %2, %4 : vector<16x768xf32>
    %c0_5 = arith.constant 0 : index
    %c0_6 = arith.constant 0 : index
    %6 = vector.load %arg5[%c0_5, %c0_6] : memref<16x768xf32, #tpu.memory_space<vmem>>, vector<16x768xf32>
    tpu.vector_store %arg5[%c0_5, %c0_6], %5 {strides = array<i32>} : memref<16x768xf32, #tpu.memory_space<vmem>>, vector<16x768xf32>,
    return
  }
  func.func @transform_0(%arg0: i32, %arg1: i32) -> (i32, i32) {
    %c0_i32 = arith.constant 0 : i32
    %c0_i32_0 = arith.constant 0 : i32
    return %arg0, %c0_i32 : i32, i32
  }
  func.func @transform_1(%arg0: i32, %arg1: i32) -> (i32, i32) {
    %c0_i32 = arith.constant 0 : i32
    %c0_i32_0 = arith.constant 0 : i32
    return %c0_i32, %arg1 : i32, i32
  }
  func.func @transform_2(%arg0: i32, %arg1: i32) -> (i32, i32) {
    %c0_i32 = arith.constant 0 : i32
    %c0_i32_0 = arith.constant 0 : i32
    return %c0_i32, %arg1 : i32, i32
  }
  func.func @transform_3(%arg0: i32, %arg1: i32) -> (i32, i32) {
    %c0_i32 = arith.constant 0 : i32
    return %arg0, %arg1 : i32, i32
  }
}

module attributes {stable_mosaic.version = 11 : i64} {
  func.func @gru_kernel(%arg0: i32, %arg1: memref<8x768xf32, #tpu.memory_space<vmem>>, %arg2: memref<8x256xbf16, #tpu.memory_space<vmem>>, %arg3: memref<8x256xf32, #tpu.memory_space<vmem>>, %arg4: memref<256x768xbf16, #tpu.memory_space<vmem>>, %arg5: memref<1x768xf32, #tpu.memory_space<vmem>>, %arg6: memref<8x256xbf16, #tpu.memory_space<vmem>>, %arg7: memref<8x256xf32, #tpu.memory_space<vmem>>) attributes {dimension_semantics = [#tpu.dimension_semantics<arbitrary>], iteration_bounds = array<i64: 8>, scalar_prefetch = 0 : i64, scratch_operands = 1 : i64, tpu.core_type = #tpu.core_type<tc>, window_params = [{transform_indices = @transform_0, window_bounds = array<i64: 8, 768>}, {transform_indices = @transform_1, window_bounds = array<i64: 8, 256>}, {pipeline_mode = #tpu.pipeline_mode<synchronous>, transform_indices = @transform_2, window_bounds = array<i64: 8, 256>}, {pipeline_mode = #tpu.pipeline_mode<synchronous>, transform_indices = @transform_3, window_bounds = array<i64: 256, 768>}, {pipeline_mode = #tpu.pipeline_mode<synchronous>, transform_indices = @transform_4, window_bounds = array<i64: 1, 768>}, {transform_indices = @transform_5, window_bounds = array<i64: 8, 256>}]} {
    %c0_i32 = arith.constant 0 : i32
    %0 = arith.cmpi eq, %arg0, %c0_i32 : i32
    %1 = arith.extui %0 : i1 to i32
    %c0_i32_0 = arith.constant 0 : i32
    %2 = arith.cmpi ne, %1, %c0_i32_0 : i32
    scf.if %2 {
      %c0_17 = arith.constant 0 : index
      %c0_18 = arith.constant 0 : index
      %43 = vector.load %arg3[%c0_17, %c0_18] : memref<8x256xf32, #tpu.memory_space<vmem>>, vector<8x256xf32>
      %c0_19 = arith.constant 0 : index
      %c0_20 = arith.constant 0 : index
      %44 = vector.load %arg7[%c0_19, %c0_20] : memref<8x256xf32, #tpu.memory_space<vmem>>, vector<8x256xf32>
      tpu.vector_store %arg7[%c0_19, %c0_20], %43 {strides = array<i32>} : memref<8x256xf32, #tpu.memory_space<vmem>>, vector<8x256xf32>,
    } else {
    }
    %c0 = arith.constant 0 : index
    %c0_1 = arith.constant 0 : index
    %3 = vector.load %arg7[%c0, %c0_1] : memref<8x256xf32, #tpu.memory_space<vmem>>, vector<8x256xf32>
    %c0_2 = arith.constant 0 : index
    %c0_3 = arith.constant 0 : index
    %4 = vector.load %arg1[%c0_2, %c0_3] : memref<8x768xf32, #tpu.memory_space<vmem>>, vector<8x768xf32>
    %5 = arith.truncf %3 : vector<8x256xf32> to vector<8x256xbf16>
    %c0_4 = arith.constant 0 : index
    %c0_5 = arith.constant 0 : index
    %6 = vector.load %arg4[%c0_4, %c0_5] : memref<256x768xbf16, #tpu.memory_space<vmem>>, vector<256x768xbf16>
    %cst = arith.constant dense<0.000000e+00> : vector<8x768xf32>
    %7 = tpu.matmul %5, %6, %cst {dimension_numbers = #tpu.dot_dimension_numbers<[1], [0], [0], [1], [0, 0, 1, 1], [], []>} : vector<8x256xbf16>, vector<256x768xbf16>, vector<8x768xf32> -> vector<8x768xf32>
    %c0_6 = arith.constant 0 : index
    %c0_7 = arith.constant 0 : index
    %8 = vector.load %arg5[%c0_6, %c0_7] : memref<1x768xf32, #tpu.memory_space<vmem>>, vector<1x768xf32>
    %9 = vector.broadcast %8 : vector<1x768xf32> to vector<8x768xf32>
    %10 = arith.addf %7, %9 : vector<8x768xf32>
    %11 = vector.extract_strided_slice %4 {offsets = [0, 0], sizes = [8, 256], strides = [1, 1]} : vector<8x768xf32> to vector<8x256xf32>
    %12 = vector.extract_strided_slice %10 {offsets = [0, 0], sizes = [8, 256], strides = [1, 1]} : vector<8x768xf32> to vector<8x256xf32>
    %13 = arith.addf %11, %12 : vector<8x256xf32>
    %14 = arith.negf %13 : vector<8x256xf32>
    %15 = math.exp %14 : vector<8x256xf32>
    %cst_8 = arith.constant 1.000000e+00 : f32
    %16 = vector.broadcast %cst_8 : f32 to vector<8x256xf32>
    %17 = arith.addf %16, %15 : vector<8x256xf32>
    %18 = arith.divf %16, %17 : vector<8x256xf32>
    %19 = vector.extract_strided_slice %4 {offsets = [0, 256], sizes = [8, 256], strides = [1, 1]} : vector<8x768xf32> to vector<8x256xf32>
    %20 = vector.extract_strided_slice %10 {offsets = [0, 256], sizes = [8, 256], strides = [1, 1]} : vector<8x768xf32> to vector<8x256xf32>
    %21 = arith.addf %19, %20 : vector<8x256xf32>
    %22 = arith.negf %21 : vector<8x256xf32>
    %23 = math.exp %22 : vector<8x256xf32>
    %cst_9 = arith.constant 1.000000e+00 : f32
    %24 = vector.broadcast %cst_9 : f32 to vector<8x256xf32>
    %25 = arith.addf %24, %23 : vector<8x256xf32>
    %26 = arith.divf %24, %25 : vector<8x256xf32>
    %27 = vector.extract_strided_slice %4 {offsets = [0, 512], sizes = [8, 256], strides = [1, 1]} : vector<8x768xf32> to vector<8x256xf32>
    %28 = vector.extract_strided_slice %10 {offsets = [0, 512], sizes = [8, 256], strides = [1, 1]} : vector<8x768xf32> to vector<8x256xf32>
    %29 = arith.mulf %18, %28 : vector<8x256xf32>
    %30 = arith.addf %27, %29 : vector<8x256xf32>
    %31 = math.tanh %30 : vector<8x256xf32>
    %cst_10 = arith.constant 1.000000e+00 : f32
    %32 = vector.broadcast %cst_10 : f32 to vector<8x256xf32>
    %33 = arith.subf %32, %26 : vector<8x256xf32>
    %34 = arith.mulf %33, %31 : vector<8x256xf32>
    %35 = arith.mulf %26, %3 : vector<8x256xf32>
    %36 = arith.addf %34, %35 : vector<8x256xf32>
    %c0_11 = arith.constant 0 : index
    %c0_12 = arith.constant 0 : index
    %37 = vector.load %arg7[%c0_11, %c0_12] : memref<8x256xf32, #tpu.memory_space<vmem>>, vector<8x256xf32>
    tpu.vector_store %arg7[%c0_11, %c0_12], %36 {strides = array<i32>} : memref<8x256xf32, #tpu.memory_space<vmem>>, vector<8x256xf32>,
    %c0_13 = arith.constant 0 : index
    %c0_14 = arith.constant 0 : index
    %38 = vector.load %arg2[%c0_13, %c0_14] : memref<8x256xbf16, #tpu.memory_space<vmem>>, vector<8x256xbf16>
    %39 = arith.extf %38 : vector<8x256xbf16> to vector<8x256xf32>
    %40 = arith.addf %36, %39 : vector<8x256xf32>
    %41 = arith.truncf %40 : vector<8x256xf32> to vector<8x256xbf16>
    %c0_15 = arith.constant 0 : index
    %c0_16 = arith.constant 0 : index
    %42 = vector.load %arg6[%c0_15, %c0_16] : memref<8x256xbf16, #tpu.memory_space<vmem>>, vector<8x256xbf16>
    tpu.vector_store %arg6[%c0_15, %c0_16], %41 {strides = array<i32>} : memref<8x256xbf16, #tpu.memory_space<vmem>>, vector<8x256xbf16>,
    return
  }
  func.func @transform_0(%arg0: i32) -> (i32, i32) {
    %c0_i32 = arith.constant 0 : i32
    %c0_i32_0 = arith.constant 0 : i32
    return %c0_i32, %arg0 : i32, i32
  }
  func.func @transform_1(%arg0: i32) -> (i32, i32) {
    %c0_i32 = arith.constant 0 : i32
    %c0_i32_0 = arith.constant 0 : i32
    return %c0_i32, %arg0 : i32, i32
  }
  func.func @transform_2(%arg0: i32) -> (i32, i32) {
    %c0_i32 = arith.constant 0 : i32
    %c0_i32_0 = arith.constant 0 : i32
    %c0_i32_1 = arith.constant 0 : i32
    return %c0_i32, %c0_i32_0 : i32, i32
  }
  func.func @transform_3(%arg0: i32) -> (i32, i32) {
    %c0_i32 = arith.constant 0 : i32
    %c0_i32_0 = arith.constant 0 : i32
    %c0_i32_1 = arith.constant 0 : i32
    return %c0_i32, %c0_i32_0 : i32, i32
  }
  func.func @transform_4(%arg0: i32) -> (i32, i32) {
    %c0_i32 = arith.constant 0 : i32
    %c0_i32_0 = arith.constant 0 : i32
    %c0_i32_1 = arith.constant 0 : i32
    return %c0_i32, %c0_i32_0 : i32, i32
  }
  func.func @transform_5(%arg0: i32) -> (i32, i32) {
    %c0_i32 = arith.constant 0 : i32
    %c0_i32_0 = arith.constant 0 : i32
    return %c0_i32, %arg0 : i32, i32
  }
}

module attributes {stable_mosaic.version = 11 : i64} {
  func.func @linear_kernel(%arg0: i32, %arg1: i32, %arg2: memref<16x256xbf16, #tpu.memory_space<vmem>>, %arg3: memref<256x256xbf16, #tpu.memory_space<vmem>>, %arg4: memref<1x256xf32, #tpu.memory_space<vmem>>, %arg5: memref<16x256xf32, #tpu.memory_space<vmem>>) attributes {dimension_semantics = [#tpu.dimension_semantics<parallel>, #tpu.dimension_semantics<parallel>], iteration_bounds = array<i64: 1, 1>, scalar_prefetch = 0 : i64, scratch_operands = 0 : i64, tpu.core_type = #tpu.core_type<tc>, window_params = [{transform_indices = @transform_0, window_bounds = array<i64: 16, 256>}, {transform_indices = @transform_1, window_bounds = array<i64: 256, 256>}, {transform_indices = @transform_2, window_bounds = array<i64: 1, 256>}, {transform_indices = @transform_3, window_bounds = array<i64: 16, 256>}]} {
    %c0 = arith.constant 0 : index
    %c0_0 = arith.constant 0 : index
    %0 = vector.load %arg2[%c0, %c0_0] : memref<16x256xbf16, #tpu.memory_space<vmem>>, vector<16x256xbf16>
    %c0_1 = arith.constant 0 : index
    %c0_2 = arith.constant 0 : index
    %1 = vector.load %arg3[%c0_1, %c0_2] : memref<256x256xbf16, #tpu.memory_space<vmem>>, vector<256x256xbf16>
    %cst = arith.constant dense<0.000000e+00> : vector<16x256xf32>
    %2 = tpu.matmul %0, %1, %cst {dimension_numbers = #tpu.dot_dimension_numbers<[1], [0], [0], [1], [0, 0, 1, 1], [], []>} : vector<16x256xbf16>, vector<256x256xbf16>, vector<16x256xf32> -> vector<16x256xf32>
    %c0_3 = arith.constant 0 : index
    %c0_4 = arith.constant 0 : index
    %3 = vector.load %arg4[%c0_3, %c0_4] : memref<1x256xf32, #tpu.memory_space<vmem>>, vector<1x256xf32>
    %4 = vector.broadcast %3 : vector<1x256xf32> to vector<16x256xf32>
    %5 = arith.addf %2, %4 : vector<16x256xf32>
    %c0_5 = arith.constant 0 : index
    %c0_6 = arith.constant 0 : index
    %6 = vector.load %arg5[%c0_5, %c0_6] : memref<16x256xf32, #tpu.memory_space<vmem>>, vector<16x256xf32>
    tpu.vector_store %arg5[%c0_5, %c0_6], %5 {strides = array<i32>} : memref<16x256xf32, #tpu.memory_space<vmem>>, vector<16x256xf32>,
    return
  }
  func.func @transform_0(%arg0: i32, %arg1: i32) -> (i32, i32) {
    %c0_i32 = arith.constant 0 : i32
    %c0_i32_0 = arith.constant 0 : i32
    return %arg0, %c0_i32 : i32, i32
  }
  func.func @transform_1(%arg0: i32, %arg1: i32) -> (i32, i32) {
    %c0_i32 = arith.constant 0 : i32
    %c0_i32_0 = arith.constant 0 : i32
    return %c0_i32, %arg1 : i32, i32
  }
  func.func @transform_2(%arg0: i32, %arg1: i32) -> (i32, i32) {
    %c0_i32 = arith.constant 0 : i32
    %c0_i32_0 = arith.constant 0 : i32
    return %c0_i32, %arg1 : i32, i32
  }
  func.func @transform_3(%arg0: i32, %arg1: i32) -> (i32, i32) {
    %c0_i32 = arith.constant 0 : i32
    return %arg0, %arg1 : i32, i32
  }
}

</mosaic_0001>

<llo_original>
// kernel: event_track_net_forward.4
$region0: #{event_track_net_forward.4}
  #allocation0 [shape = 'u32[]', space=smem, size = 0x4, offset = 0x4, fixed_abs, tag = 'smem constant byte address 0x4 - core index']
  #allocation1 [shape = 'u32[144,128]{1,0:T(1,128)}', space=vmem, size = 0x12000, scoped, tag = 'internal scratch']
  #allocation2 [shape = 'f32[16,128]{1,0:T(8,128)}', space=vmem, size = 0x2000, scoped, tag = 'scratch operand']
  %s0 = inlined_call_operand.vmem [shape: bf16[16,64,512], index: 0, kind: input, shape index: {}]
  %s1 = inlined_call_operand.vmem [shape: bf16[512,128], index: 1, kind: input, shape index: {}]
  %s2 = inlined_call_operand.vmem [shape: bf16[128,256], index: 2, kind: input, shape index: {}]
  %s3 = inlined_call_operand.vmem [shape: f32[1,256], index: 3, kind: input, shape index: {}]
  %s4 = inlined_call_operand.vmem [shape: bf16[16,256], index: 4, kind: output, shape index: {}]
  %s5 = sld [smem:[#allocation0]]
  $region80: #{event_track_net_forward.4} parent=0
    _
  %s7 = ssub.s32 1, %s5
  %s8 = scalar_select 0, %s7, %s5
  $region1: #{event_track_net_forward.4} parent=0
    #allocation3 [shape = 'u8[1048576]{0}', space=vmem, size = 0x100000, scoped, tag = 'input window, operand 0']
    loop: start=0, step=1, limit=4
    $region2: #{event_track_net_forward.4} parent=1 // loop_pre_header
      _
    $region3: #{event_track_net_forward.4} parent=1 // loop_header
      %s10 = sphi 0, %s14
      %p11 = scmp.ge.s32.totalorder %s10, 4
      %s17 = sphi 0, %s29
      %s18 = sphi 0, %s25
      %s19 = sphi 0, %s17
      %s20 = sphi 0, %s18
      %s21 = sphi 0, %s19
      %s22 = sphi 0, %s20
      %s34 = sphi 0, %s36
      %s37 = sphi 0, %s34
      %s38 = sphi 0, %s37
      %s54 = sphi 0, %s38
      %s58 = sphi 0, %s58
      %s60 = sphi 0, %s58
      %s61 = sphi 0, %s60
      %s75 = sphi 0, %s61
      %s79 = sphi 0, %s79
      %s81 = sphi 0, %s79
      %s82 = sphi 0, %s81
      %s96 = sphi 0, %s82
      %s100 = sphi 0, %s100
      %s102 = sphi 0, %s100
      %s103 = sphi 0, %s102
      %s117 = sphi 0, %s103
      %s123 = sphi 0, %s125
      %s126 = sphi 0, %s123
      %s127 = sphi 0, %s126
      %s143 = sphi 0, %s127
    $region4: #{event_track_net_forward.4} parent=1 // loop_header_branch
      %13 = sbr.rel (%p11) target = $region8
    $region5: #{event_track_net_forward.4} parent=1 // loop_body
      %s15 = ssub.s32 %s10, 1
      %s16 = ssub.s32 %s10, 2
      %s23 = sadd.s32 1, %s18
      %p24 = scmp.ge.s32.totalorder %s23, 2
      %s25 = scalar_select %p24, 0, %s23
      %s26 = sadd.s32 1, %s17
      %s27 = scalar_select %p24, %s26, %s17
      %p28 = scmp.ge.s32.totalorder %s27, 1
      %s29 = scalar_select %p28, 0, %s27
      %s30 = ssub.s32 %s17, %s29
      %s31 = ssub.s32 %s18, %s25
      %s32 = sor.u32 %s30, %s31
      %p33 = scmp.eq.s32.totalorder %s32, 0
      %s35 = sadd.s32 %s34, 1
      %s36 = scalar_select %p33, %s34, %s35
      %p39 = pneg %p33
      %p40 = scmp.eq.s32.totalorder %s10, 1
      %p41 = por %p39, %p40
      %p42 = scmp.ne.s32.totalorder %s34, %s37
      %p43 = scmp.eq.s32.totalorder %s10, 0
      %p44 = por %p42, %p43
      %p45 = scmp.ne.s32.totalorder %s34, %s37
      %p46 = scmp.eq.s32.totalorder %s15, 1
      %p47 = por %p45, %p46
      %p48 = scmp.ne.s32.totalorder %s37, %s38
      %p49 = scmp.eq.s32.totalorder %s15, 0
      %p50 = por %p48, %p49
      %p51 = scmp.ne.s32.totalorder %s37, %s38
      %p52 = scmp.eq.s32.totalorder %s16, 1
      %p53 = por %p51, %p52
      %p55 = scmp.ne.s32.totalorder %s38, %s54
      %p56 = scmp.eq.s32.totalorder %s16, 0
      %p57 = por %p55, %p56
      %s59 = sadd.s32 %s58, 1
      %p62 = scmp.eq.s32.totalorder %s10, 1
      %p63 = scmp.ne.s32.totalorder %s58, %s60
      %p64 = scmp.eq.s32.totalorder %s10, 0
      %p65 = por %p63, %p64
      %p66 = scmp.ne.s32.totalorder %s58, %s60
      %p67 = scmp.eq.s32.totalorder %s15, 1
      %p68 = por %p66, %p67
      %p69 = scmp.ne.s32.totalorder %s60, %s61
      %p70 = scmp.eq.s32.totalorder %s15, 0
      %p71 = por %p69, %p70
      %p72 = scmp.ne.s32.totalorder %s60, %s61
      %p73 = scmp.eq.s32.totalorder %s16, 1
      %p74 = por %p72, %p73
      %p76 = scmp.ne.s32.totalorder %s61, %s75
      %p77 = scmp.eq.s32.totalorder %s16, 0
      %p78 = por %p76, %p77
      %s80 = sadd.s32 %s79, 1
      %p83 = scmp.eq.s32.totalorder %s10, 1
      %p84 = scmp.ne.s32.totalorder %s79, %s81
      %p85 = scmp.eq.s32.totalorder %s10, 0
      %p86 = por %p84, %p85
      %p87 = scmp.ne.s32.totalorder %s79, %s81
      %p88 = scmp.eq.s32.totalorder %s15, 1
      %p89 = por %p87, %p88
      %p90 = scmp.ne.s32.totalorder %s81, %s82
      %p91 = scmp.eq.s32.totalorder %s15, 0
      %p92 = por %p90, %p91
      %p93 = scmp.ne.s32.totalorder %s81, %s82
      %p94 = scmp.eq.s32.totalorder %s16, 1
      %p95 = por %p93, %p94
      %p97 = scmp.ne.s32.totalorder %s82, %s96
      %p98 = scmp.eq.s32.totalorder %s16, 0
      %p99 = por %p97, %p98
      %s101 = sadd.s32 %s100, 1
      %p104 = scmp.eq.s32.totalorder %s10, 1
      %p105 = scmp.ne.s32.totalorder %s100, %s102
      %p106 = scmp.eq.s32.totalorder %s10, 0
      %p107 = por %p105, %p106
      %p108 = scmp.ne.s32.totalorder %s100, %s102
      %p109 = scmp.eq.s32.totalorder %s15, 1
      %p110 = por %p108, %p109
      %p111 = scmp.ne.s32.totalorder %s102, %s103
      %p112 = scmp.eq.s32.totalorder %s15, 0
      %p113 = por %p111, %p112
      %p114 = scmp.ne.s32.totalorder %s102, %s103
      %p115 = scmp.eq.s32.totalorder %s16, 1
      %p116 = por %p114, %p115
      %p118 = scmp.ne.s32.totalorder %s103, %s117
      %p119 = scmp.eq.s32.totalorder %s16, 0
      %p120 = por %p118, %p119
      %s121 = ssub.s32 %s17, %s29
      %p122 = scmp.eq.s32.totalorder %s121, 0
      %s124 = sadd.s32 %s123, 1
      %s125 = scalar_select %p122, %s123, %s124
      %p128 = pneg %p122
      %p129 = scmp.eq.s32.totalorder %s10, 1
      %p130 = por %p128, %p129
      %p131 = scmp.ne.s32.totalorder %s123, %s126
      %p132 = scmp.eq.s32.totalorder %s10, 0
      %p133 = por %p131, %p132
      %p134 = scmp.ne.s32.totalorder %s123, %s126
      %p135 = scmp.eq.s32.totalorder %s15, 1
      %p136 = por %p134, %p135
      %p137 = scmp.ne.s32.totalorder %s126, %s127
      %p138 = scmp.eq.s32.totalorder %s15, 0
      %p139 = por %p137, %p138
      %p140 = scmp.ne.s32.totalorder %s126, %s127
      %p141 = scmp.eq.s32.totalorder %s16, 1
      %p142 = por %p140, %p141
      %p144 = scmp.ne.s32.totalorder %s127, %s143
      %p145 = scmp.eq.s32.totalorder %s16, 0
      %p146 = por %p144, %p145
      %p147 = scmp.le.s32.totalorder 1, %s10
      %p148 = scmp.lt.s32.totalorder %s10, 3
      %p149 = pnand %p147, %p148
      %p150 = pneg %p149
      // Predicated region
      $region9: #{event_track_net_forward.4} parent=5 // pred_check
        _
      $region10: #{event_track_net_forward.4} parent=5 // pred_check_branch
        %152 = sbr.rel (%p149) target = $region12
      $region11: #{event_track_net_forward.4} parent=5 // pred_region
        %s153 = ssub.s32 %s10, 1
        // Predicated region
        $region13: #{event_track_net_forward.4} parent=11 // pred_check
          %p154 = pneg %p71
        $region14: #{event_track_net_forward.4} parent=11 // pred_check_branch
          %156 = sbr.rel (%p154) target = $region16
        $region15: #{event_track_net_forward.4} parent=11 // pred_region
          _
        $region16: #{event_track_net_forward.4} parent=11 // pred_fallthru
          _
        // Predicated region
        $region17: #{event_track_net_forward.4} parent=11 // pred_check
          %p157 = pneg %p92
        $region18: #{event_track_net_forward.4} parent=11 // pred_check_branch
          %159 = sbr.rel (%p157) target = $region20
        $region19: #{event_track_net_forward.4} parent=11 // pred_region
          _
        $region20: #{event_track_net_forward.4} parent=11 // pred_fallthru
          _
        // Predicated region
        $region21: #{event_track_net_forward.4} parent=11 // pred_check
          %p160 = pneg %p113
        $region22: #{event_track_net_forward.4} parent=11 // pred_check_branch
          %162 = sbr.rel (%p160) target = $region24
        $region23: #{event_track_net_forward.4} parent=11 // pred_region
          _
        $region24: #{event_track_net_forward.4} parent=11 // pred_fallthru
          _
      $region12: #{event_track_net_forward.4} parent=5 // pred_fallthru
        _
      %p163 = scmp.lt.s32.totalorder %s10, 2
      // Predicated region
      $region25: #{event_track_net_forward.4} parent=5 // pred_check
        %p164 = pneg %p163
      $region26: #{event_track_net_forward.4} parent=5 // pred_check_branch
        %166 = sbr.rel (%p164) target = $region28
      $region27: #{event_track_net_forward.4} parent=5 // pred_region
        // Predicated region
        $region29: #{event_track_net_forward.4} parent=27 // pred_check
          %p167 = pneg %p44
        $region30: #{event_track_net_forward.4} parent=27 // pred_check_branch
          %169 = sbr.rel (%p167) target = $region32
        $region31: #{event_track_net_forward.4} parent=27 // pred_region
          %s170 = sand.u32 %s34, 1
          %s171 = sand.u32 %s34, 1
          %s172 = smul.addr %s171, 1024
          %s173 = scalar_lea.vmem [#allocation3], %s172
          %s174 = smul.u32 16, %s17
          %s175 = smul.u32 4, %s18
          %s176 = smul.addr %s175, 4
          %s177 = smul.addr %s174, 32
          %s178 = sadd.s32 %s176, %s177
          %s179 = smul.addr %s178, 4
          %s180 = scalar_lea.vmem %s0, %s179
          // Predicated region
          $region33: #{event_track_net_forward.4} parent=31 // pred_check
            _
          $region34: #{event_track_net_forward.4} parent=31 // pred_check_branch
            %182 = sbr.rel (0) target = $region36
          $region35: #{event_track_net_forward.4} parent=31 // pred_region
            // Predicated region
            $region37: #{event_track_net_forward.4} parent=35 // pred_check
              _
            $region38: #{event_track_net_forward.4} parent=35 // pred_check_branch
              %184 = sbr.rel (0) target = $region40
            $region39: #{event_track_net_forward.4} parent=35 // pred_region
              loop: start=0, step=1, limit=1
              $region41: #{event_track_net_forward.4} parent=39 // loop_pre_header
                _
              $region42: #{event_track_net_forward.4} parent=39 // loop_header
                %s186 = sphi 0, %s190
                %p187 = scmp.ge.s32.totalorder %s186, 1
                %s191 = sphi %s180, %s180
                %s192 = sphi %s173, %s173
              $region43: #{event_track_net_forward.4} parent=39 // loop_header_branch
                %189 = sbr.rel (%p187) target = $region47
              $region44: #{event_track_net_forward.4} parent=39 // loop_body
                %v193 = vld [vmem:[%s191] sm:$0xff]
                %194 = vst [vmem:[%s192] sm:$0xff] %v193
                %v195 = vld [vmem:[%s191 + $0x8] sm:$0xff]
                %196 = vst [vmem:[%s192 + $0x8] sm:$0xff] %v195
                %v197 = vld [vmem:[%s191 + $0x10] sm:$0xff]
                %198 = vst [vmem:[%s192 + $0x10] sm:$0xff] %v197
                %v199 = vld [vmem:[%s191 + $0x18] sm:$0xff]
                %200 = vst [vmem:[%s192 + $0x18] sm:$0xff] %v199
                %v201 = vld [vmem:[%s191 + $0x20] sm:$0xff]
                %202 = vst [vmem:[%s192 + $0x20] sm:$0xff] %v201
                %v203 = vld [vmem:[%s191 + $0x28] sm:$0xff]
                %204 = vst [vmem:[%s192 + $0x28] sm:$0xff] %v203
                %v205 = vld [vmem:[%s191 + $0x30] sm:$0xff]
                %206 = vst [vmem:[%s192 + $0x30] sm:$0xff] %v205
                %v207 = vld [vmem:[%s191 + $0x38] sm:$0xff]
                %208 = vst [vmem:[%s192 + $0x38] sm:$0xff] %v207
                %v209 = vld [vmem:[%s191 + $0x80] sm:$0xff]
                %210 = vst [vmem:[%s192 + $0x40] sm:$0xff] %v209
                %v211 = vld [vmem:[%s191 + $0x88] sm:$0xff]
                %212 = vst [vmem:[%s192 + $0x48] sm:$0xff] %v211
                %v213 = vld [vmem:[%s191 + $0x90] sm:$0xff]
                %214 = vst [vmem:[%s192 + $0x50] sm:$0xff] %v213
                %v215 = vld [vmem:[%s191 + $0x98] sm:$0xff]
                %216 = vst [vmem:[%s192 + $0x58] sm:$0xff] %v215
                %v217 = vld [vmem:[%s191 + $0xa0] sm:$0xff]
                %218 = vst [vmem:[%s192 + $0x60] sm:$0xff] %v217
                %v219 = vld [vmem:[%s191 + $0xa8] sm:$0xff]
                %220 = vst [vmem:[%s192 + $0x68] sm:$0xff] %v219
                %v221 = vld [vmem:[%s191 + $0xb0] sm:$0xff]
                %222 = vst [vmem:[%s192 + $0x70] sm:$0xff] %v221
                %v223 = vld [vmem:[%s191 + $0xb8] sm:$0xff]
                %224 = vst [vmem:[%s192 + $0x78] sm:$0xff] %v223
                %v225 = vld [vmem:[%s191 + $0x100] sm:$0xff]
                %226 = vst [vmem:[%s192 + $0x80] sm:$0xff] %v225
                %v227 = vld [vmem:[%s191 + $0x108] sm:$0xff]
                %228 = vst [vmem:[%s192 + $0x88] sm:$0xff] %v227
                %v229 = vld [vmem:[%s191 + $0x110] sm:$0xff]
                %230 = vst [vmem:[%s192 + $0x90] sm:$0xff] %v229
                %v231 = vld [vmem:[%s191 + $0x118] sm:$0xff]
                %232 = vst [vmem:[%s192 + $0x98] sm:$0xff] %v231
                %v233 = vld [vmem:[%s191 + $0x120] sm:$0xff]
                %234 = vst [vmem:[%s192 + $0xa0] sm:$0xff] %v233
                %v235 = vld [vmem:[%s191 + $0x128] sm:$0xff]
                %236 = vst [vmem:[%s192 + $0xa8] sm:$0xff] %v235
                %v237 = vld [vmem:[%s191 + $0x130] sm:$0xff]
                %238 = vst [vmem:[%s192 + $0xb0] sm:$0xff] %v237
                %v239 = vld [vmem:[%s191 + $0x138] sm:$0xff]
                %240 = vst [vmem:[%s192 + $0xb8] sm:$0xff] %v239
                %v241 = vld [vmem:[%s191 + $0x180] sm:$0xff]
                %242 = vst [vmem:[%s192 + $0xc0] sm:$0xff] %v241
                %v243 = vld [vmem:[%s191 + $0x188] sm:$0xff]
                %244 = vst [vmem:[%s192 + $0xc8] sm:$0xff] %v243
                %v245 = vld [vmem:[%s191 + $0x190] sm:$0xff]
                %246 = vst [vmem:[%s192 + $0xd0] sm:$0xff] %v245
                %v247 = vld [vmem:[%s191 + $0x198] sm:$0xff]
                %248 = vst [vmem:[%s192 + $0xd8] sm:$0xff] %v247
                %v249 = vld [vmem:[%s191 + $0x1a0] sm:$0xff]
                %250 = vst [vmem:[%s192 + $0xe0] sm:$0xff] %v249
                %v251 = vld [vmem:[%s191 + $0x1a8] sm:$0xff]
                %252 = vst [vmem:[%s192 + $0xe8] sm:$0xff] %v251
                %v253 = vld [vmem:[%s191 + $0x1b0] sm:$0xff]
                %254 = vst [vmem:[%s192 + $0xf0] sm:$0xff] %v253
                %v255 = vld [vmem:[%s191 + $0x1b8] sm:$0xff]
                %256 = vst [vmem:[%s192 + $0xf8] sm:$0xff] %v255
                %v257 = vld [vmem:[%s191 + $0x200] sm:$0xff]
                %258 = vst [vmem:[%s192 + $0x100] sm:$0xff] %v257
                %v259 = vld [vmem:[%s191 + $0x208] sm:$0xff]
                %260 = vst [vmem:[%s192 + $0x108] sm:$0xff] %v259
                %v261 = vld [vmem:[%s191 + $0x210] sm:$0xff]
                %262 = vst [vmem:[%s192 + $0x110] sm:$0xff] %v261
                %v263 = vld [vmem:[%s191 + $0x218] sm:$0xff]
                %264 = vst [vmem:[%s192 + $0x118] sm:$0xff] %v263
                %v265 = vld [vmem:[%s191 + $0x220] sm:$0xff]
                %266 = vst [vmem:[%s192 + $0x120] sm:$0xff] %v265
                %v267 = vld [vmem:[%s191 + $0x228] sm:$0xff]
                %268 = vst [vmem:[%s192 + $0x128] sm:$0xff] %v267
                %v269 = vld [vmem:[%s191 + $0x230] sm:$0xff]
                %270 = vst [vmem:[%s192 + $0x130] sm:$0xff] %v269
                %v271 = vld [vmem:[%s191 + $0x238] sm:$0xff]
                %272 = vst [vmem:[%s192 + $0x138] sm:$0xff] %v271
                %v273 = vld [vmem:[%s191 + $0x280] sm:$0xff]
                %274 = vst [vmem:[%s192 + $0x140] sm:$0xff] %v273
                %v275 = vld [vmem:[%s191 + $0x288] sm:$0xff]
                %276 = vst [vmem:[%s192 + $0x148] sm:$0xff] %v275
                %v277 = vld [vmem:[%s191 + $0x290] sm:$0xff]
                %278 = vst [vmem:[%s192 + $0x150] sm:$0xff] %v277
                %v279 = vld [vmem:[%s191 + $0x298] sm:$0xff]
                %280 = vst [vmem:[%s192 + $0x158] sm:$0xff] %v279
                %v281 = vld [vmem:[%s191 + $0x2a0] sm:$0xff]
                %282 = vst [vmem:[%s192 + $0x160] sm:$0xff] %v281
                %v283 = vld [vmem:[%s191 + $0x2a8] sm:$0xff]
                %284 = vst [vmem:[%s192 + $0x168] sm:$0xff] %v283
                %v285 = vld [vmem:[%s191 + $0x2b0] sm:$0xff]
                %286 = vst [vmem:[%s192 + $0x170] sm:$0xff] %v285
                %v287 = vld [vmem:[%s191 + $0x2b8] sm:$0xff]
                %288 = vst [vmem:[%s192 + $0x178] sm:$0xff] %v287
                %v289 = vld [vmem:[%s191 + $0x300] sm:$0xff]
                %290 = vst [vmem:[%s192 + $0x180] sm:$0xff] %v289
                %v291 = vld [vmem:[%s191 + $0x308] sm:$0xff]
                %292 = vst [vmem:[%s192 + $0x188] sm:$0xff] %v291
                %v293 = vld [vmem:[%s191 + $0x310] sm:$0xff]
                %294 = vst [vmem:[%s192 + $0x190] sm:$0xff] %v293
                %v295 = vld [vmem:[%s191 + $0x318] sm:$0xff]
                %296 = vst [vmem:[%s192 + $0x198] sm:$0xff] %v295
                %v297 = vld [vmem:[%s191 + $0x320] sm:$0xff]
                %298 = vst [vmem:[%s192 + $0x1a0] sm:$0xff] %v297
                %v299 = vld [vmem:[%s191 + $0x328] sm:$0xff]
                %300 = vst [vmem:[%s192 + $0x1a8] sm:$0xff] %v299
                %v301 = vld [vmem:[%s191 + $0x330] sm:$0xff]
                %302 = vst [vmem:[%s192 + $0x1b0] sm:$0xff] %v301
                %v303 = vld [vmem:[%s191 + $0x338] sm:$0xff]
                %304 = vst [vmem:[%s192 + $0x1b8] sm:$0xff] %v303
                %v305 = vld [vmem:[%s191 + $0x380] sm:$0xff]
                %306 = vst [vmem:[%s192 + $0x1c0] sm:$0xff] %v305
                %v307 = vld [vmem:[%s191 + $0x388] sm:$0xff]
                %308 = vst [vmem:[%s192 + $0x1c8] sm:$0xff] %v307
                %v309 = vld [vmem:[%s191 + $0x390] sm:$0xff]
                %310 = vst [vmem:[%s192 + $0x1d0] sm:$0xff] %v309
                %v311 = vld [vmem:[%s191 + $0x398] sm:$0xff]
                %312 = vst [vmem:[%s192 + $0x1d8] sm:$0xff] %v311
                %v313 = vld [vmem:[%s191 + $0x3a0] sm:$0xff]
                %314 = vst [vmem:[%s192 + $0x1e0] sm:$0xff] %v313
                %v315 = vld [vmem:[%s191 + $0x3a8] sm:$0xff]
                %316 = vst [vmem:[%s192 + $0x1e8] sm:$0xff] %v315
                %v317 = vld [vmem:[%s191 + $0x3b0] sm:$0xff]
                %318 = vst [vmem:[%s192 + $0x1f0] sm:$0xff] %v317
                %v319 = vld [vmem:[%s191 + $0x3b8] sm:$0xff]
                %320 = vst [vmem:[%s192 + $0x1f8] sm:$0xff] %v319
                %v321 = vld [vmem:[%s191 + $0x400] sm:$0xff]
                %322 = vst [vmem:[%s192 + $0x200] sm:$0xff] %v321
                %v323 = vld [vmem:[%s191 + $0x408] sm:$0xff]
                %324 = vst [vmem:[%s192 + $0x208] sm:$0xff] %v323
                %v325 = vld [vmem:[%s191 + $0x410] sm:$0xff]
                %326 = vst [vmem:[%s192 + $0x210] sm:$0xff] %v325
                %v327 = vld [vmem:[%s191 + $0x418] sm:$0xff]
                %328 = vst [vmem:[%s192 + $0x218] sm:$0xff] %v327
                %v329 = vld [vmem:[%s191 + $0x420] sm:$0xff]
                %330 = vst [vmem:[%s192 + $0x220] sm:$0xff] %v329
                %v331 = vld [vmem:[%s191 + $0x428] sm:$0xff]
                %332 = vst [vmem:[%s192 + $0x228] sm:$0xff] %v331
                %v333 = vld [vmem:[%s191 + $0x430] sm:$0xff]
                %334 = vst [vmem:[%s192 + $0x230] sm:$0xff] %v333
                %v335 = vld [vmem:[%s191 + $0x438] sm:$0xff]
                %336 = vst [vmem:[%s192 + $0x238] sm:$0xff] %v335
                %v337 = vld [vmem:[%s191 + $0x480] sm:$0xff]
                %338 = vst [vmem:[%s192 + $0x240] sm:$0xff] %v337
                %v339 = vld [vmem:[%s191 + $0x488] sm:$0xff]
                %340 = vst [vmem:[%s192 + $0x248] sm:$0xff] %v339
                %v341 = vld [vmem:[%s191 + $0x490] sm:$0xff]
                %342 = vst [vmem:[%s192 + $0x250] sm:$0xff] %v341
                %v343 = vld [vmem:[%s191 + $0x498] sm:$0xff]
                %344 = vst [vmem:[%s192 + $0x258] sm:$0xff] %v343
                %v345 = vld [vmem:[%s191 + $0x4a0] sm:$0xff]
                %346 = vst [vmem:[%s192 + $0x260] sm:$0xff] %v345
                %v347 = vld [vmem:[%s191 + $0x4a8] sm:$0xff]
                %348 = vst [vmem:[%s192 + $0x268] sm:$0xff] %v347
                %v349 = vld [vmem:[%s191 + $0x4b0] sm:$0xff]
                %350 = vst [vmem:[%s192 + $0x270] sm:$0xff] %v349
                %v351 = vld [vmem:[%s191 + $0x4b8] sm:$0xff]
                %352 = vst [vmem:[%s192 + $0x278] sm:$0xff] %v351
                %v353 = vld [vmem:[%s191 + $0x500] sm:$0xff]
                %354 = vst [vmem:[%s192 + $0x280] sm:$0xff] %v353
                %v355 = vld [vmem:[%s191 + $0x508] sm:$0xff]
                %356 = vst [vmem:[%s192 + $0x288] sm:$0xff] %v355
                %v357 = vld [vmem:[%s191 + $0x510] sm:$0xff]
                %358 = vst [vmem:[%s192 + $0x290] sm:$0xff] %v357
                %v359 = vld [vmem:[%s191 + $0x518] sm:$0xff]
                %360 = vst [vmem:[%s192 + $0x298] sm:$0xff] %v359
                %v361 = vld [vmem:[%s191 + $0x520] sm:$0xff]
                %362 = vst [vmem:[%s192 + $0x2a0] sm:$0xff] %v361
                %v363 = vld [vmem:[%s191 + $0x528] sm:$0xff]
                %364 = vst [vmem:[%s192 + $0x2a8] sm:$0xff] %v363
                %v365 = vld [vmem:[%s191 + $0x530] sm:$0xff]
                %366 = vst [vmem:[%s192 + $0x2b0] sm:$0xff] %v365
                %v367 = vld [vmem:[%s191 + $0x538] sm:$0xff]
                %368 = vst [vmem:[%s192 + $0x2b8] sm:$0xff] %v367
                %v369 = vld [vmem:[%s191 + $0x580] sm:$0xff]
                %370 = vst [vmem:[%s192 + $0x2c0] sm:$0xff] %v369
                %v371 = vld [vmem:[%s191 + $0x588] sm:$0xff]
                %372 = vst [vmem:[%s192 + $0x2c8] sm:$0xff] %v371
                %v373 = vld [vmem:[%s191 + $0x590] sm:$0xff]
                %374 = vst [vmem:[%s192 + $0x2d0] sm:$0xff] %v373
                %v375 = vld [vmem:[%s191 + $0x598] sm:$0xff]
                %376 = vst [vmem:[%s192 + $0x2d8] sm:$0xff] %v375
                %v377 = vld [vmem:[%s191 + $0x5a0] sm:$0xff]
                %378 = vst [vmem:[%s192 + $0x2e0] sm:$0xff] %v377
                %v379 = vld [vmem:[%s191 + $0x5a8] sm:$0xff]
                %380 = vst [vmem:[%s192 + $0x2e8] sm:$0xff] %v379
                %v381 = vld [vmem:[%s191 + $0x5b0] sm:$0xff]
                %382 = vst [vmem:[%s192 + $0x2f0] sm:$0xff] %v381
                %v383 = vld [vmem:[%s191 + $0x5b8] sm:$0xff]
                %384 = vst [vmem:[%s192 + $0x2f8] sm:$0xff] %v383
                %v385 = vld [vmem:[%s191 + $0x600] sm:$0xff]
                %386 = vst [vmem:[%s192 + $0x300] sm:$0xff] %v385
                %v387 = vld [vmem:[%s191 + $0x608] sm:$0xff]
                %388 = vst [vmem:[%s192 + $0x308] sm:$0xff] %v387
                %v389 = vld [vmem:[%s191 + $0x610] sm:$0xff]
                %390 = vst [vmem:[%s192 + $0x310] sm:$0xff] %v389
                %v391 = vld [vmem:[%s191 + $0x618] sm:$0xff]
                %392 = vst [vmem:[%s192 + $0x318] sm:$0xff] %v391
                %v393 = vld [vmem:[%s191 + $0x620] sm:$0xff]
                %394 = vst [vmem:[%s192 + $0x320] sm:$0xff] %v393
                %v395 = vld [vmem:[%s191 + $0x628] sm:$0xff]
                %396 = vst [vmem:[%s192 + $0x328] sm:$0xff] %v395
                %v397 = vld [vmem:[%s191 + $0x630] sm:$0xff]
                %398 = vst [vmem:[%s192 + $0x330] sm:$0xff] %v397
                %v399 = vld [vmem:[%s191 + $0x638] sm:$0xff]
                %400 = vst [vmem:[%s192 + $0x338] sm:$0xff] %v399
                %v401 = vld [vmem:[%s191 + $0x680] sm:$0xff]
                %402 = vst [vmem:[%s192 + $0x340] sm:$0xff] %v401
                %v403 = vld [vmem:[%s191 + $0x688] sm:$0xff]
                %404 = vst [vmem:[%s192 + $0x348] sm:$0xff] %v403
                %v405 = vld [vmem:[%s191 + $0x690] sm:$0xff]
                %406 = vst [vmem:[%s192 + $0x350] sm:$0xff] %v405
                %v407 = vld [vmem:[%s191 + $0x698] sm:$0xff]
                %408 = vst [vmem:[%s192 + $0x358] sm:$0xff] %v407
                %v409 = vld [vmem:[%s191 + $0x6a0] sm:$0xff]
                %410 = vst [vmem:[%s192 + $0x360] sm:$0xff] %v409
                %v411 = vld [vmem:[%s191 + $0x6a8] sm:$0xff]
                %412 = vst [vmem:[%s192 + $0x368] sm:$0xff] %v411
                %v413 = vld [vmem:[%s191 + $0x6b0] sm:$0xff]
                %414 = vst [vmem:[%s192 + $0x370] sm:$0xff] %v413
                %v415 = vld [vmem:[%s191 + $0x6b8] sm:$0xff]
                %416 = vst [vmem:[%s192 + $0x378] sm:$0xff] %v415
                %v417 = vld [vmem:[%s191 + $0x700] sm:$0xff]
                %418 = vst [vmem:[%s192 + $0x380] sm:$0xff] %v417
                %v419 = vld [vmem:[%s191 + $0x708] sm:$0xff]
                %420 = vst [vmem:[%s192 + $0x388] sm:$0xff] %v419
                %v421 = vld [vmem:[%s191 + $0x710] sm:$0xff]
                %422 = vst [vmem:[%s192 + $0x390] sm:$0xff] %v421
                %v423 = vld [vmem:[%s191 + $0x718] sm:$0xff]
                %424 = vst [vmem:[%s192 + $0x398] sm:$0xff] %v423
                %v425 = vld [vmem:[%s191 + $0x720] sm:$0xff]
                %426 = vst [vmem:[%s192 + $0x3a0] sm:$0xff] %v425
                %v427 = vld [vmem:[%s191 + $0x728] sm:$0xff]
                %428 = vst [vmem:[%s192 + $0x3a8] sm:$0xff] %v427
                %v429 = vld [vmem:[%s191 + $0x730] sm:$0xff]
                %430 = vst [vmem:[%s192 + $0x3b0] sm:$0xff] %v429
                %v431 = vld [vmem:[%s191 + $0x738] sm:$0xff]
                %432 = vst [vmem:[%s192 + $0x3b8] sm:$0xff] %v431
                %v433 = vld [vmem:[%s191 + $0x780] sm:$0xff]
                %434 = vst [vmem:[%s192 + $0x3c0] sm:$0xff] %v433
                %v435 = vld [vmem:[%s191 + $0x788] sm:$0xff]
                %436 = vst [vmem:[%s192 + $0x3c8] sm:$0xff] %v435
                %v437 = vld [vmem:[%s191 + $0x790] sm:$0xff]
                %438 = vst [vmem:[%s192 + $0x3d0] sm:$0xff] %v437
                %v439 = vld [vmem:[%s191 + $0x798] sm:$0xff]
                %440 = vst [vmem:[%s192 + $0x3d8] sm:$0xff] %v439
                %v441 = vld [vmem:[%s191 + $0x7a0] sm:$0xff]
                %442 = vst [vmem:[%s192 + $0x3e0] sm:$0xff] %v441
                %v443 = vld [vmem:[%s191 + $0x7a8] sm:$0xff]
                %444 = vst [vmem:[%s192 + $0x3e8] sm:$0xff] %v443
                %v445 = vld [vmem:[%s191 + $0x7b0] sm:$0xff]
                %446 = vst [vmem:[%s192 + $0x3f0] sm:$0xff] %v445
                %v447 = vld [vmem:[%s191 + $0x7b8] sm:$0xff]
                %448 = vst [vmem:[%s192 + $0x3f8] sm:$0xff] %v447
              $region45: #{event_track_net_forward.4} parent=39 // loop_footer
                %s190 = sadd.s32 1, %s186
              $region46: #{event_track_net_forward.4} parent=39 // loop_footer_branch
                %185 = sbr.rel target = $region42
              $region47: #{event_track_net_forward.4} parent=39 // loop_exit
                _
            $region40: #{event_track_net_forward.4} parent=35 // pred_fallthru
              _
            // Predicated region
            $region48: #{event_track_net_forward.4} parent=35 // pred_check
              _
            $region49: #{event_track_net_forward.4} parent=35 // pred_check_branch
              %450 = sbr.rel target = $region51
            $region50: #{event_track_net_forward.4} parent=35 // pred_region
              _
            $region51: #{event_track_net_forward.4} parent=35 // pred_fallthru
              _
          $region36: #{event_track_net_forward.4} parent=31 // pred_fallthru
            _
          %451 = vnop
        $region32: #{event_track_net_forward.4} parent=27 // pred_fallthru
          _
      $region28: #{event_track_net_forward.4} parent=5 // pred_fallthru
        _
      %p452 = scmp.le.s32.totalorder 1, %s10
      %p453 = scmp.lt.s32.totalorder %s10, 3
      %p454 = pnand %p452, %p453
      %p455 = pneg %p454
      // Predicated region
      $region52: #{event_track_net_forward.4} parent=5 // pred_check
        _
      $region53: #{event_track_net_forward.4} parent=5 // pred_check_branch
        %457 = sbr.rel (%p454) target = $region55
      $region54: #{event_track_net_forward.4} parent=5 // pred_region
        %s458 = ssub.s32 %s10, 1
        %s459 = sand.u32 %s37, 1
        %s460 = sand.u32 %s37, 1
        %s461 = smul.addr %s460, 1024
        %s462 = scalar_lea.vmem [#allocation3], %s461
        // Predicated region
        $region56: #{event_track_net_forward.4} parent=54 // pred_check
          %p463 = pneg %p50
        $region57: #{event_track_net_forward.4} parent=54 // pred_check_branch
          %465 = sbr.rel (%p463) target = $region59
        $region58: #{event_track_net_forward.4} parent=54 // pred_region
          _
        $region59: #{event_track_net_forward.4} parent=54 // pred_fallthru
          _
        %s466 = sand.u32 %s37, 1
        %s467 = sand.u32 %s37, 1
        %s468 = smul.addr %s467, 1024
        %s469 = scalar_lea.vmem [#allocation3], %s468
        %p470 = pneg %p50
        %p471 = pneg %p47
        %p472 = pneg %p71
        %p473 = pneg %p68
        %p474 = pneg %p92
        %p475 = pneg %p89
        %p476 = pneg %p113
        %p477 = pneg %p110
        %p478 = pneg %p139
        %p479 = pneg %p136
        %s480 = smul.u32 2, %s19
        %p481 = scmp.lt.s32.totalorder %s480, 1
        %s482 = scalar_select %p481, %s480, 1
        %s483 = smul.addr %s482, 2
        %s484 = smul.addr %s483, 4
        %s485 = scalar_lea.vmem %s4, %s484
        %s486 = smul.u32 16, %s19
        %s487 = smul.u32 4, %s20
        %s488 = smul.u32 2, %s19
        %p489 = scmp.lt.s32.totalorder %s488, 1
        %s490 = scalar_select %p489, %s488, 1
        %s491 = smul.addr %s490, 2
        %s492 = smul.addr %s491, 4
        %s493 = scalar_lea.vmem %s4, %s492
        %s494 = smul.u32 2, %s19
        %p496 = scmp.eq.s32.totalorder %s20, 0
        // Predicated region
        $region60: #{event_track_net_forward.4} parent=54 // pred_check
          %p497 = pneg %p496
        $region61: #{event_track_net_forward.4} parent=54 // pred_check_branch
          %499 = sbr.rel (%p497) target = $region63
        $region62: #{event_track_net_forward.4} parent=54 // pred_region
          %500 = vst [vmem:[#allocation2] sm:$0xff] 0.0
          %501 = vst [vmem:[#allocation2 + $0x8] sm:$0xff] 0.0
        $region63: #{event_track_net_forward.4} parent=54 // pred_fallthru
          _
        %v502 = vld [vmem:[%s462] sm:$0xff]
        %v503 = vld [vmem:[%s462 + $0x8] sm:$0xff]
        %v504 = vld [vmem:[%s462 + $0x10] sm:$0xff]
        %v505 = vld [vmem:[%s462 + $0x18] sm:$0xff]
        %v506 = vld [vmem:[%s462 + $0x20] sm:$0xff]
        %v507 = vld [vmem:[%s462 + $0x28] sm:$0xff]
        %v508 = vld [vmem:[%s462 + $0x30] sm:$0xff]
        %v509 = vld [vmem:[%s462 + $0x38] sm:$0xff]
        %v510 = vld [vmem:[%s462 + $0x40] sm:$0xff]
        %v511 = vld [vmem:[%s462 + $0x48] sm:$0xff]
        %v512 = vld [vmem:[%s462 + $0x50] sm:$0xff]
        %v513 = vld [vmem:[%s462 + $0x58] sm:$0xff]
        %v514 = vld [vmem:[%s462 + $0x60] sm:$0xff]
        %v515 = vld [vmem:[%s462 + $0x68] sm:$0xff]
        %v516 = vld [vmem:[%s462 + $0x70] sm:$0xff]
        %v517 = vld [vmem:[%s462 + $0x78] sm:$0xff]
        %v518 = vld [vmem:[%s462 + $0x80] sm:$0xff]
        %v519 = vld [vmem:[%s462 + $0x88] sm:$0xff]
        %v520 = vld [vmem:[%s462 + $0x90] sm:$0xff]
        %v521 = vld [vmem:[%s462 + $0x98] sm:$0xff]
        %v522 = vld [vmem:[%s462 + $0xa0] sm:$0xff]
        %v523 = vld [vmem:[%s462 + $0xa8] sm:$0xff]
        %v524 = vld [vmem:[%s462 + $0xb0] sm:$0xff]
        %v525 = vld [vmem:[%s462 + $0xb8] sm:$0xff]
        %v526 = vld [vmem:[%s462 + $0xc0] sm:$0xff]
        %v527 = vld [vmem:[%s462 + $0xc8] sm:$0xff]
        %v528 = vld [vmem:[%s462 + $0xd0] sm:$0xff]
        %v529 = vld [vmem:[%s462 + $0xd8] sm:$0xff]
        %v530 = vld [vmem:[%s462 + $0xe0] sm:$0xff]
        %v531 = vld [vmem:[%s462 + $0xe8] sm:$0xff]
        %v532 = vld [vmem:[%s462 + $0xf0] sm:$0xff]
        %v533 = vld [vmem:[%s462 + $0xf8] sm:$0xff]
        %v534 = vld [vmem:[%s462 + $0x100] sm:$0xff]
        %v535 = vld [vmem:[%s462 + $0x108] sm:$0xff]
        %v536 = vld [vmem:[%s462 + $0x110] sm:$0xff]
        %v537 = vld [vmem:[%s462 + $0x118] sm:$0xff]
        %v538 = vld [vmem:[%s462 + $0x120] sm:$0xff]
        %v539 = vld [vmem:[%s462 + $0x128] sm:$0xff]
        %v540 = vld [vmem:[%s462 + $0x130] sm:$0xff]
        %v541 = vld [vmem:[%s462 + $0x138] sm:$0xff]
        %v542 = vld [vmem:[%s462 + $0x140] sm:$0xff]
        %v543 = vld [vmem:[%s462 + $0x148] sm:$0xff]
        %v544 = vld [vmem:[%s462 + $0x150] sm:$0xff]
        %v545 = vld [vmem:[%s462 + $0x158] sm:$0xff]
        %v546 = vld [vmem:[%s462 + $0x160] sm:$0xff]
        %v547 = vld [vmem:[%s462 + $0x168] sm:$0xff]
        %v548 = vld [vmem:[%s462 + $0x170] sm:$0xff]
        %v549 = vld [vmem:[%s462 + $0x178] sm:$0xff]
        %v550 = vld [vmem:[%s462 + $0x180] sm:$0xff]
        %v551 = vld [vmem:[%s462 + $0x188] sm:$0xff]
        %v552 = vld [vmem:[%s462 + $0x190] sm:$0xff]
        %v553 = vld [vmem:[%s462 + $0x198] sm:$0xff]
        %v554 = vld [vmem:[%s462 + $0x1a0] sm:$0xff]
        %v555 = vld [vmem:[%s462 + $0x1a8] sm:$0xff]
        %v556 = vld [vmem:[%s462 + $0x1b0] sm:$0xff]
        %v557 = vld [vmem:[%s462 + $0x1b8] sm:$0xff]
        %v558 = vld [vmem:[%s462 + $0x1c0] sm:$0xff]
        %v559 = vld [vmem:[%s462 + $0x1c8] sm:$0xff]
        %v560 = vld [vmem:[%s462 + $0x1d0] sm:$0xff]
        %v561 = vld [vmem:[%s462 + $0x1d8] sm:$0xff]
        %v562 = vld [vmem:[%s462 + $0x1e0] sm:$0xff]
        %v563 = vld [vmem:[%s462 + $0x1e8] sm:$0xff]
        %v564 = vld [vmem:[%s462 + $0x1f0] sm:$0xff]
        %v565 = vld [vmem:[%s462 + $0x1f8] sm:$0xff]
        %v566 = vld [vmem:[%s462 + $0x200] sm:$0xff]
        %v567 = vld [vmem:[%s462 + $0x208] sm:$0xff]
        %v568 = vld [vmem:[%s462 + $0x210] sm:$0xff]
        %v569 = vld [vmem:[%s462 + $0x218] sm:$0xff]
        %v570 = vld [vmem:[%s462 + $0x220] sm:$0xff]
        %v571 = vld [vmem:[%s462 + $0x228] sm:$0xff]
        %v572 = vld [vmem:[%s462 + $0x230] sm:$0xff]
        %v573 = vld [vmem:[%s462 + $0x238] sm:$0xff]
        %v574 = vld [vmem:[%s462 + $0x240] sm:$0xff]
        %v575 = vld [vmem:[%s462 + $0x248] sm:$0xff]
        %v576 = vld [vmem:[%s462 + $0x250] sm:$0xff]
        %v577 = vld [vmem:[%s462 + $0x258] sm:$0xff]
        %v578 = vld [vmem:[%s462 + $0x260] sm:$0xff]
        %v579 = vld [vmem:[%s462 + $0x268] sm:$0xff]
        %v580 = vld [vmem:[%s462 + $0x270] sm:$0xff]
        %v581 = vld [vmem:[%s462 + $0x278] sm:$0xff]
        %v582 = vld [vmem:[%s462 + $0x280] sm:$0xff]
        %v583 = vld [vmem:[%s462 + $0x288] sm:$0xff]
        %v584 = vld [vmem:[%s462 + $0x290] sm:$0xff]
        %v585 = vld [vmem:[%s462 + $0x298] sm:$0xff]
        %v586 = vld [vmem:[%s462 + $0x2a0] sm:$0xff]
        %v587 = vld [vmem:[%s462 + $0x2a8] sm:$0xff]
        %v588 = vld [vmem:[%s462 + $0x2b0] sm:$0xff]
        %v589 = vld [vmem:[%s462 + $0x2b8] sm:$0xff]
        %v590 = vld [vmem:[%s462 + $0x2c0] sm:$0xff]
        %v591 = vld [vmem:[%s462 + $0x2c8] sm:$0xff]
        %v592 = vld [vmem:[%s462 + $0x2d0] sm:$0xff]
        %v593 = vld [vmem:[%s462 + $0x2d8] sm:$0xff]
        %v594 = vld [vmem:[%s462 + $0x2e0] sm:$0xff]
        %v595 = vld [vmem:[%s462 + $0x2e8] sm:$0xff]
        %v596 = vld [vmem:[%s462 + $0x2f0] sm:$0xff]
        %v597 = vld [vmem:[%s462 + $0x2f8] sm:$0xff]
        %v598 = vld [vmem:[%s462 + $0x300] sm:$0xff]
        %v599 = vld [vmem:[%s462 + $0x308] sm:$0xff]
        %v600 = vld [vmem:[%s462 + $0x310] sm:$0xff]
        %v601 = vld [vmem:[%s462 + $0x318] sm:$0xff]
        %v602 = vld [vmem:[%s462 + $0x320] sm:$0xff]
        %v603 = vld [vmem:[%s462 + $0x328] sm:$0xff]
        %v604 = vld [vmem:[%s462 + $0x330] sm:$0xff]
        %v605 = vld [vmem:[%s462 + $0x338] sm:$0xff]
        %v606 = vld [vmem:[%s462 + $0x340] sm:$0xff]
        %v607 = vld [vmem:[%s462 + $0x348] sm:$0xff]
        %v608 = vld [vmem:[%s462 + $0x350] sm:$0xff]
        %v609 = vld [vmem:[%s462 + $0x358] sm:$0xff]
        %v610 = vld [vmem:[%s462 + $0x360] sm:$0xff]
        %v611 = vld [vmem:[%s462 + $0x368] sm:$0xff]
        %v612 = vld [vmem:[%s462 + $0x370] sm:$0xff]
        %v613 = vld [vmem:[%s462 + $0x378] sm:$0xff]
        %v614 = vld [vmem:[%s462 + $0x380] sm:$0xff]
        %v615 = vld [vmem:[%s462 + $0x388] sm:$0xff]
        %v616 = vld [vmem:[%s462 + $0x390] sm:$0xff]
        %v617 = vld [vmem:[%s462 + $0x398] sm:$0xff]
        %v618 = vld [vmem:[%s462 + $0x3a0] sm:$0xff]
        %v619 = vld [vmem:[%s462 + $0x3a8] sm:$0xff]
        %v620 = vld [vmem:[%s462 + $0x3b0] sm:$0xff]
        %v621 = vld [vmem:[%s462 + $0x3b8] sm:$0xff]
        %v622 = vld [vmem:[%s462 + $0x3c0] sm:$0xff]
        %v623 = vld [vmem:[%s462 + $0x3c8] sm:$0xff]
        %v624 = vld [vmem:[%s462 + $0x3d0] sm:$0xff]
        %v625 = vld [vmem:[%s462 + $0x3d8] sm:$0xff]
        %v626 = vld [vmem:[%s462 + $0x3e0] sm:$0xff]
        %v627 = vld [vmem:[%s462 + $0x3e8] sm:$0xff]
        %v628 = vld [vmem:[%s462 + $0x3f0] sm:$0xff]
        %v629 = vld [vmem:[%s462 + $0x3f8] sm:$0xff]
        %v630 = vld [vmem:[%s1] sm:$0xf]
        %v631 = vld [vmem:[%s1 + $0x4] sm:$0xf]
        %v632 = vld [vmem:[%s1 + $0x8] sm:$0xf]
        %v633 = vld [vmem:[%s1 + $0xc] sm:$0xf]
        %v634 = vld [vmem:[%s1 + $0x10] sm:$0xf]
        %v635 = vld [vmem:[%s1 + $0x14] sm:$0xf]
        %v636 = vld [vmem:[%s1 + $0x18] sm:$0xf]
        %v637 = vld [vmem:[%s1 + $0x1c] sm:$0xf]
        %v638 = vld [vmem:[%s1 + $0x20] sm:$0xf]
        %v639 = vld [vmem:[%s1 + $0x24] sm:$0xf]
        %v640 = vld [vmem:[%s1 + $0x28] sm:$0xf]
        %v641 = vld [vmem:[%s1 + $0x2c] sm:$0xf]
        %v642 = vld [vmem:[%s1 + $0x30] sm:$0xf]
        %v643 = vld [vmem:[%s1 + $0x34] sm:$0xf]
        %v644 = vld [vmem:[%s1 + $0x38] sm:$0xf]
        %v645 = vld [vmem:[%s1 + $0x3c] sm:$0xf]
        %v646 = vld [vmem:[%s1 + $0x40] sm:$0xf]
        %v647 = vld [vmem:[%s1 + $0x44] sm:$0xf]
        %v648 = vld [vmem:[%s1 + $0x48] sm:$0xf]
        %v649 = vld [vmem:[%s1 + $0x4c] sm:$0xf]
        %v650 = vld [vmem:[%s1 + $0x50] sm:$0xf]
        %v651 = vld [vmem:[%s1 + $0x54] sm:$0xf]
        %v652 = vld [vmem:[%s1 + $0x58] sm:$0xf]
        %v653 = vld [vmem:[%s1 + $0x5c] sm:$0xf]
        %v654 = vld [vmem:[%s1 + $0x60] sm:$0xf]
        %v655 = vld [vmem:[%s1 + $0x64] sm:$0xf]
        %v656 = vld [vmem:[%s1 + $0x68] sm:$0xf]
        %v657 = vld [vmem:[%s1 + $0x6c] sm:$0xf]
        %v658 = vld [vmem:[%s1 + $0x70] sm:$0xf]
        %v659 = vld [vmem:[%s1 + $0x74] sm:$0xf]
        %v660 = vld [vmem:[%s1 + $0x78] sm:$0xf]
        %v661 = vld [vmem:[%s1 + $0x7c] sm:$0xf]
        %v662 = vld [vmem:[%s1 + $0x80] sm:$0xf]
        %v663 = vld [vmem:[%s1 + $0x84] sm:$0xf]
        %v664 = vld [vmem:[%s1 + $0x88] sm:$0xf]
        %v665 = vld [vmem:[%s1 + $0x8c] sm:$0xf]
        %v666 = vld [vmem:[%s1 + $0x90] sm:$0xf]
        %v667 = vld [vmem:[%s1 + $0x94] sm:$0xf]
        %v668 = vld [vmem:[%s1 + $0x98] sm:$0xf]
        %v669 = vld [vmem:[%s1 + $0x9c] sm:$0xf]
        %v670 = vld [vmem:[%s1 + $0xa0] sm:$0xf]
        %v671 = vld [vmem:[%s1 + $0xa4] sm:$0xf]
        %v672 = vld [vmem:[%s1 + $0xa8] sm:$0xf]
        %v673 = vld [vmem:[%s1 + $0xac] sm:$0xf]
        %v674 = vld [vmem:[%s1 + $0xb0] sm:$0xf]
        %v675 = vld [vmem:[%s1 + $0xb4] sm:$0xf]
        %v676 = vld [vmem:[%s1 + $0xb8] sm:$0xf]
        %v677 = vld [vmem:[%s1 + $0xbc] sm:$0xf]
        %v678 = vld [vmem:[%s1 + $0xc0] sm:$0xf]
        %v679 = vld [vmem:[%s1 + $0xc4] sm:$0xf]
        %v680 = vld [vmem:[%s1 + $0xc8] sm:$0xf]
        %v681 = vld [vmem:[%s1 + $0xcc] sm:$0xf]
        %v682 = vld [vmem:[%s1 + $0xd0] sm:$0xf]
        %v683 = vld [vmem:[%s1 + $0xd4] sm:$0xf]
        %v684 = vld [vmem:[%s1 + $0xd8] sm:$0xf]
        %v685 = vld [vmem:[%s1 + $0xdc] sm:$0xf]
        %v686 = vld [vmem:[%s1 + $0xe0] sm:$0xf]
        %v687 = vld [vmem:[%s1 + $0xe4] sm:$0xf]
        %v688 = vld [vmem:[%s1 + $0xe8] sm:$0xf]
        %v689 = vld [vmem:[%s1 + $0xec] sm:$0xf]
        %v690 = vld [vmem:[%s1 + $0xf0] sm:$0xf]
        %v691 = vld [vmem:[%s1 + $0xf4] sm:$0xf]
        %v692 = vld [vmem:[%s1 + $0xf8] sm:$0xf]
        %v693 = vld [vmem:[%s1 + $0xfc] sm:$0xf]
        %v822 = vunpack.c.l.b16 %v502
        %v823 = vunpack.c.h.b16 %v502
        %v824 = vunpack.c.l.b16 %v503
        %v825 = vunpack.c.h.b16 %v503
        %v826 = vunpack.c.l.b16 %v504
        %v827 = vunpack.c.h.b16 %v504
        %v828 = vunpack.c.l.b16 %v505
        %v829 = vunpack.c.h.b16 %v505
        %v830 = vunpack.c.l.b16 %v506
        %v831 = vunpack.c.h.b16 %v506
        %v832 = vunpack.c.l.b16 %v507
        %v833 = vunpack.c.h.b16 %v507
        %v834 = vunpack.c.l.b16 %v508
        %v835 = vunpack.c.h.b16 %v508
        %v836 = vunpack.c.l.b16 %v509
        %v837 = vunpack.c.h.b16 %v509
        %v838 = vunpack.c.l.b16 %v510
        %v839 = vunpack.c.h.b16 %v510
        %v840 = vunpack.c.l.b16 %v511
        %v841 = vunpack.c.h.b16 %v511
        %v842 = vunpack.c.l.b16 %v512
        %v843 = vunpack.c.h.b16 %v512
        %v844 = vunpack.c.l.b16 %v513
        %v845 = vunpack.c.h.b16 %v513
        %v846 = vunpack.c.l.b16 %v514
        %v847 = vunpack.c.h.b16 %v514
        %v848 = vunpack.c.l.b16 %v515
        %v849 = vunpack.c.h.b16 %v515
        %v850 = vunpack.c.l.b16 %v516
        %v851 = vunpack.c.h.b16 %v516
        %v852 = vunpack.c.l.b16 %v517
        %v853 = vunpack.c.h.b16 %v517
        %v854 = vunpack.c.l.b16 %v518
        %v855 = vunpack.c.h.b16 %v518
        %v856 = vunpack.c.l.b16 %v519
        %v857 = vunpack.c.h.b16 %v519
        %v858 = vunpack.c.l.b16 %v520
        %v859 = vunpack.c.h.b16 %v520
        %v860 = vunpack.c.l.b16 %v521
        %v861 = vunpack.c.h.b16 %v521
        %v862 = vunpack.c.l.b16 %v522
        %v863 = vunpack.c.h.b16 %v522
        %v864 = vunpack.c.l.b16 %v523
        %v865 = vunpack.c.h.b16 %v523
        %v866 = vunpack.c.l.b16 %v524
        %v867 = vunpack.c.h.b16 %v524
        %v868 = vunpack.c.l.b16 %v525
        %v869 = vunpack.c.h.b16 %v525
        %v870 = vunpack.c.l.b16 %v526
        %v871 = vunpack.c.h.b16 %v526
        %v872 = vunpack.c.l.b16 %v527
        %v873 = vunpack.c.h.b16 %v527
        %v874 = vunpack.c.l.b16 %v528
        %v875 = vunpack.c.h.b16 %v528
        %v876 = vunpack.c.l.b16 %v529
        %v877 = vunpack.c.h.b16 %v529
        %v878 = vunpack.c.l.b16 %v530
        %v879 = vunpack.c.h.b16 %v530
        %v880 = vunpack.c.l.b16 %v531
        %v881 = vunpack.c.h.b16 %v531
        %v882 = vunpack.c.l.b16 %v532
        %v883 = vunpack.c.h.b16 %v532
        %v884 = vunpack.c.l.b16 %v533
        %v885 = vunpack.c.h.b16 %v533
        %v886 = vunpack.c.l.b16 %v534
        %v887 = vunpack.c.h.b16 %v534
        %v888 = vunpack.c.l.b16 %v535
        %v889 = vunpack.c.h.b16 %v535
        %v890 = vunpack.c.l.b16 %v536
        %v891 = vunpack.c.h.b16 %v536
        %v892 = vunpack.c.l.b16 %v537
        %v893 = vunpack.c.h.b16 %v537
        %v894 = vunpack.c.l.b16 %v538
        %v895 = vunpack.c.h.b16 %v538
        %v896 = vunpack.c.l.b16 %v539
        %v897 = vunpack.c.h.b16 %v539
        %v898 = vunpack.c.l.b16 %v540
        %v899 = vunpack.c.h.b16 %v540
        %v900 = vunpack.c.l.b16 %v541
        %v901 = vunpack.c.h.b16 %v541
        %v902 = vunpack.c.l.b16 %v542
        %v903 = vunpack.c.h.b16 %v542
        %v904 = vunpack.c.l.b16 %v543
        %v905 = vunpack.c.h.b16 %v543
        %v906 = vunpack.c.l.b16 %v544
        %v907 = vunpack.c.h.b16 %v544
        %v908 = vunpack.c.l.b16 %v545
        %v909 = vunpack.c.h.b16 %v545
        %v910 = vunpack.c.l.b16 %v546
        %v911 = vunpack.c.h.b16 %v546
        %v912 = vunpack.c.l.b16 %v547
        %v913 = vunpack.c.h.b16 %v547
        %v914 = vunpack.c.l.b16 %v548
        %v915 = vunpack.c.h.b16 %v548
        %v916 = vunpack.c.l.b16 %v549
        %v917 = vunpack.c.h.b16 %v549
        %v918 = vunpack.c.l.b16 %v550
        %v919 = vunpack.c.h.b16 %v550
        %v920 = vunpack.c.l.b16 %v551
        %v921 = vunpack.c.h.b16 %v551
        %v922 = vunpack.c.l.b16 %v552
        %v923 = vunpack.c.h.b16 %v552
        %v924 = vunpack.c.l.b16 %v553
        %v925 = vunpack.c.h.b16 %v553
        %v926 = vunpack.c.l.b16 %v554
        %v927 = vunpack.c.h.b16 %v554
        %v928 = vunpack.c.l.b16 %v555
        %v929 = vunpack.c.h.b16 %v555
        %v930 = vunpack.c.l.b16 %v556
        %v931 = vunpack.c.h.b16 %v556
        %v932 = vunpack.c.l.b16 %v557
        %v933 = vunpack.c.h.b16 %v557
        %v934 = vunpack.c.l.b16 %v558
        %v935 = vunpack.c.h.b16 %v558
        %v936 = vunpack.c.l.b16 %v559
        %v937 = vunpack.c.h.b16 %v559
        %v938 = vunpack.c.l.b16 %v560
        %v939 = vunpack.c.h.b16 %v560
        %v940 = vunpack.c.l.b16 %v561
        %v941 = vunpack.c.h.b16 %v561
        %v942 = vunpack.c.l.b16 %v562
        %v943 = vunpack.c.h.b16 %v562
        %v944 = vunpack.c.l.b16 %v563
        %v945 = vunpack.c.h.b16 %v563
        %v946 = vunpack.c.l.b16 %v564
        %v947 = vunpack.c.h.b16 %v564
        %v948 = vunpack.c.l.b16 %v565
        %v949 = vunpack.c.h.b16 %v565
        %v950 = vunpack.c.l.b16 %v566
        %v951 = vunpack.c.h.b16 %v566
        %v952 = vunpack.c.l.b16 %v567
        %v953 = vunpack.c.h.b16 %v567
        %v954 = vunpack.c.l.b16 %v568
        %v955 = vunpack.c.h.b16 %v568
        %v956 = vunpack.c.l.b16 %v569
        %v957 = vunpack.c.h.b16 %v569
        %v958 = vunpack.c.l.b16 %v570
        %v959 = vunpack.c.h.b16 %v570
        %v960 = vunpack.c.l.b16 %v571
        %v961 = vunpack.c.h.b16 %v571
        %v962 = vunpack.c.l.b16 %v572
        %v963 = vunpack.c.h.b16 %v572
        %v964 = vunpack.c.l.b16 %v573
        %v965 = vunpack.c.h.b16 %v573
        %v966 = vunpack.c.l.b16 %v574
        %v967 = vunpack.c.h.b16 %v574
        %v968 = vunpack.c.l.b16 %v575
        %v969 = vunpack.c.h.b16 %v575
        %v970 = vunpack.c.l.b16 %v576
        %v971 = vunpack.c.h.b16 %v576
        %v972 = vunpack.c.l.b16 %v577
        %v973 = vunpack.c.h.b16 %v577
        %v974 = vunpack.c.l.b16 %v578
        %v975 = vunpack.c.h.b16 %v578
        %v976 = vunpack.c.l.b16 %v579
        %v977 = vunpack.c.h.b16 %v579
        %v978 = vunpack.c.l.b16 %v580
        %v979 = vunpack.c.h.b16 %v580
        %v980 = vunpack.c.l.b16 %v581
        %v981 = vunpack.c.h.b16 %v581
        %v982 = vunpack.c.l.b16 %v582
        %v983 = vunpack.c.h.b16 %v582
        %v984 = vunpack.c.l.b16 %v583
        %v985 = vunpack.c.h.b16 %v583
        %v986 = vunpack.c.l.b16 %v584
        %v987 = vunpack.c.h.b16 %v584
        %v988 = vunpack.c.l.b16 %v585
        %v989 = vunpack.c.h.b16 %v585
        %v990 = vunpack.c.l.b16 %v586
        %v991 = vunpack.c.h.b16 %v586
        %v992 = vunpack.c.l.b16 %v587
        %v993 = vunpack.c.h.b16 %v587
        %v994 = vunpack.c.l.b16 %v588
        %v995 = vunpack.c.h.b16 %v588
        %v996 = vunpack.c.l.b16 %v589
        %v997 = vunpack.c.h.b16 %v589
        %v998 = vunpack.c.l.b16 %v590
        %v999 = vunpack.c.h.b16 %v590
        %v1000 = vunpack.c.l.b16 %v591
        %v1001 = vunpack.c.h.b16 %v591
        %v1002 = vunpack.c.l.b16 %v592
        %v1003 = vunpack.c.h.b16 %v592
        %v1004 = vunpack.c.l.b16 %v593
        %v1005 = vunpack.c.h.b16 %v593
        %v1006 = vunpack.c.l.b16 %v594
        %v1007 = vunpack.c.h.b16 %v594
        %v1008 = vunpack.c.l.b16 %v595
        %v1009 = vunpack.c.h.b16 %v595
        %v1010 = vunpack.c.l.b16 %v596
        %v1011 = vunpack.c.h.b16 %v596
        %v1012 = vunpack.c.l.b16 %v597
        %v1013 = vunpack.c.h.b16 %v597
        %v1014 = vunpack.c.l.b16 %v598
        %v1015 = vunpack.c.h.b16 %v598
        %v1016 = vunpack.c.l.b16 %v599
        %v1017 = vunpack.c.h.b16 %v599
        %v1018 = vunpack.c.l.b16 %v600
        %v1019 = vunpack.c.h.b16 %v600
        %v1020 = vunpack.c.l.b16 %v601
        %v1021 = vunpack.c.h.b16 %v601
        %v1022 = vunpack.c.l.b16 %v602
        %v1023 = vunpack.c.h.b16 %v602
        %v1024 = vunpack.c.l.b16 %v603
        %v1025 = vunpack.c.h.b16 %v603
        %v1026 = vunpack.c.l.b16 %v604
        %v1027 = vunpack.c.h.b16 %v604
        %v1028 = vunpack.c.l.b16 %v605
        %v1029 = vunpack.c.h.b16 %v605
        %v1030 = vunpack.c.l.b16 %v606
        %v1031 = vunpack.c.h.b16 %v606
        %v1032 = vunpack.c.l.b16 %v607
        %v1033 = vunpack.c.h.b16 %v607
        %v1034 = vunpack.c.l.b16 %v608
        %v1035 = vunpack.c.h.b16 %v608
        %v1036 = vunpack.c.l.b16 %v609
        %v1037 = vunpack.c.h.b16 %v609
        %v1038 = vunpack.c.l.b16 %v610
        %v1039 = vunpack.c.h.b16 %v610
        %v1040 = vunpack.c.l.b16 %v611
        %v1041 = vunpack.c.h.b16 %v611
        %v1042 = vunpack.c.l.b16 %v612
        %v1043 = vunpack.c.h.b16 %v612
        %v1044 = vunpack.c.l.b16 %v613
        %v1045 = vunpack.c.h.b16 %v613
        %v1046 = vunpack.c.l.b16 %v614
        %v1047 = vunpack.c.h.b16 %v614
        %v1048 = vunpack.c.l.b16 %v615
        %v1049 = vunpack.c.h.b16 %v615
        %v1050 = vunpack.c.l.b16 %v616
        %v1051 = vunpack.c.h.b16 %v616
        %v1052 = vunpack.c.l.b16 %v617
        %v1053 = vunpack.c.h.b16 %v617
        %v1054 = vunpack.c.l.b16 %v618
        %v1055 = vunpack.c.h.b16 %v618
        %v1056 = vunpack.c.l.b16 %v619
        %v1057 = vunpack.c.h.b16 %v619
        %v1058 = vunpack.c.l.b16 %v620
        %v1059 = vunpack.c.h.b16 %v620
        %v1060 = vunpack.c.l.b16 %v621
        %v1061 = vunpack.c.h.b16 %v621
        %v1062 = vunpack.c.l.b16 %v622
        %v1063 = vunpack.c.h.b16 %v622
        %v1064 = vunpack.c.l.b16 %v623
        %v1065 = vunpack.c.h.b16 %v623
        %v1066 = vunpack.c.l.b16 %v624
        %v1067 = vunpack.c.h.b16 %v624
        %v1068 = vunpack.c.l.b16 %v625
        %v1069 = vunpack.c.h.b16 %v625
        %v1070 = vunpack.c.l.b16 %v626
        %v1071 = vunpack.c.h.b16 %v626
        %v1072 = vunpack.c.l.b16 %v627
        %v1073 = vunpack.c.h.b16 %v627
        %v1074 = vunpack.c.l.b16 %v628
        %v1075 = vunpack.c.h.b16 %v628
        %v1076 = vunpack.c.l.b16 %v629
        %v1077 = vunpack.c.h.b16 %v629
        %v1078 = vpack.c.b16 %v826, %v822
        %v1079 = vpack.c.b16 %v827, %v823
        %v1080 = vpack.c.b16 %v828, %v824
        %v1081 = vpack.c.b16 %v829, %v825
        %v1082 = vpack.c.b16 %v834, %v830
        %v1083 = vpack.c.b16 %v835, %v831
        %v1084 = vpack.c.b16 %v836, %v832
        %v1085 = vpack.c.b16 %v837, %v833
        %v1086 = vpack.c.b16 %v842, %v838
        %v1087 = vpack.c.b16 %v843, %v839
        %v1088 = vpack.c.b16 %v844, %v840
        %v1089 = vpack.c.b16 %v845, %v841
        %v1090 = vpack.c.b16 %v850, %v846
        %v1091 = vpack.c.b16 %v851, %v847
        %v1092 = vpack.c.b16 %v852, %v848
        %v1093 = vpack.c.b16 %v853, %v849
        %v1094 = vpack.c.b16 %v858, %v854
        %v1095 = vpack.c.b16 %v859, %v855
        %v1096 = vpack.c.b16 %v860, %v856
        %v1097 = vpack.c.b16 %v861, %v857
        %v1098 = vpack.c.b16 %v866, %v862
        %v1099 = vpack.c.b16 %v867, %v863
        %v1100 = vpack.c.b16 %v868, %v864
        %v1101 = vpack.c.b16 %v869, %v865
        %v1102 = vpack.c.b16 %v874, %v870
        %v1103 = vpack.c.b16 %v875, %v871
        %v1104 = vpack.c.b16 %v876, %v872
        %v1105 = vpack.c.b16 %v877, %v873
        %v1106 = vpack.c.b16 %v882, %v878
        %v1107 = vpack.c.b16 %v883, %v879
        %v1108 = vpack.c.b16 %v884, %v880
        %v1109 = vpack.c.b16 %v885, %v881
        %v1110 = vpack.c.b16 %v890, %v886
        %v1111 = vpack.c.b16 %v891, %v887
        %v1112 = vpack.c.b16 %v892, %v888
        %v1113 = vpack.c.b16 %v893, %v889
        %v1114 = vpack.c.b16 %v898, %v894
        %v1115 = vpack.c.b16 %v899, %v895
        %v1116 = vpack.c.b16 %v900, %v896
        %v1117 = vpack.c.b16 %v901, %v897
        %v1118 = vpack.c.b16 %v906, %v902
        %v1119 = vpack.c.b16 %v907, %v903
        %v1120 = vpack.c.b16 %v908, %v904
        %v1121 = vpack.c.b16 %v909, %v905
        %v1122 = vpack.c.b16 %v914, %v910
        %v1123 = vpack.c.b16 %v915, %v911
        %v1124 = vpack.c.b16 %v916, %v912
        %v1125 = vpack.c.b16 %v917, %v913
        %v1126 = vpack.c.b16 %v922, %v918
        %v1127 = vpack.c.b16 %v923, %v919
        %v1128 = vpack.c.b16 %v924, %v920
        %v1129 = vpack.c.b16 %v925, %v921
        %v1130 = vpack.c.b16 %v930, %v926
        %v1131 = vpack.c.b16 %v931, %v927
        %v1132 = vpack.c.b16 %v932, %v928
        %v1133 = vpack.c.b16 %v933, %v929
        %v1134 = vpack.c.b16 %v938, %v934
        %v1135 = vpack.c.b16 %v939, %v935
        %v1136 = vpack.c.b16 %v940, %v936
        %v1137 = vpack.c.b16 %v941, %v937
        %v1138 = vpack.c.b16 %v946, %v942
        %v1139 = vpack.c.b16 %v947, %v943
        %v1140 = vpack.c.b16 %v948, %v944
        %v1141 = vpack.c.b16 %v949, %v945
        %v1142 = vpack.c.b16 %v954, %v950
        %v1143 = vpack.c.b16 %v955, %v951
        %v1144 = vpack.c.b16 %v956, %v952
        %v1145 = vpack.c.b16 %v957, %v953
        %v1146 = vpack.c.b16 %v962, %v958
        %v1147 = vpack.c.b16 %v963, %v959
        %v1148 = vpack.c.b16 %v964, %v960
        %v1149 = vpack.c.b16 %v965, %v961
        %v1150 = vpack.c.b16 %v970, %v966
        %v1151 = vpack.c.b16 %v971, %v967
        %v1152 = vpack.c.b16 %v972, %v968
        %v1153 = vpack.c.b16 %v973, %v969
        %v1154 = vpack.c.b16 %v978, %v974
        %v1155 = vpack.c.b16 %v979, %v975
        %v1156 = vpack.c.b16 %v980, %v976
        %v1157 = vpack.c.b16 %v981, %v977
        %v1158 = vpack.c.b16 %v986, %v982
        %v1159 = vpack.c.b16 %v987, %v983
        %v1160 = vpack.c.b16 %v988, %v984
        %v1161 = vpack.c.b16 %v989, %v985
        %v1162 = vpack.c.b16 %v994, %v990
        %v1163 = vpack.c.b16 %v995, %v991
        %v1164 = vpack.c.b16 %v996, %v992
        %v1165 = vpack.c.b16 %v997, %v993
        %v1166 = vpack.c.b16 %v1002, %v998
        %v1167 = vpack.c.b16 %v1003, %v999
        %v1168 = vpack.c.b16 %v1004, %v1000
        %v1169 = vpack.c.b16 %v1005, %v1001
        %v1170 = vpack.c.b16 %v1010, %v1006
        %v1171 = vpack.c.b16 %v1011, %v1007
        %v1172 = vpack.c.b16 %v1012, %v1008
        %v1173 = vpack.c.b16 %v1013, %v1009
        %v1174 = vpack.c.b16 %v1018, %v1014
        %v1175 = vpack.c.b16 %v1019, %v1015
        %v1176 = vpack.c.b16 %v1020, %v1016
        %v1177 = vpack.c.b16 %v1021, %v1017
        %v1178 = vpack.c.b16 %v1026, %v1022
        %v1179 = vpack.c.b16 %v1027, %v1023
        %v1180 = vpack.c.b16 %v1028, %v1024
        %v1181 = vpack.c.b16 %v1029, %v1025
        %v1182 = vpack.c.b16 %v1034, %v1030
        %v1183 = vpack.c.b16 %v1035, %v1031
        %v1184 = vpack.c.b16 %v1036, %v1032
        %v1185 = vpack.c.b16 %v1037, %v1033
        %v1186 = vpack.c.b16 %v1042, %v1038
        %v1187 = vpack.c.b16 %v1043, %v1039
        %v1188 = vpack.c.b16 %v1044, %v1040
        %v1189 = vpack.c.b16 %v1045, %v1041
        %v1190 = vpack.c.b16 %v1050, %v1046
        %v1191 = vpack.c.b16 %v1051, %v1047
        %v1192 = vpack.c.b16 %v1052, %v1048
        %v1193 = vpack.c.b16 %v1053, %v1049
        %v1194 = vpack.c.b16 %v1058, %v1054
        %v1195 = vpack.c.b16 %v1059, %v1055
        %v1196 = vpack.c.b16 %v1060, %v1056
        %v1197 = vpack.c.b16 %v1061, %v1057
        %v1198 = vpack.c.b16 %v1066, %v1062
        %v1199 = vpack.c.b16 %v1067, %v1063
        %v1200 = vpack.c.b16 %v1068, %v1064
        %v1201 = vpack.c.b16 %v1069, %v1065
        %v1202 = vpack.c.b16 %v1074, %v1070
        %v1203 = vpack.c.b16 %v1075, %v1071
        %v1204 = vpack.c.b16 %v1076, %v1072
        %v1205 = vpack.c.b16 %v1077, %v1073
        %v1398 = vunpack.c.l.b16 %v630
        %v1399 = vunpack.c.l.b16 %v631
        %v1400 = vunpack.c.l.b16 %v632
        %v1401 = vunpack.c.l.b16 %v633
        %v1402 = vunpack.c.l.b16 %v634
        %v1403 = vunpack.c.l.b16 %v635
        %v1404 = vunpack.c.l.b16 %v636
        %v1405 = vunpack.c.l.b16 %v637
        %v1406 = vunpack.c.l.b16 %v638
        %v1407 = vunpack.c.l.b16 %v639
        %v1408 = vunpack.c.l.b16 %v640
        %v1409 = vunpack.c.l.b16 %v641
        %v1410 = vunpack.c.l.b16 %v642
        %v1411 = vunpack.c.l.b16 %v643
        %v1412 = vunpack.c.l.b16 %v644
        %v1413 = vunpack.c.l.b16 %v645
        %v1414 = vunpack.c.l.b16 %v646
        %v1415 = vunpack.c.l.b16 %v647
        %v1416 = vunpack.c.l.b16 %v648
        %v1417 = vunpack.c.l.b16 %v649
        %v1418 = vunpack.c.l.b16 %v650
        %v1419 = vunpack.c.l.b16 %v651
        %v1420 = vunpack.c.l.b16 %v652
        %v1421 = vunpack.c.l.b16 %v653
        %v1422 = vunpack.c.l.b16 %v654
        %v1423 = vunpack.c.l.b16 %v655
        %v1424 = vunpack.c.l.b16 %v656
        %v1425 = vunpack.c.l.b16 %v657
        %v1426 = vunpack.c.l.b16 %v658
        %v1427 = vunpack.c.l.b16 %v659
        %v1428 = vunpack.c.l.b16 %v660
        %v1429 = vunpack.c.l.b16 %v661
        %v1430 = vunpack.c.l.b16 %v662
        %v1431 = vunpack.c.l.b16 %v663
        %v1432 = vunpack.c.l.b16 %v664
        %v1433 = vunpack.c.l.b16 %v665
        %v1434 = vunpack.c.l.b16 %v666
        %v1435 = vunpack.c.l.b16 %v667
        %v1436 = vunpack.c.l.b16 %v668
        %v1437 = vunpack.c.l.b16 %v669
        %v1438 = vunpack.c.l.b16 %v670
        %v1439 = vunpack.c.l.b16 %v671
        %v1440 = vunpack.c.l.b16 %v672
        %v1441 = vunpack.c.l.b16 %v673
        %v1442 = vunpack.c.l.b16 %v674
        %v1443 = vunpack.c.l.b16 %v675
        %v1444 = vunpack.c.l.b16 %v676
        %v1445 = vunpack.c.l.b16 %v677
        %v1446 = vunpack.c.l.b16 %v678
        %v1447 = vunpack.c.l.b16 %v679
        %v1448 = vunpack.c.l.b16 %v680
        %v1449 = vunpack.c.l.b16 %v681
        %v1450 = vunpack.c.l.b16 %v682
        %v1451 = vunpack.c.l.b16 %v683
        %v1452 = vunpack.c.l.b16 %v684
        %v1453 = vunpack.c.l.b16 %v685
        %v1454 = vunpack.c.l.b16 %v686
        %v1455 = vunpack.c.l.b16 %v687
        %v1456 = vunpack.c.l.b16 %v688
        %v1457 = vunpack.c.l.b16 %v689
        %v1458 = vunpack.c.l.b16 %v690
        %v1459 = vunpack.c.l.b16 %v691
        %v1460 = vunpack.c.l.b16 %v692
        %v1461 = vunpack.c.l.b16 %v693
        %v1462 = vpack.c.b16 %v1399, %v1398
        %v1463 = vpack.c.b16 %v1401, %v1400
        %v1464 = vpack.c.b16 %v1403, %v1402
        %v1465 = vpack.c.b16 %v1405, %v1404
        %v1466 = vpack.c.b16 %v1407, %v1406
        %v1467 = vpack.c.b16 %v1409, %v1408
        %v1468 = vpack.c.b16 %v1411, %v1410
        %v1469 = vpack.c.b16 %v1413, %v1412
        %v1470 = vpack.c.b16 %v1415, %v1414
        %v1471 = vpack.c.b16 %v1417, %v1416
        %v1472 = vpack.c.b16 %v1419, %v1418
        %v1473 = vpack.c.b16 %v1421, %v1420
        %v1474 = vpack.c.b16 %v1423, %v1422
        %v1475 = vpack.c.b16 %v1425, %v1424
        %v1476 = vpack.c.b16 %v1427, %v1426
        %v1477 = vpack.c.b16 %v1429, %v1428
        %v1478 = vpack.c.b16 %v1431, %v1430
        %v1479 = vpack.c.b16 %v1433, %v1432
        %v1480 = vpack.c.b16 %v1435, %v1434
        %v1481 = vpack.c.b16 %v1437, %v1436
        %v1482 = vpack.c.b16 %v1439, %v1438
        %v1483 = vpack.c.b16 %v1441, %v1440
        %v1484 = vpack.c.b16 %v1443, %v1442
        %v1485 = vpack.c.b16 %v1445, %v1444
        %v1486 = vpack.c.b16 %v1447, %v1446
        %v1487 = vpack.c.b16 %v1449, %v1448
        %v1488 = vpack.c.b16 %v1451, %v1450
        %v1489 = vpack.c.b16 %v1453, %v1452
        %v1490 = vpack.c.b16 %v1455, %v1454
        %v1491 = vpack.c.b16 %v1457, %v1456
        %v1492 = vpack.c.b16 %v1459, %v1458
        %v1493 = vpack.c.b16 %v1461, %v1460
        %1526 = vmatprep.subr.bf16.mxu0 0
        %1527 = vmatpush1.bf16.msra.mxu0 %v1462
        %1528 = vmatprep.subr.bf16.mxu0 0
        %1529 = vmatpush1.bf16.msra.mxu0 %v1463
        %1530 = vmatprep.subr.bf16.mxu0 0
        %1531 = vmatpush1.bf16.msra.mxu0 %v1464
        %1532 = vmatprep.subr.bf16.mxu0 0
        %1533 = vmatpush1.bf16.msra.mxu0 %v1465
        %1534 = vmatprep.subr.bf16.mxu0 0
        %1535 = vmatpush1.bf16.msra.mxu0 %v1466
        %1536 = vmatprep.subr.bf16.mxu0 0
        %1537 = vmatpush1.bf16.msra.mxu0 %v1467
        %1538 = vmatprep.subr.bf16.mxu0 0
        %1539 = vmatpush1.bf16.msra.mxu0 %v1468
        %1540 = vmatprep.subr.bf16.mxu0 0
        %1541 = vmatpush1.bf16.msra.mxu0 %v1469
        %1542 = vmatprep.subr.bf16.mxu0 0
        %1543 = vmatpush1.bf16.msra.mxu0 %v1470
        %1544 = vmatprep.subr.bf16.mxu0 0
        %1545 = vmatpush1.bf16.msra.mxu0 %v1471
        %1546 = vmatprep.subr.bf16.mxu0 0
        %1547 = vmatpush1.bf16.msra.mxu0 %v1472
        %1548 = vmatprep.subr.bf16.mxu0 0
        %1549 = vmatpush1.bf16.msra.mxu0 %v1473
        %1550 = vmatprep.subr.bf16.mxu0 0
        %1551 = vmatpush1.bf16.msra.mxu0 %v1474
        %1552 = vmatprep.subr.bf16.mxu0 0
        %1553 = vmatpush1.bf16.msra.mxu0 %v1475
        %1554 = vmatprep.subr.bf16.mxu0 0
        %1555 = vmatpush1.bf16.msra.mxu0 %v1476
        %1556 = vmatprep.subr.bf16.mxu0 0
        %1557 = vmatpush1.bf16.msra.mxu0 %v1477
        %1558 = vmatprep.mubr.bf16.mxu0 %v1079
        %1559 = vmatmul.mubr.bf16.gmra.mrb[0].mxu0 %v1078
        %v1560 = vpop.f32.mrb[0].mxu0
        %v1561 = vadd.f32 0.0, %v1560
        %v1562 = vpop.f32.mrb[0].mxu0
        %v1563 = vpop.f32.mrb[0].mxu0
        %v1564 = vadd.f32 0.0, %v1563
        %v1565 = vpop.f32.mrb[0].mxu0
        %1566 = vmatprep.mubr.bf16.mxu0 %v1083
        %1567 = vmatmul.mubr.bf16.gmra.mrb[0].mxu0 %v1082
        %v1568 = vpop.f32.mrb[0].mxu0
        %v1569 = vadd.f32 0.0, %v1568
        %v1570 = vpop.f32.mrb[0].mxu0
        %v1571 = vpop.f32.mrb[0].mxu0
        %v1572 = vadd.f32 0.0, %v1571
        %v1573 = vpop.f32.mrb[0].mxu0
        %1574 = vmatprep.mubr.bf16.mxu0 %v1087
        %1575 = vmatmul.mubr.bf16.gmra.mrb[0].mxu0 %v1086
        %v1576 = vpop.f32.mrb[0].mxu0
        %v1577 = vadd.f32 0.0, %v1576
        %v1578 = vpop.f32.mrb[0].mxu0
        %v1579 = vpop.f32.mrb[0].mxu0
        %v1580 = vadd.f32 0.0, %v1579
        %v1581 = vpop.f32.mrb[0].mxu0
        %1582 = vmatprep.mubr.bf16.mxu0 %v1091
        %1583 = vmatmul.mubr.bf16.gmra.mrb[0].mxu0 %v1090
        %v1584 = vpop.f32.mrb[0].mxu0
        %v1585 = vadd.f32 0.0, %v1584
        %v1586 = vpop.f32.mrb[0].mxu0
        %v1587 = vpop.f32.mrb[0].mxu0
        %v1588 = vadd.f32 0.0, %v1587
        %v1589 = vpop.f32.mrb[0].mxu0
        %1590 = vmatprep.mubr.bf16.mxu0 %v1095
        %1591 = vmatmul.mubr.bf16.gmra.mrb[0].mxu0 %v1094
        %v1592 = vpop.f32.mrb[0].mxu0
        %v1593 = vadd.f32 0.0, %v1592
        %v1594 = vpop.f32.mrb[0].mxu0
        %v1595 = vpop.f32.mrb[0].mxu0
        %v1596 = vadd.f32 0.0, %v1595
        %v1597 = vpop.f32.mrb[0].mxu0
        %1598 = vmatprep.mubr.bf16.mxu0 %v1099
        %1599 = vmatmul.mubr.bf16.gmra.mrb[0].mxu0 %v1098
        %v1600 = vpop.f32.mrb[0].mxu0
        %v1601 = vadd.f32 0.0, %v1600
        %v1602 = vpop.f32.mrb[0].mxu0
        %v1603 = vpop.f32.mrb[0].mxu0
        %v1604 = vadd.f32 0.0, %v1603
        %v1605 = vpop.f32.mrb[0].mxu0
        %1606 = vmatprep.mubr.bf16.mxu0 %v1103
        %1607 = vmatmul.mubr.bf16.gmra.mrb[0].mxu0 %v1102
        %v1608 = vpop.f32.mrb[0].mxu0
        %v1609 = vadd.f32 0.0, %v1608
        %v1610 = vpop.f32.mrb[0].mxu0
        %v1611 = vpop.f32.mrb[0].mxu0
        %v1612 = vadd.f32 0.0, %v1611
        %v1613 = vpop.f32.mrb[0].mxu0
        %1614 = vmatprep.mubr.bf16.mxu0 %v1107
        %1615 = vmatmul.mubr.bf16.gmra.mrb[0].mxu0 %v1106
        %v1616 = vpop.f32.mrb[0].mxu0
        %v1617 = vadd.f32 0.0, %v1616
        %v1618 = vpop.f32.mrb[0].mxu0
        %v1619 = vpop.f32.mrb[0].mxu0
        %v1620 = vadd.f32 0.0, %v1619
        %v1621 = vpop.f32.mrb[0].mxu0
        %1622 = vmatprep.mubr.bf16.mxu0 %v1111
        %1623 = vmatmul.mubr.bf16.gmra.mrb[0].mxu0 %v1110
        %v1624 = vpop.f32.mrb[0].mxu0
        %v1625 = vadd.f32 0.0, %v1624
        %v1626 = vpop.f32.mrb[0].mxu0
        %v1627 = vpop.f32.mrb[0].mxu0
        %v1628 = vadd.f32 0.0, %v1627
        %v1629 = vpop.f32.mrb[0].mxu0
        %1630 = vmatprep.mubr.bf16.mxu0 %v1115
        %1631 = vmatmul.mubr.bf16.gmra.mrb[0].mxu0 %v1114
        %v1632 = vpop.f32.mrb[0].mxu0
        %v1633 = vadd.f32 0.0, %v1632
        %v1634 = vpop.f32.mrb[0].mxu0
        %v1635 = vpop.f32.mrb[0].mxu0
        %v1636 = vadd.f32 0.0, %v1635
        %v1637 = vpop.f32.mrb[0].mxu0
        %1638 = vmatprep.mubr.bf16.mxu0 %v1119
        %1639 = vmatmul.mubr.bf16.gmra.mrb[0].mxu0 %v1118
        %v1640 = vpop.f32.mrb[0].mxu0
        %v1641 = vadd.f32 0.0, %v1640
        %v1642 = vpop.f32.mrb[0].mxu0
        %v1643 = vpop.f32.mrb[0].mxu0
        %v1644 = vadd.f32 0.0, %v1643
        %v1645 = vpop.f32.mrb[0].mxu0
        %1646 = vmatprep.mubr.bf16.mxu0 %v1123
        %1647 = vmatmul.mubr.bf16.gmra.mrb[0].mxu0 %v1122
        %v1648 = vpop.f32.mrb[0].mxu0
        %v1649 = vadd.f32 0.0, %v1648
        %v1650 = vpop.f32.mrb[0].mxu0
        %v1651 = vpop.f32.mrb[0].mxu0
        %v1652 = vadd.f32 0.0, %v1651
        %v1653 = vpop.f32.mrb[0].mxu0
        %1654 = vmatprep.mubr.bf16.mxu0 %v1127
        %1655 = vmatmul.mubr.bf16.gmra.mrb[0].mxu0 %v1126
        %v1656 = vpop.f32.mrb[0].mxu0
        %v1657 = vadd.f32 0.0, %v1656
        %v1658 = vpop.f32.mrb[0].mxu0
        %v1659 = vpop.f32.mrb[0].mxu0
        %v1660 = vadd.f32 0.0, %v1659
        %v1661 = vpop.f32.mrb[0].mxu0
        %1662 = vmatprep.mubr.bf16.mxu0 %v1131
        %1663 = vmatmul.mubr.bf16.gmra.mrb[0].mxu0 %v1130
        %v1664 = vpop.f32.mrb[0].mxu0
        %v1665 = vadd.f32 0.0, %v1664
        %v1666 = vpop.f32.mrb[0].mxu0
        %v1667 = vpop.f32.mrb[0].mxu0
        %v1668 = vadd.f32 0.0, %v1667
        %v1669 = vpop.f32.mrb[0].mxu0
        %1670 = vmatprep.mubr.bf16.mxu0 %v1135
        %1671 = vmatmul.mubr.bf16.gmra.mrb[0].mxu0 %v1134
        %v1672 = vpop.f32.mrb[0].mxu0
        %v1673 = vadd.f32 0.0, %v1672
        %v1674 = vpop.f32.mrb[0].mxu0
        %v1675 = vpop.f32.mrb[0].mxu0
        %v1676 = vadd.f32 0.0, %v1675
        %v1677 = vpop.f32.mrb[0].mxu0
        %1678 = vmatprep.mubr.bf16.mxu0 %v1139
        %1679 = vmatmul.mubr.bf16.gmra.mrb[0].mxu0 %v1138
        %v1680 = vpop.f32.mrb[0].mxu0
        %v1681 = vadd.f32 0.0, %v1680
        %v1682 = vpop.f32.mrb[0].mxu0
        %v1683 = vpop.f32.mrb[0].mxu0
        %v1684 = vadd.f32 0.0, %v1683
        %v1685 = vpop.f32.mrb[0].mxu0
        %1686 = vmatprep.mubr.bf16.mxu0 %v1143
        %1687 = vmatmul.mubr.bf16.gmra.mrb[0].mxu0 %v1142
        %v1688 = vpop.f32.mrb[0].mxu0
        %v1689 = vadd.f32 0.0, %v1688
        %v1690 = vpop.f32.mrb[0].mxu0
        %v1691 = vpop.f32.mrb[0].mxu0
        %v1692 = vadd.f32 0.0, %v1691
        %v1693 = vpop.f32.mrb[0].mxu0
        %1694 = vmatprep.mubr.bf16.mxu0 %v1147
        %1695 = vmatmul.mubr.bf16.gmra.mrb[0].mxu0 %v1146
        %v1696 = vpop.f32.mrb[0].mxu0
        %v1697 = vadd.f32 0.0, %v1696
        %v1698 = vpop.f32.mrb[0].mxu0
        %v1699 = vpop.f32.mrb[0].mxu0
        %v1700 = vadd.f32 0.0, %v1699
        %v1701 = vpop.f32.mrb[0].mxu0
        %1702 = vmatprep.mubr.bf16.mxu0 %v1151
        %1703 = vmatmul.mubr.bf16.gmra.mrb[0].mxu0 %v1150
        %v1704 = vpop.f32.mrb[0].mxu0
        %v1705 = vadd.f32 0.0, %v1704
        %v1706 = vpop.f32.mrb[0].mxu0
        %v1707 = vpop.f32.mrb[0].mxu0
        %v1708 = vadd.f32 0.0, %v1707
        %v1709 = vpop.f32.mrb[0].mxu0
        %1710 = vmatprep.mubr.bf16.mxu0 %v1155
        %1711 = vmatmul.mubr.bf16.gmra.mrb[0].mxu0 %v1154
        %v1712 = vpop.f32.mrb[0].mxu0
        %v1713 = vadd.f32 0.0, %v1712
        %v1714 = vpop.f32.mrb[0].mxu0
        %v1715 = vpop.f32.mrb[0].mxu0
        %v1716 = vadd.f32 0.0, %v1715
        %v1717 = vpop.f32.mrb[0].mxu0
        %1718 = vmatprep.mubr.bf16.mxu0 %v1159
        %1719 = vmatmul.mubr.bf16.gmra.mrb[0].mxu0 %v1158
        %v1720 = vpop.f32.mrb[0].mxu0
        %v1721 = vadd.f32 0.0, %v1720
        %v1722 = vpop.f32.mrb[0].mxu0
        %v1723 = vpop.f32.mrb[0].mxu0
        %v1724 = vadd.f32 0.0, %v1723
        %v1725 = vpop.f32.mrb[0].mxu0
        %1726 = vmatprep.mubr.bf16.mxu0 %v1163
        %1727 = vmatmul.mubr.bf16.gmra.mrb[0].mxu0 %v1162
        %v1728 = vpop.f32.mrb[0].mxu0
        %v1729 = vadd.f32 0.0, %v1728
        %v1730 = vpop.f32.mrb[0].mxu0
        %v1731 = vpop.f32.mrb[0].mxu0
        %v1732 = vadd.f32 0.0, %v1731
        %v1733 = vpop.f32.mrb[0].mxu0
        %1734 = vmatprep.mubr.bf16.mxu0 %v1167
        %1735 = vmatmul.mubr.bf16.gmra.mrb[0].mxu0 %v1166
        %v1736 = vpop.f32.mrb[0].mxu0
        %v1737 = vadd.f32 0.0, %v1736
        %v1738 = vpop.f32.mrb[0].mxu0
        %v1739 = vpop.f32.mrb[0].mxu0
        %v1740 = vadd.f32 0.0, %v1739
        %v1741 = vpop.f32.mrb[0].mxu0
        %1742 = vmatprep.mubr.bf16.mxu0 %v1171
        %1743 = vmatmul.mubr.bf16.gmra.mrb[0].mxu0 %v1170
        %v1744 = vpop.f32.mrb[0].mxu0
        %v1745 = vadd.f32 0.0, %v1744
        %v1746 = vpop.f32.mrb[0].mxu0
        %v1747 = vpop.f32.mrb[0].mxu0
        %v1748 = vadd.f32 0.0, %v1747
        %v1749 = vpop.f32.mrb[0].mxu0
        %1750 = vmatprep.mubr.bf16.mxu0 %v1175
        %1751 = vmatmul.mubr.bf16.gmra.mrb[0].mxu0 %v1174
        %v1752 = vpop.f32.mrb[0].mxu0
        %v1753 = vadd.f32 0.0, %v1752
        %v1754 = vpop.f32.mrb[0].mxu0
        %v1755 = vpop.f32.mrb[0].mxu0
        %v1756 = vadd.f32 0.0, %v1755
        %v1757 = vpop.f32.mrb[0].mxu0
        %1758 = vmatprep.mubr.bf16.mxu0 %v1179
        %1759 = vmatmul.mubr.bf16.gmra.mrb[0].mxu0 %v1178
        %v1760 = vpop.f32.mrb[0].mxu0
        %v1761 = vadd.f32 0.0, %v1760
        %v1762 = vpop.f32.mrb[0].mxu0
        %v1763 = vpop.f32.mrb[0].mxu0
        %v1764 = vadd.f32 0.0, %v1763
        %v1765 = vpop.f32.mrb[0].mxu0
        %1766 = vmatprep.mubr.bf16.mxu0 %v1183
        %1767 = vmatmul.mubr.bf16.gmra.mrb[0].mxu0 %v1182
        %v1768 = vpop.f32.mrb[0].mxu0
        %v1769 = vadd.f32 0.0, %v1768
        %v1770 = vpop.f32.mrb[0].mxu0
        %v1771 = vpop.f32.mrb[0].mxu0
        %v1772 = vadd.f32 0.0, %v1771
        %v1773 = vpop.f32.mrb[0].mxu0
        %1774 = vmatprep.mubr.bf16.mxu0 %v1187
        %1775 = vmatmul.mubr.bf16.gmra.mrb[0].mxu0 %v1186
        %v1776 = vpop.f32.mrb[0].mxu0
        %v1777 = vadd.f32 0.0, %v1776
        %v1778 = vpop.f32.mrb[0].mxu0
        %v1779 = vpop.f32.mrb[0].mxu0
        %v1780 = vadd.f32 0.0, %v1779
        %v1781 = vpop.f32.mrb[0].mxu0
        %1782 = vmatprep.mubr.bf16.mxu0 %v1191
        %1783 = vmatmul.mubr.bf16.gmra.mrb[0].mxu0 %v1190
        %v1784 = vpop.f32.mrb[0].mxu0
        %v1785 = vadd.f32 0.0, %v1784
        %v1786 = vpop.f32.mrb[0].mxu0
        %v1787 = vpop.f32.mrb[0].mxu0
        %v1788 = vadd.f32 0.0, %v1787
        %v1789 = vpop.f32.mrb[0].mxu0
        %1790 = vmatprep.mubr.bf16.mxu0 %v1195
        %1791 = vmatmul.mubr.bf16.gmra.mrb[0].mxu0 %v1194
        %v1792 = vpop.f32.mrb[0].mxu0
        %v1793 = vadd.f32 0.0, %v1792
        %v1794 = vpop.f32.mrb[0].mxu0
        %v1795 = vpop.f32.mrb[0].mxu0
        %v1796 = vadd.f32 0.0, %v1795
        %v1797 = vpop.f32.mrb[0].mxu0
        %1798 = vmatprep.mubr.bf16.mxu0 %v1199
        %1799 = vmatmul.mubr.bf16.gmra.mrb[0].mxu0 %v1198
        %v1800 = vpop.f32.mrb[0].mxu0
        %v1801 = vadd.f32 0.0, %v1800
        %v1802 = vpop.f32.mrb[0].mxu0
        %v1803 = vpop.f32.mrb[0].mxu0
        %v1804 = vadd.f32 0.0, %v1803
        %v1805 = vpop.f32.mrb[0].mxu0
        %1806 = vmatprep.mubr.bf16.mxu0 %v1203
        %1807 = vmatmul.mubr.bf16.gmra.mrb[0].mxu0 %v1202
        %v1808 = vpop.f32.mrb[0].mxu0
        %v1809 = vadd.f32 0.0, %v1808
        %v1810 = vpop.f32.mrb[0].mxu0
        %v1811 = vpop.f32.mrb[0].mxu0
        %v1812 = vadd.f32 0.0, %v1811
        %v1813 = vpop.f32.mrb[0].mxu0
        %1814 = vdwg.mxu0
        %1815 = vmatprep.subr.bf16.mxu0 0
        %1816 = vmatpush1.bf16.msra.mxu0 %v1478
        %1817 = vmatprep.subr.bf16.mxu0 0
        %1818 = vmatpush1.bf16.msra.mxu0 %v1479
        %1819 = vmatprep.subr.bf16.mxu0 0
        %1820 = vmatpush1.bf16.msra.mxu0 %v1480
        %1821 = vmatprep.subr.bf16.mxu0 0
        %1822 = vmatpush1.bf16.msra.mxu0 %v1481
        %1823 = vmatprep.subr.bf16.mxu0 0
        %1824 = vmatpush1.bf16.msra.mxu0 %v1482
        %1825 = vmatprep.subr.bf16.mxu0 0
        %1826 = vmatpush1.bf16.msra.mxu0 %v1483
        %1827 = vmatprep.subr.bf16.mxu0 0
        %1828 = vmatpush1.bf16.msra.mxu0 %v1484
        %1829 = vmatprep.subr.bf16.mxu0 0
        %1830 = vmatpush1.bf16.msra.mxu0 %v1485
        %1831 = vmatprep.subr.bf16.mxu0 0
        %1832 = vmatpush1.bf16.msra.mxu0 %v1486
        %1833 = vmatprep.subr.bf16.mxu0 0
        %1834 = vmatpush1.bf16.msra.mxu0 %v1487
        %1835 = vmatprep.subr.bf16.mxu0 0
        %1836 = vmatpush1.bf16.msra.mxu0 %v1488
        %1837 = vmatprep.subr.bf16.mxu0 0
        %1838 = vmatpush1.bf16.msra.mxu0 %v1489
        %1839 = vmatprep.subr.bf16.mxu0 0
        %1840 = vmatpush1.bf16.msra.mxu0 %v1490
        %1841 = vmatprep.subr.bf16.mxu0 0
        %1842 = vmatpush1.bf16.msra.mxu0 %v1491
        %1843 = vmatprep.subr.bf16.mxu0 0
        %1844 = vmatpush1.bf16.msra.mxu0 %v1492
        %1845 = vmatprep.subr.bf16.mxu0 0
        %1846 = vmatpush1.bf16.msra.mxu0 %v1493
        %1847 = vmatprep.mubr.bf16.mxu0 %v1081
        %1848 = vmatmul.mubr.bf16.gmra.mrb[0].mxu0 %v1080
        %v1849 = vpop.f32.mrb[0].mxu0
        %v1850 = vadd.f32 %v1561, %v1849
        %v1851 = vpop.f32.mrb[0].mxu0
        %v1852 = vpop.f32.mrb[0].mxu0
        %v1853 = vadd.f32 %v1564, %v1852
        %v1854 = vpop.f32.mrb[0].mxu0
        %1855 = vmatprep.mubr.bf16.mxu0 %v1085
        %1856 = vmatmul.mubr.bf16.gmra.mrb[0].mxu0 %v1084
        %v1857 = vpop.f32.mrb[0].mxu0
        %v1858 = vadd.f32 %v1569, %v1857
        %v1859 = vpop.f32.mrb[0].mxu0
        %v1860 = vpop.f32.mrb[0].mxu0
        %v1861 = vadd.f32 %v1572, %v1860
        %v1862 = vpop.f32.mrb[0].mxu0
        %1863 = vmatprep.mubr.bf16.mxu0 %v1089
        %1864 = vmatmul.mubr.bf16.gmra.mrb[0].mxu0 %v1088
        %v1865 = vpop.f32.mrb[0].mxu0
        %v1866 = vadd.f32 %v1577, %v1865
        %v1867 = vpop.f32.mrb[0].mxu0
        %v1868 = vpop.f32.mrb[0].mxu0
        %v1869 = vadd.f32 %v1580, %v1868
        %v1870 = vpop.f32.mrb[0].mxu0
        %1871 = vmatprep.mubr.bf16.mxu0 %v1093
        %1872 = vmatmul.mubr.bf16.gmra.mrb[0].mxu0 %v1092
        %v1873 = vpop.f32.mrb[0].mxu0
        %v1874 = vadd.f32 %v1585, %v1873
        %v1875 = vpop.f32.mrb[0].mxu0
        %v1876 = vpop.f32.mrb[0].mxu0
        %v1877 = vadd.f32 %v1588, %v1876
        %v1878 = vpop.f32.mrb[0].mxu0
        %1879 = vmatprep.mubr.bf16.mxu0 %v1097
        %1880 = vmatmul.mubr.bf16.gmra.mrb[0].mxu0 %v1096
        %v1881 = vpop.f32.mrb[0].mxu0
        %v1882 = vadd.f32 %v1593, %v1881
        %v1883 = vpop.f32.mrb[0].mxu0
        %v1884 = vpop.f32.mrb[0].mxu0
        %v1885 = vadd.f32 %v1596, %v1884
        %v1886 = vpop.f32.mrb[0].mxu0
        %1887 = vmatprep.mubr.bf16.mxu0 %v1101
        %1888 = vmatmul.mubr.bf16.gmra.mrb[0].mxu0 %v1100
        %v1889 = vpop.f32.mrb[0].mxu0
        %v1890 = vadd.f32 %v1601, %v1889
        %v1891 = vpop.f32.mrb[0].mxu0
        %v1892 = vpop.f32.mrb[0].mxu0
        %v1893 = vadd.f32 %v1604, %v1892
        %v1894 = vpop.f32.mrb[0].mxu0
        %1895 = vmatprep.mubr.bf16.mxu0 %v1105
        %1896 = vmatmul.mubr.bf16.gmra.mrb[0].mxu0 %v1104
        %v1897 = vpop.f32.mrb[0].mxu0
        %v1898 = vadd.f32 %v1609, %v1897
        %v1899 = vpop.f32.mrb[0].mxu0
        %v1900 = vpop.f32.mrb[0].mxu0
        %v1901 = vadd.f32 %v1612, %v1900
        %v1902 = vpop.f32.mrb[0].mxu0
        %1903 = vmatprep.mubr.bf16.mxu0 %v1109
        %1904 = vmatmul.mubr.bf16.gmra.mrb[0].mxu0 %v1108
        %v1905 = vpop.f32.mrb[0].mxu0
        %v1906 = vadd.f32 %v1617, %v1905
        %v1907 = vpop.f32.mrb[0].mxu0
        %v1908 = vpop.f32.mrb[0].mxu0
        %v1909 = vadd.f32 %v1620, %v1908
        %v1910 = vpop.f32.mrb[0].mxu0
        %1911 = vmatprep.mubr.bf16.mxu0 %v1113
        %1912 = vmatmul.mubr.bf16.gmra.mrb[0].mxu0 %v1112
        %v1913 = vpop.f32.mrb[0].mxu0
        %v1914 = vadd.f32 %v1625, %v1913
        %v1915 = vpop.f32.mrb[0].mxu0
        %v1916 = vpop.f32.mrb[0].mxu0
        %v1917 = vadd.f32 %v1628, %v1916
        %v1918 = vpop.f32.mrb[0].mxu0
        %1919 = vmatprep.mubr.bf16.mxu0 %v1117
        %1920 = vmatmul.mubr.bf16.gmra.mrb[0].mxu0 %v1116
        %v1921 = vpop.f32.mrb[0].mxu0
        %v1922 = vadd.f32 %v1633, %v1921
        %v1923 = vpop.f32.mrb[0].mxu0
        %v1924 = vpop.f32.mrb[0].mxu0
        %v1925 = vadd.f32 %v1636, %v1924
        %v1926 = vpop.f32.mrb[0].mxu0
        %1927 = vmatprep.mubr.bf16.mxu0 %v1121
        %1928 = vmatmul.mubr.bf16.gmra.mrb[0].mxu0 %v1120
        %v1929 = vpop.f32.mrb[0].mxu0
        %v1930 = vadd.f32 %v1641, %v1929
        %v1931 = vpop.f32.mrb[0].mxu0
        %v1932 = vpop.f32.mrb[0].mxu0
        %v1933 = vadd.f32 %v1644, %v1932
        %v1934 = vpop.f32.mrb[0].mxu0
        %1935 = vmatprep.mubr.bf16.mxu0 %v1125
        %1936 = vmatmul.mubr.bf16.gmra.mrb[0].mxu0 %v1124
        %v1937 = vpop.f32.mrb[0].mxu0
        %v1938 = vadd.f32 %v1649, %v1937
        %v1939 = vpop.f32.mrb[0].mxu0
        %v1940 = vpop.f32.mrb[0].mxu0
        %v1941 = vadd.f32 %v1652, %v1940
        %v1942 = vpop.f32.mrb[0].mxu0
        %1943 = vmatprep.mubr.bf16.mxu0 %v1129
        %1944 = vmatmul.mubr.bf16.gmra.mrb[0].mxu0 %v1128
        %v1945 = vpop.f32.mrb[0].mxu0
        %v1946 = vadd.f32 %v1657, %v1945
        %v1947 = vpop.f32.mrb[0].mxu0
        %v1948 = vpop.f32.mrb[0].mxu0
        %v1949 = vadd.f32 %v1660, %v1948
        %v1950 = vpop.f32.mrb[0].mxu0
        %1951 = vmatprep.mubr.bf16.mxu0 %v1133
        %1952 = vmatmul.mubr.bf16.gmra.mrb[0].mxu0 %v1132
        %v1953 = vpop.f32.mrb[0].mxu0
        %v1954 = vadd.f32 %v1665, %v1953
        %v1955 = vpop.f32.mrb[0].mxu0
        %v1956 = vpop.f32.mrb[0].mxu0
        %v1957 = vadd.f32 %v1668, %v1956
        %v1958 = vpop.f32.mrb[0].mxu0
        %1959 = vmatprep.mubr.bf16.mxu0 %v1137
        %1960 = vmatmul.mubr.bf16.gmra.mrb[0].mxu0 %v1136
        %v1961 = vpop.f32.mrb[0].mxu0
        %v1962 = vadd.f32 %v1673, %v1961
        %v1963 = vpop.f32.mrb[0].mxu0
        %v1964 = vpop.f32.mrb[0].mxu0
        %v1965 = vadd.f32 %v1676, %v1964
        %v1966 = vpop.f32.mrb[0].mxu0
        %1967 = vmatprep.mubr.bf16.mxu0 %v1141
        %1968 = vmatmul.mubr.bf16.gmra.mrb[0].mxu0 %v1140
        %v1969 = vpop.f32.mrb[0].mxu0
        %v1970 = vadd.f32 %v1681, %v1969
        %v1971 = vpop.f32.mrb[0].mxu0
        %v1972 = vpop.f32.mrb[0].mxu0
        %v1973 = vadd.f32 %v1684, %v1972
        %v1974 = vpop.f32.mrb[0].mxu0
        %1975 = vmatprep.mubr.bf16.mxu0 %v1145
        %1976 = vmatmul.mubr.bf16.gmra.mrb[0].mxu0 %v1144
        %v1977 = vpop.f32.mrb[0].mxu0
        %v1978 = vadd.f32 %v1689, %v1977
        %v1979 = vpop.f32.mrb[0].mxu0
        %v1980 = vpop.f32.mrb[0].mxu0
        %v1981 = vadd.f32 %v1692, %v1980
        %v1982 = vpop.f32.mrb[0].mxu0
        %1983 = vmatprep.mubr.bf16.mxu0 %v1149
        %1984 = vmatmul.mubr.bf16.gmra.mrb[0].mxu0 %v1148
        %v1985 = vpop.f32.mrb[0].mxu0
        %v1986 = vadd.f32 %v1697, %v1985
        %v1987 = vpop.f32.mrb[0].mxu0
        %v1988 = vpop.f32.mrb[0].mxu0
        %v1989 = vadd.f32 %v1700, %v1988
        %v1990 = vpop.f32.mrb[0].mxu0
        %1991 = vmatprep.mubr.bf16.mxu0 %v1153
        %1992 = vmatmul.mubr.bf16.gmra.mrb[0].mxu0 %v1152
        %v1993 = vpop.f32.mrb[0].mxu0
        %v1994 = vadd.f32 %v1705, %v1993
        %v1995 = vpop.f32.mrb[0].mxu0
        %v1996 = vpop.f32.mrb[0].mxu0
        %v1997 = vadd.f32 %v1708, %v1996
        %v1998 = vpop.f32.mrb[0].mxu0
        %1999 = vmatprep.mubr.bf16.mxu0 %v1157
        %2000 = vmatmul.mubr.bf16.gmra.mrb[0].mxu0 %v1156
        %v2001 = vpop.f32.mrb[0].mxu0
        %v2002 = vadd.f32 %v1713, %v2001
        %v2003 = vpop.f32.mrb[0].mxu0
        %v2004 = vpop.f32.mrb[0].mxu0
        %v2005 = vadd.f32 %v1716, %v2004
        %v2006 = vpop.f32.mrb[0].mxu0
        %2007 = vmatprep.mubr.bf16.mxu0 %v1161
        %2008 = vmatmul.mubr.bf16.gmra.mrb[0].mxu0 %v1160
        %v2009 = vpop.f32.mrb[0].mxu0
        %v2010 = vadd.f32 %v1721, %v2009
        %v2011 = vpop.f32.mrb[0].mxu0
        %v2012 = vpop.f32.mrb[0].mxu0
        %v2013 = vadd.f32 %v1724, %v2012
        %v2014 = vpop.f32.mrb[0].mxu0
        %2015 = vmatprep.mubr.bf16.mxu0 %v1165
        %2016 = vmatmul.mubr.bf16.gmra.mrb[0].mxu0 %v1164
        %v2017 = vpop.f32.mrb[0].mxu0
        %v2018 = vadd.f32 %v1729, %v2017
        %v2019 = vpop.f32.mrb[0].mxu0
        %v2020 = vpop.f32.mrb[0].mxu0
        %v2021 = vadd.f32 %v1732, %v2020
        %v2022 = vpop.f32.mrb[0].mxu0
        %2023 = vmatprep.mubr.bf16.mxu0 %v1169
        %2024 = vmatmul.mubr.bf16.gmra.mrb[0].mxu0 %v1168
        %v2025 = vpop.f32.mrb[0].mxu0
        %v2026 = vadd.f32 %v1737, %v2025
        %v2027 = vpop.f32.mrb[0].mxu0
        %v2028 = vpop.f32.mrb[0].mxu0
        %v2029 = vadd.f32 %v1740, %v2028
        %v2030 = vpop.f32.mrb[0].mxu0
        %2031 = vmatprep.mubr.bf16.mxu0 %v1173
        %2032 = vmatmul.mubr.bf16.gmra.mrb[0].mxu0 %v1172
        %v2033 = vpop.f32.mrb[0].mxu0
        %v2034 = vadd.f32 %v1745, %v2033
        %v2035 = vpop.f32.mrb[0].mxu0
        %v2036 = vpop.f32.mrb[0].mxu0
        %v2037 = vadd.f32 %v1748, %v2036
        %v2038 = vpop.f32.mrb[0].mxu0
        %2039 = vmatprep.mubr.bf16.mxu0 %v1177
        %2040 = vmatmul.mubr.bf16.gmra.mrb[0].mxu0 %v1176
        %v2041 = vpop.f32.mrb[0].mxu0
        %v2042 = vadd.f32 %v1753, %v2041
        %v2043 = vpop.f32.mrb[0].mxu0
        %v2044 = vpop.f32.mrb[0].mxu0
        %v2045 = vadd.f32 %v1756, %v2044
        %v2046 = vpop.f32.mrb[0].mxu0
        %2047 = vmatprep.mubr.bf16.mxu0 %v1181
        %2048 = vmatmul.mubr.bf16.gmra.mrb[0].mxu0 %v1180
        %v2049 = vpop.f32.mrb[0].mxu0
        %v2050 = vadd.f32 %v1761, %v2049
        %v2051 = vpop.f32.mrb[0].mxu0
        %v2052 = vpop.f32.mrb[0].mxu0
        %v2053 = vadd.f32 %v1764, %v2052
        %v2054 = vpop.f32.mrb[0].mxu0
        %2055 = vmatprep.mubr.bf16.mxu0 %v1185
        %2056 = vmatmul.mubr.bf16.gmra.mrb[0].mxu0 %v1184
        %v2057 = vpop.f32.mrb[0].mxu0
        %v2058 = vadd.f32 %v1769, %v2057
        %v2059 = vpop.f32.mrb[0].mxu0
        %v2060 = vpop.f32.mrb[0].mxu0
        %v2061 = vadd.f32 %v1772, %v2060
        %v2062 = vpop.f32.mrb[0].mxu0
        %2063 = vmatprep.mubr.bf16.mxu0 %v1189
        %2064 = vmatmul.mubr.bf16.gmra.mrb[0].mxu0 %v1188
        %v2065 = vpop.f32.mrb[0].mxu0
        %v2066 = vadd.f32 %v1777, %v2065
        %v2067 = vpop.f32.mrb[0].mxu0
        %v2068 = vpop.f32.mrb[0].mxu0
        %v2069 = vadd.f32 %v1780, %v2068
        %v2070 = vpop.f32.mrb[0].mxu0
        %2071 = vmatprep.mubr.bf16.mxu0 %v1193
        %2072 = vmatmul.mubr.bf16.gmra.mrb[0].mxu0 %v1192
        %v2073 = vpop.f32.mrb[0].mxu0
        %v2074 = vadd.f32 %v1785, %v2073
        %v2075 = vpop.f32.mrb[0].mxu0
        %v2076 = vpop.f32.mrb[0].mxu0
        %v2077 = vadd.f32 %v1788, %v2076
        %v2078 = vpop.f32.mrb[0].mxu0
        %2079 = vmatprep.mubr.bf16.mxu0 %v1197
        %2080 = vmatmul.mubr.bf16.gmra.mrb[0].mxu0 %v1196
        %v2081 = vpop.f32.mrb[0].mxu0
        %v2082 = vadd.f32 %v1793, %v2081
        %v2083 = vpop.f32.mrb[0].mxu0
        %v2084 = vpop.f32.mrb[0].mxu0
        %v2085 = vadd.f32 %v1796, %v2084
        %v2086 = vpop.f32.mrb[0].mxu0
        %2087 = vmatprep.mubr.bf16.mxu0 %v1201
        %2088 = vmatmul.mubr.bf16.gmra.mrb[0].mxu0 %v1200
        %v2089 = vpop.f32.mrb[0].mxu0
        %v2090 = vadd.f32 %v1801, %v2089
        %v2091 = vpop.f32.mrb[0].mxu0
        %v2092 = vpop.f32.mrb[0].mxu0
        %v2093 = vadd.f32 %v1804, %v2092
        %v2094 = vpop.f32.mrb[0].mxu0
        %2095 = vmatprep.mubr.bf16.mxu0 %v1205
        %2096 = vmatmul.mubr.bf16.gmra.mrb[0].mxu0 %v1204
        %v2097 = vpop.f32.mrb[0].mxu0
        %v2098 = vadd.f32 %v1809, %v2097
        %v2099 = vpop.f32.mrb[0].mxu0
        %v2100 = vpop.f32.mrb[0].mxu0
        %v2101 = vadd.f32 %v1812, %v2100
        %v2102 = vpop.f32.mrb[0].mxu0
        %2103 = vdwg.mxu0
        %v2104 = vmax.f32 %v1850, 0.0
        %v2105 = vmax.f32 %v1853, 0.0
        %v2106 = vmax.f32 %v1858, 0.0
        %v2107 = vmax.f32 %v1861, 0.0
        %v2108 = vmax.f32 %v1866, 0.0
        %v2109 = vmax.f32 %v1869, 0.0
        %v2110 = vmax.f32 %v1874, 0.0
        %v2111 = vmax.f32 %v1877, 0.0
        %v2112 = vmax.f32 %v1882, 0.0
        %v2113 = vmax.f32 %v1885, 0.0
        %v2114 = vmax.f32 %v1890, 0.0
        %v2115 = vmax.f32 %v1893, 0.0
        %v2116 = vmax.f32 %v1898, 0.0
        %v2117 = vmax.f32 %v1901, 0.0
        %v2118 = vmax.f32 %v1906, 0.0
        %v2119 = vmax.f32 %v1909, 0.0
        %v2120 = vmax.f32 %v1914, 0.0
        %v2121 = vmax.f32 %v1917, 0.0
        %v2122 = vmax.f32 %v1922, 0.0
        %v2123 = vmax.f32 %v1925, 0.0
        %v2124 = vmax.f32 %v1930, 0.0
        %v2125 = vmax.f32 %v1933, 0.0
        %v2126 = vmax.f32 %v1938, 0.0
        %v2127 = vmax.f32 %v1941, 0.0
        %v2128 = vmax.f32 %v1946, 0.0
        %v2129 = vmax.f32 %v1949, 0.0
        %v2130 = vmax.f32 %v1954, 0.0
        %v2131 = vmax.f32 %v1957, 0.0
        %v2132 = vmax.f32 %v1962, 0.0
        %v2133 = vmax.f32 %v1965, 0.0
        %v2134 = vmax.f32 %v1970, 0.0
        %v2135 = vmax.f32 %v1973, 0.0
        %v2136 = vmax.f32 %v1978, 0.0
        %v2137 = vmax.f32 %v1981, 0.0
        %v2138 = vmax.f32 %v1986, 0.0
        %v2139 = vmax.f32 %v1989, 0.0
        %v2140 = vmax.f32 %v1994, 0.0
        %v2141 = vmax.f32 %v1997, 0.0
        %v2142 = vmax.f32 %v2002, 0.0
        %v2143 = vmax.f32 %v2005, 0.0
        %v2144 = vmax.f32 %v2010, 0.0
        %v2145 = vmax.f32 %v2013, 0.0
        %v2146 = vmax.f32 %v2018, 0.0
        %v2147 = vmax.f32 %v2021, 0.0
        %v2148 = vmax.f32 %v2026, 0.0
        %v2149 = vmax.f32 %v2029, 0.0
        %v2150 = vmax.f32 %v2034, 0.0
        %v2151 = vmax.f32 %v2037, 0.0
        %v2152 = vmax.f32 %v2042, 0.0
        %v2153 = vmax.f32 %v2045, 0.0
        %v2154 = vmax.f32 %v2050, 0.0
        %v2155 = vmax.f32 %v2053, 0.0
        %v2156 = vmax.f32 %v2058, 0.0
        %v2157 = vmax.f32 %v2061, 0.0
        %v2158 = vmax.f32 %v2066, 0.0
        %v2159 = vmax.f32 %v2069, 0.0
        %v2160 = vmax.f32 %v2074, 0.0
        %v2161 = vmax.f32 %v2077, 0.0
        %v2162 = vmax.f32 %v2082, 0.0
        %v2163 = vmax.f32 %v2085, 0.0
        %v2164 = vmax.f32 %v2090, 0.0
        %v2165 = vmax.f32 %v2093, 0.0
        %v2166 = vmax.f32 %v2098, 0.0
        %v2167 = vmax.f32 %v2101, 0.0
        %v2168 = vld [vmem:[#allocation2] sm:$0xff]
        %v2169 = vld [vmem:[#allocation2 + $0x8] sm:$0xff]
        %v2170 = vadd.f32 %v2104, %v2105
        %v2171 = vadd.f32 %v2170, %v2106
        %v2172 = vadd.f32 %v2171, %v2107
        %v2173 = vrot.slane %v2172, 4
        %v2174 = vadd.f32 %v2172, %v2173
        %v2175 = vrot.slane %v2174, 2
        %v2176 = vadd.f32 %v2174, %v2175
        %v2177 = vrot.slane %v2176, 1
        %v2178 = vadd.f32 %v2176, %v2177
        %v2179 = vadd.f32 %v2108, %v2109
        %v2180 = vadd.f32 %v2179, %v2110
        %v2181 = vadd.f32 %v2180, %v2111
        %v2182 = vrot.slane %v2181, 4
        %v2183 = vadd.f32 %v2181, %v2182
        %v2184 = vrot.slane %v2183, 2
        %v2185 = vadd.f32 %v2183, %v2184
        %v2186 = vrot.slane %v2185, 1
        %v2187 = vadd.f32 %v2185, %v2186
        %v2188 = vadd.f32 %v2112, %v2113
        %v2189 = vadd.f32 %v2188, %v2114
        %v2190 = vadd.f32 %v2189, %v2115
        %v2191 = vrot.slane %v2190, 4
        %v2192 = vadd.f32 %v2190, %v2191
        %v2193 = vrot.slane %v2192, 2
        %v2194 = vadd.f32 %v2192, %v2193
        %v2195 = vrot.slane %v2194, 1
        %v2196 = vadd.f32 %v2194, %v2195
        %v2197 = vadd.f32 %v2116, %v2117
        %v2198 = vadd.f32 %v2197, %v2118
        %v2199 = vadd.f32 %v2198, %v2119
        %v2200 = vrot.slane %v2199, 4
        %v2201 = vadd.f32 %v2199, %v2200
        %v2202 = vrot.slane %v2201, 2
        %v2203 = vadd.f32 %v2201, %v2202
        %v2204 = vrot.slane %v2203, 1
        %v2205 = vadd.f32 %v2203, %v2204
        %v2206 = vadd.f32 %v2120, %v2121
        %v2207 = vadd.f32 %v2206, %v2122
        %v2208 = vadd.f32 %v2207, %v2123
        %v2209 = vrot.slane %v2208, 4
        %v2210 = vadd.f32 %v2208, %v2209
        %v2211 = vrot.slane %v2210, 2
        %v2212 = vadd.f32 %v2210, %v2211
        %v2213 = vrot.slane %v2212, 1
        %v2214 = vadd.f32 %v2212, %v2213
        %v2215 = vadd.f32 %v2124, %v2125
        %v2216 = vadd.f32 %v2215, %v2126
        %v2217 = vadd.f32 %v2216, %v2127
        %v2218 = vrot.slane %v2217, 4
        %v2219 = vadd.f32 %v2217, %v2218
        %v2220 = vrot.slane %v2219, 2
        %v2221 = vadd.f32 %v2219, %v2220
        %v2222 = vrot.slane %v2221, 1
        %v2223 = vadd.f32 %v2221, %v2222
        %v2224 = vadd.f32 %v2128, %v2129
        %v2225 = vadd.f32 %v2224, %v2130
        %v2226 = vadd.f32 %v2225, %v2131
        %v2227 = vrot.slane %v2226, 4
        %v2228 = vadd.f32 %v2226, %v2227
        %v2229 = vrot.slane %v2228, 2
        %v2230 = vadd.f32 %v2228, %v2229
        %v2231 = vrot.slane %v2230, 1
        %v2232 = vadd.f32 %v2230, %v2231
        %v2233 = vadd.f32 %v2132, %v2133
        %v2234 = vadd.f32 %v2233, %v2134
        %v2235 = vadd.f32 %v2234, %v2135
        %v2236 = vrot.slane %v2235, 4
        %v2237 = vadd.f32 %v2235, %v2236
        %v2238 = vrot.slane %v2237, 2
        %v2239 = vadd.f32 %v2237, %v2238
        %v2240 = vrot.slane %v2239, 1
        %v2241 = vadd.f32 %v2239, %v2240
        %v2242 = vadd.f32 %v2136, %v2137
        %v2243 = vadd.f32 %v2242, %v2138
        %v2244 = vadd.f32 %v2243, %v2139
        %v2245 = vrot.slane %v2244, 4
        %v2246 = vadd.f32 %v2244, %v2245
        %v2247 = vrot.slane %v2246, 2
        %v2248 = vadd.f32 %v2246, %v2247
        %v2249 = vrot.slane %v2248, 1
        %v2250 = vadd.f32 %v2248, %v2249
        %v2251 = vadd.f32 %v2140, %v2141
        %v2252 = vadd.f32 %v2251, %v2142
        %v2253 = vadd.f32 %v2252, %v2143
        %v2254 = vrot.slane %v2253, 4
        %v2255 = vadd.f32 %v2253, %v2254
        %v2256 = vrot.slane %v2255, 2
        %v2257 = vadd.f32 %v2255, %v2256
        %v2258 = vrot.slane %v2257, 1
        %v2259 = vadd.f32 %v2257, %v2258
        %v2260 = vadd.f32 %v2144, %v2145
        %v2261 = vadd.f32 %v2260, %v2146
        %v2262 = vadd.f32 %v2261, %v2147
        %v2263 = vrot.slane %v2262, 4
        %v2264 = vadd.f32 %v2262, %v2263
        %v2265 = vrot.slane %v2264, 2
        %v2266 = vadd.f32 %v2264, %v2265
        %v2267 = vrot.slane %v2266, 1
        %v2268 = vadd.f32 %v2266, %v2267
        %v2269 = vadd.f32 %v2148, %v2149
        %v2270 = vadd.f32 %v2269, %v2150
        %v2271 = vadd.f32 %v2270, %v2151
        %v2272 = vrot.slane %v2271, 4
        %v2273 = vadd.f32 %v2271, %v2272
        %v2274 = vrot.slane %v2273, 2
        %v2275 = vadd.f32 %v2273, %v2274
        %v2276 = vrot.slane %v2275, 1
        %v2277 = vadd.f32 %v2275, %v2276
        %v2278 = vadd.f32 %v2152, %v2153
        %v2279 = vadd.f32 %v2278, %v2154
        %v2280 = vadd.f32 %v2279, %v2155
        %v2281 = vrot.slane %v2280, 4
        %v2282 = vadd.f32 %v2280, %v2281
        %v2283 = vrot.slane %v2282, 2
        %v2284 = vadd.f32 %v2282, %v2283
        %v2285 = vrot.slane %v2284, 1
        %v2286 = vadd.f32 %v2284, %v2285
        %v2287 = vadd.f32 %v2156, %v2157
        %v2288 = vadd.f32 %v2287, %v2158
        %v2289 = vadd.f32 %v2288, %v2159
        %v2290 = vrot.slane %v2289, 4
        %v2291 = vadd.f32 %v2289, %v2290
        %v2292 = vrot.slane %v2291, 2
        %v2293 = vadd.f32 %v2291, %v2292
        %v2294 = vrot.slane %v2293, 1
        %v2295 = vadd.f32 %v2293, %v2294
        %v2296 = vadd.f32 %v2160, %v2161
        %v2297 = vadd.f32 %v2296, %v2162
        %v2298 = vadd.f32 %v2297, %v2163
        %v2299 = vrot.slane %v2298, 4
        %v2300 = vadd.f32 %v2298, %v2299
        %v2301 = vrot.slane %v2300, 2
        %v2302 = vadd.f32 %v2300, %v2301
        %v2303 = vrot.slane %v2302, 1
        %v2304 = vadd.f32 %v2302, %v2303
        %v2305 = vadd.f32 %v2164, %v2165
        %v2306 = vadd.f32 %v2305, %v2166
        %v2307 = vadd.f32 %v2306, %v2167
        %v2308 = vrot.slane %v2307, 4
        %v2309 = vadd.f32 %v2307, %v2308
        %v2310 = vrot.slane %v2309, 2
        %v2311 = vadd.f32 %v2309, %v2310
        %v2312 = vrot.slane %v2311, 1
        %v2313 = vadd.f32 %v2311, %v2312
        %vm2330 = vcmask 1041409
        %v2331 = vsel %vm2330, %v2187, %v2178
        %vm2332 = vcmask 1042434
        %v2333 = vsel %vm2332, %v2196, %v2331
        %vm2334 = vcmask 1043459
        %v2335 = vsel %vm2334, %v2205, %v2333
        %vm2336 = vcmask 1044484
        %v2337 = vsel %vm2336, %v2214, %v2335
        %vm2338 = vcmask 1045509
        %v2339 = vsel %vm2338, %v2223, %v2337
        %vm2340 = vcmask 1046534
        %v2341 = vsel %vm2340, %v2232, %v2339
        %vm2342 = vcmask 1047559
        %v2343 = vsel %vm2342, %v2241, %v2341
        %v2344 = vsel %vm2330, %v2259, %v2250
        %v2345 = vsel %vm2332, %v2268, %v2344
        %v2346 = vsel %vm2334, %v2277, %v2345
        %v2347 = vsel %vm2336, %v2286, %v2346
        %v2348 = vsel %vm2338, %v2295, %v2347
        %v2349 = vsel %vm2340, %v2304, %v2348
        %v2350 = vsel %vm2342, %v2313, %v2349
        %v2353 = vadd.f32 %v2168, %v2343
        %v2354 = vadd.f32 %v2169, %v2350
        %2355 = vst [vmem:[#allocation2] sm:$0xff] %v2353
        %2356 = vst [vmem:[#allocation2 + $0x8] sm:$0xff] %v2354
        %p2357 = scmp.eq.s32.totalorder %s20, 1
        // Predicated region
        $region64: #{event_track_net_forward.4} parent=54 // pred_check
          %p2358 = pneg %p2357
        $region65: #{event_track_net_forward.4} parent=54 // pred_check_branch
          %2360 = sbr.rel (%p2358) target = $region67
        $region66: #{event_track_net_forward.4} parent=54 // pred_region
          %v2361 = vld [vmem:[#allocation2] sm:$0xff]
          %v2362 = vld [vmem:[#allocation2 + $0x8] sm:$0xff]
          %v2363 = vmul.f32 %v2361, 0.015625
          %v2364 = vmul.f32 %v2362, 0.015625
          %v2365 = vpack.c.bf16 %v2364, %v2363
          %v2366 = vld [vmem:[%s2] sm:$0xff]
          %v2367 = vld [vmem:[%s2 + $0x8] sm:$0xff]
          %v2368 = vld [vmem:[%s2 + $0x10] sm:$0xff]
          %v2369 = vld [vmem:[%s2 + $0x18] sm:$0xff]
          %v2370 = vld [vmem:[%s2 + $0x20] sm:$0xff]
          %v2371 = vld [vmem:[%s2 + $0x28] sm:$0xff]
          %v2372 = vld [vmem:[%s2 + $0x30] sm:$0xff]
          %v2373 = vld [vmem:[%s2 + $0x38] sm:$0xff]
          %v2374 = vld [vmem:[%s2 + $0x40] sm:$0xff]
          %v2375 = vld [vmem:[%s2 + $0x48] sm:$0xff]
          %v2376 = vld [vmem:[%s2 + $0x50] sm:$0xff]
          %v2377 = vld [vmem:[%s2 + $0x58] sm:$0xff]
          %v2378 = vld [vmem:[%s2 + $0x60] sm:$0xff]
          %v2379 = vld [vmem:[%s2 + $0x68] sm:$0xff]
          %v2380 = vld [vmem:[%s2 + $0x70] sm:$0xff]
          %v2381 = vld [vmem:[%s2 + $0x78] sm:$0xff]
          %v2382 = vld [vmem:[%s3] sm:$0x3]
          %v2384 = vlaneseq
          %v2385 = vshrl.u32 %v2384, 7
          %v2386 = vsub.s32 0, %v2385
          %v2387 = vrot.slane %v2382, %v2386
          %v2388 = vlaneseq
          %v2389 = vshrl.u32 %v2388, 7
          %v2390 = vsub.s32 1, %v2389
          %v2391 = vrot.slane %v2382, %v2390
          %v2410 = vunpack.c.l.b16 %v2366
          %v2411 = vunpack.c.h.b16 %v2366
          %v2412 = vunpack.c.l.b16 %v2367
          %v2413 = vunpack.c.h.b16 %v2367
          %v2414 = vunpack.c.l.b16 %v2368
          %v2415 = vunpack.c.h.b16 %v2368
          %v2416 = vunpack.c.l.b16 %v2369
          %v2417 = vunpack.c.h.b16 %v2369
          %v2418 = vunpack.c.l.b16 %v2370
          %v2419 = vunpack.c.h.b16 %v2370
          %v2420 = vunpack.c.l.b16 %v2371
          %v2421 = vunpack.c.h.b16 %v2371
          %v2422 = vunpack.c.l.b16 %v2372
          %v2423 = vunpack.c.h.b16 %v2372
          %v2424 = vunpack.c.l.b16 %v2373
          %v2425 = vunpack.c.h.b16 %v2373
          %v2426 = vunpack.c.l.b16 %v2374
          %v2427 = vunpack.c.h.b16 %v2374
          %v2428 = vunpack.c.l.b16 %v2375
          %v2429 = vunpack.c.h.b16 %v2375
          %v2430 = vunpack.c.l.b16 %v2376
          %v2431 = vunpack.c.h.b16 %v2376
          %v2432 = vunpack.c.l.b16 %v2377
          %v2433 = vunpack.c.h.b16 %v2377
          %v2434 = vunpack.c.l.b16 %v2378
          %v2435 = vunpack.c.h.b16 %v2378
          %v2436 = vunpack.c.l.b16 %v2379
          %v2437 = vunpack.c.h.b16 %v2379
          %v2438 = vunpack.c.l.b16 %v2380
          %v2439 = vunpack.c.h.b16 %v2380
          %v2440 = vunpack.c.l.b16 %v2381
          %v2441 = vunpack.c.h.b16 %v2381
          %v2442 = vpack.c.b16 %v2412, %v2410
          %v2443 = vpack.c.b16 %v2413, %v2411
          %v2444 = vpack.c.b16 %v2416, %v2414
          %v2445 = vpack.c.b16 %v2417, %v2415
          %v2446 = vpack.c.b16 %v2420, %v2418
          %v2447 = vpack.c.b16 %v2421, %v2419
          %v2448 = vpack.c.b16 %v2424, %v2422
          %v2449 = vpack.c.b16 %v2425, %v2423
          %v2450 = vpack.c.b16 %v2428, %v2426
          %v2451 = vpack.c.b16 %v2429, %v2427
          %v2452 = vpack.c.b16 %v2432, %v2430
          %v2453 = vpack.c.b16 %v2433, %v2431
          %v2454 = vpack.c.b16 %v2436, %v2434
          %v2455 = vpack.c.b16 %v2437, %v2435
          %v2456 = vpack.c.b16 %v2440, %v2438
          %v2457 = vpack.c.b16 %v2441, %v2439
          %2474 = vmatprep.subr.bf16.mxu0 %v2443
          %2475 = vmatpush1.bf16.msra.mxu0 %v2442
          %2476 = vmatprep.subr.bf16.mxu0 %v2445
          %2477 = vmatpush1.bf16.msra.mxu0 %v2444
          %2478 = vmatprep.subr.bf16.mxu0 %v2447
          %2479 = vmatpush1.bf16.msra.mxu0 %v2446
          %2480 = vmatprep.subr.bf16.mxu0 %v2449
          %2481 = vmatpush1.bf16.msra.mxu0 %v2448
          %2482 = vmatprep.subr.bf16.mxu0 %v2451
          %2483 = vmatpush1.bf16.msra.mxu0 %v2450
          %2484 = vmatprep.subr.bf16.mxu0 %v2453
          %2485 = vmatpush1.bf16.msra.mxu0 %v2452
          %2486 = vmatprep.subr.bf16.mxu0 %v2455
          %2487 = vmatpush1.bf16.msra.mxu0 %v2454
          %2488 = vmatprep.subr.bf16.mxu0 %v2457
          %2489 = vmatpush1.bf16.msra.mxu0 %v2456
          %2490 = vmatprep.subr.bf16.mxu0 0
          %2491 = vmatpush1.bf16.msra.mxu0 0
          %2492 = vmatprep.subr.bf16.mxu0 0
          %2493 = vmatpush1.bf16.msra.mxu0 0
          %2494 = vmatprep.subr.bf16.mxu0 0
          %2495 = vmatpush1.bf16.msra.mxu0 0
          %2496 = vmatprep.subr.bf16.mxu0 0
          %2497 = vmatpush1.bf16.msra.mxu0 0
          %2498 = vmatprep.subr.bf16.mxu0 0
          %2499 = vmatpush1.bf16.msra.mxu0 0
          %2500 = vmatprep.subr.bf16.mxu0 0
          %2501 = vmatpush1.bf16.msra.mxu0 0
          %2502 = vmatprep.subr.bf16.mxu0 0
          %2503 = vmatpush1.bf16.msra.mxu0 0
          %2504 = vmatprep.subr.bf16.mxu0 0
          %2505 = vmatpush1.bf16.msra.mxu0 0
          %2506 = vmatprep.mubr.bf16.mxu0 0
          %2507 = vmatmul.mubr.bf16.gmra.mrb[0].mxu0 %v2365
          %v2508 = vpop.f32.mrb[0].mxu0
          %v2509 = vadd.f32 %v2387, %v2508
          %v2510 = vpop.f32.mrb[0].mxu0
          %v2511 = vadd.f32 %v2391, %v2510
          %v2512 = vpop.f32.mrb[0].mxu0
          %v2513 = vadd.f32 %v2387, %v2512
          %v2514 = vpop.f32.mrb[0].mxu0
          %v2515 = vadd.f32 %v2391, %v2514
          %2516 = vdwg.mxu0
          %v2517 = vpack.c.bf16 %v2513, %v2509
          %v2518 = vpack.c.bf16 %v2515, %v2511
          %v2521 = vunpack.c.l.b16 %v2517
          %v2522 = vunpack.c.l.b16 %v2518
          %v2523 = vunpack.c.h.b16 %v2517
          %v2524 = vunpack.c.h.b16 %v2518
          %v2525 = vpack.c.b16 %v2522, %v2521
          %v2526 = vpack.c.b16 %v2524, %v2523
          %2529 = vst [vmem:[%s493] sm:$0xff] %v2525
          %2530 = vst [vmem:[%s493 + $0x8] sm:$0xff] %v2526
        $region67: #{event_track_net_forward.4} parent=54 // pred_fallthru
          _
        %s2531 = smul.u32 2, %s19
        %p2532 = scmp.lt.s32.totalorder %s2531, 1
        %s2533 = scalar_select %p2532, %s2531, 1
        %s2534 = smul.addr %s2533, 2
        %s2535 = smul.addr %s2534, 4
        %s2536 = scalar_lea.vmem %s4, %s2535
        // Predicated region
        $region68: #{event_track_net_forward.4} parent=54 // pred_check
          %p2537 = pneg %p136
        $region69: #{event_track_net_forward.4} parent=54 // pred_check_branch
          %2539 = sbr.rel (%p2537) target = $region71
        $region70: #{event_track_net_forward.4} parent=54 // pred_region
          %s2540 = smul.u32 2, %s19
        $region71: #{event_track_net_forward.4} parent=54 // pred_fallthru
          _
        // Predicated region
        $region72: #{event_track_net_forward.4} parent=54 // pred_check
          %p2541 = pneg %p136
        $region73: #{event_track_net_forward.4} parent=54 // pred_check_branch
          %2543 = sbr.rel (%p2541) target = $region75
        $region74: #{event_track_net_forward.4} parent=54 // pred_region
          %s2544 = smul.u32 2, %s19
          %p2545 = scmp.lt.s32.totalorder %s2544, 1
          %s2546 = scalar_select %p2545, %s2544, 1
          %s2547 = smul.addr %s2546, 2
          %s2548 = smul.addr %s2547, 4
          %s2549 = scalar_lea.vmem %s4, %s2548
        $region75: #{event_track_net_forward.4} parent=54 // pred_fallthru
          _
      $region55: #{event_track_net_forward.4} parent=5 // pred_fallthru
        _
      %p2550 = scmp.le.s32.totalorder 2, %s10
      // Predicated region
      $region76: #{event_track_net_forward.4} parent=5 // pred_check
        %p2551 = pneg %p2550
      $region77: #{event_track_net_forward.4} parent=5 // pred_check_branch
        %2553 = sbr.rel (%p2551) target = $region79
      $region78: #{event_track_net_forward.4} parent=5 // pred_region
        %s2554 = ssub.s32 %s10, 2
      $region79: #{event_track_net_forward.4} parent=5 // pred_fallthru
        _
    $region6: #{event_track_net_forward.4} parent=1 // loop_footer
      %s14 = sadd.s32 1, %s10
    $region7: #{event_track_net_forward.4} parent=1 // loop_footer_branch
      %9 = sbr.rel target = $region3
    $region8: #{event_track_net_forward.4} parent=1 // loop_exit
      _

// kernel: event_track_net_forward.5
$region0: #{event_track_net_forward.5}
  #allocation0 [shape = 'u32[]', space=smem, size = 0x4, offset = 0x4, fixed_abs, tag = 'smem constant byte address 0x4 - core index']
  #allocation1 [shape = 'u32[144,128]{1,0:T(1,128)}', space=vmem, size = 0x12000, scoped, tag = 'internal scratch']
  %s0 = inlined_call_operand.vmem [shape: bf16[16,256], index: 0, kind: input, shape index: {}]
  %s1 = inlined_call_operand.vmem [shape: bf16[256,768], index: 1, kind: input, shape index: {}]
  %s2 = inlined_call_operand.vmem [shape: f32[1,768], index: 2, kind: input, shape index: {}]
  %s3 = inlined_call_operand.vmem [shape: f32[16,768], index: 3, kind: output, shape index: {}]
  %s4 = sld [smem:[#allocation0]]
  $region22: #{event_track_net_forward.5} parent=0
    _
  %s6 = ssub.s32 1, %s4
  %s7 = scalar_select 0, %s6, %s4
  // Predicated region
  $region2: #{event_track_net_forward.5} parent=0 // pred_check
    _
  $region3: #{event_track_net_forward.5} parent=0 // pred_check_branch
    %9 = sbr.rel (0) target = $region5
  $region4: #{event_track_net_forward.5} parent=0 // pred_region
    _
  $region5: #{event_track_net_forward.5} parent=0 // pred_fallthru
    _
  // Predicated region
  $region6: #{event_track_net_forward.5} parent=0 // pred_check
    _
  $region7: #{event_track_net_forward.5} parent=0 // pred_check_branch
    %11 = sbr.rel (0) target = $region9
  $region8: #{event_track_net_forward.5} parent=0 // pred_region
    _
  $region9: #{event_track_net_forward.5} parent=0 // pred_fallthru
    _
  // Predicated region
  $region10: #{event_track_net_forward.5} parent=0 // pred_check
    _
  $region11: #{event_track_net_forward.5} parent=0 // pred_check_branch
    %13 = sbr.rel (0) target = $region13
  $region12: #{event_track_net_forward.5} parent=0 // pred_region
    _
  $region13: #{event_track_net_forward.5} parent=0 // pred_fallthru
    _
  %v14 = vld [vmem:[%s0] sm:$0xff]
  %v15 = vld [vmem:[%s0 + $0x8] sm:$0xff]
  %v16 = vld [vmem:[%s1] sm:$0xff]
  %v17 = vld [vmem:[%s1 + $0x8] sm:$0xff]
  %v18 = vld [vmem:[%s1 + $0x10] sm:$0xff]
  %v19 = vld [vmem:[%s1 + $0x18] sm:$0xff]
  %v20 = vld [vmem:[%s1 + $0x20] sm:$0xff]
  %v21 = vld [vmem:[%s1 + $0x28] sm:$0xff]
  %v22 = vld [vmem:[%s1 + $0x30] sm:$0xff]
  %v23 = vld [vmem:[%s1 + $0x38] sm:$0xff]
  %v24 = vld [vmem:[%s1 + $0x40] sm:$0xff]
  %v25 = vld [vmem:[%s1 + $0x48] sm:$0xff]
  %v26 = vld [vmem:[%s1 + $0x50] sm:$0xff]
  %v27 = vld [vmem:[%s1 + $0x58] sm:$0xff]
  %v28 = vld [vmem:[%s1 + $0x60] sm:$0xff]
  %v29 = vld [vmem:[%s1 + $0x68] sm:$0xff]
  %v30 = vld [vmem:[%s1 + $0x70] sm:$0xff]
  %v31 = vld [vmem:[%s1 + $0x78] sm:$0xff]
  %v32 = vld [vmem:[%s1 + $0x80] sm:$0xff]
  %v33 = vld [vmem:[%s1 + $0x88] sm:$0xff]
  %v34 = vld [vmem:[%s1 + $0x90] sm:$0xff]
  %v35 = vld [vmem:[%s1 + $0x98] sm:$0xff]
  %v36 = vld [vmem:[%s1 + $0xa0] sm:$0xff]
  %v37 = vld [vmem:[%s1 + $0xa8] sm:$0xff]
  %v38 = vld [vmem:[%s1 + $0xb0] sm:$0xff]
  %v39 = vld [vmem:[%s1 + $0xb8] sm:$0xff]
  %v40 = vld [vmem:[%s1 + $0xc0] sm:$0xff]
  %v41 = vld [vmem:[%s1 + $0xc8] sm:$0xff]
  %v42 = vld [vmem:[%s1 + $0xd0] sm:$0xff]
  %v43 = vld [vmem:[%s1 + $0xd8] sm:$0xff]
  %v44 = vld [vmem:[%s1 + $0xe0] sm:$0xff]
  %v45 = vld [vmem:[%s1 + $0xe8] sm:$0xff]
  %v46 = vld [vmem:[%s1 + $0xf0] sm:$0xff]
  %v47 = vld [vmem:[%s1 + $0xf8] sm:$0xff]
  %v48 = vld [vmem:[%s1 + $0x100] sm:$0xff]
  %v49 = vld [vmem:[%s1 + $0x108] sm:$0xff]
  %v50 = vld [vmem:[%s1 + $0x110] sm:$0xff]
  %v51 = vld [vmem:[%s1 + $0x118] sm:$0xff]
  %v52 = vld [vmem:[%s1 + $0x120] sm:$0xff]
  %v53 = vld [vmem:[%s1 + $0x128] sm:$0xff]
  %v54 = vld [vmem:[%s1 + $0x130] sm:$0xff]
  %v55 = vld [vmem:[%s1 + $0x138] sm:$0xff]
  %v56 = vld [vmem:[%s1 + $0x140] sm:$0xff]
  %v57 = vld [vmem:[%s1 + $0x148] sm:$0xff]
  %v58 = vld [vmem:[%s1 + $0x150] sm:$0xff]
  %v59 = vld [vmem:[%s1 + $0x158] sm:$0xff]
  %v60 = vld [vmem:[%s1 + $0x160] sm:$0xff]
  %v61 = vld [vmem:[%s1 + $0x168] sm:$0xff]
  %v62 = vld [vmem:[%s1 + $0x170] sm:$0xff]
  %v63 = vld [vmem:[%s1 + $0x178] sm:$0xff]
  %v64 = vld [vmem:[%s1 + $0x180] sm:$0xff]
  %v65 = vld [vmem:[%s1 + $0x188] sm:$0xff]
  %v66 = vld [vmem:[%s1 + $0x190] sm:$0xff]
  %v67 = vld [vmem:[%s1 + $0x198] sm:$0xff]
  %v68 = vld [vmem:[%s1 + $0x1a0] sm:$0xff]
  %v69 = vld [vmem:[%s1 + $0x1a8] sm:$0xff]
  %v70 = vld [vmem:[%s1 + $0x1b0] sm:$0xff]
  %v71 = vld [vmem:[%s1 + $0x1b8] sm:$0xff]
  %v72 = vld [vmem:[%s1 + $0x1c0] sm:$0xff]
  %v73 = vld [vmem:[%s1 + $0x1c8] sm:$0xff]
  %v74 = vld [vmem:[%s1 + $0x1d0] sm:$0xff]
  %v75 = vld [vmem:[%s1 + $0x1d8] sm:$0xff]
  %v76 = vld [vmem:[%s1 + $0x1e0] sm:$0xff]
  %v77 = vld [vmem:[%s1 + $0x1e8] sm:$0xff]
  %v78 = vld [vmem:[%s1 + $0x1f0] sm:$0xff]
  %v79 = vld [vmem:[%s1 + $0x1f8] sm:$0xff]
  %v80 = vld [vmem:[%s1 + $0x200] sm:$0xff]
  %v81 = vld [vmem:[%s1 + $0x208] sm:$0xff]
  %v82 = vld [vmem:[%s1 + $0x210] sm:$0xff]
  %v83 = vld [vmem:[%s1 + $0x218] sm:$0xff]
  %v84 = vld [vmem:[%s1 + $0x220] sm:$0xff]
  %v85 = vld [vmem:[%s1 + $0x228] sm:$0xff]
  %v86 = vld [vmem:[%s1 + $0x230] sm:$0xff]
  %v87 = vld [vmem:[%s1 + $0x238] sm:$0xff]
  %v88 = vld [vmem:[%s1 + $0x240] sm:$0xff]
  %v89 = vld [vmem:[%s1 + $0x248] sm:$0xff]
  %v90 = vld [vmem:[%s1 + $0x250] sm:$0xff]
  %v91 = vld [vmem:[%s1 + $0x258] sm:$0xff]
  %v92 = vld [vmem:[%s1 + $0x260] sm:$0xff]
  %v93 = vld [vmem:[%s1 + $0x268] sm:$0xff]
  %v94 = vld [vmem:[%s1 + $0x270] sm:$0xff]
  %v95 = vld [vmem:[%s1 + $0x278] sm:$0xff]
  %v96 = vld [vmem:[%s1 + $0x280] sm:$0xff]
  %v97 = vld [vmem:[%s1 + $0x288] sm:$0xff]
  %v98 = vld [vmem:[%s1 + $0x290] sm:$0xff]
  %v99 = vld [vmem:[%s1 + $0x298] sm:$0xff]
  %v100 = vld [vmem:[%s1 + $0x2a0] sm:$0xff]
  %v101 = vld [vmem:[%s1 + $0x2a8] sm:$0xff]
  %v102 = vld [vmem:[%s1 + $0x2b0] sm:$0xff]
  %v103 = vld [vmem:[%s1 + $0x2b8] sm:$0xff]
  %v104 = vld [vmem:[%s1 + $0x2c0] sm:$0xff]
  %v105 = vld [vmem:[%s1 + $0x2c8] sm:$0xff]
  %v106 = vld [vmem:[%s1 + $0x2d0] sm:$0xff]
  %v107 = vld [vmem:[%s1 + $0x2d8] sm:$0xff]
  %v108 = vld [vmem:[%s1 + $0x2e0] sm:$0xff]
  %v109 = vld [vmem:[%s1 + $0x2e8] sm:$0xff]
  %v110 = vld [vmem:[%s1 + $0x2f0] sm:$0xff]
  %v111 = vld [vmem:[%s1 + $0x2f8] sm:$0xff]
  %v112 = vld [vmem:[%s2] sm:$0x3f]
  %v114 = vlaneseq
  %v115 = vshrl.u32 %v114, 7
  %v116 = vsub.s32 0, %v115
  %v117 = vrot.slane %v112, %v116
  %v118 = vlaneseq
  %v119 = vshrl.u32 %v118, 7
  %v120 = vsub.s32 1, %v119
  %v121 = vrot.slane %v112, %v120
  %v122 = vlaneseq
  %v123 = vshrl.u32 %v122, 7
  %v124 = vsub.s32 2, %v123
  %v125 = vrot.slane %v112, %v124
  %v126 = vlaneseq
  %v127 = vshrl.u32 %v126, 7
  %v128 = vsub.s32 3, %v127
  %v129 = vrot.slane %v112, %v128
  %v130 = vlaneseq
  %v131 = vshrl.u32 %v130, 7
  %v132 = vsub.s32 4, %v131
  %v133 = vrot.slane %v112, %v132
  %v134 = vlaneseq
  %v135 = vshrl.u32 %v134, 7
  %v136 = vsub.s32 5, %v135
  %v137 = vrot.slane %v112, %v136
  %v146 = vunpack.c.l.b16 %v14
  %v147 = vunpack.c.h.b16 %v14
  %v148 = vunpack.c.l.b16 %v15
  %v149 = vunpack.c.h.b16 %v15
  %v150 = vpack.c.b16 %v148, %v146
  %v151 = vpack.c.b16 %v149, %v147
  %v250 = vunpack.c.l.b16 %v16
  %v251 = vunpack.c.h.b16 %v16
  %v252 = vunpack.c.l.b16 %v17
  %v253 = vunpack.c.h.b16 %v17
  %v254 = vunpack.c.l.b16 %v18
  %v255 = vunpack.c.h.b16 %v18
  %v256 = vunpack.c.l.b16 %v19
  %v257 = vunpack.c.h.b16 %v19
  %v258 = vunpack.c.l.b16 %v20
  %v259 = vunpack.c.h.b16 %v20
  %v260 = vunpack.c.l.b16 %v21
  %v261 = vunpack.c.h.b16 %v21
  %v262 = vunpack.c.l.b16 %v22
  %v263 = vunpack.c.h.b16 %v22
  %v264 = vunpack.c.l.b16 %v23
  %v265 = vunpack.c.h.b16 %v23
  %v266 = vunpack.c.l.b16 %v24
  %v267 = vunpack.c.h.b16 %v24
  %v268 = vunpack.c.l.b16 %v25
  %v269 = vunpack.c.h.b16 %v25
  %v270 = vunpack.c.l.b16 %v26
  %v271 = vunpack.c.h.b16 %v26
  %v272 = vunpack.c.l.b16 %v27
  %v273 = vunpack.c.h.b16 %v27
  %v274 = vunpack.c.l.b16 %v28
  %v275 = vunpack.c.h.b16 %v28
  %v276 = vunpack.c.l.b16 %v29
  %v277 = vunpack.c.h.b16 %v29
  %v278 = vunpack.c.l.b16 %v30
  %v279 = vunpack.c.h.b16 %v30
  %v280 = vunpack.c.l.b16 %v31
  %v281 = vunpack.c.h.b16 %v31
  %v282 = vunpack.c.l.b16 %v32
  %v283 = vunpack.c.h.b16 %v32
  %v284 = vunpack.c.l.b16 %v33
  %v285 = vunpack.c.h.b16 %v33
  %v286 = vunpack.c.l.b16 %v34
  %v287 = vunpack.c.h.b16 %v34
  %v288 = vunpack.c.l.b16 %v35
  %v289 = vunpack.c.h.b16 %v35
  %v290 = vunpack.c.l.b16 %v36
  %v291 = vunpack.c.h.b16 %v36
  %v292 = vunpack.c.l.b16 %v37
  %v293 = vunpack.c.h.b16 %v37
  %v294 = vunpack.c.l.b16 %v38
  %v295 = vunpack.c.h.b16 %v38
  %v296 = vunpack.c.l.b16 %v39
  %v297 = vunpack.c.h.b16 %v39
  %v298 = vunpack.c.l.b16 %v40
  %v299 = vunpack.c.h.b16 %v40
  %v300 = vunpack.c.l.b16 %v41
  %v301 = vunpack.c.h.b16 %v41
  %v302 = vunpack.c.l.b16 %v42
  %v303 = vunpack.c.h.b16 %v42
  %v304 = vunpack.c.l.b16 %v43
  %v305 = vunpack.c.h.b16 %v43
  %v306 = vunpack.c.l.b16 %v44
  %v307 = vunpack.c.h.b16 %v44
  %v308 = vunpack.c.l.b16 %v45
  %v309 = vunpack.c.h.b16 %v45
  %v310 = vunpack.c.l.b16 %v46
  %v311 = vunpack.c.h.b16 %v46
  %v312 = vunpack.c.l.b16 %v47
  %v313 = vunpack.c.h.b16 %v47
  %v314 = vunpack.c.l.b16 %v48
  %v315 = vunpack.c.h.b16 %v48
  %v316 = vunpack.c.l.b16 %v49
  %v317 = vunpack.c.h.b16 %v49
  %v318 = vunpack.c.l.b16 %v50
  %v319 = vunpack.c.h.b16 %v50
  %v320 = vunpack.c.l.b16 %v51
  %v321 = vunpack.c.h.b16 %v51
  %v322 = vunpack.c.l.b16 %v52
  %v323 = vunpack.c.h.b16 %v52
  %v324 = vunpack.c.l.b16 %v53
  %v325 = vunpack.c.h.b16 %v53
  %v326 = vunpack.c.l.b16 %v54
  %v327 = vunpack.c.h.b16 %v54
  %v328 = vunpack.c.l.b16 %v55
  %v329 = vunpack.c.h.b16 %v55
  %v330 = vunpack.c.l.b16 %v56
  %v331 = vunpack.c.h.b16 %v56
  %v332 = vunpack.c.l.b16 %v57
  %v333 = vunpack.c.h.b16 %v57
  %v334 = vunpack.c.l.b16 %v58
  %v335 = vunpack.c.h.b16 %v58
  %v336 = vunpack.c.l.b16 %v59
  %v337 = vunpack.c.h.b16 %v59
  %v338 = vunpack.c.l.b16 %v60
  %v339 = vunpack.c.h.b16 %v60
  %v340 = vunpack.c.l.b16 %v61
  %v341 = vunpack.c.h.b16 %v61
  %v342 = vunpack.c.l.b16 %v62
  %v343 = vunpack.c.h.b16 %v62
  %v344 = vunpack.c.l.b16 %v63
  %v345 = vunpack.c.h.b16 %v63
  %v346 = vunpack.c.l.b16 %v64
  %v347 = vunpack.c.h.b16 %v64
  %v348 = vunpack.c.l.b16 %v65
  %v349 = vunpack.c.h.b16 %v65
  %v350 = vunpack.c.l.b16 %v66
  %v351 = vunpack.c.h.b16 %v66
  %v352 = vunpack.c.l.b16 %v67
  %v353 = vunpack.c.h.b16 %v67
  %v354 = vunpack.c.l.b16 %v68
  %v355 = vunpack.c.h.b16 %v68
  %v356 = vunpack.c.l.b16 %v69
  %v357 = vunpack.c.h.b16 %v69
  %v358 = vunpack.c.l.b16 %v70
  %v359 = vunpack.c.h.b16 %v70
  %v360 = vunpack.c.l.b16 %v71
  %v361 = vunpack.c.h.b16 %v71
  %v362 = vunpack.c.l.b16 %v72
  %v363 = vunpack.c.h.b16 %v72
  %v364 = vunpack.c.l.b16 %v73
  %v365 = vunpack.c.h.b16 %v73
  %v366 = vunpack.c.l.b16 %v74
  %v367 = vunpack.c.h.b16 %v74
  %v368 = vunpack.c.l.b16 %v75
  %v369 = vunpack.c.h.b16 %v75
  %v370 = vunpack.c.l.b16 %v76
  %v371 = vunpack.c.h.b16 %v76
  %v372 = vunpack.c.l.b16 %v77
  %v373 = vunpack.c.h.b16 %v77
  %v374 = vunpack.c.l.b16 %v78
  %v375 = vunpack.c.h.b16 %v78
  %v376 = vunpack.c.l.b16 %v79
  %v377 = vunpack.c.h.b16 %v79
  %v378 = vunpack.c.l.b16 %v80
  %v379 = vunpack.c.h.b16 %v80
  %v380 = vunpack.c.l.b16 %v81
  %v381 = vunpack.c.h.b16 %v81
  %v382 = vunpack.c.l.b16 %v82
  %v383 = vunpack.c.h.b16 %v82
  %v384 = vunpack.c.l.b16 %v83
  %v385 = vunpack.c.h.b16 %v83
  %v386 = vunpack.c.l.b16 %v84
  %v387 = vunpack.c.h.b16 %v84
  %v388 = vunpack.c.l.b16 %v85
  %v389 = vunpack.c.h.b16 %v85
  %v390 = vunpack.c.l.b16 %v86
  %v391 = vunpack.c.h.b16 %v86
  %v392 = vunpack.c.l.b16 %v87
  %v393 = vunpack.c.h.b16 %v87
  %v394 = vunpack.c.l.b16 %v88
  %v395 = vunpack.c.h.b16 %v88
  %v396 = vunpack.c.l.b16 %v89
  %v397 = vunpack.c.h.b16 %v89
  %v398 = vunpack.c.l.b16 %v90
  %v399 = vunpack.c.h.b16 %v90
  %v400 = vunpack.c.l.b16 %v91
  %v401 = vunpack.c.h.b16 %v91
  %v402 = vunpack.c.l.b16 %v92
  %v403 = vunpack.c.h.b16 %v92
  %v404 = vunpack.c.l.b16 %v93
  %v405 = vunpack.c.h.b16 %v93
  %v406 = vunpack.c.l.b16 %v94
  %v407 = vunpack.c.h.b16 %v94
  %v408 = vunpack.c.l.b16 %v95
  %v409 = vunpack.c.h.b16 %v95
  %v410 = vunpack.c.l.b16 %v96
  %v411 = vunpack.c.h.b16 %v96
  %v412 = vunpack.c.l.b16 %v97
  %v413 = vunpack.c.h.b16 %v97
  %v414 = vunpack.c.l.b16 %v98
  %v415 = vunpack.c.h.b16 %v98
  %v416 = vunpack.c.l.b16 %v99
  %v417 = vunpack.c.h.b16 %v99
  %v418 = vunpack.c.l.b16 %v100
  %v419 = vunpack.c.h.b16 %v100
  %v420 = vunpack.c.l.b16 %v101
  %v421 = vunpack.c.h.b16 %v101
  %v422 = vunpack.c.l.b16 %v102
  %v423 = vunpack.c.h.b16 %v102
  %v424 = vunpack.c.l.b16 %v103
  %v425 = vunpack.c.h.b16 %v103
  %v426 = vunpack.c.l.b16 %v104
  %v427 = vunpack.c.h.b16 %v104
  %v428 = vunpack.c.l.b16 %v105
  %v429 = vunpack.c.h.b16 %v105
  %v430 = vunpack.c.l.b16 %v106
  %v431 = vunpack.c.h.b16 %v106
  %v432 = vunpack.c.l.b16 %v107
  %v433 = vunpack.c.h.b16 %v107
  %v434 = vunpack.c.l.b16 %v108
  %v435 = vunpack.c.h.b16 %v108
  %v436 = vunpack.c.l.b16 %v109
  %v437 = vunpack.c.h.b16 %v109
  %v438 = vunpack.c.l.b16 %v110
  %v439 = vunpack.c.h.b16 %v110
  %v440 = vunpack.c.l.b16 %v111
  %v441 = vunpack.c.h.b16 %v111
  %v442 = vpack.c.b16 %v256, %v250
  %v443 = vpack.c.b16 %v257, %v251
  %v444 = vpack.c.b16 %v258, %v252
  %v445 = vpack.c.b16 %v259, %v253
  %v446 = vpack.c.b16 %v260, %v254
  %v447 = vpack.c.b16 %v261, %v255
  %v448 = vpack.c.b16 %v268, %v262
  %v449 = vpack.c.b16 %v269, %v263
  %v450 = vpack.c.b16 %v270, %v264
  %v451 = vpack.c.b16 %v271, %v265
  %v452 = vpack.c.b16 %v272, %v266
  %v453 = vpack.c.b16 %v273, %v267
  %v454 = vpack.c.b16 %v280, %v274
  %v455 = vpack.c.b16 %v281, %v275
  %v456 = vpack.c.b16 %v282, %v276
  %v457 = vpack.c.b16 %v283, %v277
  %v458 = vpack.c.b16 %v284, %v278
  %v459 = vpack.c.b16 %v285, %v279
  %v460 = vpack.c.b16 %v292, %v286
  %v461 = vpack.c.b16 %v293, %v287
  %v462 = vpack.c.b16 %v294, %v288
  %v463 = vpack.c.b16 %v295, %v289
  %v464 = vpack.c.b16 %v296, %v290
  %v465 = vpack.c.b16 %v297, %v291
  %v466 = vpack.c.b16 %v304, %v298
  %v467 = vpack.c.b16 %v305, %v299
  %v468 = vpack.c.b16 %v306, %v300
  %v469 = vpack.c.b16 %v307, %v301
  %v470 = vpack.c.b16 %v308, %v302
  %v471 = vpack.c.b16 %v309, %v303
  %v472 = vpack.c.b16 %v316, %v310
  %v473 = vpack.c.b16 %v317, %v311
  %v474 = vpack.c.b16 %v318, %v312
  %v475 = vpack.c.b16 %v319, %v313
  %v476 = vpack.c.b16 %v320, %v314
  %v477 = vpack.c.b16 %v321, %v315
  %v478 = vpack.c.b16 %v328, %v322
  %v479 = vpack.c.b16 %v329, %v323
  %v480 = vpack.c.b16 %v330, %v324
  %v481 = vpack.c.b16 %v331, %v325
  %v482 = vpack.c.b16 %v332, %v326
  %v483 = vpack.c.b16 %v333, %v327
  %v484 = vpack.c.b16 %v340, %v334
  %v485 = vpack.c.b16 %v341, %v335
  %v486 = vpack.c.b16 %v342, %v336
  %v487 = vpack.c.b16 %v343, %v337
  %v488 = vpack.c.b16 %v344, %v338
  %v489 = vpack.c.b16 %v345, %v339
  %v490 = vpack.c.b16 %v352, %v346
  %v491 = vpack.c.b16 %v353, %v347
  %v492 = vpack.c.b16 %v354, %v348
  %v493 = vpack.c.b16 %v355, %v349
  %v494 = vpack.c.b16 %v356, %v350
  %v495 = vpack.c.b16 %v357, %v351
  %v496 = vpack.c.b16 %v364, %v358
  %v497 = vpack.c.b16 %v365, %v359
  %v498 = vpack.c.b16 %v366, %v360
  %v499 = vpack.c.b16 %v367, %v361
  %v500 = vpack.c.b16 %v368, %v362
  %v501 = vpack.c.b16 %v369, %v363
  %v502 = vpack.c.b16 %v376, %v370
  %v503 = vpack.c.b16 %v377, %v371
  %v504 = vpack.c.b16 %v378, %v372
  %v505 = vpack.c.b16 %v379, %v373
  %v506 = vpack.c.b16 %v380, %v374
  %v507 = vpack.c.b16 %v381, %v375
  %v508 = vpack.c.b16 %v388, %v382
  %v509 = vpack.c.b16 %v389, %v383
  %v510 = vpack.c.b16 %v390, %v384
  %v511 = vpack.c.b16 %v391, %v385
  %v512 = vpack.c.b16 %v392, %v386
  %v513 = vpack.c.b16 %v393, %v387
  %v514 = vpack.c.b16 %v400, %v394
  %v515 = vpack.c.b16 %v401, %v395
  %v516 = vpack.c.b16 %v402, %v396
  %v517 = vpack.c.b16 %v403, %v397
  %v518 = vpack.c.b16 %v404, %v398
  %v519 = vpack.c.b16 %v405, %v399
  %v520 = vpack.c.b16 %v412, %v406
  %v521 = vpack.c.b16 %v413, %v407
  %v522 = vpack.c.b16 %v414, %v408
  %v523 = vpack.c.b16 %v415, %v409
  %v524 = vpack.c.b16 %v416, %v410
  %v525 = vpack.c.b16 %v417, %v411
  %v526 = vpack.c.b16 %v424, %v418
  %v527 = vpack.c.b16 %v425, %v419
  %v528 = vpack.c.b16 %v426, %v420
  %v529 = vpack.c.b16 %v427, %v421
  %v530 = vpack.c.b16 %v428, %v422
  %v531 = vpack.c.b16 %v429, %v423
  %v532 = vpack.c.b16 %v436, %v430
  %v533 = vpack.c.b16 %v437, %v431
  %v534 = vpack.c.b16 %v438, %v432
  %v535 = vpack.c.b16 %v439, %v433
  %v536 = vpack.c.b16 %v440, %v434
  %v537 = vpack.c.b16 %v441, %v435
  %634 = vmatprep.subr.bf16.mxu0 %v443
  %635 = vmatpush1.bf16.msra.mxu0 %v442
  %636 = vmatprep.subr.bf16.mxu0 %v449
  %637 = vmatpush1.bf16.msra.mxu0 %v448
  %638 = vmatprep.subr.bf16.mxu0 %v455
  %639 = vmatpush1.bf16.msra.mxu0 %v454
  %640 = vmatprep.subr.bf16.mxu0 %v461
  %641 = vmatpush1.bf16.msra.mxu0 %v460
  %642 = vmatprep.subr.bf16.mxu0 %v467
  %643 = vmatpush1.bf16.msra.mxu0 %v466
  %644 = vmatprep.subr.bf16.mxu0 %v473
  %645 = vmatpush1.bf16.msra.mxu0 %v472
  %646 = vmatprep.subr.bf16.mxu0 %v479
  %647 = vmatpush1.bf16.msra.mxu0 %v478
  %648 = vmatprep.subr.bf16.mxu0 %v485
  %649 = vmatpush1.bf16.msra.mxu0 %v484
  %650 = vmatprep.subr.bf16.mxu0 %v491
  %651 = vmatpush1.bf16.msra.mxu0 %v490
  %652 = vmatprep.subr.bf16.mxu0 %v497
  %653 = vmatpush1.bf16.msra.mxu0 %v496
  %654 = vmatprep.subr.bf16.mxu0 %v503
  %655 = vmatpush1.bf16.msra.mxu0 %v502
  %656 = vmatprep.subr.bf16.mxu0 %v509
  %657 = vmatpush1.bf16.msra.mxu0 %v508
  %658 = vmatprep.subr.bf16.mxu0 %v515
  %659 = vmatpush1.bf16.msra.mxu0 %v514
  %660 = vmatprep.subr.bf16.mxu0 %v521
  %661 = vmatpush1.bf16.msra.mxu0 %v520
  %662 = vmatprep.subr.bf16.mxu0 %v527
  %663 = vmatpush1.bf16.msra.mxu0 %v526
  %664 = vmatprep.subr.bf16.mxu0 %v533
  %665 = vmatpush1.bf16.msra.mxu0 %v532
  %666 = vmatprep.mubr.bf16.mxu0 %v151
  %667 = vmatmul.mubr.bf16.gmra.mrb[0].mxu0 %v150
  %v668 = vpop.f32.mrb[0].mxu0
  %v669 = vadd.f32 %v117, %v668
  %v670 = vpop.f32.mrb[0].mxu0
  %v671 = vadd.f32 %v121, %v670
  %v672 = vpop.f32.mrb[0].mxu0
  %v673 = vadd.f32 %v117, %v672
  %v674 = vpop.f32.mrb[0].mxu0
  %v675 = vadd.f32 %v121, %v674
  %676 = vdwg.mxu0
  %677 = vmatprep.subr.bf16.mxu0 %v445
  %678 = vmatpush1.bf16.msra.mxu0 %v444
  %679 = vmatprep.subr.bf16.mxu0 %v451
  %680 = vmatpush1.bf16.msra.mxu0 %v450
  %681 = vmatprep.subr.bf16.mxu0 %v457
  %682 = vmatpush1.bf16.msra.mxu0 %v456
  %683 = vmatprep.subr.bf16.mxu0 %v463
  %684 = vmatpush1.bf16.msra.mxu0 %v462
  %685 = vmatprep.subr.bf16.mxu0 %v469
  %686 = vmatpush1.bf16.msra.mxu0 %v468
  %687 = vmatprep.subr.bf16.mxu0 %v475
  %688 = vmatpush1.bf16.msra.mxu0 %v474
  %689 = vmatprep.subr.bf16.mxu0 %v481
  %690 = vmatpush1.bf16.msra.mxu0 %v480
  %691 = vmatprep.subr.bf16.mxu0 %v487
  %692 = vmatpush1.bf16.msra.mxu0 %v486
  %693 = vmatprep.subr.bf16.mxu0 %v493
  %694 = vmatpush1.bf16.msra.mxu0 %v492
  %695 = vmatprep.subr.bf16.mxu0 %v499
  %696 = vmatpush1.bf16.msra.mxu0 %v498
  %697 = vmatprep.subr.bf16.mxu0 %v505
  %698 = vmatpush1.bf16.msra.mxu0 %v504
  %699 = vmatprep.subr.bf16.mxu0 %v511
  %700 = vmatpush1.bf16.msra.mxu0 %v510
  %701 = vmatprep.subr.bf16.mxu0 %v517
  %702 = vmatpush1.bf16.msra.mxu0 %v516
  %703 = vmatprep.subr.bf16.mxu0 %v523
  %704 = vmatpush1.bf16.msra.mxu0 %v522
  %705 = vmatprep.subr.bf16.mxu0 %v529
  %706 = vmatpush1.bf16.msra.mxu0 %v528
  %707 = vmatprep.subr.bf16.mxu0 %v535
  %708 = vmatpush1.bf16.msra.mxu0 %v534
  %709 = vmatprep.mubr.bf16.mxu0 %v151
  %710 = vmatmul.mubr.bf16.gmra.mrb[0].mxu0 %v150
  %v711 = vpop.f32.mrb[0].mxu0
  %v712 = vadd.f32 %v125, %v711
  %v713 = vpop.f32.mrb[0].mxu0
  %v714 = vadd.f32 %v129, %v713
  %v715 = vpop.f32.mrb[0].mxu0
  %v716 = vadd.f32 %v125, %v715
  %v717 = vpop.f32.mrb[0].mxu0
  %v718 = vadd.f32 %v129, %v717
  %719 = vdwg.mxu0
  %720 = vmatprep.subr.bf16.mxu0 %v447
  %721 = vmatpush1.bf16.msra.mxu0 %v446
  %722 = vmatprep.subr.bf16.mxu0 %v453
  %723 = vmatpush1.bf16.msra.mxu0 %v452
  %724 = vmatprep.subr.bf16.mxu0 %v459
  %725 = vmatpush1.bf16.msra.mxu0 %v458
  %726 = vmatprep.subr.bf16.mxu0 %v465
  %727 = vmatpush1.bf16.msra.mxu0 %v464
  %728 = vmatprep.subr.bf16.mxu0 %v471
  %729 = vmatpush1.bf16.msra.mxu0 %v470
  %730 = vmatprep.subr.bf16.mxu0 %v477
  %731 = vmatpush1.bf16.msra.mxu0 %v476
  %732 = vmatprep.subr.bf16.mxu0 %v483
  %733 = vmatpush1.bf16.msra.mxu0 %v482
  %734 = vmatprep.subr.bf16.mxu0 %v489
  %735 = vmatpush1.bf16.msra.mxu0 %v488
  %736 = vmatprep.subr.bf16.mxu0 %v495
  %737 = vmatpush1.bf16.msra.mxu0 %v494
  %738 = vmatprep.subr.bf16.mxu0 %v501
  %739 = vmatpush1.bf16.msra.mxu0 %v500
  %740 = vmatprep.subr.bf16.mxu0 %v507
  %741 = vmatpush1.bf16.msra.mxu0 %v506
  %742 = vmatprep.subr.bf16.mxu0 %v513
  %743 = vmatpush1.bf16.msra.mxu0 %v512
  %744 = vmatprep.subr.bf16.mxu0 %v519
  %745 = vmatpush1.bf16.msra.mxu0 %v518
  %746 = vmatprep.subr.bf16.mxu0 %v525
  %747 = vmatpush1.bf16.msra.mxu0 %v524
  %748 = vmatprep.subr.bf16.mxu0 %v531
  %749 = vmatpush1.bf16.msra.mxu0 %v530
  %750 = vmatprep.subr.bf16.mxu0 %v537
  %751 = vmatpush1.bf16.msra.mxu0 %v536
  %752 = vmatprep.mubr.bf16.mxu0 %v151
  %753 = vmatmul.mubr.bf16.gmra.mrb[0].mxu0 %v150
  %v754 = vpop.f32.mrb[0].mxu0
  %v755 = vadd.f32 %v133, %v754
  %v756 = vpop.f32.mrb[0].mxu0
  %v757 = vadd.f32 %v137, %v756
  %v758 = vpop.f32.mrb[0].mxu0
  %v759 = vadd.f32 %v133, %v758
  %v760 = vpop.f32.mrb[0].mxu0
  %v761 = vadd.f32 %v137, %v760
  %762 = vdwg.mxu0
  %763 = vst [vmem:[%s3] sm:$0xff] %v669
  %764 = vst [vmem:[%s3 + $0x8] sm:$0xff] %v671
  %765 = vst [vmem:[%s3 + $0x10] sm:$0xff] %v712
  %766 = vst [vmem:[%s3 + $0x18] sm:$0xff] %v714
  %767 = vst [vmem:[%s3 + $0x20] sm:$0xff] %v755
  %768 = vst [vmem:[%s3 + $0x28] sm:$0xff] %v757
  %769 = vst [vmem:[%s3 + $0x30] sm:$0xff] %v673
  %770 = vst [vmem:[%s3 + $0x38] sm:$0xff] %v675
  %771 = vst [vmem:[%s3 + $0x40] sm:$0xff] %v716
  %772 = vst [vmem:[%s3 + $0x48] sm:$0xff] %v718
  %773 = vst [vmem:[%s3 + $0x50] sm:$0xff] %v759
  %774 = vst [vmem:[%s3 + $0x58] sm:$0xff] %v761
  // Predicated region
  $region14: #{event_track_net_forward.5} parent=0 // pred_check
    _
  $region15: #{event_track_net_forward.5} parent=0 // pred_check_branch
    %776 = sbr.rel (0) target = $region17
  $region16: #{event_track_net_forward.5} parent=0 // pred_region
    _
  $region17: #{event_track_net_forward.5} parent=0 // pred_fallthru
    _
  // Predicated region
  $region18: #{event_track_net_forward.5} parent=0 // pred_check
    _
  $region19: #{event_track_net_forward.5} parent=0 // pred_check_branch
    %778 = sbr.rel (0) target = $region21
  $region20: #{event_track_net_forward.5} parent=0 // pred_region
    _
  $region21: #{event_track_net_forward.5} parent=0 // pred_fallthru
    _

// kernel: event_track_net_forward.7
$region0: #{event_track_net_forward.7}
  #allocation0 [shape = 'u32[]', space=smem, size = 0x4, offset = 0x4, fixed_abs, tag = 'smem constant byte address 0x4 - core index']
  #allocation1 [shape = 'u32[144,128]{1,0:T(1,128)}', space=vmem, size = 0x12000, scoped, tag = 'internal scratch']
  %s0 = inlined_call_operand.vmem [shape: bf16[16,256], index: 0, kind: input, shape index: {}]
  %s1 = inlined_call_operand.vmem [shape: bf16[256,256], index: 1, kind: input, shape index: {}]
  %s2 = inlined_call_operand.vmem [shape: f32[1,256], index: 2, kind: input, shape index: {}]
  %s3 = inlined_call_operand.vmem [shape: f32[16,256], index: 3, kind: output, shape index: {}]
  %s4 = sld [smem:[#allocation0]]
  $region22: #{event_track_net_forward.7} parent=0
    _
  %s6 = ssub.s32 1, %s4
  %s7 = scalar_select 0, %s6, %s4
  // Predicated region
  $region2: #{event_track_net_forward.7} parent=0 // pred_check
    _
  $region3: #{event_track_net_forward.7} parent=0 // pred_check_branch
    %9 = sbr.rel (0) target = $region5
  $region4: #{event_track_net_forward.7} parent=0 // pred_region
    _
  $region5: #{event_track_net_forward.7} parent=0 // pred_fallthru
    _
  // Predicated region
  $region6: #{event_track_net_forward.7} parent=0 // pred_check
    _
  $region7: #{event_track_net_forward.7} parent=0 // pred_check_branch
    %11 = sbr.rel (0) target = $region9
  $region8: #{event_track_net_forward.7} parent=0 // pred_region
    _
  $region9: #{event_track_net_forward.7} parent=0 // pred_fallthru
    _
  // Predicated region
  $region10: #{event_track_net_forward.7} parent=0 // pred_check
    _
  $region11: #{event_track_net_forward.7} parent=0 // pred_check_branch
    %13 = sbr.rel (0) target = $region13
  $region12: #{event_track_net_forward.7} parent=0 // pred_region
    _
  $region13: #{event_track_net_forward.7} parent=0 // pred_fallthru
    _
  %v14 = vld [vmem:[%s0] sm:$0xff]
  %v15 = vld [vmem:[%s0 + $0x8] sm:$0xff]
  %v16 = vld [vmem:[%s1] sm:$0xff]
  %v17 = vld [vmem:[%s1 + $0x8] sm:$0xff]
  %v18 = vld [vmem:[%s1 + $0x10] sm:$0xff]
  %v19 = vld [vmem:[%s1 + $0x18] sm:$0xff]
  %v20 = vld [vmem:[%s1 + $0x20] sm:$0xff]
  %v21 = vld [vmem:[%s1 + $0x28] sm:$0xff]
  %v22 = vld [vmem:[%s1 + $0x30] sm:$0xff]
  %v23 = vld [vmem:[%s1 + $0x38] sm:$0xff]
  %v24 = vld [vmem:[%s1 + $0x40] sm:$0xff]
  %v25 = vld [vmem:[%s1 + $0x48] sm:$0xff]
  %v26 = vld [vmem:[%s1 + $0x50] sm:$0xff]
  %v27 = vld [vmem:[%s1 + $0x58] sm:$0xff]
  %v28 = vld [vmem:[%s1 + $0x60] sm:$0xff]
  %v29 = vld [vmem:[%s1 + $0x68] sm:$0xff]
  %v30 = vld [vmem:[%s1 + $0x70] sm:$0xff]
  %v31 = vld [vmem:[%s1 + $0x78] sm:$0xff]
  %v32 = vld [vmem:[%s1 + $0x80] sm:$0xff]
  %v33 = vld [vmem:[%s1 + $0x88] sm:$0xff]
  %v34 = vld [vmem:[%s1 + $0x90] sm:$0xff]
  %v35 = vld [vmem:[%s1 + $0x98] sm:$0xff]
  %v36 = vld [vmem:[%s1 + $0xa0] sm:$0xff]
  %v37 = vld [vmem:[%s1 + $0xa8] sm:$0xff]
  %v38 = vld [vmem:[%s1 + $0xb0] sm:$0xff]
  %v39 = vld [vmem:[%s1 + $0xb8] sm:$0xff]
  %v40 = vld [vmem:[%s1 + $0xc0] sm:$0xff]
  %v41 = vld [vmem:[%s1 + $0xc8] sm:$0xff]
  %v42 = vld [vmem:[%s1 + $0xd0] sm:$0xff]
  %v43 = vld [vmem:[%s1 + $0xd8] sm:$0xff]
  %v44 = vld [vmem:[%s1 + $0xe0] sm:$0xff]
  %v45 = vld [vmem:[%s1 + $0xe8] sm:$0xff]
  %v46 = vld [vmem:[%s1 + $0xf0] sm:$0xff]
  %v47 = vld [vmem:[%s1 + $0xf8] sm:$0xff]
  %v48 = vld [vmem:[%s2] sm:$0x3]
  %v50 = vlaneseq
  %v51 = vshrl.u32 %v50, 7
  %v52 = vsub.s32 0, %v51
  %v53 = vrot.slane %v48, %v52
  %v54 = vlaneseq
  %v55 = vshrl.u32 %v54, 7
  %v56 = vsub.s32 1, %v55
  %v57 = vrot.slane %v48, %v56
  %v62 = vunpack.c.l.b16 %v14
  %v63 = vunpack.c.h.b16 %v14
  %v64 = vunpack.c.l.b16 %v15
  %v65 = vunpack.c.h.b16 %v15
  %v66 = vpack.c.b16 %v64, %v62
  %v67 = vpack.c.b16 %v65, %v63
  %v102 = vunpack.c.l.b16 %v16
  %v103 = vunpack.c.h.b16 %v16
  %v104 = vunpack.c.l.b16 %v17
  %v105 = vunpack.c.h.b16 %v17
  %v106 = vunpack.c.l.b16 %v18
  %v107 = vunpack.c.h.b16 %v18
  %v108 = vunpack.c.l.b16 %v19
  %v109 = vunpack.c.h.b16 %v19
  %v110 = vunpack.c.l.b16 %v20
  %v111 = vunpack.c.h.b16 %v20
  %v112 = vunpack.c.l.b16 %v21
  %v113 = vunpack.c.h.b16 %v21
  %v114 = vunpack.c.l.b16 %v22
  %v115 = vunpack.c.h.b16 %v22
  %v116 = vunpack.c.l.b16 %v23
  %v117 = vunpack.c.h.b16 %v23
  %v118 = vunpack.c.l.b16 %v24
  %v119 = vunpack.c.h.b16 %v24
  %v120 = vunpack.c.l.b16 %v25
  %v121 = vunpack.c.h.b16 %v25
  %v122 = vunpack.c.l.b16 %v26
  %v123 = vunpack.c.h.b16 %v26
  %v124 = vunpack.c.l.b16 %v27
  %v125 = vunpack.c.h.b16 %v27
  %v126 = vunpack.c.l.b16 %v28
  %v127 = vunpack.c.h.b16 %v28
  %v128 = vunpack.c.l.b16 %v29
  %v129 = vunpack.c.h.b16 %v29
  %v130 = vunpack.c.l.b16 %v30
  %v131 = vunpack.c.h.b16 %v30
  %v132 = vunpack.c.l.b16 %v31
  %v133 = vunpack.c.h.b16 %v31
  %v134 = vunpack.c.l.b16 %v32
  %v135 = vunpack.c.h.b16 %v32
  %v136 = vunpack.c.l.b16 %v33
  %v137 = vunpack.c.h.b16 %v33
  %v138 = vunpack.c.l.b16 %v34
  %v139 = vunpack.c.h.b16 %v34
  %v140 = vunpack.c.l.b16 %v35
  %v141 = vunpack.c.h.b16 %v35
  %v142 = vunpack.c.l.b16 %v36
  %v143 = vunpack.c.h.b16 %v36
  %v144 = vunpack.c.l.b16 %v37
  %v145 = vunpack.c.h.b16 %v37
  %v146 = vunpack.c.l.b16 %v38
  %v147 = vunpack.c.h.b16 %v38
  %v148 = vunpack.c.l.b16 %v39
  %v149 = vunpack.c.h.b16 %v39
  %v150 = vunpack.c.l.b16 %v40
  %v151 = vunpack.c.h.b16 %v40
  %v152 = vunpack.c.l.b16 %v41
  %v153 = vunpack.c.h.b16 %v41
  %v154 = vunpack.c.l.b16 %v42
  %v155 = vunpack.c.h.b16 %v42
  %v156 = vunpack.c.l.b16 %v43
  %v157 = vunpack.c.h.b16 %v43
  %v158 = vunpack.c.l.b16 %v44
  %v159 = vunpack.c.h.b16 %v44
  %v160 = vunpack.c.l.b16 %v45
  %v161 = vunpack.c.h.b16 %v45
  %v162 = vunpack.c.l.b16 %v46
  %v163 = vunpack.c.h.b16 %v46
  %v164 = vunpack.c.l.b16 %v47
  %v165 = vunpack.c.h.b16 %v47
  %v166 = vpack.c.b16 %v104, %v102
  %v167 = vpack.c.b16 %v105, %v103
  %v168 = vpack.c.b16 %v108, %v106
  %v169 = vpack.c.b16 %v109, %v107
  %v170 = vpack.c.b16 %v112, %v110
  %v171 = vpack.c.b16 %v113, %v111
  %v172 = vpack.c.b16 %v116, %v114
  %v173 = vpack.c.b16 %v117, %v115
  %v174 = vpack.c.b16 %v120, %v118
  %v175 = vpack.c.b16 %v121, %v119
  %v176 = vpack.c.b16 %v124, %v122
  %v177 = vpack.c.b16 %v125, %v123
  %v178 = vpack.c.b16 %v128, %v126
  %v179 = vpack.c.b16 %v129, %v127
  %v180 = vpack.c.b16 %v132, %v130
  %v181 = vpack.c.b16 %v133, %v131
  %v182 = vpack.c.b16 %v136, %v134
  %v183 = vpack.c.b16 %v137, %v135
  %v184 = vpack.c.b16 %v140, %v138
  %v185 = vpack.c.b16 %v141, %v139
  %v186 = vpack.c.b16 %v144, %v142
  %v187 = vpack.c.b16 %v145, %v143
  %v188 = vpack.c.b16 %v148, %v146
  %v189 = vpack.c.b16 %v149, %v147
  %v190 = vpack.c.b16 %v152, %v150
  %v191 = vpack.c.b16 %v153, %v151
  %v192 = vpack.c.b16 %v156, %v154
  %v193 = vpack.c.b16 %v157, %v155
  %v194 = vpack.c.b16 %v160, %v158
  %v195 = vpack.c.b16 %v161, %v159
  %v196 = vpack.c.b16 %v164, %v162
  %v197 = vpack.c.b16 %v165, %v163
  %230 = vmatprep.subr.bf16.mxu0 %v167
  %231 = vmatpush1.bf16.msra.mxu0 %v166
  %232 = vmatprep.subr.bf16.mxu0 %v169
  %233 = vmatpush1.bf16.msra.mxu0 %v168
  %234 = vmatprep.subr.bf16.mxu0 %v171
  %235 = vmatpush1.bf16.msra.mxu0 %v170
  %236 = vmatprep.subr.bf16.mxu0 %v173
  %237 = vmatpush1.bf16.msra.mxu0 %v172
  %238 = vmatprep.subr.bf16.mxu0 %v175
  %239 = vmatpush1.bf16.msra.mxu0 %v174
  %240 = vmatprep.subr.bf16.mxu0 %v177
  %241 = vmatpush1.bf16.msra.mxu0 %v176
  %242 = vmatprep.subr.bf16.mxu0 %v179
  %243 = vmatpush1.bf16.msra.mxu0 %v178
  %244 = vmatprep.subr.bf16.mxu0 %v181
  %245 = vmatpush1.bf16.msra.mxu0 %v180
  %246 = vmatprep.subr.bf16.mxu0 %v183
  %247 = vmatpush1.bf16.msra.mxu0 %v182
  %248 = vmatprep.subr.bf16.mxu0 %v185
  %249 = vmatpush1.bf16.msra.mxu0 %v184
  %250 = vmatprep.subr.bf16.mxu0 %v187
  %251 = vmatpush1.bf16.msra.mxu0 %v186
  %252 = vmatprep.subr.bf16.mxu0 %v189
  %253 = vmatpush1.bf16.msra.mxu0 %v188
  %254 = vmatprep.subr.bf16.mxu0 %v191
  %255 = vmatpush1.bf16.msra.mxu0 %v190
  %256 = vmatprep.subr.bf16.mxu0 %v193
  %257 = vmatpush1.bf16.msra.mxu0 %v192
  %258 = vmatprep.subr.bf16.mxu0 %v195
  %259 = vmatpush1.bf16.msra.mxu0 %v194
  %260 = vmatprep.subr.bf16.mxu0 %v197
  %261 = vmatpush1.bf16.msra.mxu0 %v196
  %262 = vmatprep.mubr.bf16.mxu0 %v67
  %263 = vmatmul.mubr.bf16.gmra.mrb[0].mxu0 %v66
  %v264 = vpop.f32.mrb[0].mxu0
  %v265 = vadd.f32 %v53, %v264
  %v266 = vpop.f32.mrb[0].mxu0
  %v267 = vadd.f32 %v57, %v266
  %v268 = vpop.f32.mrb[0].mxu0
  %v269 = vadd.f32 %v53, %v268
  %v270 = vpop.f32.mrb[0].mxu0
  %v271 = vadd.f32 %v57, %v270
  %272 = vdwg.mxu0
  %273 = vst [vmem:[%s3] sm:$0xff] %v265
  %274 = vst [vmem:[%s3 + $0x8] sm:$0xff] %v267
  %275 = vst [vmem:[%s3 + $0x10] sm:$0xff] %v269
  %276 = vst [vmem:[%s3 + $0x18] sm:$0xff] %v271
  // Predicated region
  $region14: #{event_track_net_forward.7} parent=0 // pred_check
    _
  $region15: #{event_track_net_forward.7} parent=0 // pred_check_branch
    %278 = sbr.rel (0) target = $region17
  $region16: #{event_track_net_forward.7} parent=0 // pred_region
    _
  $region17: #{event_track_net_forward.7} parent=0 // pred_fallthru
    _
  // Predicated region
  $region18: #{event_track_net_forward.7} parent=0 // pred_check
    _
  $region19: #{event_track_net_forward.7} parent=0 // pred_check_branch
    %280 = sbr.rel (0) target = $region21
  $region20: #{event_track_net_forward.7} parent=0 // pred_region
    _
  $region21: #{event_track_net_forward.7} parent=0 // pred_fallthru
    _

// kernel: event_track_net_forward.6
$region0: #{event_track_net_forward.6}
  #allocation0 [shape = 'u32[]', space=smem, size = 0x4, offset = 0x4, fixed_abs, tag = 'smem constant byte address 0x4 - core index']
  #allocation1 [shape = 'u32[144,128]{1,0:T(1,128)}', space=vmem, size = 0x12000, scoped, tag = 'internal scratch']
  #allocation2 [shape = 'f32[8,256]{1,0:T(8,128)}', space=vmem, size = 0x2000, scoped, tag = 'scratch operand']
  %s0 = inlined_call_operand.vmem [shape: f32[8,6144], index: 0, kind: input, shape index: {}]
  %s1 = inlined_call_operand.vmem [shape: bf16[8,2048], index: 1, kind: input, shape index: {}]
  %s2 = inlined_call_operand.vmem [shape: f32[8,256], index: 2, kind: input, shape index: {}]
  %s3 = inlined_call_operand.vmem [shape: bf16[256,768], index: 3, kind: input, shape index: {}]
  %s4 = inlined_call_operand.vmem [shape: f32[1,768], index: 4, kind: input, shape index: {}]
  %s5 = inlined_call_operand.vmem [shape: bf16[8,2048], index: 5, kind: output, shape index: {}]
  %s6 = sld [smem:[#allocation0]]
  $region57: #{event_track_net_forward.6} parent=0
    _
  %s8 = ssub.s32 1, %s6
  %s9 = scalar_select 0, %s8, %s6
  loop: start=0, step=1, limit=10
  $region2: #{event_track_net_forward.6} parent=0 // loop_pre_header
    _
  $region3: #{event_track_net_forward.6} parent=0 // loop_header
    %s11 = sphi 0, %s15
    %p12 = scmp.ge.s32.totalorder %s11, 10
    %s21 = sphi 0, %s23
    %s24 = sphi 0, %s21
    %s25 = sphi 0, %s24
    %s41 = sphi 0, %s25
    %s47 = sphi 0, %s49
    %s50 = sphi 0, %s47
    %s51 = sphi 0, %s50
    %s67 = sphi 0, %s51
    %s71 = sphi 0, %s71
    %s73 = sphi 0, %s71
    %s74 = sphi 0, %s73
    %s88 = sphi 0, %s74
    %s92 = sphi 0, %s92
    %s94 = sphi 0, %s92
    %s95 = sphi 0, %s94
    %s109 = sphi 0, %s95
    %s113 = sphi 0, %s113
    %s115 = sphi 0, %s113
    %s116 = sphi 0, %s115
    %s130 = sphi 0, %s116
    %s136 = sphi 0, %s138
    %s139 = sphi 0, %s136
    %s140 = sphi 0, %s139
    %s156 = sphi 0, %s140
  $region4: #{event_track_net_forward.6} parent=0 // loop_header_branch
    %14 = sbr.rel (%p12) target = $region8
  $region5: #{event_track_net_forward.6} parent=0 // loop_body
    %s16 = ssub.s32 %s11, 1
    %s17 = ssub.s32 %s11, 2
    %s18 = sadd.s32 %s11, 1
    %s19 = ssub.s32 %s11, %s18
    %p20 = scmp.eq.s32.totalorder %s19, 0
    %s22 = sadd.s32 %s21, 1
    %s23 = scalar_select %p20, %s21, %s22
    %p26 = pneg %p20
    %p27 = scmp.eq.s32.totalorder %s11, 7
    %p28 = por %p26, %p27
    %p29 = scmp.ne.s32.totalorder %s21, %s24
    %p30 = scmp.eq.s32.totalorder %s11, 0
    %p31 = por %p29, %p30
    %p32 = scmp.ne.s32.totalorder %s21, %s24
    %p33 = scmp.eq.s32.totalorder %s16, 7
    %p34 = por %p32, %p33
    %p35 = scmp.ne.s32.totalorder %s24, %s25
    %p36 = scmp.eq.s32.totalorder %s16, 0
    %p37 = por %p35, %p36
    %p38 = scmp.ne.s32.totalorder %s24, %s25
    %p39 = scmp.eq.s32.totalorder %s17, 7
    %p40 = por %p38, %p39
    %p42 = scmp.ne.s32.totalorder %s25, %s41
    %p43 = scmp.eq.s32.totalorder %s17, 0
    %p44 = por %p42, %p43
    %s45 = ssub.s32 %s11, %s18
    %p46 = scmp.eq.s32.totalorder %s45, 0
    %s48 = sadd.s32 %s47, 1
    %s49 = scalar_select %p46, %s47, %s48
    %p52 = pneg %p46
    %p53 = scmp.eq.s32.totalorder %s11, 7
    %p54 = por %p52, %p53
    %p55 = scmp.ne.s32.totalorder %s47, %s50
    %p56 = scmp.eq.s32.totalorder %s11, 0
    %p57 = por %p55, %p56
    %p58 = scmp.ne.s32.totalorder %s47, %s50
    %p59 = scmp.eq.s32.totalorder %s16, 7
    %p60 = por %p58, %p59
    %p61 = scmp.ne.s32.totalorder %s50, %s51
    %p62 = scmp.eq.s32.totalorder %s16, 0
    %p63 = por %p61, %p62
    %p64 = scmp.ne.s32.totalorder %s50, %s51
    %p65 = scmp.eq.s32.totalorder %s17, 7
    %p66 = por %p64, %p65
    %p68 = scmp.ne.s32.totalorder %s51, %s67
    %p69 = scmp.eq.s32.totalorder %s17, 0
    %p70 = por %p68, %p69
    %s72 = sadd.s32 %s71, 1
    %p75 = scmp.eq.s32.totalorder %s11, 7
    %p76 = scmp.ne.s32.totalorder %s71, %s73
    %p77 = scmp.eq.s32.totalorder %s11, 0
    %p78 = por %p76, %p77
    %p79 = scmp.ne.s32.totalorder %s71, %s73
    %p80 = scmp.eq.s32.totalorder %s16, 7
    %p81 = por %p79, %p80
    %p82 = scmp.ne.s32.totalorder %s73, %s74
    %p83 = scmp.eq.s32.totalorder %s16, 0
    %p84 = por %p82, %p83
    %p85 = scmp.ne.s32.totalorder %s73, %s74
    %p86 = scmp.eq.s32.totalorder %s17, 7
    %p87 = por %p85, %p86
    %p89 = scmp.ne.s32.totalorder %s74, %s88
    %p90 = scmp.eq.s32.totalorder %s17, 0
    %p91 = por %p89, %p90
    %s93 = sadd.s32 %s92, 1
    %p96 = scmp.eq.s32.totalorder %s11, 7
    %p97 = scmp.ne.s32.totalorder %s92, %s94
    %p98 = scmp.eq.s32.totalorder %s11, 0
    %p99 = por %p97, %p98
    %p100 = scmp.ne.s32.totalorder %s92, %s94
    %p101 = scmp.eq.s32.totalorder %s16, 7
    %p102 = por %p100, %p101
    %p103 = scmp.ne.s32.totalorder %s94, %s95
    %p104 = scmp.eq.s32.totalorder %s16, 0
    %p105 = por %p103, %p104
    %p106 = scmp.ne.s32.totalorder %s94, %s95
    %p107 = scmp.eq.s32.totalorder %s17, 7
    %p108 = por %p106, %p107
    %p110 = scmp.ne.s32.totalorder %s95, %s109
    %p111 = scmp.eq.s32.totalorder %s17, 0
    %p112 = por %p110, %p111
    %s114 = sadd.s32 %s113, 1
    %p117 = scmp.eq.s32.totalorder %s11, 7
    %p118 = scmp.ne.s32.totalorder %s113, %s115
    %p119 = scmp.eq.s32.totalorder %s11, 0
    %p120 = por %p118, %p119
    %p121 = scmp.ne.s32.totalorder %s113, %s115
    %p122 = scmp.eq.s32.totalorder %s16, 7
    %p123 = por %p121, %p122
    %p124 = scmp.ne.s32.totalorder %s115, %s116
    %p125 = scmp.eq.s32.totalorder %s16, 0
    %p126 = por %p124, %p125
    %p127 = scmp.ne.s32.totalorder %s115, %s116
    %p128 = scmp.eq.s32.totalorder %s17, 7
    %p129 = por %p127, %p128
    %p131 = scmp.ne.s32.totalorder %s116, %s130
    %p132 = scmp.eq.s32.totalorder %s17, 0
    %p133 = por %p131, %p132
    %s134 = ssub.s32 %s11, %s18
    %p135 = scmp.eq.s32.totalorder %s134, 0
    %s137 = sadd.s32 %s136, 1
    %s138 = scalar_select %p135, %s136, %s137
    %p141 = pneg %p135
    %p142 = scmp.eq.s32.totalorder %s11, 7
    %p143 = por %p141, %p142
    %p144 = scmp.ne.s32.totalorder %s136, %s139
    %p145 = scmp.eq.s32.totalorder %s11, 0
    %p146 = por %p144, %p145
    %p147 = scmp.ne.s32.totalorder %s136, %s139
    %p148 = scmp.eq.s32.totalorder %s16, 7
    %p149 = por %p147, %p148
    %p150 = scmp.ne.s32.totalorder %s139, %s140
    %p151 = scmp.eq.s32.totalorder %s16, 0
    %p152 = por %p150, %p151
    %p153 = scmp.ne.s32.totalorder %s139, %s140
    %p154 = scmp.eq.s32.totalorder %s17, 7
    %p155 = por %p153, %p154
    %p157 = scmp.ne.s32.totalorder %s140, %s156
    %p158 = scmp.eq.s32.totalorder %s17, 0
    %p159 = por %p157, %p158
    %p160 = scmp.le.s32.totalorder 1, %s11
    %p161 = scmp.lt.s32.totalorder %s11, 9
    %p162 = pnand %p160, %p161
    %p163 = pneg %p162
    // Predicated region
    $region9: #{event_track_net_forward.6} parent=5 // pred_check
      _
    $region10: #{event_track_net_forward.6} parent=5 // pred_check_branch
      %165 = sbr.rel (%p162) target = $region12
    $region11: #{event_track_net_forward.6} parent=5 // pred_region
      %s166 = ssub.s32 %s11, 1
      // Predicated region
      $region13: #{event_track_net_forward.6} parent=11 // pred_check
        %p167 = pneg %p84
      $region14: #{event_track_net_forward.6} parent=11 // pred_check_branch
        %169 = sbr.rel (%p167) target = $region16
      $region15: #{event_track_net_forward.6} parent=11 // pred_region
        _
      $region16: #{event_track_net_forward.6} parent=11 // pred_fallthru
        _
      // Predicated region
      $region17: #{event_track_net_forward.6} parent=11 // pred_check
        %p170 = pneg %p105
      $region18: #{event_track_net_forward.6} parent=11 // pred_check_branch
        %172 = sbr.rel (%p170) target = $region20
      $region19: #{event_track_net_forward.6} parent=11 // pred_region
        _
      $region20: #{event_track_net_forward.6} parent=11 // pred_fallthru
        _
      // Predicated region
      $region21: #{event_track_net_forward.6} parent=11 // pred_check
        %p173 = pneg %p126
      $region22: #{event_track_net_forward.6} parent=11 // pred_check_branch
        %175 = sbr.rel (%p173) target = $region24
      $region23: #{event_track_net_forward.6} parent=11 // pred_region
        _
      $region24: #{event_track_net_forward.6} parent=11 // pred_fallthru
        _
    $region12: #{event_track_net_forward.6} parent=5 // pred_fallthru
      _
    %p176 = scmp.lt.s32.totalorder %s11, 8
    // Predicated region
    $region25: #{event_track_net_forward.6} parent=5 // pred_check
      %p177 = pneg %p176
    $region26: #{event_track_net_forward.6} parent=5 // pred_check_branch
      %179 = sbr.rel (%p177) target = $region28
    $region27: #{event_track_net_forward.6} parent=5 // pred_region
      // Predicated region
      $region29: #{event_track_net_forward.6} parent=27 // pred_check
        %p180 = pneg %p31
      $region30: #{event_track_net_forward.6} parent=27 // pred_check_branch
        %182 = sbr.rel (%p180) target = $region32
      $region31: #{event_track_net_forward.6} parent=27 // pred_region
        %s183 = smul.u32 6, %s11
        %p184 = scmp.lt.s32.totalorder %s183, 47
        %s185 = scalar_select %p184, %s183, 47
        %s186 = smul.addr %s185, 8
        %s187 = scalar_lea.vmem %s0, %s186
        %s188 = smul.u32 6, %s11
      $region32: #{event_track_net_forward.6} parent=27 // pred_fallthru
        _
      // Predicated region
      $region33: #{event_track_net_forward.6} parent=27 // pred_check
        %p189 = pneg %p57
      $region34: #{event_track_net_forward.6} parent=27 // pred_check_branch
        %191 = sbr.rel (%p189) target = $region36
      $region35: #{event_track_net_forward.6} parent=27 // pred_region
        %s192 = smul.u32 2, %s11
        %p193 = scmp.lt.s32.totalorder %s192, 15
        %s194 = scalar_select %p193, %s192, 15
        %s195 = smul.addr %s194, 4
        %s196 = scalar_lea.vmem %s1, %s195
        %s197 = smul.u32 2, %s11
      $region36: #{event_track_net_forward.6} parent=27 // pred_fallthru
        _
    $region28: #{event_track_net_forward.6} parent=5 // pred_fallthru
      _
    %p198 = scmp.le.s32.totalorder 1, %s11
    %p199 = scmp.lt.s32.totalorder %s11, 9
    %p200 = pnand %p198, %p199
    %p201 = pneg %p200
    // Predicated region
    $region37: #{event_track_net_forward.6} parent=5 // pred_check
      _
    $region38: #{event_track_net_forward.6} parent=5 // pred_check_branch
      %203 = sbr.rel (%p200) target = $region40
    $region39: #{event_track_net_forward.6} parent=5 // pred_region
      %s204 = ssub.s32 %s11, 1
      %s205 = smul.u32 6, %s16
      %p206 = scmp.lt.s32.totalorder %s205, 47
      %s207 = scalar_select %p206, %s205, 47
      %s208 = smul.addr %s207, 8
      %s209 = scalar_lea.vmem %s0, %s208
      %p210 = pneg %p37
      %p211 = pneg %p34
      %s212 = smul.u32 2, %s16
      %p213 = scmp.lt.s32.totalorder %s212, 15
      %s214 = scalar_select %p213, %s212, 15
      %s215 = smul.addr %s214, 4
      %s216 = scalar_lea.vmem %s1, %s215
      %p217 = pneg %p63
      %p218 = pneg %p60
      %p219 = pneg %p84
      %p220 = pneg %p81
      %p221 = pneg %p105
      %p222 = pneg %p102
      %p223 = pneg %p126
      %p224 = pneg %p123
      %p225 = pneg %p152
      %p226 = pneg %p149
      %s227 = smul.u32 2, %s16
      %p228 = scmp.lt.s32.totalorder %s227, 15
      %s229 = scalar_select %p228, %s227, 15
      %s230 = smul.addr %s229, 4
      %s231 = scalar_lea.vmem %s5, %s230
      %s232 = smul.u32 6, %s16
      %p233 = scmp.lt.s32.totalorder %s232, 47
      %s234 = scalar_select %p233, %s232, 47
      %s235 = smul.addr %s234, 8
      %s236 = scalar_lea.vmem %s0, %s235
      %s237 = smul.u32 6, %s16
      %s238 = smul.u32 2, %s16
      %p239 = scmp.lt.s32.totalorder %s238, 15
      %s240 = scalar_select %p239, %s238, 15
      %s241 = smul.addr %s240, 4
      %s242 = scalar_lea.vmem %s1, %s241
      %s243 = smul.u32 2, %s16
      %s244 = smul.u32 2, %s16
      %p245 = scmp.lt.s32.totalorder %s244, 15
      %s246 = scalar_select %p245, %s244, 15
      %s247 = smul.addr %s246, 4
      %s248 = scalar_lea.vmem %s5, %s247
      %s249 = smul.u32 2, %s16
      %p250 = scmp.eq.s32.totalorder %s16, 0
      // Predicated region
      $region41: #{event_track_net_forward.6} parent=39 // pred_check
        %p251 = pneg %p250
      $region42: #{event_track_net_forward.6} parent=39 // pred_check_branch
        %253 = sbr.rel (%p251) target = $region44
      $region43: #{event_track_net_forward.6} parent=39 // pred_region
        %v254 = vld [vmem:[%s2] sm:$0xff]
        %v255 = vld [vmem:[%s2 + $0x8] sm:$0xff]
        %256 = vst [vmem:[#allocation2] sm:$0xff] %v254
        %257 = vst [vmem:[#allocation2 + $0x8] sm:$0xff] %v255
      $region44: #{event_track_net_forward.6} parent=39 // pred_fallthru
        _
      %v258 = vld [vmem:[#allocation2] sm:$0xff]
      %v259 = vld [vmem:[#allocation2 + $0x8] sm:$0xff]
      %v260 = vld [vmem:[%s236] sm:$0xff]
      %v261 = vld [vmem:[%s236 + $0x8] sm:$0xff]
      %v262 = vld [vmem:[%s236 + $0x10] sm:$0xff]
      %v263 = vld [vmem:[%s236 + $0x18] sm:$0xff]
      %v264 = vld [vmem:[%s236 + $0x20] sm:$0xff]
      %v265 = vld [vmem:[%s236 + $0x28] sm:$0xff]
      %v266 = vpack.c.bf16 %v258, %v258
      %v267 = vpack.c.bf16 %v259, %v259
      %v268 = vld [vmem:[%s3] sm:$0xff]
      %v269 = vld [vmem:[%s3 + $0x8] sm:$0xff]
      %v270 = vld [vmem:[%s3 + $0x10] sm:$0xff]
      %v271 = vld [vmem:[%s3 + $0x18] sm:$0xff]
      %v272 = vld [vmem:[%s3 + $0x20] sm:$0xff]
      %v273 = vld [vmem:[%s3 + $0x28] sm:$0xff]
      %v274 = vld [vmem:[%s3 + $0x30] sm:$0xff]
      %v275 = vld [vmem:[%s3 + $0x38] sm:$0xff]
      %v276 = vld [vmem:[%s3 + $0x40] sm:$0xff]
      %v277 = vld [vmem:[%s3 + $0x48] sm:$0xff]
      %v278 = vld [vmem:[%s3 + $0x50] sm:$0xff]
      %v279 = vld [vmem:[%s3 + $0x58] sm:$0xff]
      %v280 = vld [vmem:[%s3 + $0x60] sm:$0xff]
      %v281 = vld [vmem:[%s3 + $0x68] sm:$0xff]
      %v282 = vld [vmem:[%s3 + $0x70] sm:$0xff]
      %v283 = vld [vmem:[%s3 + $0x78] sm:$0xff]
      %v284 = vld [vmem:[%s3 + $0x80] sm:$0xff]
      %v285 = vld [vmem:[%s3 + $0x88] sm:$0xff]
      %v286 = vld [vmem:[%s3 + $0x90] sm:$0xff]
      %v287 = vld [vmem:[%s3 + $0x98] sm:$0xff]
      %v288 = vld [vmem:[%s3 + $0xa0] sm:$0xff]
      %v289 = vld [vmem:[%s3 + $0xa8] sm:$0xff]
      %v290 = vld [vmem:[%s3 + $0xb0] sm:$0xff]
      %v291 = vld [vmem:[%s3 + $0xb8] sm:$0xff]
      %v292 = vld [vmem:[%s3 + $0xc0] sm:$0xff]
      %v293 = vld [vmem:[%s3 + $0xc8] sm:$0xff]
      %v294 = vld [vmem:[%s3 + $0xd0] sm:$0xff]
      %v295 = vld [vmem:[%s3 + $0xd8] sm:$0xff]
      %v296 = vld [vmem:[%s3 + $0xe0] sm:$0xff]
      %v297 = vld [vmem:[%s3 + $0xe8] sm:$0xff]
      %v298 = vld [vmem:[%s3 + $0xf0] sm:$0xff]
      %v299 = vld [vmem:[%s3 + $0xf8] sm:$0xff]
      %v300 = vld [vmem:[%s3 + $0x100] sm:$0xff]
      %v301 = vld [vmem:[%s3 + $0x108] sm:$0xff]
      %v302 = vld [vmem:[%s3 + $0x110] sm:$0xff]
      %v303 = vld [vmem:[%s3 + $0x118] sm:$0xff]
      %v304 = vld [vmem:[%s3 + $0x120] sm:$0xff]
      %v305 = vld [vmem:[%s3 + $0x128] sm:$0xff]
      %v306 = vld [vmem:[%s3 + $0x130] sm:$0xff]
      %v307 = vld [vmem:[%s3 + $0x138] sm:$0xff]
      %v308 = vld [vmem:[%s3 + $0x140] sm:$0xff]
      %v309 = vld [vmem:[%s3 + $0x148] sm:$0xff]
      %v310 = vld [vmem:[%s3 + $0x150] sm:$0xff]
      %v311 = vld [vmem:[%s3 + $0x158] sm:$0xff]
      %v312 = vld [vmem:[%s3 + $0x160] sm:$0xff]
      %v313 = vld [vmem:[%s3 + $0x168] sm:$0xff]
      %v314 = vld [vmem:[%s3 + $0x170] sm:$0xff]
      %v315 = vld [vmem:[%s3 + $0x178] sm:$0xff]
      %v316 = vld [vmem:[%s3 + $0x180] sm:$0xff]
      %v317 = vld [vmem:[%s3 + $0x188] sm:$0xff]
      %v318 = vld [vmem:[%s3 + $0x190] sm:$0xff]
      %v319 = vld [vmem:[%s3 + $0x198] sm:$0xff]
      %v320 = vld [vmem:[%s3 + $0x1a0] sm:$0xff]
      %v321 = vld [vmem:[%s3 + $0x1a8] sm:$0xff]
      %v322 = vld [vmem:[%s3 + $0x1b0] sm:$0xff]
      %v323 = vld [vmem:[%s3 + $0x1b8] sm:$0xff]
      %v324 = vld [vmem:[%s3 + $0x1c0] sm:$0xff]
      %v325 = vld [vmem:[%s3 + $0x1c8] sm:$0xff]
      %v326 = vld [vmem:[%s3 + $0x1d0] sm:$0xff]
      %v327 = vld [vmem:[%s3 + $0x1d8] sm:$0xff]
      %v328 = vld [vmem:[%s3 + $0x1e0] sm:$0xff]
      %v329 = vld [vmem:[%s3 + $0x1e8] sm:$0xff]
      %v330 = vld [vmem:[%s3 + $0x1f0] sm:$0xff]
      %v331 = vld [vmem:[%s3 + $0x1f8] sm:$0xff]
      %v332 = vld [vmem:[%s3 + $0x200] sm:$0xff]
      %v333 = vld [vmem:[%s3 + $0x208] sm:$0xff]
      %v334 = vld [vmem:[%s3 + $0x210] sm:$0xff]
      %v335 = vld [vmem:[%s3 + $0x218] sm:$0xff]
      %v336 = vld [vmem:[%s3 + $0x220] sm:$0xff]
      %v337 = vld [vmem:[%s3 + $0x228] sm:$0xff]
      %v338 = vld [vmem:[%s3 + $0x230] sm:$0xff]
      %v339 = vld [vmem:[%s3 + $0x238] sm:$0xff]
      %v340 = vld [vmem:[%s3 + $0x240] sm:$0xff]
      %v341 = vld [vmem:[%s3 + $0x248] sm:$0xff]
      %v342 = vld [vmem:[%s3 + $0x250] sm:$0xff]
      %v343 = vld [vmem:[%s3 + $0x258] sm:$0xff]
      %v344 = vld [vmem:[%s3 + $0x260] sm:$0xff]
      %v345 = vld [vmem:[%s3 + $0x268] sm:$0xff]
      %v346 = vld [vmem:[%s3 + $0x270] sm:$0xff]
      %v347 = vld [vmem:[%s3 + $0x278] sm:$0xff]
      %v348 = vld [vmem:[%s3 + $0x280] sm:$0xff]
      %v349 = vld [vmem:[%s3 + $0x288] sm:$0xff]
      %v350 = vld [vmem:[%s3 + $0x290] sm:$0xff]
      %v351 = vld [vmem:[%s3 + $0x298] sm:$0xff]
      %v352 = vld [vmem:[%s3 + $0x2a0] sm:$0xff]
      %v353 = vld [vmem:[%s3 + $0x2a8] sm:$0xff]
      %v354 = vld [vmem:[%s3 + $0x2b0] sm:$0xff]
      %v355 = vld [vmem:[%s3 + $0x2b8] sm:$0xff]
      %v356 = vld [vmem:[%s3 + $0x2c0] sm:$0xff]
      %v357 = vld [vmem:[%s3 + $0x2c8] sm:$0xff]
      %v358 = vld [vmem:[%s3 + $0x2d0] sm:$0xff]
      %v359 = vld [vmem:[%s3 + $0x2d8] sm:$0xff]
      %v360 = vld [vmem:[%s3 + $0x2e0] sm:$0xff]
      %v361 = vld [vmem:[%s3 + $0x2e8] sm:$0xff]
      %v362 = vld [vmem:[%s3 + $0x2f0] sm:$0xff]
      %v363 = vld [vmem:[%s3 + $0x2f8] sm:$0xff]
      %v364 = vld [vmem:[%s4] sm:$0x3f]
      %v366 = vlaneseq
      %v367 = vshrl.u32 %v366, 7
      %v368 = vsub.s32 0, %v367
      %v369 = vrot.slane %v364, %v368
      %v370 = vlaneseq
      %v371 = vshrl.u32 %v370, 7
      %v372 = vsub.s32 1, %v371
      %v373 = vrot.slane %v364, %v372
      %v374 = vlaneseq
      %v375 = vshrl.u32 %v374, 7
      %v376 = vsub.s32 2, %v375
      %v377 = vrot.slane %v364, %v376
      %v378 = vlaneseq
      %v379 = vshrl.u32 %v378, 7
      %v380 = vsub.s32 3, %v379
      %v381 = vrot.slane %v364, %v380
      %v382 = vlaneseq
      %v383 = vshrl.u32 %v382, 7
      %v384 = vsub.s32 4, %v383
      %v385 = vrot.slane %v364, %v384
      %v386 = vlaneseq
      %v387 = vshrl.u32 %v386, 7
      %v388 = vsub.s32 5, %v387
      %v389 = vrot.slane %v364, %v388
      %v492 = vunpack.c.l.b16 %v268
      %v493 = vunpack.c.h.b16 %v268
      %v494 = vunpack.c.l.b16 %v269
      %v495 = vunpack.c.h.b16 %v269
      %v496 = vunpack.c.l.b16 %v270
      %v497 = vunpack.c.h.b16 %v270
      %v498 = vunpack.c.l.b16 %v271
      %v499 = vunpack.c.h.b16 %v271
      %v500 = vunpack.c.l.b16 %v272
      %v501 = vunpack.c.h.b16 %v272
      %v502 = vunpack.c.l.b16 %v273
      %v503 = vunpack.c.h.b16 %v273
      %v504 = vunpack.c.l.b16 %v274
      %v505 = vunpack.c.h.b16 %v274
      %v506 = vunpack.c.l.b16 %v275
      %v507 = vunpack.c.h.b16 %v275
      %v508 = vunpack.c.l.b16 %v276
      %v509 = vunpack.c.h.b16 %v276
      %v510 = vunpack.c.l.b16 %v277
      %v511 = vunpack.c.h.b16 %v277
      %v512 = vunpack.c.l.b16 %v278
      %v513 = vunpack.c.h.b16 %v278
      %v514 = vunpack.c.l.b16 %v279
      %v515 = vunpack.c.h.b16 %v279
      %v516 = vunpack.c.l.b16 %v280
      %v517 = vunpack.c.h.b16 %v280
      %v518 = vunpack.c.l.b16 %v281
      %v519 = vunpack.c.h.b16 %v281
      %v520 = vunpack.c.l.b16 %v282
      %v521 = vunpack.c.h.b16 %v282
      %v522 = vunpack.c.l.b16 %v283
      %v523 = vunpack.c.h.b16 %v283
      %v524 = vunpack.c.l.b16 %v284
      %v525 = vunpack.c.h.b16 %v284
      %v526 = vunpack.c.l.b16 %v285
      %v527 = vunpack.c.h.b16 %v285
      %v528 = vunpack.c.l.b16 %v286
      %v529 = vunpack.c.h.b16 %v286
      %v530 = vunpack.c.l.b16 %v287
      %v531 = vunpack.c.h.b16 %v287
      %v532 = vunpack.c.l.b16 %v288
      %v533 = vunpack.c.h.b16 %v288
      %v534 = vunpack.c.l.b16 %v289
      %v535 = vunpack.c.h.b16 %v289
      %v536 = vunpack.c.l.b16 %v290
      %v537 = vunpack.c.h.b16 %v290
      %v538 = vunpack.c.l.b16 %v291
      %v539 = vunpack.c.h.b16 %v291
      %v540 = vunpack.c.l.b16 %v292
      %v541 = vunpack.c.h.b16 %v292
      %v542 = vunpack.c.l.b16 %v293
      %v543 = vunpack.c.h.b16 %v293
      %v544 = vunpack.c.l.b16 %v294
      %v545 = vunpack.c.h.b16 %v294
      %v546 = vunpack.c.l.b16 %v295
      %v547 = vunpack.c.h.b16 %v295
      %v548 = vunpack.c.l.b16 %v296
      %v549 = vunpack.c.h.b16 %v296
      %v550 = vunpack.c.l.b16 %v297
      %v551 = vunpack.c.h.b16 %v297
      %v552 = vunpack.c.l.b16 %v298
      %v553 = vunpack.c.h.b16 %v298
      %v554 = vunpack.c.l.b16 %v299
      %v555 = vunpack.c.h.b16 %v299
      %v556 = vunpack.c.l.b16 %v300
      %v557 = vunpack.c.h.b16 %v300
      %v558 = vunpack.c.l.b16 %v301
      %v559 = vunpack.c.h.b16 %v301
      %v560 = vunpack.c.l.b16 %v302
      %v561 = vunpack.c.h.b16 %v302
      %v562 = vunpack.c.l.b16 %v303
      %v563 = vunpack.c.h.b16 %v303
      %v564 = vunpack.c.l.b16 %v304
      %v565 = vunpack.c.h.b16 %v304
      %v566 = vunpack.c.l.b16 %v305
      %v567 = vunpack.c.h.b16 %v305
      %v568 = vunpack.c.l.b16 %v306
      %v569 = vunpack.c.h.b16 %v306
      %v570 = vunpack.c.l.b16 %v307
      %v571 = vunpack.c.h.b16 %v307
      %v572 = vunpack.c.l.b16 %v308
      %v573 = vunpack.c.h.b16 %v308
      %v574 = vunpack.c.l.b16 %v309
      %v575 = vunpack.c.h.b16 %v309
      %v576 = vunpack.c.l.b16 %v310
      %v577 = vunpack.c.h.b16 %v310
      %v578 = vunpack.c.l.b16 %v311
      %v579 = vunpack.c.h.b16 %v311
      %v580 = vunpack.c.l.b16 %v312
      %v581 = vunpack.c.h.b16 %v312
      %v582 = vunpack.c.l.b16 %v313
      %v583 = vunpack.c.h.b16 %v313
      %v584 = vunpack.c.l.b16 %v314
      %v585 = vunpack.c.h.b16 %v314
      %v586 = vunpack.c.l.b16 %v315
      %v587 = vunpack.c.h.b16 %v315
      %v588 = vunpack.c.l.b16 %v316
      %v589 = vunpack.c.h.b16 %v316
      %v590 = vunpack.c.l.b16 %v317
      %v591 = vunpack.c.h.b16 %v317
      %v592 = vunpack.c.l.b16 %v318
      %v593 = vunpack.c.h.b16 %v318
      %v594 = vunpack.c.l.b16 %v319
      %v595 = vunpack.c.h.b16 %v319
      %v596 = vunpack.c.l.b16 %v320
      %v597 = vunpack.c.h.b16 %v320
      %v598 = vunpack.c.l.b16 %v321
      %v599 = vunpack.c.h.b16 %v321
      %v600 = vunpack.c.l.b16 %v322
      %v601 = vunpack.c.h.b16 %v322
      %v602 = vunpack.c.l.b16 %v323
      %v603 = vunpack.c.h.b16 %v323
      %v604 = vunpack.c.l.b16 %v324
      %v605 = vunpack.c.h.b16 %v324
      %v606 = vunpack.c.l.b16 %v325
      %v607 = vunpack.c.h.b16 %v325
      %v608 = vunpack.c.l.b16 %v326
      %v609 = vunpack.c.h.b16 %v326
      %v610 = vunpack.c.l.b16 %v327
      %v611 = vunpack.c.h.b16 %v327
      %v612 = vunpack.c.l.b16 %v328
      %v613 = vunpack.c.h.b16 %v328
      %v614 = vunpack.c.l.b16 %v329
      %v615 = vunpack.c.h.b16 %v329
      %v616 = vunpack.c.l.b16 %v330
      %v617 = vunpack.c.h.b16 %v330
      %v618 = vunpack.c.l.b16 %v331
      %v619 = vunpack.c.h.b16 %v331
      %v620 = vunpack.c.l.b16 %v332
      %v621 = vunpack.c.h.b16 %v332
      %v622 = vunpack.c.l.b16 %v333
      %v623 = vunpack.c.h.b16 %v333
      %v624 = vunpack.c.l.b16 %v334
      %v625 = vunpack.c.h.b16 %v334
      %v626 = vunpack.c.l.b16 %v335
      %v627 = vunpack.c.h.b16 %v335
      %v628 = vunpack.c.l.b16 %v336
      %v629 = vunpack.c.h.b16 %v336
      %v630 = vunpack.c.l.b16 %v337
      %v631 = vunpack.c.h.b16 %v337
      %v632 = vunpack.c.l.b16 %v338
      %v633 = vunpack.c.h.b16 %v338
      %v634 = vunpack.c.l.b16 %v339
      %v635 = vunpack.c.h.b16 %v339
      %v636 = vunpack.c.l.b16 %v340
      %v637 = vunpack.c.h.b16 %v340
      %v638 = vunpack.c.l.b16 %v341
      %v639 = vunpack.c.h.b16 %v341
      %v640 = vunpack.c.l.b16 %v342
      %v641 = vunpack.c.h.b16 %v342
      %v642 = vunpack.c.l.b16 %v343
      %v643 = vunpack.c.h.b16 %v343
      %v644 = vunpack.c.l.b16 %v344
      %v645 = vunpack.c.h.b16 %v344
      %v646 = vunpack.c.l.b16 %v345
      %v647 = vunpack.c.h.b16 %v345
      %v648 = vunpack.c.l.b16 %v346
      %v649 = vunpack.c.h.b16 %v346
      %v650 = vunpack.c.l.b16 %v347
      %v651 = vunpack.c.h.b16 %v347
      %v652 = vunpack.c.l.b16 %v348
      %v653 = vunpack.c.h.b16 %v348
      %v654 = vunpack.c.l.b16 %v349
      %v655 = vunpack.c.h.b16 %v349
      %v656 = vunpack.c.l.b16 %v350
      %v657 = vunpack.c.h.b16 %v350
      %v658 = vunpack.c.l.b16 %v351
      %v659 = vunpack.c.h.b16 %v351
      %v660 = vunpack.c.l.b16 %v352
      %v661 = vunpack.c.h.b16 %v352
      %v662 = vunpack.c.l.b16 %v353
      %v663 = vunpack.c.h.b16 %v353
      %v664 = vunpack.c.l.b16 %v354
      %v665 = vunpack.c.h.b16 %v354
      %v666 = vunpack.c.l.b16 %v355
      %v667 = vunpack.c.h.b16 %v355
      %v668 = vunpack.c.l.b16 %v356
      %v669 = vunpack.c.h.b16 %v356
      %v670 = vunpack.c.l.b16 %v357
      %v671 = vunpack.c.h.b16 %v357
      %v672 = vunpack.c.l.b16 %v358
      %v673 = vunpack.c.h.b16 %v358
      %v674 = vunpack.c.l.b16 %v359
      %v675 = vunpack.c.h.b16 %v359
      %v676 = vunpack.c.l.b16 %v360
      %v677 = vunpack.c.h.b16 %v360
      %v678 = vunpack.c.l.b16 %v361
      %v679 = vunpack.c.h.b16 %v361
      %v680 = vunpack.c.l.b16 %v362
      %v681 = vunpack.c.h.b16 %v362
      %v682 = vunpack.c.l.b16 %v363
      %v683 = vunpack.c.h.b16 %v363
      %v684 = vpack.c.b16 %v498, %v492
      %v685 = vpack.c.b16 %v499, %v493
      %v686 = vpack.c.b16 %v500, %v494
      %v687 = vpack.c.b16 %v501, %v495
      %v688 = vpack.c.b16 %v502, %v496
      %v689 = vpack.c.b16 %v503, %v497
      %v690 = vpack.c.b16 %v510, %v504
      %v691 = vpack.c.b16 %v511, %v505
      %v692 = vpack.c.b16 %v512, %v506
      %v693 = vpack.c.b16 %v513, %v507
      %v694 = vpack.c.b16 %v514, %v508
      %v695 = vpack.c.b16 %v515, %v509
      %v696 = vpack.c.b16 %v522, %v516
      %v697 = vpack.c.b16 %v523, %v517
      %v698 = vpack.c.b16 %v524, %v518
      %v699 = vpack.c.b16 %v525, %v519
      %v700 = vpack.c.b16 %v526, %v520
      %v701 = vpack.c.b16 %v527, %v521
      %v702 = vpack.c.b16 %v534, %v528
      %v703 = vpack.c.b16 %v535, %v529
      %v704 = vpack.c.b16 %v536, %v530
      %v705 = vpack.c.b16 %v537, %v531
      %v706 = vpack.c.b16 %v538, %v532
      %v707 = vpack.c.b16 %v539, %v533
      %v708 = vpack.c.b16 %v546, %v540
      %v709 = vpack.c.b16 %v547, %v541
      %v710 = vpack.c.b16 %v548, %v542
      %v711 = vpack.c.b16 %v549, %v543
      %v712 = vpack.c.b16 %v550, %v544
      %v713 = vpack.c.b16 %v551, %v545
      %v714 = vpack.c.b16 %v558, %v552
      %v715 = vpack.c.b16 %v559, %v553
      %v716 = vpack.c.b16 %v560, %v554
      %v717 = vpack.c.b16 %v561, %v555
      %v718 = vpack.c.b16 %v562, %v556
      %v719 = vpack.c.b16 %v563, %v557
      %v720 = vpack.c.b16 %v570, %v564
      %v721 = vpack.c.b16 %v571, %v565
      %v722 = vpack.c.b16 %v572, %v566
      %v723 = vpack.c.b16 %v573, %v567
      %v724 = vpack.c.b16 %v574, %v568
      %v725 = vpack.c.b16 %v575, %v569
      %v726 = vpack.c.b16 %v582, %v576
      %v727 = vpack.c.b16 %v583, %v577
      %v728 = vpack.c.b16 %v584, %v578
      %v729 = vpack.c.b16 %v585, %v579
      %v730 = vpack.c.b16 %v586, %v580
      %v731 = vpack.c.b16 %v587, %v581
      %v732 = vpack.c.b16 %v594, %v588
      %v733 = vpack.c.b16 %v595, %v589
      %v734 = vpack.c.b16 %v596, %v590
      %v735 = vpack.c.b16 %v597, %v591
      %v736 = vpack.c.b16 %v598, %v592
      %v737 = vpack.c.b16 %v599, %v593
      %v738 = vpack.c.b16 %v606, %v600
      %v739 = vpack.c.b16 %v607, %v601
      %v740 = vpack.c.b16 %v608, %v602
      %v741 = vpack.c.b16 %v609, %v603
      %v742 = vpack.c.b16 %v610, %v604
      %v743 = vpack.c.b16 %v611, %v605
      %v744 = vpack.c.b16 %v618, %v612
      %v745 = vpack.c.b16 %v619, %v613
      %v746 = vpack.c.b16 %v620, %v614
      %v747 = vpack.c.b16 %v621, %v615
      %v748 = vpack.c.b16 %v622, %v616
      %v749 = vpack.c.b16 %v623, %v617
      %v750 = vpack.c.b16 %v630, %v624
      %v751 = vpack.c.b16 %v631, %v625
      %v752 = vpack.c.b16 %v632, %v626
      %v753 = vpack.c.b16 %v633, %v627
      %v754 = vpack.c.b16 %v634, %v628
      %v755 = vpack.c.b16 %v635, %v629
      %v756 = vpack.c.b16 %v642, %v636
      %v757 = vpack.c.b16 %v643, %v637
      %v758 = vpack.c.b16 %v644, %v638
      %v759 = vpack.c.b16 %v645, %v639
      %v760 = vpack.c.b16 %v646, %v640
      %v761 = vpack.c.b16 %v647, %v641
      %v762 = vpack.c.b16 %v654, %v648
      %v763 = vpack.c.b16 %v655, %v649
      %v764 = vpack.c.b16 %v656, %v650
      %v765 = vpack.c.b16 %v657, %v651
      %v766 = vpack.c.b16 %v658, %v652
      %v767 = vpack.c.b16 %v659, %v653
      %v768 = vpack.c.b16 %v666, %v660
      %v769 = vpack.c.b16 %v667, %v661
      %v770 = vpack.c.b16 %v668, %v662
      %v771 = vpack.c.b16 %v669, %v663
      %v772 = vpack.c.b16 %v670, %v664
      %v773 = vpack.c.b16 %v671, %v665
      %v774 = vpack.c.b16 %v678, %v672
      %v775 = vpack.c.b16 %v679, %v673
      %v776 = vpack.c.b16 %v680, %v674
      %v777 = vpack.c.b16 %v681, %v675
      %v778 = vpack.c.b16 %v682, %v676
      %v779 = vpack.c.b16 %v683, %v677
      %876 = vmatprep.subr.bf16.mxu0 %v685
      %877 = vmatpush1.bf16.msra.mxu0 %v684
      %878 = vmatprep.subr.bf16.mxu0 %v691
      %879 = vmatpush1.bf16.msra.mxu0 %v690
      %880 = vmatprep.subr.bf16.mxu0 %v697
      %881 = vmatpush1.bf16.msra.mxu0 %v696
      %882 = vmatprep.subr.bf16.mxu0 %v703
      %883 = vmatpush1.bf16.msra.mxu0 %v702
      %884 = vmatprep.subr.bf16.mxu0 %v709
      %885 = vmatpush1.bf16.msra.mxu0 %v708
      %886 = vmatprep.subr.bf16.mxu0 %v715
      %887 = vmatpush1.bf16.msra.mxu0 %v714
      %888 = vmatprep.subr.bf16.mxu0 %v721
      %889 = vmatpush1.bf16.msra.mxu0 %v720
      %890 = vmatprep.subr.bf16.mxu0 %v727
      %891 = vmatpush1.bf16.msra.mxu0 %v726
      %892 = vmatprep.subr.bf16.mxu0 %v733
      %893 = vmatpush1.bf16.msra.mxu0 %v732
      %894 = vmatprep.subr.bf16.mxu0 %v739
      %895 = vmatpush1.bf16.msra.mxu0 %v738
      %896 = vmatprep.subr.bf16.mxu0 %v745
      %897 = vmatpush1.bf16.msra.mxu0 %v744
      %898 = vmatprep.subr.bf16.mxu0 %v751
      %899 = vmatpush1.bf16.msra.mxu0 %v750
      %900 = vmatprep.subr.bf16.mxu0 %v757
      %901 = vmatpush1.bf16.msra.mxu0 %v756
      %902 = vmatprep.subr.bf16.mxu0 %v763
      %903 = vmatpush1.bf16.msra.mxu0 %v762
      %904 = vmatprep.subr.bf16.mxu0 %v769
      %905 = vmatpush1.bf16.msra.mxu0 %v768
      %906 = vmatprep.subr.bf16.mxu0 %v775
      %907 = vmatpush1.bf16.msra.mxu0 %v774
      %908 = vmatprep.mubr.bf16.mxu0 %v267
      %909 = vmatmul.mubr.bf16.gmra.mrb[0].mxu0 %v266
      %v910 = vpop.f32.mrb[0].mxu0
      %v911 = vadd.f32 %v369, %v910
      %v912 = vpop.f32.mrb[0].mxu0
      %v913 = vadd.f32 %v373, %v912
      %v914 = vpop.f32.mrb[0].mxu0
      %v915 = vpop.f32.mrb[0].mxu0
      %916 = vdwg.mxu0
      %917 = vmatprep.subr.bf16.mxu0 %v687
      %918 = vmatpush1.bf16.msra.mxu0 %v686
      %919 = vmatprep.subr.bf16.mxu0 %v693
      %920 = vmatpush1.bf16.msra.mxu0 %v692
      %921 = vmatprep.subr.bf16.mxu0 %v699
      %922 = vmatpush1.bf16.msra.mxu0 %v698
      %923 = vmatprep.subr.bf16.mxu0 %v705
      %924 = vmatpush1.bf16.msra.mxu0 %v704
      %925 = vmatprep.subr.bf16.mxu0 %v711
      %926 = vmatpush1.bf16.msra.mxu0 %v710
      %927 = vmatprep.subr.bf16.mxu0 %v717
      %928 = vmatpush1.bf16.msra.mxu0 %v716
      %929 = vmatprep.subr.bf16.mxu0 %v723
      %930 = vmatpush1.bf16.msra.mxu0 %v722
      %931 = vmatprep.subr.bf16.mxu0 %v729
      %932 = vmatpush1.bf16.msra.mxu0 %v728
      %933 = vmatprep.subr.bf16.mxu0 %v735
      %934 = vmatpush1.bf16.msra.mxu0 %v734
      %935 = vmatprep.subr.bf16.mxu0 %v741
      %936 = vmatpush1.bf16.msra.mxu0 %v740
      %937 = vmatprep.subr.bf16.mxu0 %v747
      %938 = vmatpush1.bf16.msra.mxu0 %v746
      %939 = vmatprep.subr.bf16.mxu0 %v753
      %940 = vmatpush1.bf16.msra.mxu0 %v752
      %941 = vmatprep.subr.bf16.mxu0 %v759
      %942 = vmatpush1.bf16.msra.mxu0 %v758
      %943 = vmatprep.subr.bf16.mxu0 %v765
      %944 = vmatpush1.bf16.msra.mxu0 %v764
      %945 = vmatprep.subr.bf16.mxu0 %v771
      %946 = vmatpush1.bf16.msra.mxu0 %v770
      %947 = vmatprep.subr.bf16.mxu0 %v777
      %948 = vmatpush1.bf16.msra.mxu0 %v776
      %949 = vmatprep.mubr.bf16.mxu0 %v267
      %950 = vmatmul.mubr.bf16.gmra.mrb[0].mxu0 %v266
      %v951 = vpop.f32.mrb[0].mxu0
      %v952 = vadd.f32 %v377, %v951
      %v953 = vpop.f32.mrb[0].mxu0
      %v954 = vadd.f32 %v381, %v953
      %v955 = vpop.f32.mrb[0].mxu0
      %v956 = vpop.f32.mrb[0].mxu0
      %957 = vdwg.mxu0
      %958 = vmatprep.subr.bf16.mxu0 %v689
      %959 = vmatpush1.bf16.msra.mxu0 %v688
      %960 = vmatprep.subr.bf16.mxu0 %v695
      %961 = vmatpush1.bf16.msra.mxu0 %v694
      %962 = vmatprep.subr.bf16.mxu0 %v701
      %963 = vmatpush1.bf16.msra.mxu0 %v700
      %964 = vmatprep.subr.bf16.mxu0 %v707
      %965 = vmatpush1.bf16.msra.mxu0 %v706
      %966 = vmatprep.subr.bf16.mxu0 %v713
      %967 = vmatpush1.bf16.msra.mxu0 %v712
      %968 = vmatprep.subr.bf16.mxu0 %v719
      %969 = vmatpush1.bf16.msra.mxu0 %v718
      %970 = vmatprep.subr.bf16.mxu0 %v725
      %971 = vmatpush1.bf16.msra.mxu0 %v724
      %972 = vmatprep.subr.bf16.mxu0 %v731
      %973 = vmatpush1.bf16.msra.mxu0 %v730
      %974 = vmatprep.subr.bf16.mxu0 %v737
      %975 = vmatpush1.bf16.msra.mxu0 %v736
      %976 = vmatprep.subr.bf16.mxu0 %v743
      %977 = vmatpush1.bf16.msra.mxu0 %v742
      %978 = vmatprep.subr.bf16.mxu0 %v749
      %979 = vmatpush1.bf16.msra.mxu0 %v748
      %980 = vmatprep.subr.bf16.mxu0 %v755
      %981 = vmatpush1.bf16.msra.mxu0 %v754
      %982 = vmatprep.subr.bf16.mxu0 %v761
      %983 = vmatpush1.bf16.msra.mxu0 %v760
      %984 = vmatprep.subr.bf16.mxu0 %v767
      %985 = vmatpush1.bf16.msra.mxu0 %v766
      %986 = vmatprep.subr.bf16.mxu0 %v773
      %987 = vmatpush1.bf16.msra.mxu0 %v772
      %988 = vmatprep.subr.bf16.mxu0 %v779
      %989 = vmatpush1.bf16.msra.mxu0 %v778
      %990 = vmatprep.mubr.bf16.mxu0 %v267
      %991 = vmatmul.mubr.bf16.gmra.mrb[0].mxu0 %v266
      %v992 = vpop.f32.mrb[0].mxu0
      %v993 = vadd.f32 %v385, %v992
      %v994 = vpop.f32.mrb[0].mxu0
      %v995 = vadd.f32 %v389, %v994
      %v996 = vpop.f32.mrb[0].mxu0
      %v997 = vpop.f32.mrb[0].mxu0
      %998 = vdwg.mxu0
      %v999 = vadd.f32 %v260, %v911
      %v1000 = vadd.f32 %v261, %v913
      %v1001 = vxor.u32 %v999, 2147483648
      %v1002 = vxor.u32 %v1000, 2147483648
      %v1003 = vmul.f32 %v1001, 1.442695
      %v1004 = vpow.pop %v1003
      %v1005 = vmul.f32 %v1002, 1.442695
      %v1006 = vpow.pop %v1005
      %v1007 = vadd.f32 %v1004, 1.0
      %v1008 = vadd.f32 %v1006, 1.0
      %v1009 = vrcp.pop %v1007
      %v1010 = vmul.f32 1.0, %v1009
      %v1011 = vrcp.pop %v1008
      %v1012 = vmul.f32 1.0, %v1011
      %v1013 = vadd.f32 %v262, %v952
      %v1014 = vadd.f32 %v263, %v954
      %v1015 = vxor.u32 %v1013, 2147483648
      %v1016 = vxor.u32 %v1014, 2147483648
      %v1017 = vmul.f32 %v1015, 1.442695
      %v1018 = vpow.pop %v1017
      %v1019 = vmul.f32 %v1016, 1.442695
      %v1020 = vpow.pop %v1019
      %v1021 = vadd.f32 %v1018, 1.0
      %v1022 = vadd.f32 %v1020, 1.0
      %v1023 = vrcp.pop %v1021
      %v1024 = vmul.f32 1.0, %v1023
      %v1025 = vrcp.pop %v1022
      %v1026 = vmul.f32 1.0, %v1025
      %v1027 = vmul.f32 %v1010, %v993
      %v1028 = vmul.f32 %v1012, %v995
      %v1029 = vadd.f32 %v264, %v1027
      %v1030 = vadd.f32 %v265, %v1028
      %v1031 = vtanh.pop %v1029
      %v1032 = vtanh.pop %v1030
      %v1033 = vsub.f32 1.0, %v1024
      %v1034 = vsub.f32 1.0, %v1026
      %v1035 = vmul.f32 %v1033, %v1031
      %v1036 = vmul.f32 %v1034, %v1032
      %v1037 = vmul.f32 %v1024, %v258
      %v1038 = vmul.f32 %v1026, %v259
      %v1039 = vadd.f32 %v1035, %v1037
      %v1040 = vadd.f32 %v1036, %v1038
      %1041 = vst [vmem:[#allocation2] sm:$0xff] %v1039
      %1042 = vst [vmem:[#allocation2 + $0x8] sm:$0xff] %v1040
      %v1043 = vld [vmem:[%s242] sm:$0xff]
      %v1044 = vunpack.c.l.bf16 %v1043
      %v1045 = vunpack.c.h.bf16 %v1043
      %v1046 = vadd.f32 %v1039, %v1044
      %v1047 = vadd.f32 %v1040, %v1045
      %v1048 = vpack.c.bf16 %v1046, %v1046
      %v1049 = vpack.c.bf16 %v1047, %v1047
      %v1052 = vunpack.c.l.b16 %v1048
      %v1053 = vunpack.c.l.b16 %v1049
      %v1054 = vpack.c.b16 %v1053, %v1052
      %1056 = vst [vmem:[%s248] sm:$0xff] %v1054
      %s1057 = smul.u32 2, %s16
      %p1058 = scmp.lt.s32.totalorder %s1057, 15
      %s1059 = scalar_select %p1058, %s1057, 15
      %s1060 = smul.addr %s1059, 4
      %s1061 = scalar_lea.vmem %s5, %s1060
      // Predicated region
      $region45: #{event_track_net_forward.6} parent=39 // pred_check
        %p1062 = pneg %p149
      $region46: #{event_track_net_forward.6} parent=39 // pred_check_branch
        %1064 = sbr.rel (%p1062) target = $region48
      $region47: #{event_track_net_forward.6} parent=39 // pred_region
        %s1065 = smul.u32 2, %s16
      $region48: #{event_track_net_forward.6} parent=39 // pred_fallthru
        _
    $region40: #{event_track_net_forward.6} parent=5 // pred_fallthru
      _
    %p1066 = scmp.le.s32.totalorder 2, %s11
    // Predicated region
    $region49: #{event_track_net_forward.6} parent=5 // pred_check
      %p1067 = pneg %p1066
    $region50: #{event_track_net_forward.6} parent=5 // pred_check_branch
      %1069 = sbr.rel (%p1067) target = $region52
    $region51: #{event_track_net_forward.6} parent=5 // pred_region
      %s1070 = ssub.s32 %s11, 2
      // Predicated region
      $region53: #{event_track_net_forward.6} parent=51 // pred_check
        %p1071 = pneg %p155
      $region54: #{event_track_net_forward.6} parent=51 // pred_check_branch
        %1073 = sbr.rel (%p1071) target = $region56
      $region55: #{event_track_net_forward.6} parent=51 // pred_region
        %s1074 = smul.u32 2, %s17
        %p1075 = scmp.lt.s32.totalorder %s1074, 15
        %s1076 = scalar_select %p1075, %s1074, 15
        %s1077 = smul.addr %s1076, 4
        %s1078 = scalar_lea.vmem %s5, %s1077
      $region56: #{event_track_net_forward.6} parent=51 // pred_fallthru
        _
    $region52: #{event_track_net_forward.6} parent=5 // pred_fallthru
      _
  $region6: #{event_track_net_forward.6} parent=0 // loop_footer
    %s15 = sadd.s32 1, %s11
  $region7: #{event_track_net_forward.6} parent=0 // loop_footer_branch
    %10 = sbr.rel target = $region3
  $region8: #{event_track_net_forward.6} parent=0 // loop_exit
    _

// kernel: squeeze.22
$region0: #{squeeze.22}
  %s0 = inlined_call_operand.vmem [shape: f32[2,72], index: 0, kind: input, shape index: {}]
  %s1 = inlined_call_operand.vmem [shape: f32[48,3], index: 1, kind: output, shape index: {}]
  $region1: #{squeeze.22} parent=0
    #allocation0 [shape = 'u8[4096]{0}', space=vmem, size = 0x1000, scoped, tag = 'scoped mem for input reshape']
    %s3 = sshllo.u32 0, 2
    %v4 = vld [vmem:[%s0] sm:%s3]
    %5 = vst [vmem:[#allocation0] sm:%s3] %v4
    %v6 = vld [vmem:[#allocation0] sm:$0x3]
    %vm7 = vcmask 23552
    %8 = vst.msk [vmem:[%s1] ss:$24 sm:$0x3] %vm7, %v6
    %v9 = vld [vmem:[#allocation0] sm:$0x3]
    %10 = vrot.lane.b32.xlu0 %v9, 125
    %v11 = vpop.permute.xlu0 %10
    %vm12 = vcmask 23552
    %s13 = scalar_lea.vmem %s1, 1
    %14 = vst.msk [vmem:[%s13] ss:$24 sm:$0x3] %vm12, %v11
    %v15 = vld [vmem:[#allocation0] sm:$0x3]
    %16 = vrot.lane.b32.xlu0 %v15, 122
    %v17 = vpop.permute.xlu0 %16
    %vm18 = vcmask 23552
    %s19 = scalar_lea.vmem %s1, 2
    %20 = vst.msk [vmem:[%s19] ss:$24 sm:$0x3] %vm18, %v17
    %v21 = vld [vmem:[#allocation0] sm:$0x3]
    %22 = vrot.lane.b32.xlu0 %v21, 119
    %v23 = vpop.permute.xlu0 %22
    %vm24 = vcmask 23552
    %s25 = scalar_lea.vmem %s1, 3
    %26 = vst.msk [vmem:[%s25] ss:$24 sm:$0x3] %vm24, %v23
    %v27 = vld [vmem:[#allocation0] sm:$0x3]
    %28 = vrot.lane.b32.xlu0 %v27, 116
    %v29 = vpop.permute.xlu0 %28
    %vm30 = vcmask 23552
    %s31 = scalar_lea.vmem %s1, 4
    %32 = vst.msk [vmem:[%s31] ss:$24 sm:$0x3] %vm30, %v29
    %v33 = vld [vmem:[#allocation0] sm:$0x3]
    %34 = vrot.lane.b32.xlu0 %v33, 113
    %v35 = vpop.permute.xlu0 %34
    %vm36 = vcmask 23552
    %s37 = scalar_lea.vmem %s1, 5
    %38 = vst.msk [vmem:[%s37] ss:$24 sm:$0x3] %vm36, %v35
    %v39 = vld [vmem:[#allocation0] sm:$0x3]
    %40 = vrot.lane.b32.xlu0 %v39, 110
    %v41 = vpop.permute.xlu0 %40
    %vm42 = vcmask 23552
    %s43 = scalar_lea.vmem %s1, 6
    %44 = vst.msk [vmem:[%s43] ss:$24 sm:$0x3] %vm42, %v41
    %v45 = vld [vmem:[#allocation0] sm:$0x3]
    %46 = vrot.lane.b32.xlu0 %v45, 107
    %v47 = vpop.permute.xlu0 %46
    %vm48 = vcmask 23552
    %s49 = scalar_lea.vmem %s1, 7
    %50 = vst.msk [vmem:[%s49] ss:$24 sm:$0x3] %vm48, %v47
    %s51 = scalar_lea.vmem [#allocation0], 1
    %s52 = smov 3
    %v53 = vld [vmem:[%s51] ss:$-1 sm:%s52]
    %54 = vrot.lane.b32.xlu0 %v53, 104
    %v55 = vpop.permute.xlu0 %54
    %vm56 = vcmask 23552
    %s57 = scalar_lea.vmem %s1, 32
    %58 = vst.msk [vmem:[%s57] ss:$-24 sm:$0x3] %vm56, %v55
    %s59 = scalar_lea.vmem [#allocation0], 1
    %s60 = smov 3
    %v61 = vld [vmem:[%s59] ss:$-1 sm:%s60]
    %62 = vrot.lane.b32.xlu0 %v61, 101
    %v63 = vpop.permute.xlu0 %62
    %vm64 = vcmask 23552
    %s65 = scalar_lea.vmem %s1, 33
    %66 = vst.msk [vmem:[%s65] ss:$-24 sm:$0x3] %vm64, %v63
    %s67 = scalar_lea.vmem [#allocation0], 1
    %s68 = smov 3
    %v69 = vld [vmem:[%s67] ss:$-1 sm:%s68]
    %70 = vrot.lane.b32.xlu0 %v69, 98
    %v71 = vpop.permute.xlu0 %70
    %vm72 = vcmask 23552
    %s73 = scalar_lea.vmem %s1, 34
    %74 = vst.msk [vmem:[%s73] ss:$-24 sm:$0x3] %vm72, %v71
    %s75 = scalar_lea.vmem [#allocation0], 1
    %s76 = smov 3
    %v77 = vld [vmem:[%s75] ss:$-1 sm:%s76]
    %78 = vrot.lane.b32.xlu0 %v77, 95
    %v79 = vpop.permute.xlu0 %78
    %vm80 = vcmask 23552
    %s81 = scalar_lea.vmem %s1, 35
    %82 = vst.msk [vmem:[%s81] ss:$-24 sm:$0x3] %vm80, %v79
    %s83 = scalar_lea.vmem [#allocation0], 1
    %s84 = smov 3
    %v85 = vld [vmem:[%s83] ss:$-1 sm:%s84]
    %86 = vrot.lane.b32.xlu0 %v85, 92
    %v87 = vpop.permute.xlu0 %86
    %vm88 = vcmask 23552
    %s89 = scalar_lea.vmem %s1, 36
    %90 = vst.msk [vmem:[%s89] ss:$-24 sm:$0x3] %vm88, %v87
    %s91 = scalar_lea.vmem [#allocation0], 1
    %s92 = smov 3
    %v93 = vld [vmem:[%s91] ss:$-1 sm:%s92]
    %94 = vrot.lane.b32.xlu0 %v93, 89
    %v95 = vpop.permute.xlu0 %94
    %vm96 = vcmask 23552
    %s97 = scalar_lea.vmem %s1, 37
    %98 = vst.msk [vmem:[%s97] ss:$-24 sm:$0x3] %vm96, %v95
    %s99 = scalar_lea.vmem [#allocation0], 1
    %s100 = smov 3
    %v101 = vld [vmem:[%s99] ss:$-1 sm:%s100]
    %102 = vrot.lane.b32.xlu0 %v101, 86
    %v103 = vpop.permute.xlu0 %102
    %vm104 = vcmask 23552
    %s105 = scalar_lea.vmem %s1, 38
    %106 = vst.msk [vmem:[%s105] ss:$-24 sm:$0x3] %vm104, %v103
    %s107 = scalar_lea.vmem [#allocation0], 1
    %s108 = smov 3
    %v109 = vld [vmem:[%s107] ss:$-1 sm:%s108]
    %110 = vrot.lane.b32.xlu0 %v109, 83
    %v111 = vpop.permute.xlu0 %110
    %vm112 = vcmask 23552
    %s113 = scalar_lea.vmem %s1, 39
    %114 = vst.msk [vmem:[%s113] ss:$-24 sm:$0x3] %vm112, %v111
    %s115 = scalar_lea.vmem [#allocation0], 1
    %s116 = smov 3
    %v117 = vld [vmem:[%s115] ss:$-1 sm:%s116]
    %118 = vrot.lane.b32.xlu0 %v117, 80
    %v119 = vpop.permute.xlu0 %118
    %vm120 = vcmask 23552
    %s121 = scalar_lea.vmem %s1, 40
    %122 = vst.msk [vmem:[%s121] ss:$-24 sm:$0x3] %vm120, %v119
    %s123 = scalar_lea.vmem [#allocation0], 1
    %s124 = smov 3
    %v125 = vld [vmem:[%s123] ss:$-1 sm:%s124]
    %126 = vrot.lane.b32.xlu0 %v125, 77
    %v127 = vpop.permute.xlu0 %126
    %vm128 = vcmask 23552
    %s129 = scalar_lea.vmem %s1, 41
    %130 = vst.msk [vmem:[%s129] ss:$-24 sm:$0x3] %vm128, %v127
    %s131 = scalar_lea.vmem [#allocation0], 1
    %s132 = smov 3
    %v133 = vld [vmem:[%s131] ss:$-1 sm:%s132]
    %134 = vrot.lane.b32.xlu0 %v133, 74
    %v135 = vpop.permute.xlu0 %134
    %vm136 = vcmask 23552
    %s137 = scalar_lea.vmem %s1, 42
    %138 = vst.msk [vmem:[%s137] ss:$-24 sm:$0x3] %vm136, %v135
    %s139 = scalar_lea.vmem [#allocation0], 1
    %s140 = smov 3
    %v141 = vld [vmem:[%s139] ss:$-1 sm:%s140]
    %142 = vrot.lane.b32.xlu0 %v141, 71
    %v143 = vpop.permute.xlu0 %142
    %vm144 = vcmask 23552
    %s145 = scalar_lea.vmem %s1, 43
    %146 = vst.msk [vmem:[%s145] ss:$-24 sm:$0x3] %vm144, %v143
    %s147 = scalar_lea.vmem [#allocation0], 1
    %s148 = smov 3
    %v149 = vld [vmem:[%s147] ss:$-1 sm:%s148]
    %150 = vrot.lane.b32.xlu0 %v149, 68
    %v151 = vpop.permute.xlu0 %150
    %vm152 = vcmask 23552
    %s153 = scalar_lea.vmem %s1, 44
    %154 = vst.msk [vmem:[%s153] ss:$-24 sm:$0x3] %vm152, %v151
    %s155 = scalar_lea.vmem [#allocation0], 1
    %s156 = smov 3
    %v157 = vld [vmem:[%s155] ss:$-1 sm:%s156]
    %158 = vrot.lane.b32.xlu0 %v157, 65
    %v159 = vpop.permute.xlu0 %158
    %vm160 = vcmask 23552
    %s161 = scalar_lea.vmem %s1, 45
    %162 = vst.msk [vmem:[%s161] ss:$-24 sm:$0x3] %vm160, %v159
    %s163 = scalar_lea.vmem [#allocation0], 1
    %s164 = smov 3
    %v165 = vld [vmem:[%s163] ss:$-1 sm:%s164]
    %166 = vrot.lane.b32.xlu0 %v165, 62
    %v167 = vpop.permute.xlu0 %166
    %vm168 = vcmask 23552
    %s169 = scalar_lea.vmem %s1, 46
    %170 = vst.msk [vmem:[%s169] ss:$-24 sm:$0x3] %vm168, %v167
    %s171 = scalar_lea.vmem [#allocation0], 1
    %s172 = smov 3
    %v173 = vld [vmem:[%s171] ss:$-1 sm:%s172]
    %174 = vrot.lane.b32.xlu0 %v173, 59
    %v175 = vpop.permute.xlu0 %174
    %vm176 = vcmask 23552
    %s177 = scalar_lea.vmem %s1, 47
    %178 = vst.msk [vmem:[%s177] ss:$-24 sm:$0x3] %vm176, %v175

// kernel: custom-call
$region0: #{custom-call}
  %s0 = inlined_call_operand.hbm [shape: f32[8,2,24,3,3], index: 0, kind: output, shape index: {}]

// kernel: event_track_net_forward.4
$region0: #{event_track_net_forward.4}
  #allocation0 [shape = 'u32[]', space=smem, size = 0x4, offset = 0x4, fixed_abs, tag = 'smem constant byte address 0x4 - core index']
  #allocation1 [shape = 'u32[144,128]{1,0:T(1,128)}', space=vmem, size = 0x12000, scoped, tag = 'internal scratch']
  #allocation2 [shape = 'f32[16,128]{1,0:T(8,128)}', space=vmem, size = 0x2000, scoped, tag = 'scratch operand']
  %s0 = inlined_call_operand.vmem [shape: bf16[16,64,512], index: 0, kind: input, shape index: {}]
  %s1 = inlined_call_operand.vmem [shape: bf16[512,128], index: 1, kind: input, shape index: {}]
  %s2 = inlined_call_operand.vmem [shape: bf16[128,256], index: 2, kind: input, shape index: {}]
  %s3 = inlined_call_operand.vmem [shape: f32[1,256], index: 3, kind: input, shape index: {}]
  %s4 = inlined_call_operand.vmem [shape: bf16[16,256], index: 4, kind: output, shape index: {}]
  %s5 = sld [smem:[#allocation0]]
  $region80: #{event_track_net_forward.4} parent=0
    _
  %s7 = ssub.s32 1, %s5
  %s8 = scalar_select 0, %s7, %s5
  $region1: #{event_track_net_forward.4} parent=0
    #allocation3 [shape = 'u8[1048576]{0}', space=vmem, size = 0x100000, scoped, tag = 'input window, operand 0']
    loop: start=0, step=1, limit=4
    $region2: #{event_track_net_forward.4} parent=1 // loop_pre_header
      _
    $region3: #{event_track_net_forward.4} parent=1 // loop_header
      %s10 = sphi 0, %s14
      %p11 = scmp.ge.s32.totalorder %s10, 4
      %s17 = sphi 0, %s29
      %s18 = sphi 0, %s25
      %s19 = sphi 0, %s17
      %s20 = sphi 0, %s18
      %s21 = sphi 0, %s19
      %s22 = sphi 0, %s20
      %s34 = sphi 0, %s36
      %s37 = sphi 0, %s34
      %s38 = sphi 0, %s37
      %s54 = sphi 0, %s38
      %s58 = sphi 0, %s58
      %s60 = sphi 0, %s58
      %s61 = sphi 0, %s60
      %s75 = sphi 0, %s61
      %s79 = sphi 0, %s79
      %s81 = sphi 0, %s79
      %s82 = sphi 0, %s81
      %s96 = sphi 0, %s82
      %s100 = sphi 0, %s100
      %s102 = sphi 0, %s100
      %s103 = sphi 0, %s102
      %s117 = sphi 0, %s103
      %s123 = sphi 0, %s125
      %s126 = sphi 0, %s123
      %s127 = sphi 0, %s126
      %s143 = sphi 0, %s127
    $region4: #{event_track_net_forward.4} parent=1 // loop_header_branch
      %13 = sbr.rel (%p11) target = $region8
    $region5: #{event_track_net_forward.4} parent=1 // loop_body
      %s15 = ssub.s32 %s10, 1
      %s16 = ssub.s32 %s10, 2
      %s23 = sadd.s32 1, %s18
      %p24 = scmp.ge.s32.totalorder %s23, 2
      %s25 = scalar_select %p24, 0, %s23
      %s26 = sadd.s32 1, %s17
      %s27 = scalar_select %p24, %s26, %s17
      %p28 = scmp.ge.s32.totalorder %s27, 1
      %s29 = scalar_select %p28, 0, %s27
      %s30 = ssub.s32 %s17, %s29
      %s31 = ssub.s32 %s18, %s25
      %s32 = sor.u32 %s30, %s31
      %p33 = scmp.eq.s32.totalorder %s32, 0
      %s35 = sadd.s32 %s34, 1
      %s36 = scalar_select %p33, %s34, %s35
      %p39 = pneg %p33
      %p40 = scmp.eq.s32.totalorder %s10, 1
      %p41 = por %p39, %p40
      %p42 = scmp.ne.s32.totalorder %s34, %s37
      %p43 = scmp.eq.s32.totalorder %s10, 0
      %p44 = por %p42, %p43
      %p45 = scmp.ne.s32.totalorder %s34, %s37
      %p46 = scmp.eq.s32.totalorder %s15, 1
      %p47 = por %p45, %p46
      %p48 = scmp.ne.s32.totalorder %s37, %s38
      %p49 = scmp.eq.s32.totalorder %s15, 0
      %p50 = por %p48, %p49
      %p51 = scmp.ne.s32.totalorder %s37, %s38
      %p52 = scmp.eq.s32.totalorder %s16, 1
      %p53 = por %p51, %p52
      %p55 = scmp.ne.s32.totalorder %s38, %s54
      %p56 = scmp.eq.s32.totalorder %s16, 0
      %p57 = por %p55, %p56
      %s59 = sadd.s32 %s58, 1
      %p62 = scmp.eq.s32.totalorder %s10, 1
      %p63 = scmp.ne.s32.totalorder %s58, %s60
      %p64 = scmp.eq.s32.totalorder %s10, 0
      %p65 = por %p63, %p64
      %p66 = scmp.ne.s32.totalorder %s58, %s60
      %p67 = scmp.eq.s32.totalorder %s15, 1
      %p68 = por %p66, %p67
      %p69 = scmp.ne.s32.totalorder %s60, %s61
      %p70 = scmp.eq.s32.totalorder %s15, 0
      %p71 = por %p69, %p70
      %p72 = scmp.ne.s32.totalorder %s60, %s61
      %p73 = scmp.eq.s32.totalorder %s16, 1
      %p74 = por %p72, %p73
      %p76 = scmp.ne.s32.totalorder %s61, %s75
      %p77 = scmp.eq.s32.totalorder %s16, 0
      %p78 = por %p76, %p77
      %s80 = sadd.s32 %s79, 1
      %p83 = scmp.eq.s32.totalorder %s10, 1
      %p84 = scmp.ne.s32.totalorder %s79, %s81
      %p85 = scmp.eq.s32.totalorder %s10, 0
      %p86 = por %p84, %p85
      %p87 = scmp.ne.s32.totalorder %s79, %s81
      %p88 = scmp.eq.s32.totalorder %s15, 1
      %p89 = por %p87, %p88
      %p90 = scmp.ne.s32.totalorder %s81, %s82
      %p91 = scmp.eq.s32.totalorder %s15, 0
      %p92 = por %p90, %p91
      %p93 = scmp.ne.s32.totalorder %s81, %s82
      %p94 = scmp.eq.s32.totalorder %s16, 1
      %p95 = por %p93, %p94
      %p97 = scmp.ne.s32.totalorder %s82, %s96
      %p98 = scmp.eq.s32.totalorder %s16, 0
      %p99 = por %p97, %p98
      %s101 = sadd.s32 %s100, 1
      %p104 = scmp.eq.s32.totalorder %s10, 1
      %p105 = scmp.ne.s32.totalorder %s100, %s102
      %p106 = scmp.eq.s32.totalorder %s10, 0
      %p107 = por %p105, %p106
      %p108 = scmp.ne.s32.totalorder %s100, %s102
      %p109 = scmp.eq.s32.totalorder %s15, 1
      %p110 = por %p108, %p109
      %p111 = scmp.ne.s32.totalorder %s102, %s103
      %p112 = scmp.eq.s32.totalorder %s15, 0
      %p113 = por %p111, %p112
      %p114 = scmp.ne.s32.totalorder %s102, %s103
      %p115 = scmp.eq.s32.totalorder %s16, 1
      %p116 = por %p114, %p115
      %p118 = scmp.ne.s32.totalorder %s103, %s117
      %p119 = scmp.eq.s32.totalorder %s16, 0
      %p120 = por %p118, %p119
      %s121 = ssub.s32 %s17, %s29
      %p122 = scmp.eq.s32.totalorder %s121, 0
      %s124 = sadd.s32 %s123, 1
      %s125 = scalar_select %p122, %s123, %s124
      %p128 = pneg %p122
      %p129 = scmp.eq.s32.totalorder %s10, 1
      %p130 = por %p128, %p129
      %p131 = scmp.ne.s32.totalorder %s123, %s126
      %p132 = scmp.eq.s32.totalorder %s10, 0
      %p133 = por %p131, %p132
      %p134 = scmp.ne.s32.totalorder %s123, %s126
      %p135 = scmp.eq.s32.totalorder %s15, 1
      %p136 = por %p134, %p135
      %p137 = scmp.ne.s32.totalorder %s126, %s127
      %p138 = scmp.eq.s32.totalorder %s15, 0
      %p139 = por %p137, %p138
      %p140 = scmp.ne.s32.totalorder %s126, %s127
      %p141 = scmp.eq.s32.totalorder %s16, 1
      %p142 = por %p140, %p141
      %p144 = scmp.ne.s32.totalorder %s127, %s143
      %p145 = scmp.eq.s32.totalorder %s16, 0
      %p146 = por %p144, %p145
      %p147 = scmp.le.s32.totalorder 1, %s10
      %p148 = scmp.lt.s32.totalorder %s10, 3
      %p149 = pnand %p147, %p148
      %p150 = pneg %p149
      // Predicated region
      $region9: #{event_track_net_forward.4} parent=5 // pred_check
        _
      $region10: #{event_track_net_forward.4} parent=5 // pred_check_branch
        %152 = sbr.rel (%p149) target = $region12
      $region11: #{event_track_net_forward.4} parent=5 // pred_region
        %s153 = ssub.s32 %s10, 1
        // Predicated region
        $region13: #{event_track_net_forward.4} parent=11 // pred_check
          %p154 = pneg %p71
        $region14: #{event_track_net_forward.4} parent=11 // pred_check_branch
          %156 = sbr.rel (%p154) target = $region16
        $region15: #{event_track_net_forward.4} parent=11 // pred_region
          _
        $region16: #{event_track_net_forward.4} parent=11 // pred_fallthru
          _
        // Predicated region
        $region17: #{event_track_net_forward.4} parent=11 // pred_check
          %p157 = pneg %p92
        $region18: #{event_track_net_forward.4} parent=11 // pred_check_branch
          %159 = sbr.rel (%p157) target = $region20
        $region19: #{event_track_net_forward.4} parent=11 // pred_region
          _
        $region20: #{event_track_net_forward.4} parent=11 // pred_fallthru
          _
        // Predicated region
        $region21: #{event_track_net_forward.4} parent=11 // pred_check
          %p160 = pneg %p113
        $region22: #{event_track_net_forward.4} parent=11 // pred_check_branch
          %162 = sbr.rel (%p160) target = $region24
        $region23: #{event_track_net_forward.4} parent=11 // pred_region
          _
        $region24: #{event_track_net_forward.4} parent=11 // pred_fallthru
          _
      $region12: #{event_track_net_forward.4} parent=5 // pred_fallthru
        _
      %p163 = scmp.lt.s32.totalorder %s10, 2
      // Predicated region
      $region25: #{event_track_net_forward.4} parent=5 // pred_check
        %p164 = pneg %p163
      $region26: #{event_track_net_forward.4} parent=5 // pred_check_branch
        %166 = sbr.rel (%p164) target = $region28
      $region27: #{event_track_net_forward.4} parent=5 // pred_region
        // Predicated region
        $region29: #{event_track_net_forward.4} parent=27 // pred_check
          %p167 = pneg %p44
        $region30: #{event_track_net_forward.4} parent=27 // pred_check_branch
          %169 = sbr.rel (%p167) target = $region32
        $region31: #{event_track_net_forward.4} parent=27 // pred_region
          %s170 = sand.u32 %s34, 1
          %s171 = sand.u32 %s34, 1
          %s172 = smul.addr %s171, 1024
          %s173 = scalar_lea.vmem [#allocation3], %s172
          %s174 = smul.u32 16, %s17
          %s175 = smul.u32 4, %s18
          %s176 = smul.addr %s175, 4
          %s177 = smul.addr %s174, 32
          %s178 = sadd.s32 %s176, %s177
          %s179 = smul.addr %s178, 4
          %s180 = scalar_lea.vmem %s0, %s179
          // Predicated region
          $region33: #{event_track_net_forward.4} parent=31 // pred_check
            _
          $region34: #{event_track_net_forward.4} parent=31 // pred_check_branch
            %182 = sbr.rel (0) target = $region36
          $region35: #{event_track_net_forward.4} parent=31 // pred_region
            // Predicated region
            $region37: #{event_track_net_forward.4} parent=35 // pred_check
              _
            $region38: #{event_track_net_forward.4} parent=35 // pred_check_branch
              %184 = sbr.rel (0) target = $region40
            $region39: #{event_track_net_forward.4} parent=35 // pred_region
              loop: start=0, step=1, limit=1
              $region41: #{event_track_net_forward.4} parent=39 // loop_pre_header
                _
              $region42: #{event_track_net_forward.4} parent=39 // loop_header
                %s186 = sphi 0, %s190
                %p187 = scmp.ge.s32.totalorder %s186, 1
                %s191 = sphi %s180, %s180
                %s192 = sphi %s173, %s173
              $region43: #{event_track_net_forward.4} parent=39 // loop_header_branch
                %189 = sbr.rel (%p187) target = $region47
              $region44: #{event_track_net_forward.4} parent=39 // loop_body
                %v193 = vld [vmem:[%s191] sm:$0xff]
                %194 = vst [vmem:[%s192] sm:$0xff] %v193
                %v195 = vld [vmem:[%s191 + $0x8] sm:$0xff]
                %196 = vst [vmem:[%s192 + $0x8] sm:$0xff] %v195
                %v197 = vld [vmem:[%s191 + $0x10] sm:$0xff]
                %198 = vst [vmem:[%s192 + $0x10] sm:$0xff] %v197
                %v199 = vld [vmem:[%s191 + $0x18] sm:$0xff]
                %200 = vst [vmem:[%s192 + $0x18] sm:$0xff] %v199
                %v201 = vld [vmem:[%s191 + $0x20] sm:$0xff]
                %202 = vst [vmem:[%s192 + $0x20] sm:$0xff] %v201
                %v203 = vld [vmem:[%s191 + $0x28] sm:$0xff]
                %204 = vst [vmem:[%s192 + $0x28] sm:$0xff] %v203
                %v205 = vld [vmem:[%s191 + $0x30] sm:$0xff]
                %206 = vst [vmem:[%s192 + $0x30] sm:$0xff] %v205
                %v207 = vld [vmem:[%s191 + $0x38] sm:$0xff]
                %208 = vst [vmem:[%s192 + $0x38] sm:$0xff] %v207
                %v209 = vld [vmem:[%s191 + $0x80] sm:$0xff]
                %210 = vst [vmem:[%s192 + $0x40] sm:$0xff] %v209
                %v211 = vld [vmem:[%s191 + $0x88] sm:$0xff]
                %212 = vst [vmem:[%s192 + $0x48] sm:$0xff] %v211
                %v213 = vld [vmem:[%s191 + $0x90] sm:$0xff]
                %214 = vst [vmem:[%s192 + $0x50] sm:$0xff] %v213
                %v215 = vld [vmem:[%s191 + $0x98] sm:$0xff]
                %216 = vst [vmem:[%s192 + $0x58] sm:$0xff] %v215
                %v217 = vld [vmem:[%s191 + $0xa0] sm:$0xff]
                %218 = vst [vmem:[%s192 + $0x60] sm:$0xff] %v217
                %v219 = vld [vmem:[%s191 + $0xa8] sm:$0xff]
                %220 = vst [vmem:[%s192 + $0x68] sm:$0xff] %v219
                %v221 = vld [vmem:[%s191 + $0xb0] sm:$0xff]
                %222 = vst [vmem:[%s192 + $0x70] sm:$0xff] %v221
                %v223 = vld [vmem:[%s191 + $0xb8] sm:$0xff]
                %224 = vst [vmem:[%s192 + $0x78] sm:$0xff] %v223
                %v225 = vld [vmem:[%s191 + $0x100] sm:$0xff]
                %226 = vst [vmem:[%s192 + $0x80] sm:$0xff] %v225
                %v227 = vld [vmem:[%s191 + $0x108] sm:$0xff]
                %228 = vst [vmem:[%s192 + $0x88] sm:$0xff] %v227
                %v229 = vld [vmem:[%s191 + $0x110] sm:$0xff]
                %230 = vst [vmem:[%s192 + $0x90] sm:$0xff] %v229
                %v231 = vld [vmem:[%s191 + $0x118] sm:$0xff]
                %232 = vst [vmem:[%s192 + $0x98] sm:$0xff] %v231
                %v233 = vld [vmem:[%s191 + $0x120] sm:$0xff]
                %234 = vst [vmem:[%s192 + $0xa0] sm:$0xff] %v233
                %v235 = vld [vmem:[%s191 + $0x128] sm:$0xff]
                %236 = vst [vmem:[%s192 + $0xa8] sm:$0xff] %v235
                %v237 = vld [vmem:[%s191 + $0x130] sm:$0xff]
                %238 = vst [vmem:[%s192 + $0xb0] sm:$0xff] %v237
                %v239 = vld [vmem:[%s191 + $0x138] sm:$0xff]
                %240 = vst [vmem:[%s192 + $0xb8] sm:$0xff] %v239
                %v241 = vld [vmem:[%s191 + $0x180] sm:$0xff]
                %242 = vst [vmem:[%s192 + $0xc0] sm:$0xff] %v241
                %v243 = vld [vmem:[%s191 + $0x188] sm:$0xff]
                %244 = vst [vmem:[%s192 + $0xc8] sm:$0xff] %v243
                %v245 = vld [vmem:[%s191 + $0x190] sm:$0xff]
                %246 = vst [vmem:[%s192 + $0xd0] sm:$0xff] %v245
                %v247 = vld [vmem:[%s191 + $0x198] sm:$0xff]
                %248 = vst [vmem:[%s192 + $0xd8] sm:$0xff] %v247
                %v249 = vld [vmem:[%s191 + $0x1a0] sm:$0xff]
                %250 = vst [vmem:[%s192 + $0xe0] sm:$0xff] %v249
                %v251 = vld [vmem:[%s191 + $0x1a8] sm:$0xff]
                %252 = vst [vmem:[%s192 + $0xe8] sm:$0xff] %v251
                %v253 = vld [vmem:[%s191 + $0x1b0] sm:$0xff]
                %254 = vst [vmem:[%s192 + $0xf0] sm:$0xff] %v253
                %v255 = vld [vmem:[%s191 + $0x1b8] sm:$0xff]
                %256 = vst [vmem:[%s192 + $0xf8] sm:$0xff] %v255
                %v257 = vld [vmem:[%s191 + $0x200] sm:$0xff]
                %258 = vst [vmem:[%s192 + $0x100] sm:$0xff] %v257
                %v259 = vld [vmem:[%s191 + $0x208] sm:$0xff]
                %260 = vst [vmem:[%s192 + $0x108] sm:$0xff] %v259
                %v261 = vld [vmem:[%s191 + $0x210] sm:$0xff]
                %262 = vst [vmem:[%s192 + $0x110] sm:$0xff] %v261
                %v263 = vld [vmem:[%s191 + $0x218] sm:$0xff]
                %264 = vst [vmem:[%s192 + $0x118] sm:$0xff] %v263
                %v265 = vld [vmem:[%s191 + $0x220] sm:$0xff]
                %266 = vst [vmem:[%s192 + $0x120] sm:$0xff] %v265
                %v267 = vld [vmem:[%s191 + $0x228] sm:$0xff]
                %268 = vst [vmem:[%s192 + $0x128] sm:$0xff] %v267
                %v269 = vld [vmem:[%s191 + $0x230] sm:$0xff]
                %270 = vst [vmem:[%s192 + $0x130] sm:$0xff] %v269
                %v271 = vld [vmem:[%s191 + $0x238] sm:$0xff]
                %272 = vst [vmem:[%s192 + $0x138] sm:$0xff] %v271
                %v273 = vld [vmem:[%s191 + $0x280] sm:$0xff]
                %274 = vst [vmem:[%s192 + $0x140] sm:$0xff] %v273
                %v275 = vld [vmem:[%s191 + $0x288] sm:$0xff]
                %276 = vst [vmem:[%s192 + $0x148] sm:$0xff] %v275
                %v277 = vld [vmem:[%s191 + $0x290] sm:$0xff]
                %278 = vst [vmem:[%s192 + $0x150] sm:$0xff] %v277
                %v279 = vld [vmem:[%s191 + $0x298] sm:$0xff]
                %280 = vst [vmem:[%s192 + $0x158] sm:$0xff] %v279
                %v281 = vld [vmem:[%s191 + $0x2a0] sm:$0xff]
                %282 = vst [vmem:[%s192 + $0x160] sm:$0xff] %v281
                %v283 = vld [vmem:[%s191 + $0x2a8] sm:$0xff]
                %284 = vst [vmem:[%s192 + $0x168] sm:$0xff] %v283
                %v285 = vld [vmem:[%s191 + $0x2b0] sm:$0xff]
                %286 = vst [vmem:[%s192 + $0x170] sm:$0xff] %v285
                %v287 = vld [vmem:[%s191 + $0x2b8] sm:$0xff]
                %288 = vst [vmem:[%s192 + $0x178] sm:$0xff] %v287
                %v289 = vld [vmem:[%s191 + $0x300] sm:$0xff]
                %290 = vst [vmem:[%s192 + $0x180] sm:$0xff] %v289
                %v291 = vld [vmem:[%s191 + $0x308] sm:$0xff]
                %292 = vst [vmem:[%s192 + $0x188] sm:$0xff] %v291
                %v293 = vld [vmem:[%s191 + $0x310] sm:$0xff]
                %294 = vst [vmem:[%s192 + $0x190] sm:$0xff] %v293
                %v295 = vld [vmem:[%s191 + $0x318] sm:$0xff]
                %296 = vst [vmem:[%s192 + $0x198] sm:$0xff] %v295
                %v297 = vld [vmem:[%s191 + $0x320] sm:$0xff]
                %298 = vst [vmem:[%s192 + $0x1a0] sm:$0xff] %v297
                %v299 = vld [vmem:[%s191 + $0x328] sm:$0xff]
                %300 = vst [vmem:[%s192 + $0x1a8] sm:$0xff] %v299
                %v301 = vld [vmem:[%s191 + $0x330] sm:$0xff]
                %302 = vst [vmem:[%s192 + $0x1b0] sm:$0xff] %v301
                %v303 = vld [vmem:[%s191 + $0x338] sm:$0xff]
                %304 = vst [vmem:[%s192 + $0x1b8] sm:$0xff] %v303
                %v305 = vld [vmem:[%s191 + $0x380] sm:$0xff]
                %306 = vst [vmem:[%s192 + $0x1c0] sm:$0xff] %v305
                %v307 = vld [vmem:[%s191 + $0x388] sm:$0xff]
                %308 = vst [vmem:[%s192 + $0x1c8] sm:$0xff] %v307
                %v309 = vld [vmem:[%s191 + $0x390] sm:$0xff]
                %310 = vst [vmem:[%s192 + $0x1d0] sm:$0xff] %v309
                %v311 = vld [vmem:[%s191 + $0x398] sm:$0xff]
                %312 = vst [vmem:[%s192 + $0x1d8] sm:$0xff] %v311
                %v313 = vld [vmem:[%s191 + $0x3a0] sm:$0xff]
                %314 = vst [vmem:[%s192 + $0x1e0] sm:$0xff] %v313
                %v315 = vld [vmem:[%s191 + $0x3a8] sm:$0xff]
                %316 = vst [vmem:[%s192 + $0x1e8] sm:$0xff] %v315
                %v317 = vld [vmem:[%s191 + $0x3b0] sm:$0xff]
                %318 = vst [vmem:[%s192 + $0x1f0] sm:$0xff] %v317
                %v319 = vld [vmem:[%s191 + $0x3b8] sm:$0xff]
                %320 = vst [vmem:[%s192 + $0x1f8] sm:$0xff] %v319
                %v321 = vld [vmem:[%s191 + $0x400] sm:$0xff]
                %322 = vst [vmem:[%s192 + $0x200] sm:$0xff] %v321
                %v323 = vld [vmem:[%s191 + $0x408] sm:$0xff]
                %324 = vst [vmem:[%s192 + $0x208] sm:$0xff] %v323
                %v325 = vld [vmem:[%s191 + $0x410] sm:$0xff]
                %326 = vst [vmem:[%s192 + $0x210] sm:$0xff] %v325
                %v327 = vld [vmem:[%s191 + $0x418] sm:$0xff]
                %328 = vst [vmem:[%s192 + $0x218] sm:$0xff] %v327
                %v329 = vld [vmem:[%s191 + $0x420] sm:$0xff]
                %330 = vst [vmem:[%s192 + $0x220] sm:$0xff] %v329
                %v331 = vld [vmem:[%s191 + $0x428] sm:$0xff]
                %332 = vst [vmem:[%s192 + $0x228] sm:$0xff] %v331
                %v333 = vld [vmem:[%s191 + $0x430] sm:$0xff]
                %334 = vst [vmem:[%s192 + $0x230] sm:$0xff] %v333
                %v335 = vld [vmem:[%s191 + $0x438] sm:$0xff]
                %336 = vst [vmem:[%s192 + $0x238] sm:$0xff] %v335
                %v337 = vld [vmem:[%s191 + $0x480] sm:$0xff]
                %338 = vst [vmem:[%s192 + $0x240] sm:$0xff] %v337
                %v339 = vld [vmem:[%s191 + $0x488] sm:$0xff]
                %340 = vst [vmem:[%s192 + $0x248] sm:$0xff] %v339
                %v341 = vld [vmem:[%s191 + $0x490] sm:$0xff]
                %342 = vst [vmem:[%s192 + $0x250] sm:$0xff] %v341
                %v343 = vld [vmem:[%s191 + $0x498] sm:$0xff]
                %344 = vst [vmem:[%s192 + $0x258] sm:$0xff] %v343
                %v345 = vld [vmem:[%s191 + $0x4a0] sm:$0xff]
                %346 = vst [vmem:[%s192 + $0x260] sm:$0xff] %v345
                %v347 = vld [vmem:[%s191 + $0x4a8] sm:$0xff]
                %348 = vst [vmem:[%s192 + $0x268] sm:$0xff] %v347
                %v349 = vld [vmem:[%s191 + $0x4b0] sm:$0xff]
                %350 = vst [vmem:[%s192 + $0x270] sm:$0xff] %v349
                %v351 = vld [vmem:[%s191 + $0x4b8] sm:$0xff]
                %352 = vst [vmem:[%s192 + $0x278] sm:$0xff] %v351
                %v353 = vld [vmem:[%s191 + $0x500] sm:$0xff]
                %354 = vst [vmem:[%s192 + $0x280] sm:$0xff] %v353
                %v355 = vld [vmem:[%s191 + $0x508] sm:$0xff]
                %356 = vst [vmem:[%s192 + $0x288] sm:$0xff] %v355
                %v357 = vld [vmem:[%s191 + $0x510] sm:$0xff]
                %358 = vst [vmem:[%s192 + $0x290] sm:$0xff] %v357
                %v359 = vld [vmem:[%s191 + $0x518] sm:$0xff]
                %360 = vst [vmem:[%s192 + $0x298] sm:$0xff] %v359
                %v361 = vld [vmem:[%s191 + $0x520] sm:$0xff]
                %362 = vst [vmem:[%s192 + $0x2a0] sm:$0xff] %v361
                %v363 = vld [vmem:[%s191 + $0x528] sm:$0xff]
                %364 = vst [vmem:[%s192 + $0x2a8] sm:$0xff] %v363
                %v365 = vld [vmem:[%s191 + $0x530] sm:$0xff]
                %366 = vst [vmem:[%s192 + $0x2b0] sm:$0xff] %v365
                %v367 = vld [vmem:[%s191 + $0x538] sm:$0xff]
                %368 = vst [vmem:[%s192 + $0x2b8] sm:$0xff] %v367
                %v369 = vld [vmem:[%s191 + $0x580] sm:$0xff]
                %370 = vst [vmem:[%s192 + $0x2c0] sm:$0xff] %v369
                %v371 = vld [vmem:[%s191 + $0x588] sm:$0xff]
                %372 = vst [vmem:[%s192 + $0x2c8] sm:$0xff] %v371
                %v373 = vld [vmem:[%s191 + $0x590] sm:$0xff]
                %374 = vst [vmem:[%s192 + $0x2d0] sm:$0xff] %v373
                %v375 = vld [vmem:[%s191 + $0x598] sm:$0xff]
                %376 = vst [vmem:[%s192 + $0x2d8] sm:$0xff] %v375
                %v377 = vld [vmem:[%s191 + $0x5a0] sm:$0xff]
                %378 = vst [vmem:[%s192 + $0x2e0] sm:$0xff] %v377
                %v379 = vld [vmem:[%s191 + $0x5a8] sm:$0xff]
                %380 = vst [vmem:[%s192 + $0x2e8] sm:$0xff] %v379
                %v381 = vld [vmem:[%s191 + $0x5b0] sm:$0xff]
                %382 = vst [vmem:[%s192 + $0x2f0] sm:$0xff] %v381
                %v383 = vld [vmem:[%s191 + $0x5b8] sm:$0xff]
                %384 = vst [vmem:[%s192 + $0x2f8] sm:$0xff] %v383
                %v385 = vld [vmem:[%s191 + $0x600] sm:$0xff]
                %386 = vst [vmem:[%s192 + $0x300] sm:$0xff] %v385
                %v387 = vld [vmem:[%s191 + $0x608] sm:$0xff]
                %388 = vst [vmem:[%s192 + $0x308] sm:$0xff] %v387
                %v389 = vld [vmem:[%s191 + $0x610] sm:$0xff]
                %390 = vst [vmem:[%s192 + $0x310] sm:$0xff] %v389
                %v391 = vld [vmem:[%s191 + $0x618] sm:$0xff]
                %392 = vst [vmem:[%s192 + $0x318] sm:$0xff] %v391
                %v393 = vld [vmem:[%s191 + $0x620] sm:$0xff]
                %394 = vst [vmem:[%s192 + $0x320] sm:$0xff] %v393
                %v395 = vld [vmem:[%s191 + $0x628] sm:$0xff]
                %396 = vst [vmem:[%s192 + $0x328] sm:$0xff] %v395
                %v397 = vld [vmem:[%s191 + $0x630] sm:$0xff]
                %398 = vst [vmem:[%s192 + $0x330] sm:$0xff] %v397
                %v399 = vld [vmem:[%s191 + $0x638] sm:$0xff]
                %400 = vst [vmem:[%s192 + $0x338] sm:$0xff] %v399
                %v401 = vld [vmem:[%s191 + $0x680] sm:$0xff]
                %402 = vst [vmem:[%s192 + $0x340] sm:$0xff] %v401
                %v403 = vld [vmem:[%s191 + $0x688] sm:$0xff]
                %404 = vst [vmem:[%s192 + $0x348] sm:$0xff] %v403
                %v405 = vld [vmem:[%s191 + $0x690] sm:$0xff]
                %406 = vst [vmem:[%s192 + $0x350] sm:$0xff] %v405
                %v407 = vld [vmem:[%s191 + $0x698] sm:$0xff]
                %408 = vst [vmem:[%s192 + $0x358] sm:$0xff] %v407
                %v409 = vld [vmem:[%s191 + $0x6a0] sm:$0xff]
                %410 = vst [vmem:[%s192 + $0x360] sm:$0xff] %v409
                %v411 = vld [vmem:[%s191 + $0x6a8] sm:$0xff]
                %412 = vst [vmem:[%s192 + $0x368] sm:$0xff] %v411
                %v413 = vld [vmem:[%s191 + $0x6b0] sm:$0xff]
                %414 = vst [vmem:[%s192 + $0x370] sm:$0xff] %v413
                %v415 = vld [vmem:[%s191 + $0x6b8] sm:$0xff]
                %416 = vst [vmem:[%s192 + $0x378] sm:$0xff] %v415
                %v417 = vld [vmem:[%s191 + $0x700] sm:$0xff]
                %418 = vst [vmem:[%s192 + $0x380] sm:$0xff] %v417
                %v419 = vld [vmem:[%s191 + $0x708] sm:$0xff]
                %420 = vst [vmem:[%s192 + $0x388] sm:$0xff] %v419
                %v421 = vld [vmem:[%s191 + $0x710] sm:$0xff]
                %422 = vst [vmem:[%s192 + $0x390] sm:$0xff] %v421
                %v423 = vld [vmem:[%s191 + $0x718] sm:$0xff]
                %424 = vst [vmem:[%s192 + $0x398] sm:$0xff] %v423
                %v425 = vld [vmem:[%s191 + $0x720] sm:$0xff]
                %426 = vst [vmem:[%s192 + $0x3a0] sm:$0xff] %v425
                %v427 = vld [vmem:[%s191 + $0x728] sm:$0xff]
                %428 = vst [vmem:[%s192 + $0x3a8] sm:$0xff] %v427
                %v429 = vld [vmem:[%s191 + $0x730] sm:$0xff]
                %430 = vst [vmem:[%s192 + $0x3b0] sm:$0xff] %v429
                %v431 = vld [vmem:[%s191 + $0x738] sm:$0xff]
                %432 = vst [vmem:[%s192 + $0x3b8] sm:$0xff] %v431
                %v433 = vld [vmem:[%s191 + $0x780] sm:$0xff]
                %434 = vst [vmem:[%s192 + $0x3c0] sm:$0xff] %v433
                %v435 = vld [vmem:[%s191 + $0x788] sm:$0xff]
                %436 = vst [vmem:[%s192 + $0x3c8] sm:$0xff] %v435
                %v437 = vld [vmem:[%s191 + $0x790] sm:$0xff]
                %438 = vst [vmem:[%s192 + $0x3d0] sm:$0xff] %v437
                %v439 = vld [vmem:[%s191 + $0x798] sm:$0xff]
                %440 = vst [vmem:[%s192 + $0x3d8] sm:$0xff] %v439
                %v441 = vld [vmem:[%s191 + $0x7a0] sm:$0xff]
                %442 = vst [vmem:[%s192 + $0x3e0] sm:$0xff] %v441
                %v443 = vld [vmem:[%s191 + $0x7a8] sm:$0xff]
                %444 = vst [vmem:[%s192 + $0x3e8] sm:$0xff] %v443
                %v445 = vld [vmem:[%s191 + $0x7b0] sm:$0xff]
                %446 = vst [vmem:[%s192 + $0x3f0] sm:$0xff] %v445
                %v447 = vld [vmem:[%s191 + $0x7b8] sm:$0xff]
                %448 = vst [vmem:[%s192 + $0x3f8] sm:$0xff] %v447
              $region45: #{event_track_net_forward.4} parent=39 // loop_footer
                %s190 = sadd.s32 1, %s186
              $region46: #{event_track_net_forward.4} parent=39 // loop_footer_branch
                %185 = sbr.rel target = $region42
              $region47: #{event_track_net_forward.4} parent=39 // loop_exit
                _
            $region40: #{event_track_net_forward.4} parent=35 // pred_fallthru
              _
            // Predicated region
            $region48: #{event_track_net_forward.4} parent=35 // pred_check
              _
            $region49: #{event_track_net_forward.4} parent=35 // pred_check_branch
              %450 = sbr.rel target = $region51
            $region50: #{event_track_net_forward.4} parent=35 // pred_region
              _
            $region51: #{event_track_net_forward.4} parent=35 // pred_fallthru
              _
          $region36: #{event_track_net_forward.4} parent=31 // pred_fallthru
            _
          %451 = vnop
        $region32: #{event_track_net_forward.4} parent=27 // pred_fallthru
          _
      $region28: #{event_track_net_forward.4} parent=5 // pred_fallthru
        _
      %p452 = scmp.le.s32.totalorder 1, %s10
      %p453 = scmp.lt.s32.totalorder %s10, 3
      %p454 = pnand %p452, %p453
      %p455 = pneg %p454
      // Predicated region
      $region52: #{event_track_net_forward.4} parent=5 // pred_check
        _
      $region53: #{event_track_net_forward.4} parent=5 // pred_check_branch
        %457 = sbr.rel (%p454) target = $region55
      $region54: #{event_track_net_forward.4} parent=5 // pred_region
        %s458 = ssub.s32 %s10, 1
        %s459 = sand.u32 %s37, 1
        %s460 = sand.u32 %s37, 1
        %s461 = smul.addr %s460, 1024
        %s462 = scalar_lea.vmem [#allocation3], %s461
        // Predicated region
        $region56: #{event_track_net_forward.4} parent=54 // pred_check
          %p463 = pneg %p50
        $region57: #{event_track_net_forward.4} parent=54 // pred_check_branch
          %465 = sbr.rel (%p463) target = $region59
        $region58: #{event_track_net_forward.4} parent=54 // pred_region
          _
        $region59: #{event_track_net_forward.4} parent=54 // pred_fallthru
          _
        %s466 = sand.u32 %s37, 1
        %s467 = sand.u32 %s37, 1
        %s468 = smul.addr %s467, 1024
        %s469 = scalar_lea.vmem [#allocation3], %s468
        %p470 = pneg %p50
        %p471 = pneg %p47
        %p472 = pneg %p71
        %p473 = pneg %p68
        %p474 = pneg %p92
        %p475 = pneg %p89
        %p476 = pneg %p113
        %p477 = pneg %p110
        %p478 = pneg %p139
        %p479 = pneg %p136
        %s480 = smul.u32 2, %s19
        %p481 = scmp.lt.s32.totalorder %s480, 1
        %s482 = scalar_select %p481, %s480, 1
        %s483 = smul.addr %s482, 2
        %s484 = smul.addr %s483, 4
        %s485 = scalar_lea.vmem %s4, %s484
        %s486 = smul.u32 16, %s19
        %s487 = smul.u32 4, %s20
        %s488 = smul.u32 2, %s19
        %p489 = scmp.lt.s32.totalorder %s488, 1
        %s490 = scalar_select %p489, %s488, 1
        %s491 = smul.addr %s490, 2
        %s492 = smul.addr %s491, 4
        %s493 = scalar_lea.vmem %s4, %s492
        %s494 = smul.u32 2, %s19
        %p496 = scmp.eq.s32.totalorder %s20, 0
        // Predicated region
        $region60: #{event_track_net_forward.4} parent=54 // pred_check
          %p497 = pneg %p496
        $region61: #{event_track_net_forward.4} parent=54 // pred_check_branch
          %499 = sbr.rel (%p497) target = $region63
        $region62: #{event_track_net_forward.4} parent=54 // pred_region
          %500 = vst [vmem:[#allocation2] sm:$0xff] 0.0
          %501 = vst [vmem:[#allocation2 + $0x8] sm:$0xff] 0.0
        $region63: #{event_track_net_forward.4} parent=54 // pred_fallthru
          _
        %v502 = vld [vmem:[%s462] sm:$0xff]
        %v503 = vld [vmem:[%s462 + $0x8] sm:$0xff]
        %v504 = vld [vmem:[%s462 + $0x10] sm:$0xff]
        %v505 = vld [vmem:[%s462 + $0x18] sm:$0xff]
        %v506 = vld [vmem:[%s462 + $0x20] sm:$0xff]
        %v507 = vld [vmem:[%s462 + $0x28] sm:$0xff]
        %v508 = vld [vmem:[%s462 + $0x30] sm:$0xff]
        %v509 = vld [vmem:[%s462 + $0x38] sm:$0xff]
        %v510 = vld [vmem:[%s462 + $0x40] sm:$0xff]
        %v511 = vld [vmem:[%s462 + $0x48] sm:$0xff]
        %v512 = vld [vmem:[%s462 + $0x50] sm:$0xff]
        %v513 = vld [vmem:[%s462 + $0x58] sm:$0xff]
        %v514 = vld [vmem:[%s462 + $0x60] sm:$0xff]
        %v515 = vld [vmem:[%s462 + $0x68] sm:$0xff]
        %v516 = vld [vmem:[%s462 + $0x70] sm:$0xff]
        %v517 = vld [vmem:[%s462 + $0x78] sm:$0xff]
        %v518 = vld [vmem:[%s462 + $0x80] sm:$0xff]
        %v519 = vld [vmem:[%s462 + $0x88] sm:$0xff]
        %v520 = vld [vmem:[%s462 + $0x90] sm:$0xff]
        %v521 = vld [vmem:[%s462 + $0x98] sm:$0xff]
        %v522 = vld [vmem:[%s462 + $0xa0] sm:$0xff]
        %v523 = vld [vmem:[%s462 + $0xa8] sm:$0xff]
        %v524 = vld [vmem:[%s462 + $0xb0] sm:$0xff]
        %v525 = vld [vmem:[%s462 + $0xb8] sm:$0xff]
        %v526 = vld [vmem:[%s462 + $0xc0] sm:$0xff]
        %v527 = vld [vmem:[%s462 + $0xc8] sm:$0xff]
        %v528 = vld [vmem:[%s462 + $0xd0] sm:$0xff]
        %v529 = vld [vmem:[%s462 + $0xd8] sm:$0xff]
        %v530 = vld [vmem:[%s462 + $0xe0] sm:$0xff]
        %v531 = vld [vmem:[%s462 + $0xe8] sm:$0xff]
        %v532 = vld [vmem:[%s462 + $0xf0] sm:$0xff]
        %v533 = vld [vmem:[%s462 + $0xf8] sm:$0xff]
        %v534 = vld [vmem:[%s462 + $0x100] sm:$0xff]
        %v535 = vld [vmem:[%s462 + $0x108] sm:$0xff]
        %v536 = vld [vmem:[%s462 + $0x110] sm:$0xff]
        %v537 = vld [vmem:[%s462 + $0x118] sm:$0xff]
        %v538 = vld [vmem:[%s462 + $0x120] sm:$0xff]
        %v539 = vld [vmem:[%s462 + $0x128] sm:$0xff]
        %v540 = vld [vmem:[%s462 + $0x130] sm:$0xff]
        %v541 = vld [vmem:[%s462 + $0x138] sm:$0xff]
        %v542 = vld [vmem:[%s462 + $0x140] sm:$0xff]
        %v543 = vld [vmem:[%s462 + $0x148] sm:$0xff]
        %v544 = vld [vmem:[%s462 + $0x150] sm:$0xff]
        %v545 = vld [vmem:[%s462 + $0x158] sm:$0xff]
        %v546 = vld [vmem:[%s462 + $0x160] sm:$0xff]
        %v547 = vld [vmem:[%s462 + $0x168] sm:$0xff]
        %v548 = vld [vmem:[%s462 + $0x170] sm:$0xff]
        %v549 = vld [vmem:[%s462 + $0x178] sm:$0xff]
        %v550 = vld [vmem:[%s462 + $0x180] sm:$0xff]
        %v551 = vld [vmem:[%s462 + $0x188] sm:$0xff]
        %v552 = vld [vmem:[%s462 + $0x190] sm:$0xff]
        %v553 = vld [vmem:[%s462 + $0x198] sm:$0xff]
        %v554 = vld [vmem:[%s462 + $0x1a0] sm:$0xff]
        %v555 = vld [vmem:[%s462 + $0x1a8] sm:$0xff]
        %v556 = vld [vmem:[%s462 + $0x1b0] sm:$0xff]
        %v557 = vld [vmem:[%s462 + $0x1b8] sm:$0xff]
        %v558 = vld [vmem:[%s462 + $0x1c0] sm:$0xff]
        %v559 = vld [vmem:[%s462 + $0x1c8] sm:$0xff]
        %v560 = vld [vmem:[%s462 + $0x1d0] sm:$0xff]
        %v561 = vld [vmem:[%s462 + $0x1d8] sm:$0xff]
        %v562 = vld [vmem:[%s462 + $0x1e0] sm:$0xff]
        %v563 = vld [vmem:[%s462 + $0x1e8] sm:$0xff]
        %v564 = vld [vmem:[%s462 + $0x1f0] sm:$0xff]
        %v565 = vld [vmem:[%s462 + $0x1f8] sm:$0xff]
        %v566 = vld [vmem:[%s462 + $0x200] sm:$0xff]
        %v567 = vld [vmem:[%s462 + $0x208] sm:$0xff]
        %v568 = vld [vmem:[%s462 + $0x210] sm:$0xff]
        %v569 = vld [vmem:[%s462 + $0x218] sm:$0xff]
        %v570 = vld [vmem:[%s462 + $0x220] sm:$0xff]
        %v571 = vld [vmem:[%s462 + $0x228] sm:$0xff]
        %v572 = vld [vmem:[%s462 + $0x230] sm:$0xff]
        %v573 = vld [vmem:[%s462 + $0x238] sm:$0xff]
        %v574 = vld [vmem:[%s462 + $0x240] sm:$0xff]
        %v575 = vld [vmem:[%s462 + $0x248] sm:$0xff]
        %v576 = vld [vmem:[%s462 + $0x250] sm:$0xff]
        %v577 = vld [vmem:[%s462 + $0x258] sm:$0xff]
        %v578 = vld [vmem:[%s462 + $0x260] sm:$0xff]
        %v579 = vld [vmem:[%s462 + $0x268] sm:$0xff]
        %v580 = vld [vmem:[%s462 + $0x270] sm:$0xff]
        %v581 = vld [vmem:[%s462 + $0x278] sm:$0xff]
        %v582 = vld [vmem:[%s462 + $0x280] sm:$0xff]
        %v583 = vld [vmem:[%s462 + $0x288] sm:$0xff]
        %v584 = vld [vmem:[%s462 + $0x290] sm:$0xff]
        %v585 = vld [vmem:[%s462 + $0x298] sm:$0xff]
        %v586 = vld [vmem:[%s462 + $0x2a0] sm:$0xff]
        %v587 = vld [vmem:[%s462 + $0x2a8] sm:$0xff]
        %v588 = vld [vmem:[%s462 + $0x2b0] sm:$0xff]
        %v589 = vld [vmem:[%s462 + $0x2b8] sm:$0xff]
        %v590 = vld [vmem:[%s462 + $0x2c0] sm:$0xff]
        %v591 = vld [vmem:[%s462 + $0x2c8] sm:$0xff]
        %v592 = vld [vmem:[%s462 + $0x2d0] sm:$0xff]
        %v593 = vld [vmem:[%s462 + $0x2d8] sm:$0xff]
        %v594 = vld [vmem:[%s462 + $0x2e0] sm:$0xff]
        %v595 = vld [vmem:[%s462 + $0x2e8] sm:$0xff]
        %v596 = vld [vmem:[%s462 + $0x2f0] sm:$0xff]
        %v597 = vld [vmem:[%s462 + $0x2f8] sm:$0xff]
        %v598 = vld [vmem:[%s462 + $0x300] sm:$0xff]
        %v599 = vld [vmem:[%s462 + $0x308] sm:$0xff]
        %v600 = vld [vmem:[%s462 + $0x310] sm:$0xff]
        %v601 = vld [vmem:[%s462 + $0x318] sm:$0xff]
        %v602 = vld [vmem:[%s462 + $0x320] sm:$0xff]
        %v603 = vld [vmem:[%s462 + $0x328] sm:$0xff]
        %v604 = vld [vmem:[%s462 + $0x330] sm:$0xff]
        %v605 = vld [vmem:[%s462 + $0x338] sm:$0xff]
        %v606 = vld [vmem:[%s462 + $0x340] sm:$0xff]
        %v607 = vld [vmem:[%s462 + $0x348] sm:$0xff]
        %v608 = vld [vmem:[%s462 + $0x350] sm:$0xff]
        %v609 = vld [vmem:[%s462 + $0x358] sm:$0xff]
        %v610 = vld [vmem:[%s462 + $0x360] sm:$0xff]
        %v611 = vld [vmem:[%s462 + $0x368] sm:$0xff]
        %v612 = vld [vmem:[%s462 + $0x370] sm:$0xff]
        %v613 = vld [vmem:[%s462 + $0x378] sm:$0xff]
        %v614 = vld [vmem:[%s462 + $0x380] sm:$0xff]
        %v615 = vld [vmem:[%s462 + $0x388] sm:$0xff]
        %v616 = vld [vmem:[%s462 + $0x390] sm:$0xff]
        %v617 = vld [vmem:[%s462 + $0x398] sm:$0xff]
        %v618 = vld [vmem:[%s462 + $0x3a0] sm:$0xff]
        %v619 = vld [vmem:[%s462 + $0x3a8] sm:$0xff]
        %v620 = vld [vmem:[%s462 + $0x3b0] sm:$0xff]
        %v621 = vld [vmem:[%s462 + $0x3b8] sm:$0xff]
        %v622 = vld [vmem:[%s462 + $0x3c0] sm:$0xff]
        %v623 = vld [vmem:[%s462 + $0x3c8] sm:$0xff]
        %v624 = vld [vmem:[%s462 + $0x3d0] sm:$0xff]
        %v625 = vld [vmem:[%s462 + $0x3d8] sm:$0xff]
        %v626 = vld [vmem:[%s462 + $0x3e0] sm:$0xff]
        %v627 = vld [vmem:[%s462 + $0x3e8] sm:$0xff]
        %v628 = vld [vmem:[%s462 + $0x3f0] sm:$0xff]
        %v629 = vld [vmem:[%s462 + $0x3f8] sm:$0xff]
        %v630 = vld [vmem:[%s1] sm:$0xf]
        %v631 = vld [vmem:[%s1 + $0x4] sm:$0xf]
        %v632 = vld [vmem:[%s1 + $0x8] sm:$0xf]
        %v633 = vld [vmem:[%s1 + $0xc] sm:$0xf]
        %v634 = vld [vmem:[%s1 + $0x10] sm:$0xf]
        %v635 = vld [vmem:[%s1 + $0x14] sm:$0xf]
        %v636 = vld [vmem:[%s1 + $0x18] sm:$0xf]
        %v637 = vld [vmem:[%s1 + $0x1c] sm:$0xf]
        %v638 = vld [vmem:[%s1 + $0x20] sm:$0xf]
        %v639 = vld [vmem:[%s1 + $0x24] sm:$0xf]
        %v640 = vld [vmem:[%s1 + $0x28] sm:$0xf]
        %v641 = vld [vmem:[%s1 + $0x2c] sm:$0xf]
        %v642 = vld [vmem:[%s1 + $0x30] sm:$0xf]
        %v643 = vld [vmem:[%s1 + $0x34] sm:$0xf]
        %v644 = vld [vmem:[%s1 + $0x38] sm:$0xf]
        %v645 = vld [vmem:[%s1 + $0x3c] sm:$0xf]
        %v646 = vld [vmem:[%s1 + $0x40] sm:$0xf]
        %v647 = vld [vmem:[%s1 + $0x44] sm:$0xf]
        %v648 = vld [vmem:[%s1 + $0x48] sm:$0xf]
        %v649 = vld [vmem:[%s1 + $0x4c] sm:$0xf]
        %v650 = vld [vmem:[%s1 + $0x50] sm:$0xf]
        %v651 = vld [vmem:[%s1 + $0x54] sm:$0xf]
        %v652 = vld [vmem:[%s1 + $0x58] sm:$0xf]
        %v653 = vld [vmem:[%s1 + $0x5c] sm:$0xf]
        %v654 = vld [vmem:[%s1 + $0x60] sm:$0xf]
        %v655 = vld [vmem:[%s1 + $0x64] sm:$0xf]
        %v656 = vld [vmem:[%s1 + $0x68] sm:$0xf]
        %v657 = vld [vmem:[%s1 + $0x6c] sm:$0xf]
        %v658 = vld [vmem:[%s1 + $0x70] sm:$0xf]
        %v659 = vld [vmem:[%s1 + $0x74] sm:$0xf]
        %v660 = vld [vmem:[%s1 + $0x78] sm:$0xf]
        %v661 = vld [vmem:[%s1 + $0x7c] sm:$0xf]
        %v662 = vld [vmem:[%s1 + $0x80] sm:$0xf]
        %v663 = vld [vmem:[%s1 + $0x84] sm:$0xf]
        %v664 = vld [vmem:[%s1 + $0x88] sm:$0xf]
        %v665 = vld [vmem:[%s1 + $0x8c] sm:$0xf]
        %v666 = vld [vmem:[%s1 + $0x90] sm:$0xf]
        %v667 = vld [vmem:[%s1 + $0x94] sm:$0xf]
        %v668 = vld [vmem:[%s1 + $0x98] sm:$0xf]
        %v669 = vld [vmem:[%s1 + $0x9c] sm:$0xf]
        %v670 = vld [vmem:[%s1 + $0xa0] sm:$0xf]
        %v671 = vld [vmem:[%s1 + $0xa4] sm:$0xf]
        %v672 = vld [vmem:[%s1 + $0xa8] sm:$0xf]
        %v673 = vld [vmem:[%s1 + $0xac] sm:$0xf]
        %v674 = vld [vmem:[%s1 + $0xb0] sm:$0xf]
        %v675 = vld [vmem:[%s1 + $0xb4] sm:$0xf]
        %v676 = vld [vmem:[%s1 + $0xb8] sm:$0xf]
        %v677 = vld [vmem:[%s1 + $0xbc] sm:$0xf]
        %v678 = vld [vmem:[%s1 + $0xc0] sm:$0xf]
        %v679 = vld [vmem:[%s1 + $0xc4] sm:$0xf]
        %v680 = vld [vmem:[%s1 + $0xc8] sm:$0xf]
        %v681 = vld [vmem:[%s1 + $0xcc] sm:$0xf]
        %v682 = vld [vmem:[%s1 + $0xd0] sm:$0xf]
        %v683 = vld [vmem:[%s1 + $0xd4] sm:$0xf]
        %v684 = vld [vmem:[%s1 + $0xd8] sm:$0xf]
        %v685 = vld [vmem:[%s1 + $0xdc] sm:$0xf]
        %v686 = vld [vmem:[%s1 + $0xe0] sm:$0xf]
        %v687 = vld [vmem:[%s1 + $0xe4] sm:$0xf]
        %v688 = vld [vmem:[%s1 + $0xe8] sm:$0xf]
        %v689 = vld [vmem:[%s1 + $0xec] sm:$0xf]
        %v690 = vld [vmem:[%s1 + $0xf0] sm:$0xf]
        %v691 = vld [vmem:[%s1 + $0xf4] sm:$0xf]
        %v692 = vld [vmem:[%s1 + $0xf8] sm:$0xf]
        %v693 = vld [vmem:[%s1 + $0xfc] sm:$0xf]
        %v822 = vunpack.c.l.b16 %v502
        %v823 = vunpack.c.h.b16 %v502
        %v824 = vunpack.c.l.b16 %v503
        %v825 = vunpack.c.h.b16 %v503
        %v826 = vunpack.c.l.b16 %v504
        %v827 = vunpack.c.h.b16 %v504
        %v828 = vunpack.c.l.b16 %v505
        %v829 = vunpack.c.h.b16 %v505
        %v830 = vunpack.c.l.b16 %v506
        %v831 = vunpack.c.h.b16 %v506
        %v832 = vunpack.c.l.b16 %v507
        %v833 = vunpack.c.h.b16 %v507
        %v834 = vunpack.c.l.b16 %v508
        %v835 = vunpack.c.h.b16 %v508
        %v836 = vunpack.c.l.b16 %v509
        %v837 = vunpack.c.h.b16 %v509
        %v838 = vunpack.c.l.b16 %v510
        %v839 = vunpack.c.h.b16 %v510
        %v840 = vunpack.c.l.b16 %v511
        %v841 = vunpack.c.h.b16 %v511
        %v842 = vunpack.c.l.b16 %v512
        %v843 = vunpack.c.h.b16 %v512
        %v844 = vunpack.c.l.b16 %v513
        %v845 = vunpack.c.h.b16 %v513
        %v846 = vunpack.c.l.b16 %v514
        %v847 = vunpack.c.h.b16 %v514
        %v848 = vunpack.c.l.b16 %v515
        %v849 = vunpack.c.h.b16 %v515
        %v850 = vunpack.c.l.b16 %v516
        %v851 = vunpack.c.h.b16 %v516
        %v852 = vunpack.c.l.b16 %v517
        %v853 = vunpack.c.h.b16 %v517
        %v854 = vunpack.c.l.b16 %v518
        %v855 = vunpack.c.h.b16 %v518
        %v856 = vunpack.c.l.b16 %v519
        %v857 = vunpack.c.h.b16 %v519
        %v858 = vunpack.c.l.b16 %v520
        %v859 = vunpack.c.h.b16 %v520
        %v860 = vunpack.c.l.b16 %v521
        %v861 = vunpack.c.h.b16 %v521
        %v862 = vunpack.c.l.b16 %v522
        %v863 = vunpack.c.h.b16 %v522
        %v864 = vunpack.c.l.b16 %v523
        %v865 = vunpack.c.h.b16 %v523
        %v866 = vunpack.c.l.b16 %v524
        %v867 = vunpack.c.h.b16 %v524
        %v868 = vunpack.c.l.b16 %v525
        %v869 = vunpack.c.h.b16 %v525
        %v870 = vunpack.c.l.b16 %v526
        %v871 = vunpack.c.h.b16 %v526
        %v872 = vunpack.c.l.b16 %v527
        %v873 = vunpack.c.h.b16 %v527
        %v874 = vunpack.c.l.b16 %v528
        %v875 = vunpack.c.h.b16 %v528
        %v876 = vunpack.c.l.b16 %v529
        %v877 = vunpack.c.h.b16 %v529
        %v878 = vunpack.c.l.b16 %v530
        %v879 = vunpack.c.h.b16 %v530
        %v880 = vunpack.c.l.b16 %v531
        %v881 = vunpack.c.h.b16 %v531
        %v882 = vunpack.c.l.b16 %v532
        %v883 = vunpack.c.h.b16 %v532
        %v884 = vunpack.c.l.b16 %v533
        %v885 = vunpack.c.h.b16 %v533
        %v886 = vunpack.c.l.b16 %v534
        %v887 = vunpack.c.h.b16 %v534
        %v888 = vunpack.c.l.b16 %v535
        %v889 = vunpack.c.h.b16 %v535
        %v890 = vunpack.c.l.b16 %v536
        %v891 = vunpack.c.h.b16 %v536
        %v892 = vunpack.c.l.b16 %v537
        %v893 = vunpack.c.h.b16 %v537
        %v894 = vunpack.c.l.b16 %v538
        %v895 = vunpack.c.h.b16 %v538
        %v896 = vunpack.c.l.b16 %v539
        %v897 = vunpack.c.h.b16 %v539
        %v898 = vunpack.c.l.b16 %v540
        %v899 = vunpack.c.h.b16 %v540
        %v900 = vunpack.c.l.b16 %v541
        %v901 = vunpack.c.h.b16 %v541
        %v902 = vunpack.c.l.b16 %v542
        %v903 = vunpack.c.h.b16 %v542
        %v904 = vunpack.c.l.b16 %v543
        %v905 = vunpack.c.h.b16 %v543
        %v906 = vunpack.c.l.b16 %v544
        %v907 = vunpack.c.h.b16 %v544
        %v908 = vunpack.c.l.b16 %v545
        %v909 = vunpack.c.h.b16 %v545
        %v910 = vunpack.c.l.b16 %v546
        %v911 = vunpack.c.h.b16 %v546
        %v912 = vunpack.c.l.b16 %v547
        %v913 = vunpack.c.h.b16 %v547
        %v914 = vunpack.c.l.b16 %v548
        %v915 = vunpack.c.h.b16 %v548
        %v916 = vunpack.c.l.b16 %v549
        %v917 = vunpack.c.h.b16 %v549
        %v918 = vunpack.c.l.b16 %v550
        %v919 = vunpack.c.h.b16 %v550
        %v920 = vunpack.c.l.b16 %v551
        %v921 = vunpack.c.h.b16 %v551
        %v922 = vunpack.c.l.b16 %v552
        %v923 = vunpack.c.h.b16 %v552
        %v924 = vunpack.c.l.b16 %v553
        %v925 = vunpack.c.h.b16 %v553
        %v926 = vunpack.c.l.b16 %v554
        %v927 = vunpack.c.h.b16 %v554
        %v928 = vunpack.c.l.b16 %v555
        %v929 = vunpack.c.h.b16 %v555
        %v930 = vunpack.c.l.b16 %v556
        %v931 = vunpack.c.h.b16 %v556
        %v932 = vunpack.c.l.b16 %v557
        %v933 = vunpack.c.h.b16 %v557
        %v934 = vunpack.c.l.b16 %v558
        %v935 = vunpack.c.h.b16 %v558
        %v936 = vunpack.c.l.b16 %v559
        %v937 = vunpack.c.h.b16 %v559
        %v938 = vunpack.c.l.b16 %v560
        %v939 = vunpack.c.h.b16 %v560
        %v940 = vunpack.c.l.b16 %v561
        %v941 = vunpack.c.h.b16 %v561
        %v942 = vunpack.c.l.b16 %v562
        %v943 = vunpack.c.h.b16 %v562
        %v944 = vunpack.c.l.b16 %v563
        %v945 = vunpack.c.h.b16 %v563
        %v946 = vunpack.c.l.b16 %v564
        %v947 = vunpack.c.h.b16 %v564
        %v948 = vunpack.c.l.b16 %v565
        %v949 = vunpack.c.h.b16 %v565
        %v950 = vunpack.c.l.b16 %v566
        %v951 = vunpack.c.h.b16 %v566
        %v952 = vunpack.c.l.b16 %v567
        %v953 = vunpack.c.h.b16 %v567
        %v954 = vunpack.c.l.b16 %v568
        %v955 = vunpack.c.h.b16 %v568
        %v956 = vunpack.c.l.b16 %v569
        %v957 = vunpack.c.h.b16 %v569
        %v958 = vunpack.c.l.b16 %v570
        %v959 = vunpack.c.h.b16 %v570
        %v960 = vunpack.c.l.b16 %v571
        %v961 = vunpack.c.h.b16 %v571
        %v962 = vunpack.c.l.b16 %v572
        %v963 = vunpack.c.h.b16 %v572
        %v964 = vunpack.c.l.b16 %v573
        %v965 = vunpack.c.h.b16 %v573
        %v966 = vunpack.c.l.b16 %v574
        %v967 = vunpack.c.h.b16 %v574
        %v968 = vunpack.c.l.b16 %v575
        %v969 = vunpack.c.h.b16 %v575
        %v970 = vunpack.c.l.b16 %v576
        %v971 = vunpack.c.h.b16 %v576
        %v972 = vunpack.c.l.b16 %v577
        %v973 = vunpack.c.h.b16 %v577
        %v974 = vunpack.c.l.b16 %v578
        %v975 = vunpack.c.h.b16 %v578
        %v976 = vunpack.c.l.b16 %v579
        %v977 = vunpack.c.h.b16 %v579
        %v978 = vunpack.c.l.b16 %v580
        %v979 = vunpack.c.h.b16 %v580
        %v980 = vunpack.c.l.b16 %v581
        %v981 = vunpack.c.h.b16 %v581
        %v982 = vunpack.c.l.b16 %v582
        %v983 = vunpack.c.h.b16 %v582
        %v984 = vunpack.c.l.b16 %v583
        %v985 = vunpack.c.h.b16 %v583
        %v986 = vunpack.c.l.b16 %v584
        %v987 = vunpack.c.h.b16 %v584
        %v988 = vunpack.c.l.b16 %v585
        %v989 = vunpack.c.h.b16 %v585
        %v990 = vunpack.c.l.b16 %v586
        %v991 = vunpack.c.h.b16 %v586
        %v992 = vunpack.c.l.b16 %v587
        %v993 = vunpack.c.h.b16 %v587
        %v994 = vunpack.c.l.b16 %v588
        %v995 = vunpack.c.h.b16 %v588
        %v996 = vunpack.c.l.b16 %v589
        %v997 = vunpack.c.h.b16 %v589
        %v998 = vunpack.c.l.b16 %v590
        %v999 = vunpack.c.h.b16 %v590
        %v1000 = vunpack.c.l.b16 %v591
        %v1001 = vunpack.c.h.b16 %v591
        %v1002 = vunpack.c.l.b16 %v592
        %v1003 = vunpack.c.h.b16 %v592
        %v1004 = vunpack.c.l.b16 %v593
        %v1005 = vunpack.c.h.b16 %v593
        %v1006 = vunpack.c.l.b16 %v594
        %v1007 = vunpack.c.h.b16 %v594
        %v1008 = vunpack.c.l.b16 %v595
        %v1009 = vunpack.c.h.b16 %v595
        %v1010 = vunpack.c.l.b16 %v596
        %v1011 = vunpack.c.h.b16 %v596
        %v1012 = vunpack.c.l.b16 %v597
        %v1013 = vunpack.c.h.b16 %v597
        %v1014 = vunpack.c.l.b16 %v598
        %v1015 = vunpack.c.h.b16 %v598
        %v1016 = vunpack.c.l.b16 %v599
        %v1017 = vunpack.c.h.b16 %v599
        %v1018 = vunpack.c.l.b16 %v600
        %v1019 = vunpack.c.h.b16 %v600
        %v1020 = vunpack.c.l.b16 %v601
        %v1021 = vunpack.c.h.b16 %v601
        %v1022 = vunpack.c.l.b16 %v602
        %v1023 = vunpack.c.h.b16 %v602
        %v1024 = vunpack.c.l.b16 %v603
        %v1025 = vunpack.c.h.b16 %v603
        %v1026 = vunpack.c.l.b16 %v604
        %v1027 = vunpack.c.h.b16 %v604
        %v1028 = vunpack.c.l.b16 %v605
        %v1029 = vunpack.c.h.b16 %v605
        %v1030 = vunpack.c.l.b16 %v606
        %v1031 = vunpack.c.h.b16 %v606
        %v1032 = vunpack.c.l.b16 %v607
        %v1033 = vunpack.c.h.b16 %v607
        %v1034 = vunpack.c.l.b16 %v608
        %v1035 = vunpack.c.h.b16 %v608
        %v1036 = vunpack.c.l.b16 %v609
        %v1037 = vunpack.c.h.b16 %v609
        %v1038 = vunpack.c.l.b16 %v610
        %v1039 = vunpack.c.h.b16 %v610
        %v1040 = vunpack.c.l.b16 %v611
        %v1041 = vunpack.c.h.b16 %v611
        %v1042 = vunpack.c.l.b16 %v612
        %v1043 = vunpack.c.h.b16 %v612
        %v1044 = vunpack.c.l.b16 %v613
        %v1045 = vunpack.c.h.b16 %v613
        %v1046 = vunpack.c.l.b16 %v614
        %v1047 = vunpack.c.h.b16 %v614
        %v1048 = vunpack.c.l.b16 %v615
        %v1049 = vunpack.c.h.b16 %v615
        %v1050 = vunpack.c.l.b16 %v616
        %v1051 = vunpack.c.h.b16 %v616
        %v1052 = vunpack.c.l.b16 %v617
        %v1053 = vunpack.c.h.b16 %v617
        %v1054 = vunpack.c.l.b16 %v618
        %v1055 = vunpack.c.h.b16 %v618
        %v1056 = vunpack.c.l.b16 %v619
        %v1057 = vunpack.c.h.b16 %v619
        %v1058 = vunpack.c.l.b16 %v620
        %v1059 = vunpack.c.h.b16 %v620
        %v1060 = vunpack.c.l.b16 %v621
        %v1061 = vunpack.c.h.b16 %v621
        %v1062 = vunpack.c.l.b16 %v622
        %v1063 = vunpack.c.h.b16 %v622
        %v1064 = vunpack.c.l.b16 %v623
        %v1065 = vunpack.c.h.b16 %v623
        %v1066 = vunpack.c.l.b16 %v624
        %v1067 = vunpack.c.h.b16 %v624
        %v1068 = vunpack.c.l.b16 %v625
        %v1069 = vunpack.c.h.b16 %v625
        %v1070 = vunpack.c.l.b16 %v626
        %v1071 = vunpack.c.h.b16 %v626
        %v1072 = vunpack.c.l.b16 %v627
        %v1073 = vunpack.c.h.b16 %v627
        %v1074 = vunpack.c.l.b16 %v628
        %v1075 = vunpack.c.h.b16 %v628
        %v1076 = vunpack.c.l.b16 %v629
        %v1077 = vunpack.c.h.b16 %v629
        %v1078 = vpack.c.b16 %v826, %v822
        %v1079 = vpack.c.b16 %v827, %v823
        %v1080 = vpack.c.b16 %v828, %v824
        %v1081 = vpack.c.b16 %v829, %v825
        %v1082 = vpack.c.b16 %v834, %v830
        %v1083 = vpack.c.b16 %v835, %v831
        %v1084 = vpack.c.b16 %v836, %v832
        %v1085 = vpack.c.b16 %v837, %v833
        %v1086 = vpack.c.b16 %v842, %v838
        %v1087 = vpack.c.b16 %v843, %v839
        %v1088 = vpack.c.b16 %v844, %v840
        %v1089 = vpack.c.b16 %v845, %v841
        %v1090 = vpack.c.b16 %v850, %v846
        %v1091 = vpack.c.b16 %v851, %v847
        %v1092 = vpack.c.b16 %v852, %v848
        %v1093 = vpack.c.b16 %v853, %v849
        %v1094 = vpack.c.b16 %v858, %v854
        %v1095 = vpack.c.b16 %v859, %v855
        %v1096 = vpack.c.b16 %v860, %v856
        %v1097 = vpack.c.b16 %v861, %v857
        %v1098 = vpack.c.b16 %v866, %v862
        %v1099 = vpack.c.b16 %v867, %v863
        %v1100 = vpack.c.b16 %v868, %v864
        %v1101 = vpack.c.b16 %v869, %v865
        %v1102 = vpack.c.b16 %v874, %v870
        %v1103 = vpack.c.b16 %v875, %v871
        %v1104 = vpack.c.b16 %v876, %v872
        %v1105 = vpack.c.b16 %v877, %v873
        %v1106 = vpack.c.b16 %v882, %v878
        %v1107 = vpack.c.b16 %v883, %v879
        %v1108 = vpack.c.b16 %v884, %v880
        %v1109 = vpack.c.b16 %v885, %v881
        %v1110 = vpack.c.b16 %v890, %v886
        %v1111 = vpack.c.b16 %v891, %v887
        %v1112 = vpack.c.b16 %v892, %v888
        %v1113 = vpack.c.b16 %v893, %v889
        %v1114 = vpack.c.b16 %v898, %v894
        %v1115 = vpack.c.b16 %v899, %v895
        %v1116 = vpack.c.b16 %v900, %v896
        %v1117 = vpack.c.b16 %v901, %v897
        %v1118 = vpack.c.b16 %v906, %v902
        %v1119 = vpack.c.b16 %v907, %v903
        %v1120 = vpack.c.b16 %v908, %v904
        %v1121 = vpack.c.b16 %v909, %v905
        %v1122 = vpack.c.b16 %v914, %v910
        %v1123 = vpack.c.b16 %v915, %v911
        %v1124 = vpack.c.b16 %v916, %v912
        %v1125 = vpack.c.b16 %v917, %v913
        %v1126 = vpack.c.b16 %v922, %v918
        %v1127 = vpack.c.b16 %v923, %v919
        %v1128 = vpack.c.b16 %v924, %v920
        %v1129 = vpack.c.b16 %v925, %v921
        %v1130 = vpack.c.b16 %v930, %v926
        %v1131 = vpack.c.b16 %v931, %v927
        %v1132 = vpack.c.b16 %v932, %v928
        %v1133 = vpack.c.b16 %v933, %v929
        %v1134 = vpack.c.b16 %v938, %v934
        %v1135 = vpack.c.b16 %v939, %v935
        %v1136 = vpack.c.b16 %v940, %v936
        %v1137 = vpack.c.b16 %v941, %v937
        %v1138 = vpack.c.b16 %v946, %v942
        %v1139 = vpack.c.b16 %v947, %v943
        %v1140 = vpack.c.b16 %v948, %v944
        %v1141 = vpack.c.b16 %v949, %v945
        %v1142 = vpack.c.b16 %v954, %v950
        %v1143 = vpack.c.b16 %v955, %v951
        %v1144 = vpack.c.b16 %v956, %v952
        %v1145 = vpack.c.b16 %v957, %v953
        %v1146 = vpack.c.b16 %v962, %v958
        %v1147 = vpack.c.b16 %v963, %v959
        %v1148 = vpack.c.b16 %v964, %v960
        %v1149 = vpack.c.b16 %v965, %v961
        %v1150 = vpack.c.b16 %v970, %v966
        %v1151 = vpack.c.b16 %v971, %v967
        %v1152 = vpack.c.b16 %v972, %v968
        %v1153 = vpack.c.b16 %v973, %v969
        %v1154 = vpack.c.b16 %v978, %v974
        %v1155 = vpack.c.b16 %v979, %v975
        %v1156 = vpack.c.b16 %v980, %v976
        %v1157 = vpack.c.b16 %v981, %v977
        %v1158 = vpack.c.b16 %v986, %v982
        %v1159 = vpack.c.b16 %v987, %v983
        %v1160 = vpack.c.b16 %v988, %v984
        %v1161 = vpack.c.b16 %v989, %v985
        %v1162 = vpack.c.b16 %v994, %v990
        %v1163 = vpack.c.b16 %v995, %v991
        %v1164 = vpack.c.b16 %v996, %v992
        %v1165 = vpack.c.b16 %v997, %v993
        %v1166 = vpack.c.b16 %v1002, %v998
        %v1167 = vpack.c.b16 %v1003, %v999
        %v1168 = vpack.c.b16 %v1004, %v1000
        %v1169 = vpack.c.b16 %v1005, %v1001
        %v1170 = vpack.c.b16 %v1010, %v1006
        %v1171 = vpack.c.b16 %v1011, %v1007
        %v1172 = vpack.c.b16 %v1012, %v1008
        %v1173 = vpack.c.b16 %v1013, %v1009
        %v1174 = vpack.c.b16 %v1018, %v1014
        %v1175 = vpack.c.b16 %v1019, %v1015
        %v1176 = vpack.c.b16 %v1020, %v1016
        %v1177 = vpack.c.b16 %v1021, %v1017
        %v1178 = vpack.c.b16 %v1026, %v1022
        %v1179 = vpack.c.b16 %v1027, %v1023
        %v1180 = vpack.c.b16 %v1028, %v1024
        %v1181 = vpack.c.b16 %v1029, %v1025
        %v1182 = vpack.c.b16 %v1034, %v1030
        %v1183 = vpack.c.b16 %v1035, %v1031
        %v1184 = vpack.c.b16 %v1036, %v1032
        %v1185 = vpack.c.b16 %v1037, %v1033
        %v1186 = vpack.c.b16 %v1042, %v1038
        %v1187 = vpack.c.b16 %v1043, %v1039
        %v1188 = vpack.c.b16 %v1044, %v1040
        %v1189 = vpack.c.b16 %v1045, %v1041
        %v1190 = vpack.c.b16 %v1050, %v1046
        %v1191 = vpack.c.b16 %v1051, %v1047
        %v1192 = vpack.c.b16 %v1052, %v1048
        %v1193 = vpack.c.b16 %v1053, %v1049
        %v1194 = vpack.c.b16 %v1058, %v1054
        %v1195 = vpack.c.b16 %v1059, %v1055
        %v1196 = vpack.c.b16 %v1060, %v1056
        %v1197 = vpack.c.b16 %v1061, %v1057
        %v1198 = vpack.c.b16 %v1066, %v1062
        %v1199 = vpack.c.b16 %v1067, %v1063
        %v1200 = vpack.c.b16 %v1068, %v1064
        %v1201 = vpack.c.b16 %v1069, %v1065
        %v1202 = vpack.c.b16 %v1074, %v1070
        %v1203 = vpack.c.b16 %v1075, %v1071
        %v1204 = vpack.c.b16 %v1076, %v1072
        %v1205 = vpack.c.b16 %v1077, %v1073
        %v1398 = vunpack.c.l.b16 %v630
        %v1399 = vunpack.c.l.b16 %v631
        %v1400 = vunpack.c.l.b16 %v632
        %v1401 = vunpack.c.l.b16 %v633
        %v1402 = vunpack.c.l.b16 %v634
        %v1403 = vunpack.c.l.b16 %v635
        %v1404 = vunpack.c.l.b16 %v636
        %v1405 = vunpack.c.l.b16 %v637
        %v1406 = vunpack.c.l.b16 %v638
        %v1407 = vunpack.c.l.b16 %v639
        %v1408 = vunpack.c.l.b16 %v640
        %v1409 = vunpack.c.l.b16 %v641
        %v1410 = vunpack.c.l.b16 %v642
        %v1411 = vunpack.c.l.b16 %v643
        %v1412 = vunpack.c.l.b16 %v644
        %v1413 = vunpack.c.l.b16 %v645
        %v1414 = vunpack.c.l.b16 %v646
        %v1415 = vunpack.c.l.b16 %v647
        %v1416 = vunpack.c.l.b16 %v648
        %v1417 = vunpack.c.l.b16 %v649
        %v1418 = vunpack.c.l.b16 %v650
        %v1419 = vunpack.c.l.b16 %v651
        %v1420 = vunpack.c.l.b16 %v652
        %v1421 = vunpack.c.l.b16 %v653
        %v1422 = vunpack.c.l.b16 %v654
        %v1423 = vunpack.c.l.b16 %v655
        %v1424 = vunpack.c.l.b16 %v656
        %v1425 = vunpack.c.l.b16 %v657
        %v1426 = vunpack.c.l.b16 %v658
        %v1427 = vunpack.c.l.b16 %v659
        %v1428 = vunpack.c.l.b16 %v660
        %v1429 = vunpack.c.l.b16 %v661
        %v1430 = vunpack.c.l.b16 %v662
        %v1431 = vunpack.c.l.b16 %v663
        %v1432 = vunpack.c.l.b16 %v664
        %v1433 = vunpack.c.l.b16 %v665
        %v1434 = vunpack.c.l.b16 %v666
        %v1435 = vunpack.c.l.b16 %v667
        %v1436 = vunpack.c.l.b16 %v668
        %v1437 = vunpack.c.l.b16 %v669
        %v1438 = vunpack.c.l.b16 %v670
        %v1439 = vunpack.c.l.b16 %v671
        %v1440 = vunpack.c.l.b16 %v672
        %v1441 = vunpack.c.l.b16 %v673
        %v1442 = vunpack.c.l.b16 %v674
        %v1443 = vunpack.c.l.b16 %v675
        %v1444 = vunpack.c.l.b16 %v676
        %v1445 = vunpack.c.l.b16 %v677
        %v1446 = vunpack.c.l.b16 %v678
        %v1447 = vunpack.c.l.b16 %v679
        %v1448 = vunpack.c.l.b16 %v680
        %v1449 = vunpack.c.l.b16 %v681
        %v1450 = vunpack.c.l.b16 %v682
        %v1451 = vunpack.c.l.b16 %v683
        %v1452 = vunpack.c.l.b16 %v684
        %v1453 = vunpack.c.l.b16 %v685
        %v1454 = vunpack.c.l.b16 %v686
        %v1455 = vunpack.c.l.b16 %v687
        %v1456 = vunpack.c.l.b16 %v688
        %v1457 = vunpack.c.l.b16 %v689
        %v1458 = vunpack.c.l.b16 %v690
        %v1459 = vunpack.c.l.b16 %v691
        %v1460 = vunpack.c.l.b16 %v692
        %v1461 = vunpack.c.l.b16 %v693
        %v1462 = vpack.c.b16 %v1399, %v1398
        %v1463 = vpack.c.b16 %v1401, %v1400
        %v1464 = vpack.c.b16 %v1403, %v1402
        %v1465 = vpack.c.b16 %v1405, %v1404
        %v1466 = vpack.c.b16 %v1407, %v1406
        %v1467 = vpack.c.b16 %v1409, %v1408
        %v1468 = vpack.c.b16 %v1411, %v1410
        %v1469 = vpack.c.b16 %v1413, %v1412
        %v1470 = vpack.c.b16 %v1415, %v1414
        %v1471 = vpack.c.b16 %v1417, %v1416
        %v1472 = vpack.c.b16 %v1419, %v1418
        %v1473 = vpack.c.b16 %v1421, %v1420
        %v1474 = vpack.c.b16 %v1423, %v1422
        %v1475 = vpack.c.b16 %v1425, %v1424
        %v1476 = vpack.c.b16 %v1427, %v1426
        %v1477 = vpack.c.b16 %v1429, %v1428
        %v1478 = vpack.c.b16 %v1431, %v1430
        %v1479 = vpack.c.b16 %v1433, %v1432
        %v1480 = vpack.c.b16 %v1435, %v1434
        %v1481 = vpack.c.b16 %v1437, %v1436
        %v1482 = vpack.c.b16 %v1439, %v1438
        %v1483 = vpack.c.b16 %v1441, %v1440
        %v1484 = vpack.c.b16 %v1443, %v1442
        %v1485 = vpack.c.b16 %v1445, %v1444
        %v1486 = vpack.c.b16 %v1447, %v1446
        %v1487 = vpack.c.b16 %v1449, %v1448
        %v1488 = vpack.c.b16 %v1451, %v1450
        %v1489 = vpack.c.b16 %v1453, %v1452
        %v1490 = vpack.c.b16 %v1455, %v1454
        %v1491 = vpack.c.b16 %v1457, %v1456
        %v1492 = vpack.c.b16 %v1459, %v1458
        %v1493 = vpack.c.b16 %v1461, %v1460
        %1526 = vmatprep.subr.bf16.mxu0 0
        %1527 = vmatpush1.bf16.msra.mxu0 %v1462
        %1528 = vmatprep.subr.bf16.mxu0 0
        %1529 = vmatpush1.bf16.msra.mxu0 %v1463
        %1530 = vmatprep.subr.bf16.mxu0 0
        %1531 = vmatpush1.bf16.msra.mxu0 %v1464
        %1532 = vmatprep.subr.bf16.mxu0 0
        %1533 = vmatpush1.bf16.msra.mxu0 %v1465
        %1534 = vmatprep.subr.bf16.mxu0 0
        %1535 = vmatpush1.bf16.msra.mxu0 %v1466
        %1536 = vmatprep.subr.bf16.mxu0 0
        %1537 = vmatpush1.bf16.msra.mxu0 %v1467
        %1538 = vmatprep.subr.bf16.mxu0 0
        %1539 = vmatpush1.bf16.msra.mxu0 %v1468
        %1540 = vmatprep.subr.bf16.mxu0 0
        %1541 = vmatpush1.bf16.msra.mxu0 %v1469
        %1542 = vmatprep.subr.bf16.mxu0 0
        %1543 = vmatpush1.bf16.msra.mxu0 %v1470
        %1544 = vmatprep.subr.bf16.mxu0 0
        %1545 = vmatpush1.bf16.msra.mxu0 %v1471
        %1546 = vmatprep.subr.bf16.mxu0 0
        %1547 = vmatpush1.bf16.msra.mxu0 %v1472
        %1548 = vmatprep.subr.bf16.mxu0 0
        %1549 = vmatpush1.bf16.msra.mxu0 %v1473
        %1550 = vmatprep.subr.bf16.mxu0 0
        %1551 = vmatpush1.bf16.msra.mxu0 %v1474
        %1552 = vmatprep.subr.bf16.mxu0 0
        %1553 = vmatpush1.bf16.msra.mxu0 %v1475
        %1554 = vmatprep.subr.bf16.mxu0 0
        %1555 = vmatpush1.bf16.msra.mxu0 %v1476
        %1556 = vmatprep.subr.bf16.mxu0 0
        %1557 = vmatpush1.bf16.msra.mxu0 %v1477
        %1558 = vmatprep.mubr.bf16.mxu0 %v1079
        %1559 = vmatmul.mubr.bf16.gmra.mrb[0].mxu0 %v1078
        %v1560 = vpop.f32.mrb[0].mxu0
        %v1561 = vadd.f32 0.0, %v1560
        %v1562 = vpop.f32.mrb[0].mxu0
        %v1563 = vpop.f32.mrb[0].mxu0
        %v1564 = vadd.f32 0.0, %v1563
        %v1565 = vpop.f32.mrb[0].mxu0
        %1566 = vmatprep.mubr.bf16.mxu0 %v1083
        %1567 = vmatmul.mubr.bf16.gmra.mrb[0].mxu0 %v1082
        %v1568 = vpop.f32.mrb[0].mxu0
        %v1569 = vadd.f32 0.0, %v1568
        %v1570 = vpop.f32.mrb[0].mxu0
        %v1571 = vpop.f32.mrb[0].mxu0
        %v1572 = vadd.f32 0.0, %v1571
        %v1573 = vpop.f32.mrb[0].mxu0
        %1574 = vmatprep.mubr.bf16.mxu0 %v1087
        %1575 = vmatmul.mubr.bf16.gmra.mrb[0].mxu0 %v1086
        %v1576 = vpop.f32.mrb[0].mxu0
        %v1577 = vadd.f32 0.0, %v1576
        %v1578 = vpop.f32.mrb[0].mxu0
        %v1579 = vpop.f32.mrb[0].mxu0
        %v1580 = vadd.f32 0.0, %v1579
        %v1581 = vpop.f32.mrb[0].mxu0
        %1582 = vmatprep.mubr.bf16.mxu0 %v1091
        %1583 = vmatmul.mubr.bf16.gmra.mrb[0].mxu0 %v1090
        %v1584 = vpop.f32.mrb[0].mxu0
        %v1585 = vadd.f32 0.0, %v1584
        %v1586 = vpop.f32.mrb[0].mxu0
        %v1587 = vpop.f32.mrb[0].mxu0
        %v1588 = vadd.f32 0.0, %v1587
        %v1589 = vpop.f32.mrb[0].mxu0
        %1590 = vmatprep.mubr.bf16.mxu0 %v1095
        %1591 = vmatmul.mubr.bf16.gmra.mrb[0].mxu0 %v1094
        %v1592 = vpop.f32.mrb[0].mxu0
        %v1593 = vadd.f32 0.0, %v1592
        %v1594 = vpop.f32.mrb[0].mxu0
        %v1595 = vpop.f32.mrb[0].mxu0
        %v1596 = vadd.f32 0.0, %v1595
        %v1597 = vpop.f32.mrb[0].mxu0
        %1598 = vmatprep.mubr.bf16.mxu0 %v1099
        %1599 = vmatmul.mubr.bf16.gmra.mrb[0].mxu0 %v1098
        %v1600 = vpop.f32.mrb[0].mxu0
        %v1601 = vadd.f32 0.0, %v1600
        %v1602 = vpop.f32.mrb[0].mxu0
        %v1603 = vpop.f32.mrb[0].mxu0
        %v1604 = vadd.f32 0.0, %v1603
        %v1605 = vpop.f32.mrb[0].mxu0
        %1606 = vmatprep.mubr.bf16.mxu0 %v1103
        %1607 = vmatmul.mubr.bf16.gmra.mrb[0].mxu0 %v1102
        %v1608 = vpop.f32.mrb[0].mxu0
        %v1609 = vadd.f32 0.0, %v1608
        %v1610 = vpop.f32.mrb[0].mxu0
        %v1611 = vpop.f32.mrb[0].mxu0
        %v1612 = vadd.f32 0.0, %v1611
        %v1613 = vpop.f32.mrb[0].mxu0
        %1614 = vmatprep.mubr.bf16.mxu0 %v1107
        %1615 = vmatmul.mubr.bf16.gmra.mrb[0].mxu0 %v1106
        %v1616 = vpop.f32.mrb[0].mxu0
        %v1617 = vadd.f32 0.0, %v1616
        %v1618 = vpop.f32.mrb[0].mxu0
        %v1619 = vpop.f32.mrb[0].mxu0
        %v1620 = vadd.f32 0.0, %v1619
        %v1621 = vpop.f32.mrb[0].mxu0
        %1622 = vmatprep.mubr.bf16.mxu0 %v1111
        %1623 = vmatmul.mubr.bf16.gmra.mrb[0].mxu0 %v1110
        %v1624 = vpop.f32.mrb[0].mxu0
        %v1625 = vadd.f32 0.0, %v1624
        %v1626 = vpop.f32.mrb[0].mxu0
        %v1627 = vpop.f32.mrb[0].mxu0
        %v1628 = vadd.f32 0.0, %v1627
        %v1629 = vpop.f32.mrb[0].mxu0
        %1630 = vmatprep.mubr.bf16.mxu0 %v1115
        %1631 = vmatmul.mubr.bf16.gmra.mrb[0].mxu0 %v1114
        %v1632 = vpop.f32.mrb[0].mxu0
        %v1633 = vadd.f32 0.0, %v1632
        %v1634 = vpop.f32.mrb[0].mxu0
        %v1635 = vpop.f32.mrb[0].mxu0
        %v1636 = vadd.f32 0.0, %v1635
        %v1637 = vpop.f32.mrb[0].mxu0
        %1638 = vmatprep.mubr.bf16.mxu0 %v1119
        %1639 = vmatmul.mubr.bf16.gmra.mrb[0].mxu0 %v1118
        %v1640 = vpop.f32.mrb[0].mxu0
        %v1641 = vadd.f32 0.0, %v1640
        %v1642 = vpop.f32.mrb[0].mxu0
        %v1643 = vpop.f32.mrb[0].mxu0
        %v1644 = vadd.f32 0.0, %v1643
        %v1645 = vpop.f32.mrb[0].mxu0
        %1646 = vmatprep.mubr.bf16.mxu0 %v1123
        %1647 = vmatmul.mubr.bf16.gmra.mrb[0].mxu0 %v1122
        %v1648 = vpop.f32.mrb[0].mxu0
        %v1649 = vadd.f32 0.0, %v1648
        %v1650 = vpop.f32.mrb[0].mxu0
        %v1651 = vpop.f32.mrb[0].mxu0
        %v1652 = vadd.f32 0.0, %v1651
        %v1653 = vpop.f32.mrb[0].mxu0
        %1654 = vmatprep.mubr.bf16.mxu0 %v1127
        %1655 = vmatmul.mubr.bf16.gmra.mrb[0].mxu0 %v1126
        %v1656 = vpop.f32.mrb[0].mxu0
        %v1657 = vadd.f32 0.0, %v1656
        %v1658 = vpop.f32.mrb[0].mxu0
        %v1659 = vpop.f32.mrb[0].mxu0
        %v1660 = vadd.f32 0.0, %v1659
        %v1661 = vpop.f32.mrb[0].mxu0
        %1662 = vmatprep.mubr.bf16.mxu0 %v1131
        %1663 = vmatmul.mubr.bf16.gmra.mrb[0].mxu0 %v1130
        %v1664 = vpop.f32.mrb[0].mxu0
        %v1665 = vadd.f32 0.0, %v1664
        %v1666 = vpop.f32.mrb[0].mxu0
        %v1667 = vpop.f32.mrb[0].mxu0
        %v1668 = vadd.f32 0.0, %v1667
        %v1669 = vpop.f32.mrb[0].mxu0
        %1670 = vmatprep.mubr.bf16.mxu0 %v1135
        %1671 = vmatmul.mubr.bf16.gmra.mrb[0].mxu0 %v1134
        %v1672 = vpop.f32.mrb[0].mxu0
        %v1673 = vadd.f32 0.0, %v1672
        %v1674 = vpop.f32.mrb[0].mxu0
        %v1675 = vpop.f32.mrb[0].mxu0
        %v1676 = vadd.f32 0.0, %v1675
        %v1677 = vpop.f32.mrb[0].mxu0
        %1678 = vmatprep.mubr.bf16.mxu0 %v1139
        %1679 = vmatmul.mubr.bf16.gmra.mrb[0].mxu0 %v1138
        %v1680 = vpop.f32.mrb[0].mxu0
        %v1681 = vadd.f32 0.0, %v1680
        %v1682 = vpop.f32.mrb[0].mxu0
        %v1683 = vpop.f32.mrb[0].mxu0
        %v1684 = vadd.f32 0.0, %v1683
        %v1685 = vpop.f32.mrb[0].mxu0
        %1686 = vmatprep.mubr.bf16.mxu0 %v1143
        %1687 = vmatmul.mubr.bf16.gmra.mrb[0].mxu0 %v1142
        %v1688 = vpop.f32.mrb[0].mxu0
        %v1689 = vadd.f32 0.0, %v1688
        %v1690 = vpop.f32.mrb[0].mxu0
        %v1691 = vpop.f32.mrb[0].mxu0
        %v1692 = vadd.f32 0.0, %v1691
        %v1693 = vpop.f32.mrb[0].mxu0
        %1694 = vmatprep.mubr.bf16.mxu0 %v1147
        %1695 = vmatmul.mubr.bf16.gmra.mrb[0].mxu0 %v1146
        %v1696 = vpop.f32.mrb[0].mxu0
        %v1697 = vadd.f32 0.0, %v1696
        %v1698 = vpop.f32.mrb[0].mxu0
        %v1699 = vpop.f32.mrb[0].mxu0
        %v1700 = vadd.f32 0.0, %v1699
        %v1701 = vpop.f32.mrb[0].mxu0
        %1702 = vmatprep.mubr.bf16.mxu0 %v1151
        %1703 = vmatmul.mubr.bf16.gmra.mrb[0].mxu0 %v1150
        %v1704 = vpop.f32.mrb[0].mxu0
        %v1705 = vadd.f32 0.0, %v1704
        %v1706 = vpop.f32.mrb[0].mxu0
        %v1707 = vpop.f32.mrb[0].mxu0
        %v1708 = vadd.f32 0.0, %v1707
        %v1709 = vpop.f32.mrb[0].mxu0
        %1710 = vmatprep.mubr.bf16.mxu0 %v1155
        %1711 = vmatmul.mubr.bf16.gmra.mrb[0].mxu0 %v1154
        %v1712 = vpop.f32.mrb[0].mxu0
        %v1713 = vadd.f32 0.0, %v1712
        %v1714 = vpop.f32.mrb[0].mxu0
        %v1715 = vpop.f32.mrb[0].mxu0
        %v1716 = vadd.f32 0.0, %v1715
        %v1717 = vpop.f32.mrb[0].mxu0
        %1718 = vmatprep.mubr.bf16.mxu0 %v1159
        %1719 = vmatmul.mubr.bf16.gmra.mrb[0].mxu0 %v1158
        %v1720 = vpop.f32.mrb[0].mxu0
        %v1721 = vadd.f32 0.0, %v1720
        %v1722 = vpop.f32.mrb[0].mxu0
        %v1723 = vpop.f32.mrb[0].mxu0
        %v1724 = vadd.f32 0.0, %v1723
        %v1725 = vpop.f32.mrb[0].mxu0
        %1726 = vmatprep.mubr.bf16.mxu0 %v1163
        %1727 = vmatmul.mubr.bf16.gmra.mrb[0].mxu0 %v1162
        %v1728 = vpop.f32.mrb[0].mxu0
        %v1729 = vadd.f32 0.0, %v1728
        %v1730 = vpop.f32.mrb[0].mxu0
        %v1731 = vpop.f32.mrb[0].mxu0
        %v1732 = vadd.f32 0.0, %v1731
        %v1733 = vpop.f32.mrb[0].mxu0
        %1734 = vmatprep.mubr.bf16.mxu0 %v1167
        %1735 = vmatmul.mubr.bf16.gmra.mrb[0].mxu0 %v1166
        %v1736 = vpop.f32.mrb[0].mxu0
        %v1737 = vadd.f32 0.0, %v1736
        %v1738 = vpop.f32.mrb[0].mxu0
        %v1739 = vpop.f32.mrb[0].mxu0
        %v1740 = vadd.f32 0.0, %v1739
        %v1741 = vpop.f32.mrb[0].mxu0
        %1742 = vmatprep.mubr.bf16.mxu0 %v1171
        %1743 = vmatmul.mubr.bf16.gmra.mrb[0].mxu0 %v1170
        %v1744 = vpop.f32.mrb[0].mxu0
        %v1745 = vadd.f32 0.0, %v1744
        %v1746 = vpop.f32.mrb[0].mxu0
        %v1747 = vpop.f32.mrb[0].mxu0
        %v1748 = vadd.f32 0.0, %v1747
        %v1749 = vpop.f32.mrb[0].mxu0
        %1750 = vmatprep.mubr.bf16.mxu0 %v1175
        %1751 = vmatmul.mubr.bf16.gmra.mrb[0].mxu0 %v1174
        %v1752 = vpop.f32.mrb[0].mxu0
        %v1753 = vadd.f32 0.0, %v1752
        %v1754 = vpop.f32.mrb[0].mxu0
        %v1755 = vpop.f32.mrb[0].mxu0
        %v1756 = vadd.f32 0.0, %v1755
        %v1757 = vpop.f32.mrb[0].mxu0
        %1758 = vmatprep.mubr.bf16.mxu0 %v1179
        %1759 = vmatmul.mubr.bf16.gmra.mrb[0].mxu0 %v1178
        %v1760 = vpop.f32.mrb[0].mxu0
        %v1761 = vadd.f32 0.0, %v1760
        %v1762 = vpop.f32.mrb[0].mxu0
        %v1763 = vpop.f32.mrb[0].mxu0
        %v1764 = vadd.f32 0.0, %v1763
        %v1765 = vpop.f32.mrb[0].mxu0
        %1766 = vmatprep.mubr.bf16.mxu0 %v1183
        %1767 = vmatmul.mubr.bf16.gmra.mrb[0].mxu0 %v1182
        %v1768 = vpop.f32.mrb[0].mxu0
        %v1769 = vadd.f32 0.0, %v1768
        %v1770 = vpop.f32.mrb[0].mxu0
        %v1771 = vpop.f32.mrb[0].mxu0
        %v1772 = vadd.f32 0.0, %v1771
        %v1773 = vpop.f32.mrb[0].mxu0
        %1774 = vmatprep.mubr.bf16.mxu0 %v1187
        %1775 = vmatmul.mubr.bf16.gmra.mrb[0].mxu0 %v1186
        %v1776 = vpop.f32.mrb[0].mxu0
        %v1777 = vadd.f32 0.0, %v1776
        %v1778 = vpop.f32.mrb[0].mxu0
        %v1779 = vpop.f32.mrb[0].mxu0
        %v1780 = vadd.f32 0.0, %v1779
        %v1781 = vpop.f32.mrb[0].mxu0
        %1782 = vmatprep.mubr.bf16.mxu0 %v1191
        %1783 = vmatmul.mubr.bf16.gmra.mrb[0].mxu0 %v1190
        %v1784 = vpop.f32.mrb[0].mxu0
        %v1785 = vadd.f32 0.0, %v1784
        %v1786 = vpop.f32.mrb[0].mxu0
        %v1787 = vpop.f32.mrb[0].mxu0
        %v1788 = vadd.f32 0.0, %v1787
        %v1789 = vpop.f32.mrb[0].mxu0
        %1790 = vmatprep.mubr.bf16.mxu0 %v1195
        %1791 = vmatmul.mubr.bf16.gmra.mrb[0].mxu0 %v1194
        %v1792 = vpop.f32.mrb[0].mxu0
        %v1793 = vadd.f32 0.0, %v1792
        %v1794 = vpop.f32.mrb[0].mxu0
        %v1795 = vpop.f32.mrb[0].mxu0
        %v1796 = vadd.f32 0.0, %v1795
        %v1797 = vpop.f32.mrb[0].mxu0
        %1798 = vmatprep.mubr.bf16.mxu0 %v1199
        %1799 = vmatmul.mubr.bf16.gmra.mrb[0].mxu0 %v1198
        %v1800 = vpop.f32.mrb[0].mxu0
        %v1801 = vadd.f32 0.0, %v1800
        %v1802 = vpop.f32.mrb[0].mxu0
        %v1803 = vpop.f32.mrb[0].mxu0
        %v1804 = vadd.f32 0.0, %v1803
        %v1805 = vpop.f32.mrb[0].mxu0
        %1806 = vmatprep.mubr.bf16.mxu0 %v1203
        %1807 = vmatmul.mubr.bf16.gmra.mrb[0].mxu0 %v1202
        %v1808 = vpop.f32.mrb[0].mxu0
        %v1809 = vadd.f32 0.0, %v1808
        %v1810 = vpop.f32.mrb[0].mxu0
        %v1811 = vpop.f32.mrb[0].mxu0
        %v1812 = vadd.f32 0.0, %v1811
        %v1813 = vpop.f32.mrb[0].mxu0
        %1814 = vdwg.mxu0
        %1815 = vmatprep.subr.bf16.mxu0 0
        %1816 = vmatpush1.bf16.msra.mxu0 %v1478
        %1817 = vmatprep.subr.bf16.mxu0 0
        %1818 = vmatpush1.bf16.msra.mxu0 %v1479
        %1819 = vmatprep.subr.bf16.mxu0 0
        %1820 = vmatpush1.bf16.msra.mxu0 %v1480
        %1821 = vmatprep.subr.bf16.mxu0 0
        %1822 = vmatpush1.bf16.msra.mxu0 %v1481
        %1823 = vmatprep.subr.bf16.mxu0 0
        %1824 = vmatpush1.bf16.msra.mxu0 %v1482
        %1825 = vmatprep.subr.bf16.mxu0 0
        %1826 = vmatpush1.bf16.msra.mxu0 %v1483
        %1827 = vmatprep.subr.bf16.mxu0 0
        %1828 = vmatpush1.bf16.msra.mxu0 %v1484
        %1829 = vmatprep.subr.bf16.mxu0 0
        %1830 = vmatpush1.bf16.msra.mxu0 %v1485
        %1831 = vmatprep.subr.bf16.mxu0 0
        %1832 = vmatpush1.bf16.msra.mxu0 %v1486
        %1833 = vmatprep.subr.bf16.mxu0 0
        %1834 = vmatpush1.bf16.msra.mxu0 %v1487
        %1835 = vmatprep.subr.bf16.mxu0 0
        %1836 = vmatpush1.bf16.msra.mxu0 %v1488
        %1837 = vmatprep.subr.bf16.mxu0 0
        %1838 = vmatpush1.bf16.msra.mxu0 %v1489
        %1839 = vmatprep.subr.bf16.mxu0 0
        %1840 = vmatpush1.bf16.msra.mxu0 %v1490
        %1841 = vmatprep.subr.bf16.mxu0 0
        %1842 = vmatpush1.bf16.msra.mxu0 %v1491
        %1843 = vmatprep.subr.bf16.mxu0 0
        %1844 = vmatpush1.bf16.msra.mxu0 %v1492
        %1845 = vmatprep.subr.bf16.mxu0 0
        %1846 = vmatpush1.bf16.msra.mxu0 %v1493
        %1847 = vmatprep.mubr.bf16.mxu0 %v1081
        %1848 = vmatmul.mubr.bf16.gmra.mrb[0].mxu0 %v1080
        %v1849 = vpop.f32.mrb[0].mxu0
        %v1850 = vadd.f32 %v1561, %v1849
        %v1851 = vpop.f32.mrb[0].mxu0
        %v1852 = vpop.f32.mrb[0].mxu0
        %v1853 = vadd.f32 %v1564, %v1852
        %v1854 = vpop.f32.mrb[0].mxu0
        %1855 = vmatprep.mubr.bf16.mxu0 %v1085
        %1856 = vmatmul.mubr.bf16.gmra.mrb[0].mxu0 %v1084
        %v1857 = vpop.f32.mrb[0].mxu0
        %v1858 = vadd.f32 %v1569, %v1857
        %v1859 = vpop.f32.mrb[0].mxu0
        %v1860 = vpop.f32.mrb[0].mxu0
        %v1861 = vadd.f32 %v1572, %v1860
        %v1862 = vpop.f32.mrb[0].mxu0
        %1863 = vmatprep.mubr.bf16.mxu0 %v1089
        %1864 = vmatmul.mubr.bf16.gmra.mrb[0].mxu0 %v1088
        %v1865 = vpop.f32.mrb[0].mxu0
        %v1866 = vadd.f32 %v1577, %v1865
        %v1867 = vpop.f32.mrb[0].mxu0
        %v1868 = vpop.f32.mrb[0].mxu0
        %v1869 = vadd.f32 %v1580, %v1868
        %v1870 = vpop.f32.mrb[0].mxu0
        %1871 = vmatprep.mubr.bf16.mxu0 %v1093
        %1872 = vmatmul.mubr.bf16.gmra.mrb[0].mxu0 %v1092
        %v1873 = vpop.f32.mrb[0].mxu0
        %v1874 = vadd.f32 %v1585, %v1873
        %v1875 = vpop.f32.mrb[0].mxu0
        %v1876 = vpop.f32.mrb[0].mxu0
        %v1877 = vadd.f32 %v1588, %v1876
        %v1878 = vpop.f32.mrb[0].mxu0
        %1879 = vmatprep.mubr.bf16.mxu0 %v1097
        %1880 = vmatmul.mubr.bf16.gmra.mrb[0].mxu0 %v1096
        %v1881 = vpop.f32.mrb[0].mxu0
        %v1882 = vadd.f32 %v1593, %v1881
        %v1883 = vpop.f32.mrb[0].mxu0
        %v1884 = vpop.f32.mrb[0].mxu0
        %v1885 = vadd.f32 %v1596, %v1884
        %v1886 = vpop.f32.mrb[0].mxu0
        %1887 = vmatprep.mubr.bf16.mxu0 %v1101
        %1888 = vmatmul.mubr.bf16.gmra.mrb[0].mxu0 %v1100
        %v1889 = vpop.f32.mrb[0].mxu0
        %v1890 = vadd.f32 %v1601, %v1889
        %v1891 = vpop.f32.mrb[0].mxu0
        %v1892 = vpop.f32.mrb[0].mxu0
        %v1893 = vadd.f32 %v1604, %v1892
        %v1894 = vpop.f32.mrb[0].mxu0
        %1895 = vmatprep.mubr.bf16.mxu0 %v1105
        %1896 = vmatmul.mubr.bf16.gmra.mrb[0].mxu0 %v1104
        %v1897 = vpop.f32.mrb[0].mxu0
        %v1898 = vadd.f32 %v1609, %v1897
        %v1899 = vpop.f32.mrb[0].mxu0
        %v1900 = vpop.f32.mrb[0].mxu0
        %v1901 = vadd.f32 %v1612, %v1900
        %v1902 = vpop.f32.mrb[0].mxu0
        %1903 = vmatprep.mubr.bf16.mxu0 %v1109
        %1904 = vmatmul.mubr.bf16.gmra.mrb[0].mxu0 %v1108
        %v1905 = vpop.f32.mrb[0].mxu0
        %v1906 = vadd.f32 %v1617, %v1905
        %v1907 = vpop.f32.mrb[0].mxu0
        %v1908 = vpop.f32.mrb[0].mxu0
        %v1909 = vadd.f32 %v1620, %v1908
        %v1910 = vpop.f32.mrb[0].mxu0
        %1911 = vmatprep.mubr.bf16.mxu0 %v1113
        %1912 = vmatmul.mubr.bf16.gmra.mrb[0].mxu0 %v1112
        %v1913 = vpop.f32.mrb[0].mxu0
        %v1914 = vadd.f32 %v1625, %v1913
        %v1915 = vpop.f32.mrb[0].mxu0
        %v1916 = vpop.f32.mrb[0].mxu0
        %v1917 = vadd.f32 %v1628, %v1916
        %v1918 = vpop.f32.mrb[0].mxu0
        %1919 = vmatprep.mubr.bf16.mxu0 %v1117
        %1920 = vmatmul.mubr.bf16.gmra.mrb[0].mxu0 %v1116
        %v1921 = vpop.f32.mrb[0].mxu0
        %v1922 = vadd.f32 %v1633, %v1921
        %v1923 = vpop.f32.mrb[0].mxu0
        %v1924 = vpop.f32.mrb[0].mxu0
        %v1925 = vadd.f32 %v1636, %v1924
        %v1926 = vpop.f32.mrb[0].mxu0
        %1927 = vmatprep.mubr.bf16.mxu0 %v1121
        %1928 = vmatmul.mubr.bf16.gmra.mrb[0].mxu0 %v1120
        %v1929 = vpop.f32.mrb[0].mxu0
        %v1930 = vadd.f32 %v1641, %v1929
        %v1931 = vpop.f32.mrb[0].mxu0
        %v1932 = vpop.f32.mrb[0].mxu0
        %v1933 = vadd.f32 %v1644, %v1932
        %v1934 = vpop.f32.mrb[0].mxu0
        %1935 = vmatprep.mubr.bf16.mxu0 %v1125
        %1936 = vmatmul.mubr.bf16.gmra.mrb[0].mxu0 %v1124
        %v1937 = vpop.f32.mrb[0].mxu0
        %v1938 = vadd.f32 %v1649, %v1937
        %v1939 = vpop.f32.mrb[0].mxu0
        %v1940 = vpop.f32.mrb[0].mxu0
        %v1941 = vadd.f32 %v1652, %v1940
        %v1942 = vpop.f32.mrb[0].mxu0
        %1943 = vmatprep.mubr.bf16.mxu0 %v1129
        %1944 = vmatmul.mubr.bf16.gmra.mrb[0].mxu0 %v1128
        %v1945 = vpop.f32.mrb[0].mxu0
        %v1946 = vadd.f32 %v1657, %v1945
        %v1947 = vpop.f32.mrb[0].mxu0
        %v1948 = vpop.f32.mrb[0].mxu0
        %v1949 = vadd.f32 %v1660, %v1948
        %v1950 = vpop.f32.mrb[0].mxu0
        %1951 = vmatprep.mubr.bf16.mxu0 %v1133
        %1952 = vmatmul.mubr.bf16.gmra.mrb[0].mxu0 %v1132
        %v1953 = vpop.f32.mrb[0].mxu0
        %v1954 = vadd.f32 %v1665, %v1953
        %v1955 = vpop.f32.mrb[0].mxu0
        %v1956 = vpop.f32.mrb[0].mxu0
        %v1957 = vadd.f32 %v1668, %v1956
        %v1958 = vpop.f32.mrb[0].mxu0
        %1959 = vmatprep.mubr.bf16.mxu0 %v1137
        %1960 = vmatmul.mubr.bf16.gmra.mrb[0].mxu0 %v1136
        %v1961 = vpop.f32.mrb[0].mxu0
        %v1962 = vadd.f32 %v1673, %v1961
        %v1963 = vpop.f32.mrb[0].mxu0
        %v1964 = vpop.f32.mrb[0].mxu0
        %v1965 = vadd.f32 %v1676, %v1964
        %v1966 = vpop.f32.mrb[0].mxu0
        %1967 = vmatprep.mubr.bf16.mxu0 %v1141
        %1968 = vmatmul.mubr.bf16.gmra.mrb[0].mxu0 %v1140
        %v1969 = vpop.f32.mrb[0].mxu0
        %v1970 = vadd.f32 %v1681, %v1969
        %v1971 = vpop.f32.mrb[0].mxu0
        %v1972 = vpop.f32.mrb[0].mxu0
        %v1973 = vadd.f32 %v1684, %v1972
        %v1974 = vpop.f32.mrb[0].mxu0
        %1975 = vmatprep.mubr.bf16.mxu0 %v1145
        %1976 = vmatmul.mubr.bf16.gmra.mrb[0].mxu0 %v1144
        %v1977 = vpop.f32.mrb[0].mxu0
        %v1978 = vadd.f32 %v1689, %v1977
        %v1979 = vpop.f32.mrb[0].mxu0
        %v1980 = vpop.f32.mrb[0].mxu0
        %v1981 = vadd.f32 %v1692, %v1980
        %v1982 = vpop.f32.mrb[0].mxu0
        %1983 = vmatprep.mubr.bf16.mxu0 %v1149
        %1984 = vmatmul.mubr.bf16.gmra.mrb[0].mxu0 %v1148
        %v1985 = vpop.f32.mrb[0].mxu0
        %v1986 = vadd.f32 %v1697, %v1985
        %v1987 = vpop.f32.mrb[0].mxu0
        %v1988 = vpop.f32.mrb[0].mxu0
        %v1989 = vadd.f32 %v1700, %v1988
        %v1990 = vpop.f32.mrb[0].mxu0
        %1991 = vmatprep.mubr.bf16.mxu0 %v1153
        %1992 = vmatmul.mubr.bf16.gmra.mrb[0].mxu0 %v1152
        %v1993 = vpop.f32.mrb[0].mxu0
        %v1994 = vadd.f32 %v1705, %v1993
        %v1995 = vpop.f32.mrb[0].mxu0
        %v1996 = vpop.f32.mrb[0].mxu0
        %v1997 = vadd.f32 %v1708, %v1996
        %v1998 = vpop.f32.mrb[0].mxu0
        %1999 = vmatprep.mubr.bf16.mxu0 %v1157
        %2000 = vmatmul.mubr.bf16.gmra.mrb[0].mxu0 %v1156
        %v2001 = vpop.f32.mrb[0].mxu0
        %v2002 = vadd.f32 %v1713, %v2001
        %v2003 = vpop.f32.mrb[0].mxu0
        %v2004 = vpop.f32.mrb[0].mxu0
        %v2005 = vadd.f32 %v1716, %v2004
        %v2006 = vpop.f32.mrb[0].mxu0
        %2007 = vmatprep.mubr.bf16.mxu0 %v1161
        %2008 = vmatmul.mubr.bf16.gmra.mrb[0].mxu0 %v1160
        %v2009 = vpop.f32.mrb[0].mxu0
        %v2010 = vadd.f32 %v1721, %v2009
        %v2011 = vpop.f32.mrb[0].mxu0
        %v2012 = vpop.f32.mrb[0].mxu0
        %v2013 = vadd.f32 %v1724, %v2012
        %v2014 = vpop.f32.mrb[0].mxu0
        %2015 = vmatprep.mubr.bf16.mxu0 %v1165
        %2016 = vmatmul.mubr.bf16.gmra.mrb[0].mxu0 %v1164
        %v2017 = vpop.f32.mrb[0].mxu0
        %v2018 = vadd.f32 %v1729, %v2017
        %v2019 = vpop.f32.mrb[0].mxu0
        %v2020 = vpop.f32.mrb[0].mxu0
        %v2021 = vadd.f32 %v1732, %v2020
        %v2022 = vpop.f32.mrb[0].mxu0
        %2023 = vmatprep.mubr.bf16.mxu0 %v1169
        %2024 = vmatmul.mubr.bf16.gmra.mrb[0].mxu0 %v1168
        %v2025 = vpop.f32.mrb[0].mxu0
        %v2026 = vadd.f32 %v1737, %v2025
        %v2027 = vpop.f32.mrb[0].mxu0
        %v2028 = vpop.f32.mrb[0].mxu0
        %v2029 = vadd.f32 %v1740, %v2028
        %v2030 = vpop.f32.mrb[0].mxu0
        %2031 = vmatprep.mubr.bf16.mxu0 %v1173
        %2032 = vmatmul.mubr.bf16.gmra.mrb[0].mxu0 %v1172
        %v2033 = vpop.f32.mrb[0].mxu0
        %v2034 = vadd.f32 %v1745, %v2033
        %v2035 = vpop.f32.mrb[0].mxu0
        %v2036 = vpop.f32.mrb[0].mxu0
        %v2037 = vadd.f32 %v1748, %v2036
        %v2038 = vpop.f32.mrb[0].mxu0
        %2039 = vmatprep.mubr.bf16.mxu0 %v1177
        %2040 = vmatmul.mubr.bf16.gmra.mrb[0].mxu0 %v1176
        %v2041 = vpop.f32.mrb[0].mxu0
        %v2042 = vadd.f32 %v1753, %v2041
        %v2043 = vpop.f32.mrb[0].mxu0
        %v2044 = vpop.f32.mrb[0].mxu0
        %v2045 = vadd.f32 %v1756, %v2044
        %v2046 = vpop.f32.mrb[0].mxu0
        %2047 = vmatprep.mubr.bf16.mxu0 %v1181
        %2048 = vmatmul.mubr.bf16.gmra.mrb[0].mxu0 %v1180
        %v2049 = vpop.f32.mrb[0].mxu0
        %v2050 = vadd.f32 %v1761, %v2049
        %v2051 = vpop.f32.mrb[0].mxu0
        %v2052 = vpop.f32.mrb[0].mxu0
        %v2053 = vadd.f32 %v1764, %v2052
        %v2054 = vpop.f32.mrb[0].mxu0
        %2055 = vmatprep.mubr.bf16.mxu0 %v1185
        %2056 = vmatmul.mubr.bf16.gmra.mrb[0].mxu0 %v1184
        %v2057 = vpop.f32.mrb[0].mxu0
        %v2058 = vadd.f32 %v1769, %v2057
        %v2059 = vpop.f32.mrb[0].mxu0
        %v2060 = vpop.f32.mrb[0].mxu0
        %v2061 = vadd.f32 %v1772, %v2060
        %v2062 = vpop.f32.mrb[0].mxu0
        %2063 = vmatprep.mubr.bf16.mxu0 %v1189
        %2064 = vmatmul.mubr.bf16.gmra.mrb[0].mxu0 %v1188
        %v2065 = vpop.f32.mrb[0].mxu0
        %v2066 = vadd.f32 %v1777, %v2065
        %v2067 = vpop.f32.mrb[0].mxu0
        %v2068 = vpop.f32.mrb[0].mxu0
        %v2069 = vadd.f32 %v1780, %v2068
        %v2070 = vpop.f32.mrb[0].mxu0
        %2071 = vmatprep.mubr.bf16.mxu0 %v1193
        %2072 = vmatmul.mubr.bf16.gmra.mrb[0].mxu0 %v1192
        %v2073 = vpop.f32.mrb[0].mxu0
        %v2074 = vadd.f32 %v1785, %v2073
        %v2075 = vpop.f32.mrb[0].mxu0
        %v2076 = vpop.f32.mrb[0].mxu0
        %v2077 = vadd.f32 %v1788, %v2076
        %v2078 = vpop.f32.mrb[0].mxu0
        %2079 = vmatprep.mubr.bf16.mxu0 %v1197
        %2080 = vmatmul.mubr.bf16.gmra.mrb[0].mxu0 %v1196
        %v2081 = vpop.f32.mrb[0].mxu0
        %v2082 = vadd.f32 %v1793, %v2081
        %v2083 = vpop.f32.mrb[0].mxu0
        %v2084 = vpop.f32.mrb[0].mxu0
        %v2085 = vadd.f32 %v1796, %v2084
        %v2086 = vpop.f32.mrb[0].mxu0
        %2087 = vmatprep.mubr.bf16.mxu0 %v1201
        %2088 = vmatmul.mubr.bf16.gmra.mrb[0].mxu0 %v1200
        %v2089 = vpop.f32.mrb[0].mxu0
        %v2090 = vadd.f32 %v1801, %v2089
        %v2091 = vpop.f32.mrb[0].mxu0
        %v2092 = vpop.f32.mrb[0].mxu0
        %v2093 = vadd.f32 %v1804, %v2092
        %v2094 = vpop.f32.mrb[0].mxu0
        %2095 = vmatprep.mubr.bf16.mxu0 %v1205
        %2096 = vmatmul.mubr.bf16.gmra.mrb[0].mxu0 %v1204
        %v2097 = vpop.f32.mrb[0].mxu0
        %v2098 = vadd.f32 %v1809, %v2097
        %v2099 = vpop.f32.mrb[0].mxu0
        %v2100 = vpop.f32.mrb[0].mxu0
        %v2101 = vadd.f32 %v1812, %v2100
        %v2102 = vpop.f32.mrb[0].mxu0
        %2103 = vdwg.mxu0
        %v2104 = vmax.f32 %v1850, 0.0
        %v2105 = vmax.f32 %v1853, 0.0
        %v2106 = vmax.f32 %v1858, 0.0
        %v2107 = vmax.f32 %v1861, 0.0
        %v2108 = vmax.f32 %v1866, 0.0
        %v2109 = vmax.f32 %v1869, 0.0
        %v2110 = vmax.f32 %v1874, 0.0
        %v2111 = vmax.f32 %v1877, 0.0
        %v2112 = vmax.f32 %v1882, 0.0
        %v2113 = vmax.f32 %v1885, 0.0
        %v2114 = vmax.f32 %v1890, 0.0
        %v2115 = vmax.f32 %v1893, 0.0
        %v2116 = vmax.f32 %v1898, 0.0
        %v2117 = vmax.f32 %v1901, 0.0
        %v2118 = vmax.f32 %v1906, 0.0
        %v2119 = vmax.f32 %v1909, 0.0
        %v2120 = vmax.f32 %v1914, 0.0
        %v2121 = vmax.f32 %v1917, 0.0
        %v2122 = vmax.f32 %v1922, 0.0
        %v2123 = vmax.f32 %v1925, 0.0
        %v2124 = vmax.f32 %v1930, 0.0
        %v2125 = vmax.f32 %v1933, 0.0
        %v2126 = vmax.f32 %v1938, 0.0
        %v2127 = vmax.f32 %v1941, 0.0
        %v2128 = vmax.f32 %v1946, 0.0
        %v2129 = vmax.f32 %v1949, 0.0
        %v2130 = vmax.f32 %v1954, 0.0
        %v2131 = vmax.f32 %v1957, 0.0
        %v2132 = vmax.f32 %v1962, 0.0
        %v2133 = vmax.f32 %v1965, 0.0
        %v2134 = vmax.f32 %v1970, 0.0
        %v2135 = vmax.f32 %v1973, 0.0
        %v2136 = vmax.f32 %v1978, 0.0
        %v2137 = vmax.f32 %v1981, 0.0
        %v2138 = vmax.f32 %v1986, 0.0
        %v2139 = vmax.f32 %v1989, 0.0
        %v2140 = vmax.f32 %v1994, 0.0
        %v2141 = vmax.f32 %v1997, 0.0
        %v2142 = vmax.f32 %v2002, 0.0
        %v2143 = vmax.f32 %v2005, 0.0
        %v2144 = vmax.f32 %v2010, 0.0
        %v2145 = vmax.f32 %v2013, 0.0
        %v2146 = vmax.f32 %v2018, 0.0
        %v2147 = vmax.f32 %v2021, 0.0
        %v2148 = vmax.f32 %v2026, 0.0
        %v2149 = vmax.f32 %v2029, 0.0
        %v2150 = vmax.f32 %v2034, 0.0
        %v2151 = vmax.f32 %v2037, 0.0
        %v2152 = vmax.f32 %v2042, 0.0
        %v2153 = vmax.f32 %v2045, 0.0
        %v2154 = vmax.f32 %v2050, 0.0
        %v2155 = vmax.f32 %v2053, 0.0
        %v2156 = vmax.f32 %v2058, 0.0
        %v2157 = vmax.f32 %v2061, 0.0
        %v2158 = vmax.f32 %v2066, 0.0
        %v2159 = vmax.f32 %v2069, 0.0
        %v2160 = vmax.f32 %v2074, 0.0
        %v2161 = vmax.f32 %v2077, 0.0
        %v2162 = vmax.f32 %v2082, 0.0
        %v2163 = vmax.f32 %v2085, 0.0
        %v2164 = vmax.f32 %v2090, 0.0
        %v2165 = vmax.f32 %v2093, 0.0
        %v2166 = vmax.f32 %v2098, 0.0
        %v2167 = vmax.f32 %v2101, 0.0
        %v2168 = vld [vmem:[#allocation2] sm:$0xff]
        %v2169 = vld [vmem:[#allocation2 + $0x8] sm:$0xff]
        %v2170 = vadd.f32 %v2104, %v2105
        %v2171 = vadd.f32 %v2170, %v2106
        %v2172 = vadd.f32 %v2171, %v2107
        %v2173 = vrot.slane %v2172, 4
        %v2174 = vadd.f32 %v2172, %v2173
        %v2175 = vrot.slane %v2174, 2
        %v2176 = vadd.f32 %v2174, %v2175
        %v2177 = vrot.slane %v2176, 1
        %v2178 = vadd.f32 %v2176, %v2177
        %v2179 = vadd.f32 %v2108, %v2109
        %v2180 = vadd.f32 %v2179, %v2110
        %v2181 = vadd.f32 %v2180, %v2111
        %v2182 = vrot.slane %v2181, 4
        %v2183 = vadd.f32 %v2181, %v2182
        %v2184 = vrot.slane %v2183, 2
        %v2185 = vadd.f32 %v2183, %v2184
        %v2186 = vrot.slane %v2185, 1
        %v2187 = vadd.f32 %v2185, %v2186
        %v2188 = vadd.f32 %v2112, %v2113
        %v2189 = vadd.f32 %v2188, %v2114
        %v2190 = vadd.f32 %v2189, %v2115
        %v2191 = vrot.slane %v2190, 4
        %v2192 = vadd.f32 %v2190, %v2191
        %v2193 = vrot.slane %v2192, 2
        %v2194 = vadd.f32 %v2192, %v2193
        %v2195 = vrot.slane %v2194, 1
        %v2196 = vadd.f32 %v2194, %v2195
        %v2197 = vadd.f32 %v2116, %v2117
        %v2198 = vadd.f32 %v2197, %v2118
        %v2199 = vadd.f32 %v2198, %v2119
        %v2200 = vrot.slane %v2199, 4
        %v2201 = vadd.f32 %v2199, %v2200
        %v2202 = vrot.slane %v2201, 2
        %v2203 = vadd.f32 %v2201, %v2202
        %v2204 = vrot.slane %v2203, 1
        %v2205 = vadd.f32 %v2203, %v2204
        %v2206 = vadd.f32 %v2120, %v2121
        %v2207 = vadd.f32 %v2206, %v2122
        %v2208 = vadd.f32 %v2207, %v2123
        %v2209 = vrot.slane %v2208, 4
        %v2210 = vadd.f32 %v2208, %v2209
        %v2211 = vrot.slane %v2210, 2
        %v2212 = vadd.f32 %v2210, %v2211
        %v2213 = vrot.slane %v2212, 1
        %v2214 = vadd.f32 %v2212, %v2213
        %v2215 = vadd.f32 %v2124, %v2125
        %v2216 = vadd.f32 %v2215, %v2126
        %v2217 = vadd.f32 %v2216, %v2127
        %v2218 = vrot.slane %v2217, 4
        %v2219 = vadd.f32 %v2217, %v2218
        %v2220 = vrot.slane %v2219, 2
        %v2221 = vadd.f32 %v2219, %v2220
        %v2222 = vrot.slane %v2221, 1
        %v2223 = vadd.f32 %v2221, %v2222
        %v2224 = vadd.f32 %v2128, %v2129
        %v2225 = vadd.f32 %v2224, %v2130
        %v2226 = vadd.f32 %v2225, %v2131
        %v2227 = vrot.slane %v2226, 4
        %v2228 = vadd.f32 %v2226, %v2227
        %v2229 = vrot.slane %v2228, 2
        %v2230 = vadd.f32 %v2228, %v2229
        %v2231 = vrot.slane %v2230, 1
        %v2232 = vadd.f32 %v2230, %v2231
        %v2233 = vadd.f32 %v2132, %v2133
        %v2234 = vadd.f32 %v2233, %v2134
        %v2235 = vadd.f32 %v2234, %v2135
        %v2236 = vrot.slane %v2235, 4
        %v2237 = vadd.f32 %v2235, %v2236
        %v2238 = vrot.slane %v2237, 2
        %v2239 = vadd.f32 %v2237, %v2238
        %v2240 = vrot.slane %v2239, 1
        %v2241 = vadd.f32 %v2239, %v2240
        %v2242 = vadd.f32 %v2136, %v2137
        %v2243 = vadd.f32 %v2242, %v2138
        %v2244 = vadd.f32 %v2243, %v2139
        %v2245 = vrot.slane %v2244, 4
        %v2246 = vadd.f32 %v2244, %v2245
        %v2247 = vrot.slane %v2246, 2
        %v2248 = vadd.f32 %v2246, %v2247
        %v2249 = vrot.slane %v2248, 1
        %v2250 = vadd.f32 %v2248, %v2249
        %v2251 = vadd.f32 %v2140, %v2141
        %v2252 = vadd.f32 %v2251, %v2142
        %v2253 = vadd.f32 %v2252, %v2143
        %v2254 = vrot.slane %v2253, 4
        %v2255 = vadd.f32 %v2253, %v2254
        %v2256 = vrot.slane %v2255, 2
        %v2257 = vadd.f32 %v2255, %v2256
        %v2258 = vrot.slane %v2257, 1
        %v2259 = vadd.f32 %v2257, %v2258
        %v2260 = vadd.f32 %v2144, %v2145
        %v2261 = vadd.f32 %v2260, %v2146
        %v2262 = vadd.f32 %v2261, %v2147
        %v2263 = vrot.slane %v2262, 4
        %v2264 = vadd.f32 %v2262, %v2263
        %v2265 = vrot.slane %v2264, 2
        %v2266 = vadd.f32 %v2264, %v2265
        %v2267 = vrot.slane %v2266, 1
        %v2268 = vadd.f32 %v2266, %v2267
        %v2269 = vadd.f32 %v2148, %v2149
        %v2270 = vadd.f32 %v2269, %v2150
        %v2271 = vadd.f32 %v2270, %v2151
        %v2272 = vrot.slane %v2271, 4
        %v2273 = vadd.f32 %v2271, %v2272
        %v2274 = vrot.slane %v2273, 2
        %v2275 = vadd.f32 %v2273, %v2274
        %v2276 = vrot.slane %v2275, 1
        %v2277 = vadd.f32 %v2275, %v2276
        %v2278 = vadd.f32 %v2152, %v2153
        %v2279 = vadd.f32 %v2278, %v2154
        %v2280 = vadd.f32 %v2279, %v2155
        %v2281 = vrot.slane %v2280, 4
        %v2282 = vadd.f32 %v2280, %v2281
        %v2283 = vrot.slane %v2282, 2
        %v2284 = vadd.f32 %v2282, %v2283
        %v2285 = vrot.slane %v2284, 1
        %v2286 = vadd.f32 %v2284, %v2285
        %v2287 = vadd.f32 %v2156, %v2157
        %v2288 = vadd.f32 %v2287, %v2158
        %v2289 = vadd.f32 %v2288, %v2159
        %v2290 = vrot.slane %v2289, 4
        %v2291 = vadd.f32 %v2289, %v2290
        %v2292 = vrot.slane %v2291, 2
        %v2293 = vadd.f32 %v2291, %v2292
        %v2294 = vrot.slane %v2293, 1
        %v2295 = vadd.f32 %v2293, %v2294
        %v2296 = vadd.f32 %v2160, %v2161
        %v2297 = vadd.f32 %v2296, %v2162
        %v2298 = vadd.f32 %v2297, %v2163
        %v2299 = vrot.slane %v2298, 4
        %v2300 = vadd.f32 %v2298, %v2299
        %v2301 = vrot.slane %v2300, 2
        %v2302 = vadd.f32 %v2300, %v2301
        %v2303 = vrot.slane %v2302, 1
        %v2304 = vadd.f32 %v2302, %v2303
        %v2305 = vadd.f32 %v2164, %v2165
        %v2306 = vadd.f32 %v2305, %v2166
        %v2307 = vadd.f32 %v2306, %v2167
        %v2308 = vrot.slane %v2307, 4
        %v2309 = vadd.f32 %v2307, %v2308
        %v2310 = vrot.slane %v2309, 2
        %v2311 = vadd.f32 %v2309, %v2310
        %v2312 = vrot.slane %v2311, 1
        %v2313 = vadd.f32 %v2311, %v2312
        %vm2330 = vcmask 1041409
        %v2331 = vsel %vm2330, %v2187, %v2178
        %vm2332 = vcmask 1042434
        %v2333 = vsel %vm2332, %v2196, %v2331
        %vm2334 = vcmask 1043459
        %v2335 = vsel %vm2334, %v2205, %v2333
        %vm2336 = vcmask 1044484
        %v2337 = vsel %vm2336, %v2214, %v2335
        %vm2338 = vcmask 1045509
        %v2339 = vsel %vm2338, %v2223, %v2337
        %vm2340 = vcmask 1046534
        %v2341 = vsel %vm2340, %v2232, %v2339
        %vm2342 = vcmask 1047559
        %v2343 = vsel %vm2342, %v2241, %v2341
        %v2344 = vsel %vm2330, %v2259, %v2250
        %v2345 = vsel %vm2332, %v2268, %v2344
        %v2346 = vsel %vm2334, %v2277, %v2345
        %v2347 = vsel %vm2336, %v2286, %v2346
        %v2348 = vsel %vm2338, %v2295, %v2347
        %v2349 = vsel %vm2340, %v2304, %v2348
        %v2350 = vsel %vm2342, %v2313, %v2349
        %v2353 = vadd.f32 %v2168, %v2343
        %v2354 = vadd.f32 %v2169, %v2350
        %2355 = vst [vmem:[#allocation2] sm:$0xff] %v2353
        %2356 = vst [vmem:[#allocation2 + $0x8] sm:$0xff] %v2354
        %p2357 = scmp.eq.s32.totalorder %s20, 1
        // Predicated region
        $region64: #{event_track_net_forward.4} parent=54 // pred_check
          %p2358 = pneg %p2357
        $region65: #{event_track_net_forward.4} parent=54 // pred_check_branch
          %2360 = sbr.rel (%p2358) target = $region67
        $region66: #{event_track_net_forward.4} parent=54 // pred_region
          %v2361 = vld [vmem:[#allocation2] sm:$0xff]
          %v2362 = vld [vmem:[#allocation2 + $0x8] sm:$0xff]
          %v2363 = vmul.f32 %v2361, 0.015625
          %v2364 = vmul.f32 %v2362, 0.015625
          %v2365 = vpack.c.bf16 %v2364, %v2363
          %v2366 = vld [vmem:[%s2] sm:$0xff]
          %v2367 = vld [vmem:[%s2 + $0x8] sm:$0xff]
          %v2368 = vld [vmem:[%s2 + $0x10] sm:$0xff]
          %v2369 = vld [vmem:[%s2 + $0x18] sm:$0xff]
          %v2370 = vld [vmem:[%s2 + $0x20] sm:$0xff]
          %v2371 = vld [vmem:[%s2 + $0x28] sm:$0xff]
          %v2372 = vld [vmem:[%s2 + $0x30] sm:$0xff]
          %v2373 = vld [vmem:[%s2 + $0x38] sm:$0xff]
          %v2374 = vld [vmem:[%s2 + $0x40] sm:$0xff]
          %v2375 = vld [vmem:[%s2 + $0x48] sm:$0xff]
          %v2376 = vld [vmem:[%s2 + $0x50] sm:$0xff]
          %v2377 = vld [vmem:[%s2 + $0x58] sm:$0xff]
          %v2378 = vld [vmem:[%s2 + $0x60] sm:$0xff]
          %v2379 = vld [vmem:[%s2 + $0x68] sm:$0xff]
          %v2380 = vld [vmem:[%s2 + $0x70] sm:$0xff]
          %v2381 = vld [vmem:[%s2 + $0x78] sm:$0xff]
          %v2382 = vld [vmem:[%s3] sm:$0x3]
          %v2384 = vlaneseq
          %v2385 = vshrl.u32 %v2384, 7
          %v2386 = vsub.s32 0, %v2385
          %v2387 = vrot.slane %v2382, %v2386
          %v2388 = vlaneseq
          %v2389 = vshrl.u32 %v2388, 7
          %v2390 = vsub.s32 1, %v2389
          %v2391 = vrot.slane %v2382, %v2390
          %v2410 = vunpack.c.l.b16 %v2366
          %v2411 = vunpack.c.h.b16 %v2366
          %v2412 = vunpack.c.l.b16 %v2367
          %v2413 = vunpack.c.h.b16 %v2367
          %v2414 = vunpack.c.l.b16 %v2368
          %v2415 = vunpack.c.h.b16 %v2368
          %v2416 = vunpack.c.l.b16 %v2369
          %v2417 = vunpack.c.h.b16 %v2369
          %v2418 = vunpack.c.l.b16 %v2370
          %v2419 = vunpack.c.h.b16 %v2370
          %v2420 = vunpack.c.l.b16 %v2371
          %v2421 = vunpack.c.h.b16 %v2371
          %v2422 = vunpack.c.l.b16 %v2372
          %v2423 = vunpack.c.h.b16 %v2372
          %v2424 = vunpack.c.l.b16 %v2373
          %v2425 = vunpack.c.h.b16 %v2373
          %v2426 = vunpack.c.l.b16 %v2374
          %v2427 = vunpack.c.h.b16 %v2374
          %v2428 = vunpack.c.l.b16 %v2375
          %v2429 = vunpack.c.h.b16 %v2375
          %v2430 = vunpack.c.l.b16 %v2376
          %v2431 = vunpack.c.h.b16 %v2376
          %v2432 = vunpack.c.l.b16 %v2377
          %v2433 = vunpack.c.h.b16 %v2377
          %v2434 = vunpack.c.l.b16 %v2378
          %v2435 = vunpack.c.h.b16 %v2378
          %v2436 = vunpack.c.l.b16 %v2379
          %v2437 = vunpack.c.h.b16 %v2379
          %v2438 = vunpack.c.l.b16 %v2380
          %v2439 = vunpack.c.h.b16 %v2380
          %v2440 = vunpack.c.l.b16 %v2381
          %v2441 = vunpack.c.h.b16 %v2381
          %v2442 = vpack.c.b16 %v2412, %v2410
          %v2443 = vpack.c.b16 %v2413, %v2411
          %v2444 = vpack.c.b16 %v2416, %v2414
          %v2445 = vpack.c.b16 %v2417, %v2415
          %v2446 = vpack.c.b16 %v2420, %v2418
          %v2447 = vpack.c.b16 %v2421, %v2419
          %v2448 = vpack.c.b16 %v2424, %v2422
          %v2449 = vpack.c.b16 %v2425, %v2423
          %v2450 = vpack.c.b16 %v2428, %v2426
          %v2451 = vpack.c.b16 %v2429, %v2427
          %v2452 = vpack.c.b16 %v2432, %v2430
          %v2453 = vpack.c.b16 %v2433, %v2431
          %v2454 = vpack.c.b16 %v2436, %v2434
          %v2455 = vpack.c.b16 %v2437, %v2435
          %v2456 = vpack.c.b16 %v2440, %v2438
          %v2457 = vpack.c.b16 %v2441, %v2439
          %2474 = vmatprep.subr.bf16.mxu0 %v2443
          %2475 = vmatpush1.bf16.msra.mxu0 %v2442
          %2476 = vmatprep.subr.bf16.mxu0 %v2445
          %2477 = vmatpush1.bf16.msra.mxu0 %v2444
          %2478 = vmatprep.subr.bf16.mxu0 %v2447
          %2479 = vmatpush1.bf16.msra.mxu0 %v2446
          %2480 = vmatprep.subr.bf16.mxu0 %v2449
          %2481 = vmatpush1.bf16.msra.mxu0 %v2448
          %2482 = vmatprep.subr.bf16.mxu0 %v2451
          %2483 = vmatpush1.bf16.msra.mxu0 %v2450
          %2484 = vmatprep.subr.bf16.mxu0 %v2453
          %2485 = vmatpush1.bf16.msra.mxu0 %v2452
          %2486 = vmatprep.subr.bf16.mxu0 %v2455
          %2487 = vmatpush1.bf16.msra.mxu0 %v2454
          %2488 = vmatprep.subr.bf16.mxu0 %v2457
          %2489 = vmatpush1.bf16.msra.mxu0 %v2456
          %2490 = vmatprep.subr.bf16.mxu0 0
          %2491 = vmatpush1.bf16.msra.mxu0 0
          %2492 = vmatprep.subr.bf16.mxu0 0
          %2493 = vmatpush1.bf16.msra.mxu0 0
          %2494 = vmatprep.subr.bf16.mxu0 0
          %2495 = vmatpush1.bf16.msra.mxu0 0
          %2496 = vmatprep.subr.bf16.mxu0 0
          %2497 = vmatpush1.bf16.msra.mxu0 0
          %2498 = vmatprep.subr.bf16.mxu0 0
          %2499 = vmatpush1.bf16.msra.mxu0 0
          %2500 = vmatprep.subr.bf16.mxu0 0
          %2501 = vmatpush1.bf16.msra.mxu0 0
          %2502 = vmatprep.subr.bf16.mxu0 0
          %2503 = vmatpush1.bf16.msra.mxu0 0
          %2504 = vmatprep.subr.bf16.mxu0 0
          %2505 = vmatpush1.bf16.msra.mxu0 0
          %2506 = vmatprep.mubr.bf16.mxu0 0
          %2507 = vmatmul.mubr.bf16.gmra.mrb[0].mxu0 %v2365
          %v2508 = vpop.f32.mrb[0].mxu0
          %v2509 = vadd.f32 %v2387, %v2508
          %v2510 = vpop.f32.mrb[0].mxu0
          %v2511 = vadd.f32 %v2391, %v2510
          %v2512 = vpop.f32.mrb[0].mxu0
          %v2513 = vadd.f32 %v2387, %v2512
          %v2514 = vpop.f32.mrb[0].mxu0
          %v2515 = vadd.f32 %v2391, %v2514
          %2516 = vdwg.mxu0
          %v2517 = vpack.c.bf16 %v2513, %v2509
          %v2518 = vpack.c.bf16 %v2515, %v2511
          %v2521 = vunpack.c.l.b16 %v2517
          %v2522 = vunpack.c.l.b16 %v2518
          %v2523 = vunpack.c.h.b16 %v2517
          %v2524 = vunpack.c.h.b16 %v2518
          %v2525 = vpack.c.b16 %v2522, %v2521
          %v2526 = vpack.c.b16 %v2524, %v2523
          %2529 = vst [vmem:[%s493] sm:$0xff] %v2525
          %2530 = vst [vmem:[%s493 + $0x8] sm:$0xff] %v2526
        $region67: #{event_track_net_forward.4} parent=54 // pred_fallthru
          _
        %s2531 = smul.u32 2, %s19
        %p2532 = scmp.lt.s32.totalorder %s2531, 1
        %s2533 = scalar_select %p2532, %s2531, 1
        %s2534 = smul.addr %s2533, 2
        %s2535 = smul.addr %s2534, 4
        %s2536 = scalar_lea.vmem %s4, %s2535
        // Predicated region
        $region68: #{event_track_net_forward.4} parent=54 // pred_check
          %p2537 = pneg %p136
        $region69: #{event_track_net_forward.4} parent=54 // pred_check_branch
          %2539 = sbr.rel (%p2537) target = $region71
        $region70: #{event_track_net_forward.4} parent=54 // pred_region
          %s2540 = smul.u32 2, %s19
        $region71: #{event_track_net_forward.4} parent=54 // pred_fallthru
          _
        // Predicated region
        $region72: #{event_track_net_forward.4} parent=54 // pred_check
          %p2541 = pneg %p136
        $region73: #{event_track_net_forward.4} parent=54 // pred_check_branch
          %2543 = sbr.rel (%p2541) target = $region75
        $region74: #{event_track_net_forward.4} parent=54 // pred_region
          %s2544 = smul.u32 2, %s19
          %p2545 = scmp.lt.s32.totalorder %s2544, 1
          %s2546 = scalar_select %p2545, %s2544, 1
          %s2547 = smul.addr %s2546, 2
          %s2548 = smul.addr %s2547, 4
          %s2549 = scalar_lea.vmem %s4, %s2548
        $region75: #{event_track_net_forward.4} parent=54 // pred_fallthru
          _
      $region55: #{event_track_net_forward.4} parent=5 // pred_fallthru
        _
      %p2550 = scmp.le.s32.totalorder 2, %s10
      // Predicated region
      $region76: #{event_track_net_forward.4} parent=5 // pred_check
        %p2551 = pneg %p2550
      $region77: #{event_track_net_forward.4} parent=5 // pred_check_branch
        %2553 = sbr.rel (%p2551) target = $region79
      $region78: #{event_track_net_forward.4} parent=5 // pred_region
        %s2554 = ssub.s32 %s10, 2
      $region79: #{event_track_net_forward.4} parent=5 // pred_fallthru
        _
    $region6: #{event_track_net_forward.4} parent=1 // loop_footer
      %s14 = sadd.s32 1, %s10
    $region7: #{event_track_net_forward.4} parent=1 // loop_footer_branch
      %9 = sbr.rel target = $region3
    $region8: #{event_track_net_forward.4} parent=1 // loop_exit
      _

// kernel: event_track_net_forward.5
$region0: #{event_track_net_forward.5}
  #allocation0 [shape = 'u32[]', space=smem, size = 0x4, offset = 0x4, fixed_abs, tag = 'smem constant byte address 0x4 - core index']
  #allocation1 [shape = 'u32[144,128]{1,0:T(1,128)}', space=vmem, size = 0x12000, scoped, tag = 'internal scratch']
  %s0 = inlined_call_operand.vmem [shape: bf16[16,256], index: 0, kind: input, shape index: {}]
  %s1 = inlined_call_operand.vmem [shape: bf16[256,768], index: 1, kind: input, shape index: {}]
  %s2 = inlined_call_operand.vmem [shape: f32[1,768], index: 2, kind: input, shape index: {}]
  %s3 = inlined_call_operand.vmem [shape: f32[16,768], index: 3, kind: output, shape index: {}]
  %s4 = sld [smem:[#allocation0]]
  $region22: #{event_track_net_forward.5} parent=0
    _
  %s6 = ssub.s32 1, %s4
  %s7 = scalar_select 0, %s6, %s4
  // Predicated region
  $region2: #{event_track_net_forward.5} parent=0 // pred_check
    _
  $region3: #{event_track_net_forward.5} parent=0 // pred_check_branch
    %9 = sbr.rel (0) target = $region5
  $region4: #{event_track_net_forward.5} parent=0 // pred_region
    _
  $region5: #{event_track_net_forward.5} parent=0 // pred_fallthru
    _
  // Predicated region
  $region6: #{event_track_net_forward.5} parent=0 // pred_check
    _
  $region7: #{event_track_net_forward.5} parent=0 // pred_check_branch
    %11 = sbr.rel (0) target = $region9
  $region8: #{event_track_net_forward.5} parent=0 // pred_region
    _
  $region9: #{event_track_net_forward.5} parent=0 // pred_fallthru
    _
  // Predicated region
  $region10: #{event_track_net_forward.5} parent=0 // pred_check
    _
  $region11: #{event_track_net_forward.5} parent=0 // pred_check_branch
    %13 = sbr.rel (0) target = $region13
  $region12: #{event_track_net_forward.5} parent=0 // pred_region
    _
  $region13: #{event_track_net_forward.5} parent=0 // pred_fallthru
    _
  %v14 = vld [vmem:[%s0] sm:$0xff]
  %v15 = vld [vmem:[%s0 + $0x8] sm:$0xff]
  %v16 = vld [vmem:[%s1] sm:$0xff]
  %v17 = vld [vmem:[%s1 + $0x8] sm:$0xff]
  %v18 = vld [vmem:[%s1 + $0x10] sm:$0xff]
  %v19 = vld [vmem:[%s1 + $0x18] sm:$0xff]
  %v20 = vld [vmem:[%s1 + $0x20] sm:$0xff]
  %v21 = vld [vmem:[%s1 + $0x28] sm:$0xff]
  %v22 = vld [vmem:[%s1 + $0x30] sm:$0xff]
  %v23 = vld [vmem:[%s1 + $0x38] sm:$0xff]
  %v24 = vld [vmem:[%s1 + $0x40] sm:$0xff]
  %v25 = vld [vmem:[%s1 + $0x48] sm:$0xff]
  %v26 = vld [vmem:[%s1 + $0x50] sm:$0xff]
  %v27 = vld [vmem:[%s1 + $0x58] sm:$0xff]
  %v28 = vld [vmem:[%s1 + $0x60] sm:$0xff]
  %v29 = vld [vmem:[%s1 + $0x68] sm:$0xff]
  %v30 = vld [vmem:[%s1 + $0x70] sm:$0xff]
  %v31 = vld [vmem:[%s1 + $0x78] sm:$0xff]
  %v32 = vld [vmem:[%s1 + $0x80] sm:$0xff]
  %v33 = vld [vmem:[%s1 + $0x88] sm:$0xff]
  %v34 = vld [vmem:[%s1 + $0x90] sm:$0xff]
  %v35 = vld [vmem:[%s1 + $0x98] sm:$0xff]
  %v36 = vld [vmem:[%s1 + $0xa0] sm:$0xff]
  %v37 = vld [vmem:[%s1 + $0xa8] sm:$0xff]
  %v38 = vld [vmem:[%s1 + $0xb0] sm:$0xff]
  %v39 = vld [vmem:[%s1 + $0xb8] sm:$0xff]
  %v40 = vld [vmem:[%s1 + $0xc0] sm:$0xff]
  %v41 = vld [vmem:[%s1 + $0xc8] sm:$0xff]
  %v42 = vld [vmem:[%s1 + $0xd0] sm:$0xff]
  %v43 = vld [vmem:[%s1 + $0xd8] sm:$0xff]
  %v44 = vld [vmem:[%s1 + $0xe0] sm:$0xff]
  %v45 = vld [vmem:[%s1 + $0xe8] sm:$0xff]
  %v46 = vld [vmem:[%s1 + $0xf0] sm:$0xff]
  %v47 = vld [vmem:[%s1 + $0xf8] sm:$0xff]
  %v48 = vld [vmem:[%s1 + $0x100] sm:$0xff]
  %v49 = vld [vmem:[%s1 + $0x108] sm:$0xff]
  %v50 = vld [vmem:[%s1 + $0x110] sm:$0xff]
  %v51 = vld [vmem:[%s1 + $0x118] sm:$0xff]
  %v52 = vld [vmem:[%s1 + $0x120] sm:$0xff]
  %v53 = vld [vmem:[%s1 + $0x128] sm:$0xff]
  %v54 = vld [vmem:[%s1 + $0x130] sm:$0xff]
  %v55 = vld [vmem:[%s1 + $0x138] sm:$0xff]
  %v56 = vld [vmem:[%s1 + $0x140] sm:$0xff]
  %v57 = vld [vmem:[%s1 + $0x148] sm:$0xff]
  %v58 = vld [vmem:[%s1 + $0x150] sm:$0xff]
  %v59 = vld [vmem:[%s1 + $0x158] sm:$0xff]
  %v60 = vld [vmem:[%s1 + $0x160] sm:$0xff]
  %v61 = vld [vmem:[%s1 + $0x168] sm:$0xff]
  %v62 = vld [vmem:[%s1 + $0x170] sm:$0xff]
  %v63 = vld [vmem:[%s1 + $0x178] sm:$0xff]
  %v64 = vld [vmem:[%s1 + $0x180] sm:$0xff]
  %v65 = vld [vmem:[%s1 + $0x188] sm:$0xff]
  %v66 = vld [vmem:[%s1 + $0x190] sm:$0xff]
  %v67 = vld [vmem:[%s1 + $0x198] sm:$0xff]
  %v68 = vld [vmem:[%s1 + $0x1a0] sm:$0xff]
  %v69 = vld [vmem:[%s1 + $0x1a8] sm:$0xff]
  %v70 = vld [vmem:[%s1 + $0x1b0] sm:$0xff]
  %v71 = vld [vmem:[%s1 + $0x1b8] sm:$0xff]
  %v72 = vld [vmem:[%s1 + $0x1c0] sm:$0xff]
  %v73 = vld [vmem:[%s1 + $0x1c8] sm:$0xff]
  %v74 = vld [vmem:[%s1 + $0x1d0] sm:$0xff]
  %v75 = vld [vmem:[%s1 + $0x1d8] sm:$0xff]
  %v76 = vld [vmem:[%s1 + $0x1e0] sm:$0xff]
  %v77 = vld [vmem:[%s1 + $0x1e8] sm:$0xff]
  %v78 = vld [vmem:[%s1 + $0x1f0] sm:$0xff]
  %v79 = vld [vmem:[%s1 + $0x1f8] sm:$0xff]
  %v80 = vld [vmem:[%s1 + $0x200] sm:$0xff]
  %v81 = vld [vmem:[%s1 + $0x208] sm:$0xff]
  %v82 = vld [vmem:[%s1 + $0x210] sm:$0xff]
  %v83 = vld [vmem:[%s1 + $0x218] sm:$0xff]
  %v84 = vld [vmem:[%s1 + $0x220] sm:$0xff]
  %v85 = vld [vmem:[%s1 + $0x228] sm:$0xff]
  %v86 = vld [vmem:[%s1 + $0x230] sm:$0xff]
  %v87 = vld [vmem:[%s1 + $0x238] sm:$0xff]
  %v88 = vld [vmem:[%s1 + $0x240] sm:$0xff]
  %v89 = vld [vmem:[%s1 + $0x248] sm:$0xff]
  %v90 = vld [vmem:[%s1 + $0x250] sm:$0xff]
  %v91 = vld [vmem:[%s1 + $0x258] sm:$0xff]
  %v92 = vld [vmem:[%s1 + $0x260] sm:$0xff]
  %v93 = vld [vmem:[%s1 + $0x268] sm:$0xff]
  %v94 = vld [vmem:[%s1 + $0x270] sm:$0xff]
  %v95 = vld [vmem:[%s1 + $0x278] sm:$0xff]
  %v96 = vld [vmem:[%s1 + $0x280] sm:$0xff]
  %v97 = vld [vmem:[%s1 + $0x288] sm:$0xff]
  %v98 = vld [vmem:[%s1 + $0x290] sm:$0xff]
  %v99 = vld [vmem:[%s1 + $0x298] sm:$0xff]
  %v100 = vld [vmem:[%s1 + $0x2a0] sm:$0xff]
  %v101 = vld [vmem:[%s1 + $0x2a8] sm:$0xff]
  %v102 = vld [vmem:[%s1 + $0x2b0] sm:$0xff]
  %v103 = vld [vmem:[%s1 + $0x2b8] sm:$0xff]
  %v104 = vld [vmem:[%s1 + $0x2c0] sm:$0xff]
  %v105 = vld [vmem:[%s1 + $0x2c8] sm:$0xff]
  %v106 = vld [vmem:[%s1 + $0x2d0] sm:$0xff]
  %v107 = vld [vmem:[%s1 + $0x2d8] sm:$0xff]
  %v108 = vld [vmem:[%s1 + $0x2e0] sm:$0xff]
  %v109 = vld [vmem:[%s1 + $0x2e8] sm:$0xff]
  %v110 = vld [vmem:[%s1 + $0x2f0] sm:$0xff]
  %v111 = vld [vmem:[%s1 + $0x2f8] sm:$0xff]
  %v112 = vld [vmem:[%s2] sm:$0x3f]
  %v114 = vlaneseq
  %v115 = vshrl.u32 %v114, 7
  %v116 = vsub.s32 0, %v115
  %v117 = vrot.slane %v112, %v116
  %v118 = vlaneseq
  %v119 = vshrl.u32 %v118, 7
  %v120 = vsub.s32 1, %v119
  %v121 = vrot.slane %v112, %v120
  %v122 = vlaneseq
  %v123 = vshrl.u32 %v122, 7
  %v124 = vsub.s32 2, %v123
  %v125 = vrot.slane %v112, %v124
  %v126 = vlaneseq
  %v127 = vshrl.u32 %v126, 7
  %v128 = vsub.s32 3, %v127
  %v129 = vrot.slane %v112, %v128
  %v130 = vlaneseq
  %v131 = vshrl.u32 %v130, 7
  %v132 = vsub.s32 4, %v131
  %v133 = vrot.slane %v112, %v132
  %v134 = vlaneseq
  %v135 = vshrl.u32 %v134, 7
  %v136 = vsub.s32 5, %v135
  %v137 = vrot.slane %v112, %v136
  %v146 = vunpack.c.l.b16 %v14
  %v147 = vunpack.c.h.b16 %v14
  %v148 = vunpack.c.l.b16 %v15
  %v149 = vunpack.c.h.b16 %v15
  %v150 = vpack.c.b16 %v148, %v146
  %v151 = vpack.c.b16 %v149, %v147
  %v250 = vunpack.c.l.b16 %v16
  %v251 = vunpack.c.h.b16 %v16
  %v252 = vunpack.c.l.b16 %v17
  %v253 = vunpack.c.h.b16 %v17
  %v254 = vunpack.c.l.b16 %v18
  %v255 = vunpack.c.h.b16 %v18
  %v256 = vunpack.c.l.b16 %v19
  %v257 = vunpack.c.h.b16 %v19
  %v258 = vunpack.c.l.b16 %v20
  %v259 = vunpack.c.h.b16 %v20
  %v260 = vunpack.c.l.b16 %v21
  %v261 = vunpack.c.h.b16 %v21
  %v262 = vunpack.c.l.b16 %v22
  %v263 = vunpack.c.h.b16 %v22
  %v264 = vunpack.c.l.b16 %v23
  %v265 = vunpack.c.h.b16 %v23
  %v266 = vunpack.c.l.b16 %v24
  %v267 = vunpack.c.h.b16 %v24
  %v268 = vunpack.c.l.b16 %v25
  %v269 = vunpack.c.h.b16 %v25
  %v270 = vunpack.c.l.b16 %v26
  %v271 = vunpack.c.h.b16 %v26
  %v272 = vunpack.c.l.b16 %v27
  %v273 = vunpack.c.h.b16 %v27
  %v274 = vunpack.c.l.b16 %v28
  %v275 = vunpack.c.h.b16 %v28
  %v276 = vunpack.c.l.b16 %v29
  %v277 = vunpack.c.h.b16 %v29
  %v278 = vunpack.c.l.b16 %v30
  %v279 = vunpack.c.h.b16 %v30
  %v280 = vunpack.c.l.b16 %v31
  %v281 = vunpack.c.h.b16 %v31
  %v282 = vunpack.c.l.b16 %v32
  %v283 = vunpack.c.h.b16 %v32
  %v284 = vunpack.c.l.b16 %v33
  %v285 = vunpack.c.h.b16 %v33
  %v286 = vunpack.c.l.b16 %v34
  %v287 = vunpack.c.h.b16 %v34
  %v288 = vunpack.c.l.b16 %v35
  %v289 = vunpack.c.h.b16 %v35
  %v290 = vunpack.c.l.b16 %v36
  %v291 = vunpack.c.h.b16 %v36
  %v292 = vunpack.c.l.b16 %v37
  %v293 = vunpack.c.h.b16 %v37
  %v294 = vunpack.c.l.b16 %v38
  %v295 = vunpack.c.h.b16 %v38
  %v296 = vunpack.c.l.b16 %v39
  %v297 = vunpack.c.h.b16 %v39
  %v298 = vunpack.c.l.b16 %v40
  %v299 = vunpack.c.h.b16 %v40
  %v300 = vunpack.c.l.b16 %v41
  %v301 = vunpack.c.h.b16 %v41
  %v302 = vunpack.c.l.b16 %v42
  %v303 = vunpack.c.h.b16 %v42
  %v304 = vunpack.c.l.b16 %v43
  %v305 = vunpack.c.h.b16 %v43
  %v306 = vunpack.c.l.b16 %v44
  %v307 = vunpack.c.h.b16 %v44
  %v308 = vunpack.c.l.b16 %v45
  %v309 = vunpack.c.h.b16 %v45
  %v310 = vunpack.c.l.b16 %v46
  %v311 = vunpack.c.h.b16 %v46
  %v312 = vunpack.c.l.b16 %v47
  %v313 = vunpack.c.h.b16 %v47
  %v314 = vunpack.c.l.b16 %v48
  %v315 = vunpack.c.h.b16 %v48
  %v316 = vunpack.c.l.b16 %v49
  %v317 = vunpack.c.h.b16 %v49
  %v318 = vunpack.c.l.b16 %v50
  %v319 = vunpack.c.h.b16 %v50
  %v320 = vunpack.c.l.b16 %v51
  %v321 = vunpack.c.h.b16 %v51
  %v322 = vunpack.c.l.b16 %v52
  %v323 = vunpack.c.h.b16 %v52
  %v324 = vunpack.c.l.b16 %v53
  %v325 = vunpack.c.h.b16 %v53
  %v326 = vunpack.c.l.b16 %v54
  %v327 = vunpack.c.h.b16 %v54
  %v328 = vunpack.c.l.b16 %v55
  %v329 = vunpack.c.h.b16 %v55
  %v330 = vunpack.c.l.b16 %v56
  %v331 = vunpack.c.h.b16 %v56
  %v332 = vunpack.c.l.b16 %v57
  %v333 = vunpack.c.h.b16 %v57
  %v334 = vunpack.c.l.b16 %v58
  %v335 = vunpack.c.h.b16 %v58
  %v336 = vunpack.c.l.b16 %v59
  %v337 = vunpack.c.h.b16 %v59
  %v338 = vunpack.c.l.b16 %v60
  %v339 = vunpack.c.h.b16 %v60
  %v340 = vunpack.c.l.b16 %v61
  %v341 = vunpack.c.h.b16 %v61
  %v342 = vunpack.c.l.b16 %v62
  %v343 = vunpack.c.h.b16 %v62
  %v344 = vunpack.c.l.b16 %v63
  %v345 = vunpack.c.h.b16 %v63
  %v346 = vunpack.c.l.b16 %v64
  %v347 = vunpack.c.h.b16 %v64
  %v348 = vunpack.c.l.b16 %v65
  %v349 = vunpack.c.h.b16 %v65
  %v350 = vunpack.c.l.b16 %v66
  %v351 = vunpack.c.h.b16 %v66
  %v352 = vunpack.c.l.b16 %v67
  %v353 = vunpack.c.h.b16 %v67
  %v354 = vunpack.c.l.b16 %v68
  %v355 = vunpack.c.h.b16 %v68
  %v356 = vunpack.c.l.b16 %v69
  %v357 = vunpack.c.h.b16 %v69
  %v358 = vunpack.c.l.b16 %v70
  %v359 = vunpack.c.h.b16 %v70
  %v360 = vunpack.c.l.b16 %v71
  %v361 = vunpack.c.h.b16 %v71
  %v362 = vunpack.c.l.b16 %v72
  %v363 = vunpack.c.h.b16 %v72
  %v364 = vunpack.c.l.b16 %v73
  %v365 = vunpack.c.h.b16 %v73
  %v366 = vunpack.c.l.b16 %v74
  %v367 = vunpack.c.h.b16 %v74
  %v368 = vunpack.c.l.b16 %v75
  %v369 = vunpack.c.h.b16 %v75
  %v370 = vunpack.c.l.b16 %v76
  %v371 = vunpack.c.h.b16 %v76
  %v372 = vunpack.c.l.b16 %v77
  %v373 = vunpack.c.h.b16 %v77
  %v374 = vunpack.c.l.b16 %v78
  %v375 = vunpack.c.h.b16 %v78
  %v376 = vunpack.c.l.b16 %v79
  %v377 = vunpack.c.h.b16 %v79
  %v378 = vunpack.c.l.b16 %v80
  %v379 = vunpack.c.h.b16 %v80
  %v380 = vunpack.c.l.b16 %v81
  %v381 = vunpack.c.h.b16 %v81
  %v382 = vunpack.c.l.b16 %v82
  %v383 = vunpack.c.h.b16 %v82
  %v384 = vunpack.c.l.b16 %v83
  %v385 = vunpack.c.h.b16 %v83
  %v386 = vunpack.c.l.b16 %v84
  %v387 = vunpack.c.h.b16 %v84
  %v388 = vunpack.c.l.b16 %v85
  %v389 = vunpack.c.h.b16 %v85
  %v390 = vunpack.c.l.b16 %v86
  %v391 = vunpack.c.h.b16 %v86
  %v392 = vunpack.c.l.b16 %v87
  %v393 = vunpack.c.h.b16 %v87
  %v394 = vunpack.c.l.b16 %v88
  %v395 = vunpack.c.h.b16 %v88
  %v396 = vunpack.c.l.b16 %v89
  %v397 = vunpack.c.h.b16 %v89
  %v398 = vunpack.c.l.b16 %v90
  %v399 = vunpack.c.h.b16 %v90
  %v400 = vunpack.c.l.b16 %v91
  %v401 = vunpack.c.h.b16 %v91
  %v402 = vunpack.c.l.b16 %v92
  %v403 = vunpack.c.h.b16 %v92
  %v404 = vunpack.c.l.b16 %v93
  %v405 = vunpack.c.h.b16 %v93
  %v406 = vunpack.c.l.b16 %v94
  %v407 = vunpack.c.h.b16 %v94
  %v408 = vunpack.c.l.b16 %v95
  %v409 = vunpack.c.h.b16 %v95
  %v410 = vunpack.c.l.b16 %v96
  %v411 = vunpack.c.h.b16 %v96
  %v412 = vunpack.c.l.b16 %v97
  %v413 = vunpack.c.h.b16 %v97
  %v414 = vunpack.c.l.b16 %v98
  %v415 = vunpack.c.h.b16 %v98
  %v416 = vunpack.c.l.b16 %v99
  %v417 = vunpack.c.h.b16 %v99
  %v418 = vunpack.c.l.b16 %v100
  %v419 = vunpack.c.h.b16 %v100
  %v420 = vunpack.c.l.b16 %v101
  %v421 = vunpack.c.h.b16 %v101
  %v422 = vunpack.c.l.b16 %v102
  %v423 = vunpack.c.h.b16 %v102
  %v424 = vunpack.c.l.b16 %v103
  %v425 = vunpack.c.h.b16 %v103
  %v426 = vunpack.c.l.b16 %v104
  %v427 = vunpack.c.h.b16 %v104
  %v428 = vunpack.c.l.b16 %v105
  %v429 = vunpack.c.h.b16 %v105
  %v430 = vunpack.c.l.b16 %v106
  %v431 = vunpack.c.h.b16 %v106
  %v432 = vunpack.c.l.b16 %v107
  %v433 = vunpack.c.h.b16 %v107
  %v434 = vunpack.c.l.b16 %v108
  %v435 = vunpack.c.h.b16 %v108
  %v436 = vunpack.c.l.b16 %v109
  %v437 = vunpack.c.h.b16 %v109
  %v438 = vunpack.c.l.b16 %v110
  %v439 = vunpack.c.h.b16 %v110
  %v440 = vunpack.c.l.b16 %v111
  %v441 = vunpack.c.h.b16 %v111
  %v442 = vpack.c.b16 %v256, %v250
  %v443 = vpack.c.b16 %v257, %v251
  %v444 = vpack.c.b16 %v258, %v252
  %v445 = vpack.c.b16 %v259, %v253
  %v446 = vpack.c.b16 %v260, %v254
  %v447 = vpack.c.b16 %v261, %v255
  %v448 = vpack.c.b16 %v268, %v262
  %v449 = vpack.c.b16 %v269, %v263
  %v450 = vpack.c.b16 %v270, %v264
  %v451 = vpack.c.b16 %v271, %v265
  %v452 = vpack.c.b16 %v272, %v266
  %v453 = vpack.c.b16 %v273, %v267
  %v454 = vpack.c.b16 %v280, %v274
  %v455 = vpack.c.b16 %v281, %v275
  %v456 = vpack.c.b16 %v282, %v276
  %v457 = vpack.c.b16 %v283, %v277
  %v458 = vpack.c.b16 %v284, %v278
  %v459 = vpack.c.b16 %v285, %v279
  %v460 = vpack.c.b16 %v292, %v286
  %v461 = vpack.c.b16 %v293, %v287
  %v462 = vpack.c.b16 %v294, %v288
  %v463 = vpack.c.b16 %v295, %v289
  %v464 = vpack.c.b16 %v296, %v290
  %v465 = vpack.c.b16 %v297, %v291
  %v466 = vpack.c.b16 %v304, %v298
  %v467 = vpack.c.b16 %v305, %v299
  %v468 = vpack.c.b16 %v306, %v300
  %v469 = vpack.c.b16 %v307, %v301
  %v470 = vpack.c.b16 %v308, %v302
  %v471 = vpack.c.b16 %v309, %v303
  %v472 = vpack.c.b16 %v316, %v310
  %v473 = vpack.c.b16 %v317, %v311
  %v474 = vpack.c.b16 %v318, %v312
  %v475 = vpack.c.b16 %v319, %v313
  %v476 = vpack.c.b16 %v320, %v314
  %v477 = vpack.c.b16 %v321, %v315
  %v478 = vpack.c.b16 %v328, %v322
  %v479 = vpack.c.b16 %v329, %v323
  %v480 = vpack.c.b16 %v330, %v324
  %v481 = vpack.c.b16 %v331, %v325
  %v482 = vpack.c.b16 %v332, %v326
  %v483 = vpack.c.b16 %v333, %v327
  %v484 = vpack.c.b16 %v340, %v334
  %v485 = vpack.c.b16 %v341, %v335
  %v486 = vpack.c.b16 %v342, %v336
  %v487 = vpack.c.b16 %v343, %v337
  %v488 = vpack.c.b16 %v344, %v338
  %v489 = vpack.c.b16 %v345, %v339
  %v490 = vpack.c.b16 %v352, %v346
  %v491 = vpack.c.b16 %v353, %v347
  %v492 = vpack.c.b16 %v354, %v348
  %v493 = vpack.c.b16 %v355, %v349
  %v494 = vpack.c.b16 %v356, %v350
  %v495 = vpack.c.b16 %v357, %v351
  %v496 = vpack.c.b16 %v364, %v358
  %v497 = vpack.c.b16 %v365, %v359
  %v498 = vpack.c.b16 %v366, %v360
  %v499 = vpack.c.b16 %v367, %v361
  %v500 = vpack.c.b16 %v368, %v362
  %v501 = vpack.c.b16 %v369, %v363
  %v502 = vpack.c.b16 %v376, %v370
  %v503 = vpack.c.b16 %v377, %v371
  %v504 = vpack.c.b16 %v378, %v372
  %v505 = vpack.c.b16 %v379, %v373
  %v506 = vpack.c.b16 %v380, %v374
  %v507 = vpack.c.b16 %v381, %v375
  %v508 = vpack.c.b16 %v388, %v382
  %v509 = vpack.c.b16 %v389, %v383
  %v510 = vpack.c.b16 %v390, %v384
  %v511 = vpack.c.b16 %v391, %v385
  %v512 = vpack.c.b16 %v392, %v386
  %v513 = vpack.c.b16 %v393, %v387
  %v514 = vpack.c.b16 %v400, %v394
  %v515 = vpack.c.b16 %v401, %v395
  %v516 = vpack.c.b16 %v402, %v396
  %v517 = vpack.c.b16 %v403, %v397
  %v518 = vpack.c.b16 %v404, %v398
  %v519 = vpack.c.b16 %v405, %v399
  %v520 = vpack.c.b16 %v412, %v406
  %v521 = vpack.c.b16 %v413, %v407
  %v522 = vpack.c.b16 %v414, %v408
  %v523 = vpack.c.b16 %v415, %v409
  %v524 = vpack.c.b16 %v416, %v410
  %v525 = vpack.c.b16 %v417, %v411
  %v526 = vpack.c.b16 %v424, %v418
  %v527 = vpack.c.b16 %v425, %v419
  %v528 = vpack.c.b16 %v426, %v420
  %v529 = vpack.c.b16 %v427, %v421
  %v530 = vpack.c.b16 %v428, %v422
  %v531 = vpack.c.b16 %v429, %v423
  %v532 = vpack.c.b16 %v436, %v430
  %v533 = vpack.c.b16 %v437, %v431
  %v534 = vpack.c.b16 %v438, %v432
  %v535 = vpack.c.b16 %v439, %v433
  %v536 = vpack.c.b16 %v440, %v434
  %v537 = vpack.c.b16 %v441, %v435
  %634 = vmatprep.subr.bf16.mxu0 %v443
  %635 = vmatpush1.bf16.msra.mxu0 %v442
  %636 = vmatprep.subr.bf16.mxu0 %v449
  %637 = vmatpush1.bf16.msra.mxu0 %v448
  %638 = vmatprep.subr.bf16.mxu0 %v455
  %639 = vmatpush1.bf16.msra.mxu0 %v454
  %640 = vmatprep.subr.bf16.mxu0 %v461
  %641 = vmatpush1.bf16.msra.mxu0 %v460
  %642 = vmatprep.subr.bf16.mxu0 %v467
  %643 = vmatpush1.bf16.msra.mxu0 %v466
  %644 = vmatprep.subr.bf16.mxu0 %v473
  %645 = vmatpush1.bf16.msra.mxu0 %v472
  %646 = vmatprep.subr.bf16.mxu0 %v479
  %647 = vmatpush1.bf16.msra.mxu0 %v478
  %648 = vmatprep.subr.bf16.mxu0 %v485
  %649 = vmatpush1.bf16.msra.mxu0 %v484
  %650 = vmatprep.subr.bf16.mxu0 %v491
  %651 = vmatpush1.bf16.msra.mxu0 %v490
  %652 = vmatprep.subr.bf16.mxu0 %v497
  %653 = vmatpush1.bf16.msra.mxu0 %v496
  %654 = vmatprep.subr.bf16.mxu0 %v503
  %655 = vmatpush1.bf16.msra.mxu0 %v502
  %656 = vmatprep.subr.bf16.mxu0 %v509
  %657 = vmatpush1.bf16.msra.mxu0 %v508
  %658 = vmatprep.subr.bf16.mxu0 %v515
  %659 = vmatpush1.bf16.msra.mxu0 %v514
  %660 = vmatprep.subr.bf16.mxu0 %v521
  %661 = vmatpush1.bf16.msra.mxu0 %v520
  %662 = vmatprep.subr.bf16.mxu0 %v527
  %663 = vmatpush1.bf16.msra.mxu0 %v526
  %664 = vmatprep.subr.bf16.mxu0 %v533
  %665 = vmatpush1.bf16.msra.mxu0 %v532
  %666 = vmatprep.mubr.bf16.mxu0 %v151
  %667 = vmatmul.mubr.bf16.gmra.mrb[0].mxu0 %v150
  %v668 = vpop.f32.mrb[0].mxu0
  %v669 = vadd.f32 %v117, %v668
  %v670 = vpop.f32.mrb[0].mxu0
  %v671 = vadd.f32 %v121, %v670
  %v672 = vpop.f32.mrb[0].mxu0
  %v673 = vadd.f32 %v117, %v672
  %v674 = vpop.f32.mrb[0].mxu0
  %v675 = vadd.f32 %v121, %v674
  %676 = vdwg.mxu0
  %677 = vmatprep.subr.bf16.mxu0 %v445
  %678 = vmatpush1.bf16.msra.mxu0 %v444
  %679 = vmatprep.subr.bf16.mxu0 %v451
  %680 = vmatpush1.bf16.msra.mxu0 %v450
  %681 = vmatprep.subr.bf16.mxu0 %v457
  %682 = vmatpush1.bf16.msra.mxu0 %v456
  %683 = vmatprep.subr.bf16.mxu0 %v463
  %684 = vmatpush1.bf16.msra.mxu0 %v462
  %685 = vmatprep.subr.bf16.mxu0 %v469
  %686 = vmatpush1.bf16.msra.mxu0 %v468
  %687 = vmatprep.subr.bf16.mxu0 %v475
  %688 = vmatpush1.bf16.msra.mxu0 %v474
  %689 = vmatprep.subr.bf16.mxu0 %v481
  %690 = vmatpush1.bf16.msra.mxu0 %v480
  %691 = vmatprep.subr.bf16.mxu0 %v487
  %692 = vmatpush1.bf16.msra.mxu0 %v486
  %693 = vmatprep.subr.bf16.mxu0 %v493
  %694 = vmatpush1.bf16.msra.mxu0 %v492
  %695 = vmatprep.subr.bf16.mxu0 %v499
  %696 = vmatpush1.bf16.msra.mxu0 %v498
  %697 = vmatprep.subr.bf16.mxu0 %v505
  %698 = vmatpush1.bf16.msra.mxu0 %v504
  %699 = vmatprep.subr.bf16.mxu0 %v511
  %700 = vmatpush1.bf16.msra.mxu0 %v510
  %701 = vmatprep.subr.bf16.mxu0 %v517
  %702 = vmatpush1.bf16.msra.mxu0 %v516
  %703 = vmatprep.subr.bf16.mxu0 %v523
  %704 = vmatpush1.bf16.msra.mxu0 %v522
  %705 = vmatprep.subr.bf16.mxu0 %v529
  %706 = vmatpush1.bf16.msra.mxu0 %v528
  %707 = vmatprep.subr.bf16.mxu0 %v535
  %708 = vmatpush1.bf16.msra.mxu0 %v534
  %709 = vmatprep.mubr.bf16.mxu0 %v151
  %710 = vmatmul.mubr.bf16.gmra.mrb[0].mxu0 %v150
  %v711 = vpop.f32.mrb[0].mxu0
  %v712 = vadd.f32 %v125, %v711
  %v713 = vpop.f32.mrb[0].mxu0
  %v714 = vadd.f32 %v129, %v713
  %v715 = vpop.f32.mrb[0].mxu0
  %v716 = vadd.f32 %v125, %v715
  %v717 = vpop.f32.mrb[0].mxu0
  %v718 = vadd.f32 %v129, %v717
  %719 = vdwg.mxu0
  %720 = vmatprep.subr.bf16.mxu0 %v447
  %721 = vmatpush1.bf16.msra.mxu0 %v446
  %722 = vmatprep.subr.bf16.mxu0 %v453
  %723 = vmatpush1.bf16.msra.mxu0 %v452
  %724 = vmatprep.subr.bf16.mxu0 %v459
  %725 = vmatpush1.bf16.msra.mxu0 %v458
  %726 = vmatprep.subr.bf16.mxu0 %v465
  %727 = vmatpush1.bf16.msra.mxu0 %v464
  %728 = vmatprep.subr.bf16.mxu0 %v471
  %729 = vmatpush1.bf16.msra.mxu0 %v470
  %730 = vmatprep.subr.bf16.mxu0 %v477
  %731 = vmatpush1.bf16.msra.mxu0 %v476
  %732 = vmatprep.subr.bf16.mxu0 %v483
  %733 = vmatpush1.bf16.msra.mxu0 %v482
  %734 = vmatprep.subr.bf16.mxu0 %v489
  %735 = vmatpush1.bf16.msra.mxu0 %v488
  %736 = vmatprep.subr.bf16.mxu0 %v495
  %737 = vmatpush1.bf16.msra.mxu0 %v494
  %738 = vmatprep.subr.bf16.mxu0 %v501
  %739 = vmatpush1.bf16.msra.mxu0 %v500
  %740 = vmatprep.subr.bf16.mxu0 %v507
  %741 = vmatpush1.bf16.msra.mxu0 %v506
  %742 = vmatprep.subr.bf16.mxu0 %v513
  %743 = vmatpush1.bf16.msra.mxu0 %v512
  %744 = vmatprep.subr.bf16.mxu0 %v519
  %745 = vmatpush1.bf16.msra.mxu0 %v518
  %746 = vmatprep.subr.bf16.mxu0 %v525
  %747 = vmatpush1.bf16.msra.mxu0 %v524
  %748 = vmatprep.subr.bf16.mxu0 %v531
  %749 = vmatpush1.bf16.msra.mxu0 %v530
  %750 = vmatprep.subr.bf16.mxu0 %v537
  %751 = vmatpush1.bf16.msra.mxu0 %v536
  %752 = vmatprep.mubr.bf16.mxu0 %v151
  %753 = vmatmul.mubr.bf16.gmra.mrb[0].mxu0 %v150
  %v754 = vpop.f32.mrb[0].mxu0
  %v755 = vadd.f32 %v133, %v754
  %v756 = vpop.f32.mrb[0].mxu0
  %v757 = vadd.f32 %v137, %v756
  %v758 = vpop.f32.mrb[0].mxu0
  %v759 = vadd.f32 %v133, %v758
  %v760 = vpop.f32.mrb[0].mxu0
  %v761 = vadd.f32 %v137, %v760
  %762 = vdwg.mxu0
  %763 = vst [vmem:[%s3] sm:$0xff] %v669
  %764 = vst [vmem:[%s3 + $0x8] sm:$0xff] %v671
  %765 = vst [vmem:[%s3 + $0x10] sm:$0xff] %v712
  %766 = vst [vmem:[%s3 + $0x18] sm:$0xff] %v714
  %767 = vst [vmem:[%s3 + $0x20] sm:$0xff] %v755
  %768 = vst [vmem:[%s3 + $0x28] sm:$0xff] %v757
  %769 = vst [vmem:[%s3 + $0x30] sm:$0xff] %v673
  %770 = vst [vmem:[%s3 + $0x38] sm:$0xff] %v675
  %771 = vst [vmem:[%s3 + $0x40] sm:$0xff] %v716
  %772 = vst [vmem:[%s3 + $0x48] sm:$0xff] %v718
  %773 = vst [vmem:[%s3 + $0x50] sm:$0xff] %v759
  %774 = vst [vmem:[%s3 + $0x58] sm:$0xff] %v761
  // Predicated region
  $region14: #{event_track_net_forward.5} parent=0 // pred_check
    _
  $region15: #{event_track_net_forward.5} parent=0 // pred_check_branch
    %776 = sbr.rel (0) target = $region17
  $region16: #{event_track_net_forward.5} parent=0 // pred_region
    _
  $region17: #{event_track_net_forward.5} parent=0 // pred_fallthru
    _
  // Predicated region
  $region18: #{event_track_net_forward.5} parent=0 // pred_check
    _
  $region19: #{event_track_net_forward.5} parent=0 // pred_check_branch
    %778 = sbr.rel (0) target = $region21
  $region20: #{event_track_net_forward.5} parent=0 // pred_region
    _
  $region21: #{event_track_net_forward.5} parent=0 // pred_fallthru
    _

// kernel: event_track_net_forward.6
$region0: #{event_track_net_forward.6}
  #allocation0 [shape = 'u32[]', space=smem, size = 0x4, offset = 0x4, fixed_abs, tag = 'smem constant byte address 0x4 - core index']
  #allocation1 [shape = 'u32[144,128]{1,0:T(1,128)}', space=vmem, size = 0x12000, scoped, tag = 'internal scratch']
  #allocation2 [shape = 'f32[8,256]{1,0:T(8,128)}', space=vmem, size = 0x2000, scoped, tag = 'scratch operand']
  %s0 = inlined_call_operand.vmem [shape: f32[8,6144], index: 0, kind: input, shape index: {}]
  %s1 = inlined_call_operand.vmem [shape: bf16[8,2048], index: 1, kind: input, shape index: {}]
  %s2 = inlined_call_operand.vmem [shape: f32[8,256], index: 2, kind: input, shape index: {}]
  %s3 = inlined_call_operand.vmem [shape: bf16[256,768], index: 3, kind: input, shape index: {}]
  %s4 = inlined_call_operand.vmem [shape: f32[1,768], index: 4, kind: input, shape index: {}]
  %s5 = inlined_call_operand.vmem [shape: bf16[8,2048], index: 5, kind: output, shape index: {}]
  %s6 = sld [smem:[#allocation0]]
  $region57: #{event_track_net_forward.6} parent=0
    _
  %s8 = ssub.s32 1, %s6
  %s9 = scalar_select 0, %s8, %s6
  loop: start=0, step=1, limit=10
  $region2: #{event_track_net_forward.6} parent=0 // loop_pre_header
    _
  $region3: #{event_track_net_forward.6} parent=0 // loop_header
    %s11 = sphi 0, %s15
    %p12 = scmp.ge.s32.totalorder %s11, 10
    %s21 = sphi 0, %s23
    %s24 = sphi 0, %s21
    %s25 = sphi 0, %s24
    %s41 = sphi 0, %s25
    %s47 = sphi 0, %s49
    %s50 = sphi 0, %s47
    %s51 = sphi 0, %s50
    %s67 = sphi 0, %s51
    %s71 = sphi 0, %s71
    %s73 = sphi 0, %s71
    %s74 = sphi 0, %s73
    %s88 = sphi 0, %s74
    %s92 = sphi 0, %s92
    %s94 = sphi 0, %s92
    %s95 = sphi 0, %s94
    %s109 = sphi 0, %s95
    %s113 = sphi 0, %s113
    %s115 = sphi 0, %s113
    %s116 = sphi 0, %s115
    %s130 = sphi 0, %s116
    %s136 = sphi 0, %s138
    %s139 = sphi 0, %s136
    %s140 = sphi 0, %s139
    %s156 = sphi 0, %s140
  $region4: #{event_track_net_forward.6} parent=0 // loop_header_branch
    %14 = sbr.rel (%p12) target = $region8
  $region5: #{event_track_net_forward.6} parent=0 // loop_body
    %s16 = ssub.s32 %s11, 1
    %s17 = ssub.s32 %s11, 2
    %s18 = sadd.s32 %s11, 1
    %s19 = ssub.s32 %s11, %s18
    %p20 = scmp.eq.s32.totalorder %s19, 0
    %s22 = sadd.s32 %s21, 1
    %s23 = scalar_select %p20, %s21, %s22
    %p26 = pneg %p20
    %p27 = scmp.eq.s32.totalorder %s11, 7
    %p28 = por %p26, %p27
    %p29 = scmp.ne.s32.totalorder %s21, %s24
    %p30 = scmp.eq.s32.totalorder %s11, 0
    %p31 = por %p29, %p30
    %p32 = scmp.ne.s32.totalorder %s21, %s24
    %p33 = scmp.eq.s32.totalorder %s16, 7
    %p34 = por %p32, %p33
    %p35 = scmp.ne.s32.totalorder %s24, %s25
    %p36 = scmp.eq.s32.totalorder %s16, 0
    %p37 = por %p35, %p36
    %p38 = scmp.ne.s32.totalorder %s24, %s25
    %p39 = scmp.eq.s32.totalorder %s17, 7
    %p40 = por %p38, %p39
    %p42 = scmp.ne.s32.totalorder %s25, %s41
    %p43 = scmp.eq.s32.totalorder %s17, 0
    %p44 = por %p42, %p43
    %s45 = ssub.s32 %s11, %s18
    %p46 = scmp.eq.s32.totalorder %s45, 0
    %s48 = sadd.s32 %s47, 1
    %s49 = scalar_select %p46, %s47, %s48
    %p52 = pneg %p46
    %p53 = scmp.eq.s32.totalorder %s11, 7
    %p54 = por %p52, %p53
    %p55 = scmp.ne.s32.totalorder %s47, %s50
    %p56 = scmp.eq.s32.totalorder %s11, 0
    %p57 = por %p55, %p56
    %p58 = scmp.ne.s32.totalorder %s47, %s50
    %p59 = scmp.eq.s32.totalorder %s16, 7
    %p60 = por %p58, %p59
    %p61 = scmp.ne.s32.totalorder %s50, %s51
    %p62 = scmp.eq.s32.totalorder %s16, 0
    %p63 = por %p61, %p62
    %p64 = scmp.ne.s32.totalorder %s50, %s51
    %p65 = scmp.eq.s32.totalorder %s17, 7
    %p66 = por %p64, %p65
    %p68 = scmp.ne.s32.totalorder %s51, %s67
    %p69 = scmp.eq.s32.totalorder %s17, 0
    %p70 = por %p68, %p69
    %s72 = sadd.s32 %s71, 1
    %p75 = scmp.eq.s32.totalorder %s11, 7
    %p76 = scmp.ne.s32.totalorder %s71, %s73
    %p77 = scmp.eq.s32.totalorder %s11, 0
    %p78 = por %p76, %p77
    %p79 = scmp.ne.s32.totalorder %s71, %s73
    %p80 = scmp.eq.s32.totalorder %s16, 7
    %p81 = por %p79, %p80
    %p82 = scmp.ne.s32.totalorder %s73, %s74
    %p83 = scmp.eq.s32.totalorder %s16, 0
    %p84 = por %p82, %p83
    %p85 = scmp.ne.s32.totalorder %s73, %s74
    %p86 = scmp.eq.s32.totalorder %s17, 7
    %p87 = por %p85, %p86
    %p89 = scmp.ne.s32.totalorder %s74, %s88
    %p90 = scmp.eq.s32.totalorder %s17, 0
    %p91 = por %p89, %p90
    %s93 = sadd.s32 %s92, 1
    %p96 = scmp.eq.s32.totalorder %s11, 7
    %p97 = scmp.ne.s32.totalorder %s92, %s94
    %p98 = scmp.eq.s32.totalorder %s11, 0
    %p99 = por %p97, %p98
    %p100 = scmp.ne.s32.totalorder %s92, %s94
    %p101 = scmp.eq.s32.totalorder %s16, 7
    %p102 = por %p100, %p101
    %p103 = scmp.ne.s32.totalorder %s94, %s95
    %p104 = scmp.eq.s32.totalorder %s16, 0
    %p105 = por %p103, %p104
    %p106 = scmp.ne.s32.totalorder %s94, %s95
    %p107 = scmp.eq.s32.totalorder %s17, 7
    %p108 = por %p106, %p107
    %p110 = scmp.ne.s32.totalorder %s95, %s109
    %p111 = scmp.eq.s32.totalorder %s17, 0
    %p112 = por %p110, %p111
    %s114 = sadd.s32 %s113, 1
    %p117 = scmp.eq.s32.totalorder %s11, 7
    %p118 = scmp.ne.s32.totalorder %s113, %s115
    %p119 = scmp.eq.s32.totalorder %s11, 0
    %p120 = por %p118, %p119
    %p121 = scmp.ne.s32.totalorder %s113, %s115
    %p122 = scmp.eq.s32.totalorder %s16, 7
    %p123 = por %p121, %p122
    %p124 = scmp.ne.s32.totalorder %s115, %s116
    %p125 = scmp.eq.s32.totalorder %s16, 0
    %p126 = por %p124, %p125
    %p127 = scmp.ne.s32.totalorder %s115, %s116
    %p128 = scmp.eq.s32.totalorder %s17, 7
    %p129 = por %p127, %p128
    %p131 = scmp.ne.s32.totalorder %s116, %s130
    %p132 = scmp.eq.s32.totalorder %s17, 0
    %p133 = por %p131, %p132
    %s134 = ssub.s32 %s11, %s18
    %p135 = scmp.eq.s32.totalorder %s134, 0
    %s137 = sadd.s32 %s136, 1
    %s138 = scalar_select %p135, %s136, %s137
    %p141 = pneg %p135
    %p142 = scmp.eq.s32.totalorder %s11, 7
    %p143 = por %p141, %p142
    %p144 = scmp.ne.s32.totalorder %s136, %s139
    %p145 = scmp.eq.s32.totalorder %s11, 0
    %p146 = por %p144, %p145
    %p147 = scmp.ne.s32.totalorder %s136, %s139
    %p148 = scmp.eq.s32.totalorder %s16, 7
    %p149 = por %p147, %p148
    %p150 = scmp.ne.s32.totalorder %s139, %s140
    %p151 = scmp.eq.s32.totalorder %s16, 0
    %p152 = por %p150, %p151
    %p153 = scmp.ne.s32.totalorder %s139, %s140
    %p154 = scmp.eq.s32.totalorder %s17, 7
    %p155 = por %p153, %p154
    %p157 = scmp.ne.s32.totalorder %s140, %s156
    %p158 = scmp.eq.s32.totalorder %s17, 0
    %p159 = por %p157, %p158
    %p160 = scmp.le.s32.totalorder 1, %s11
    %p161 = scmp.lt.s32.totalorder %s11, 9
    %p162 = pnand %p160, %p161
    %p163 = pneg %p162
    // Predicated region
    $region9: #{event_track_net_forward.6} parent=5 // pred_check
      _
    $region10: #{event_track_net_forward.6} parent=5 // pred_check_branch
      %165 = sbr.rel (%p162) target = $region12
    $region11: #{event_track_net_forward.6} parent=5 // pred_region
      %s166 = ssub.s32 %s11, 1
      // Predicated region
      $region13: #{event_track_net_forward.6} parent=11 // pred_check
        %p167 = pneg %p84
      $region14: #{event_track_net_forward.6} parent=11 // pred_check_branch
        %169 = sbr.rel (%p167) target = $region16
      $region15: #{event_track_net_forward.6} parent=11 // pred_region
        _
      $region16: #{event_track_net_forward.6} parent=11 // pred_fallthru
        _
      // Predicated region
      $region17: #{event_track_net_forward.6} parent=11 // pred_check
        %p170 = pneg %p105
      $region18: #{event_track_net_forward.6} parent=11 // pred_check_branch
        %172 = sbr.rel (%p170) target = $region20
      $region19: #{event_track_net_forward.6} parent=11 // pred_region
        _
      $region20: #{event_track_net_forward.6} parent=11 // pred_fallthru
        _
      // Predicated region
      $region21: #{event_track_net_forward.6} parent=11 // pred_check
        %p173 = pneg %p126
      $region22: #{event_track_net_forward.6} parent=11 // pred_check_branch
        %175 = sbr.rel (%p173) target = $region24
      $region23: #{event_track_net_forward.6} parent=11 // pred_region
        _
      $region24: #{event_track_net_forward.6} parent=11 // pred_fallthru
        _
    $region12: #{event_track_net_forward.6} parent=5 // pred_fallthru
      _
    %p176 = scmp.lt.s32.totalorder %s11, 8
    // Predicated region
    $region25: #{event_track_net_forward.6} parent=5 // pred_check
      %p177 = pneg %p176
    $region26: #{event_track_net_forward.6} parent=5 // pred_check_branch
      %179 = sbr.rel (%p177) target = $region28
    $region27: #{event_track_net_forward.6} parent=5 // pred_region
      // Predicated region
      $region29: #{event_track_net_forward.6} parent=27 // pred_check
        %p180 = pneg %p31
      $region30: #{event_track_net_forward.6} parent=27 // pred_check_branch
        %182 = sbr.rel (%p180) target = $region32
      $region31: #{event_track_net_forward.6} parent=27 // pred_region
        %s183 = smul.u32 6, %s11
        %p184 = scmp.lt.s32.totalorder %s183, 47
        %s185 = scalar_select %p184, %s183, 47
        %s186 = smul.addr %s185, 8
        %s187 = scalar_lea.vmem %s0, %s186
        %s188 = smul.u32 6, %s11
      $region32: #{event_track_net_forward.6} parent=27 // pred_fallthru
        _
      // Predicated region
      $region33: #{event_track_net_forward.6} parent=27 // pred_check
        %p189 = pneg %p57
      $region34: #{event_track_net_forward.6} parent=27 // pred_check_branch
        %191 = sbr.rel (%p189) target = $region36
      $region35: #{event_track_net_forward.6} parent=27 // pred_region
        %s192 = smul.u32 2, %s11
        %p193 = scmp.lt.s32.totalorder %s192, 15
        %s194 = scalar_select %p193, %s192, 15
        %s195 = smul.addr %s194, 4
        %s196 = scalar_lea.vmem %s1, %s195
        %s197 = smul.u32 2, %s11
      $region36: #{event_track_net_forward.6} parent=27 // pred_fallthru
        _
    $region28: #{event_track_net_forward.6} parent=5 // pred_fallthru
      _
    %p198 = scmp.le.s32.totalorder 1, %s11
    %p199 = scmp.lt.s32.totalorder %s11, 9
    %p200 = pnand %p198, %p199
    %p201 = pneg %p200
    // Predicated region
    $region37: #{event_track_net_forward.6} parent=5 // pred_check
      _
    $region38: #{event_track_net_forward.6} parent=5 // pred_check_branch
      %203 = sbr.rel (%p200) target = $region40
    $region39: #{event_track_net_forward.6} parent=5 // pred_region
      %s204 = ssub.s32 %s11, 1
      %s205 = smul.u32 6, %s16
      %p206 = scmp.lt.s32.totalorder %s205, 47
      %s207 = scalar_select %p206, %s205, 47
      %s208 = smul.addr %s207, 8
      %s209 = scalar_lea.vmem %s0, %s208
      %p210 = pneg %p37
      %p211 = pneg %p34
      %s212 = smul.u32 2, %s16
      %p213 = scmp.lt.s32.totalorder %s212, 15
      %s214 = scalar_select %p213, %s212, 15
      %s215 = smul.addr %s214, 4
      %s216 = scalar_lea.vmem %s1, %s215
      %p217 = pneg %p63
      %p218 = pneg %p60
      %p219 = pneg %p84
      %p220 = pneg %p81
      %p221 = pneg %p105
      %p222 = pneg %p102
      %p223 = pneg %p126
      %p224 = pneg %p123
      %p225 = pneg %p152
      %p226 = pneg %p149
      %s227 = smul.u32 2, %s16
      %p228 = scmp.lt.s32.totalorder %s227, 15
      %s229 = scalar_select %p228, %s227, 15
      %s230 = smul.addr %s229, 4
      %s231 = scalar_lea.vmem %s5, %s230
      %s232 = smul.u32 6, %s16
      %p233 = scmp.lt.s32.totalorder %s232, 47
      %s234 = scalar_select %p233, %s232, 47
      %s235 = smul.addr %s234, 8
      %s236 = scalar_lea.vmem %s0, %s235
      %s237 = smul.u32 6, %s16
      %s238 = smul.u32 2, %s16
      %p239 = scmp.lt.s32.totalorder %s238, 15
      %s240 = scalar_select %p239, %s238, 15
      %s241 = smul.addr %s240, 4
      %s242 = scalar_lea.vmem %s1, %s241
      %s243 = smul.u32 2, %s16
      %s244 = smul.u32 2, %s16
      %p245 = scmp.lt.s32.totalorder %s244, 15
      %s246 = scalar_select %p245, %s244, 15
      %s247 = smul.addr %s246, 4
      %s248 = scalar_lea.vmem %s5, %s247
      %s249 = smul.u32 2, %s16
      %p250 = scmp.eq.s32.totalorder %s16, 0
      // Predicated region
      $region41: #{event_track_net_forward.6} parent=39 // pred_check
        %p251 = pneg %p250
      $region42: #{event_track_net_forward.6} parent=39 // pred_check_branch
        %253 = sbr.rel (%p251) target = $region44
      $region43: #{event_track_net_forward.6} parent=39 // pred_region
        %v254 = vld [vmem:[%s2] sm:$0xff]
        %v255 = vld [vmem:[%s2 + $0x8] sm:$0xff]
        %256 = vst [vmem:[#allocation2] sm:$0xff] %v254
        %257 = vst [vmem:[#allocation2 + $0x8] sm:$0xff] %v255
      $region44: #{event_track_net_forward.6} parent=39 // pred_fallthru
        _
      %v258 = vld [vmem:[#allocation2] sm:$0xff]
      %v259 = vld [vmem:[#allocation2 + $0x8] sm:$0xff]
      %v260 = vld [vmem:[%s236] sm:$0xff]
      %v261 = vld [vmem:[%s236 + $0x8] sm:$0xff]
      %v262 = vld [vmem:[%s236 + $0x10] sm:$0xff]
      %v263 = vld [vmem:[%s236 + $0x18] sm:$0xff]
      %v264 = vld [vmem:[%s236 + $0x20] sm:$0xff]
      %v265 = vld [vmem:[%s236 + $0x28] sm:$0xff]
      %v266 = vpack.c.bf16 %v258, %v258
      %v267 = vpack.c.bf16 %v259, %v259
      %v268 = vld [vmem:[%s3] sm:$0xff]
      %v269 = vld [vmem:[%s3 + $0x8] sm:$0xff]
      %v270 = vld [vmem:[%s3 + $0x10] sm:$0xff]
      %v271 = vld [vmem:[%s3 + $0x18] sm:$0xff]
      %v272 = vld [vmem:[%s3 + $0x20] sm:$0xff]
      %v273 = vld [vmem:[%s3 + $0x28] sm:$0xff]
      %v274 = vld [vmem:[%s3 + $0x30] sm:$0xff]
      %v275 = vld [vmem:[%s3 + $0x38] sm:$0xff]
      %v276 = vld [vmem:[%s3 + $0x40] sm:$0xff]
      %v277 = vld [vmem:[%s3 + $0x48] sm:$0xff]
      %v278 = vld [vmem:[%s3 + $0x50] sm:$0xff]
      %v279 = vld [vmem:[%s3 + $0x58] sm:$0xff]
      %v280 = vld [vmem:[%s3 + $0x60] sm:$0xff]
      %v281 = vld [vmem:[%s3 + $0x68] sm:$0xff]
      %v282 = vld [vmem:[%s3 + $0x70] sm:$0xff]
      %v283 = vld [vmem:[%s3 + $0x78] sm:$0xff]
      %v284 = vld [vmem:[%s3 + $0x80] sm:$0xff]
      %v285 = vld [vmem:[%s3 + $0x88] sm:$0xff]
      %v286 = vld [vmem:[%s3 + $0x90] sm:$0xff]
      %v287 = vld [vmem:[%s3 + $0x98] sm:$0xff]
      %v288 = vld [vmem:[%s3 + $0xa0] sm:$0xff]
      %v289 = vld [vmem:[%s3 + $0xa8] sm:$0xff]
      %v290 = vld [vmem:[%s3 + $0xb0] sm:$0xff]
      %v291 = vld [vmem:[%s3 + $0xb8] sm:$0xff]
      %v292 = vld [vmem:[%s3 + $0xc0] sm:$0xff]
      %v293 = vld [vmem:[%s3 + $0xc8] sm:$0xff]
      %v294 = vld [vmem:[%s3 + $0xd0] sm:$0xff]
      %v295 = vld [vmem:[%s3 + $0xd8] sm:$0xff]
      %v296 = vld [vmem:[%s3 + $0xe0] sm:$0xff]
      %v297 = vld [vmem:[%s3 + $0xe8] sm:$0xff]
      %v298 = vld [vmem:[%s3 + $0xf0] sm:$0xff]
      %v299 = vld [vmem:[%s3 + $0xf8] sm:$0xff]
      %v300 = vld [vmem:[%s3 + $0x100] sm:$0xff]
      %v301 = vld [vmem:[%s3 + $0x108] sm:$0xff]
      %v302 = vld [vmem:[%s3 + $0x110] sm:$0xff]
      %v303 = vld [vmem:[%s3 + $0x118] sm:$0xff]
      %v304 = vld [vmem:[%s3 + $0x120] sm:$0xff]
      %v305 = vld [vmem:[%s3 + $0x128] sm:$0xff]
      %v306 = vld [vmem:[%s3 + $0x130] sm:$0xff]
      %v307 = vld [vmem:[%s3 + $0x138] sm:$0xff]
      %v308 = vld [vmem:[%s3 + $0x140] sm:$0xff]
      %v309 = vld [vmem:[%s3 + $0x148] sm:$0xff]
      %v310 = vld [vmem:[%s3 + $0x150] sm:$0xff]
      %v311 = vld [vmem:[%s3 + $0x158] sm:$0xff]
      %v312 = vld [vmem:[%s3 + $0x160] sm:$0xff]
      %v313 = vld [vmem:[%s3 + $0x168] sm:$0xff]
      %v314 = vld [vmem:[%s3 + $0x170] sm:$0xff]
      %v315 = vld [vmem:[%s3 + $0x178] sm:$0xff]
      %v316 = vld [vmem:[%s3 + $0x180] sm:$0xff]
      %v317 = vld [vmem:[%s3 + $0x188] sm:$0xff]
      %v318 = vld [vmem:[%s3 + $0x190] sm:$0xff]
      %v319 = vld [vmem:[%s3 + $0x198] sm:$0xff]
      %v320 = vld [vmem:[%s3 + $0x1a0] sm:$0xff]
      %v321 = vld [vmem:[%s3 + $0x1a8] sm:$0xff]
      %v322 = vld [vmem:[%s3 + $0x1b0] sm:$0xff]
      %v323 = vld [vmem:[%s3 + $0x1b8] sm:$0xff]
      %v324 = vld [vmem:[%s3 + $0x1c0] sm:$0xff]
      %v325 = vld [vmem:[%s3 + $0x1c8] sm:$0xff]
      %v326 = vld [vmem:[%s3 + $0x1d0] sm:$0xff]
      %v327 = vld [vmem:[%s3 + $0x1d8] sm:$0xff]
      %v328 = vld [vmem:[%s3 + $0x1e0] sm:$0xff]
      %v329 = vld [vmem:[%s3 + $0x1e8] sm:$0xff]
      %v330 = vld [vmem:[%s3 + $0x1f0] sm:$0xff]
      %v331 = vld [vmem:[%s3 + $0x1f8] sm:$0xff]
      %v332 = vld [vmem:[%s3 + $0x200] sm:$0xff]
      %v333 = vld [vmem:[%s3 + $0x208] sm:$0xff]
      %v334 = vld [vmem:[%s3 + $0x210] sm:$0xff]
      %v335 = vld [vmem:[%s3 + $0x218] sm:$0xff]
      %v336 = vld [vmem:[%s3 + $0x220] sm:$0xff]
      %v337 = vld [vmem:[%s3 + $0x228] sm:$0xff]
      %v338 = vld [vmem:[%s3 + $0x230] sm:$0xff]
      %v339 = vld [vmem:[%s3 + $0x238] sm:$0xff]
      %v340 = vld [vmem:[%s3 + $0x240] sm:$0xff]
      %v341 = vld [vmem:[%s3 + $0x248] sm:$0xff]
      %v342 = vld [vmem:[%s3 + $0x250] sm:$0xff]
      %v343 = vld [vmem:[%s3 + $0x258] sm:$0xff]
      %v344 = vld [vmem:[%s3 + $0x260] sm:$0xff]
      %v345 = vld [vmem:[%s3 + $0x268] sm:$0xff]
      %v346 = vld [vmem:[%s3 + $0x270] sm:$0xff]
      %v347 = vld [vmem:[%s3 + $0x278] sm:$0xff]
      %v348 = vld [vmem:[%s3 + $0x280] sm:$0xff]
      %v349 = vld [vmem:[%s3 + $0x288] sm:$0xff]
      %v350 = vld [vmem:[%s3 + $0x290] sm:$0xff]
      %v351 = vld [vmem:[%s3 + $0x298] sm:$0xff]
      %v352 = vld [vmem:[%s3 + $0x2a0] sm:$0xff]
      %v353 = vld [vmem:[%s3 + $0x2a8] sm:$0xff]
      %v354 = vld [vmem:[%s3 + $0x2b0] sm:$0xff]
      %v355 = vld [vmem:[%s3 + $0x2b8] sm:$0xff]
      %v356 = vld [vmem:[%s3 + $0x2c0] sm:$0xff]
      %v357 = vld [vmem:[%s3 + $0x2c8] sm:$0xff]
      %v358 = vld [vmem:[%s3 + $0x2d0] sm:$0xff]
      %v359 = vld [vmem:[%s3 + $0x2d8] sm:$0xff]
      %v360 = vld [vmem:[%s3 + $0x2e0] sm:$0xff]
      %v361 = vld [vmem:[%s3 + $0x2e8] sm:$0xff]
      %v362 = vld [vmem:[%s3 + $0x2f0] sm:$0xff]
      %v363 = vld [vmem:[%s3 + $0x2f8] sm:$0xff]
      %v364 = vld [vmem:[%s4] sm:$0x3f]
      %v366 = vlaneseq
      %v367 = vshrl.u32 %v366, 7
      %v368 = vsub.s32 0, %v367
      %v369 = vrot.slane %v364, %v368
      %v370 = vlaneseq
      %v371 = vshrl.u32 %v370, 7
      %v372 = vsub.s32 1, %v371
      %v373 = vrot.slane %v364, %v372
      %v374 = vlaneseq
      %v375 = vshrl.u32 %v374, 7
      %v376 = vsub.s32 2, %v375
      %v377 = vrot.slane %v364, %v376
      %v378 = vlaneseq
      %v379 = vshrl.u32 %v378, 7
      %v380 = vsub.s32 3, %v379
      %v381 = vrot.slane %v364, %v380
      %v382 = vlaneseq
      %v383 = vshrl.u32 %v382, 7
      %v384 = vsub.s32 4, %v383
      %v385 = vrot.slane %v364, %v384
      %v386 = vlaneseq
      %v387 = vshrl.u32 %v386, 7
      %v388 = vsub.s32 5, %v387
      %v389 = vrot.slane %v364, %v388
      %v492 = vunpack.c.l.b16 %v268
      %v493 = vunpack.c.h.b16 %v268
      %v494 = vunpack.c.l.b16 %v269
      %v495 = vunpack.c.h.b16 %v269
      %v496 = vunpack.c.l.b16 %v270
      %v497 = vunpack.c.h.b16 %v270
      %v498 = vunpack.c.l.b16 %v271
      %v499 = vunpack.c.h.b16 %v271
      %v500 = vunpack.c.l.b16 %v272
      %v501 = vunpack.c.h.b16 %v272
      %v502 = vunpack.c.l.b16 %v273
      %v503 = vunpack.c.h.b16 %v273
      %v504 = vunpack.c.l.b16 %v274
      %v505 = vunpack.c.h.b16 %v274
      %v506 = vunpack.c.l.b16 %v275
      %v507 = vunpack.c.h.b16 %v275
      %v508 = vunpack.c.l.b16 %v276
      %v509 = vunpack.c.h.b16 %v276
      %v510 = vunpack.c.l.b16 %v277
      %v511 = vunpack.c.h.b16 %v277
      %v512 = vunpack.c.l.b16 %v278
      %v513 = vunpack.c.h.b16 %v278
      %v514 = vunpack.c.l.b16 %v279
      %v515 = vunpack.c.h.b16 %v279
      %v516 = vunpack.c.l.b16 %v280
      %v517 = vunpack.c.h.b16 %v280
      %v518 = vunpack.c.l.b16 %v281
      %v519 = vunpack.c.h.b16 %v281
      %v520 = vunpack.c.l.b16 %v282
      %v521 = vunpack.c.h.b16 %v282
      %v522 = vunpack.c.l.b16 %v283
      %v523 = vunpack.c.h.b16 %v283
      %v524 = vunpack.c.l.b16 %v284
      %v525 = vunpack.c.h.b16 %v284
      %v526 = vunpack.c.l.b16 %v285
      %v527 = vunpack.c.h.b16 %v285
      %v528 = vunpack.c.l.b16 %v286
      %v529 = vunpack.c.h.b16 %v286
      %v530 = vunpack.c.l.b16 %v287
      %v531 = vunpack.c.h.b16 %v287
      %v532 = vunpack.c.l.b16 %v288
      %v533 = vunpack.c.h.b16 %v288
      %v534 = vunpack.c.l.b16 %v289
      %v535 = vunpack.c.h.b16 %v289
      %v536 = vunpack.c.l.b16 %v290
      %v537 = vunpack.c.h.b16 %v290
      %v538 = vunpack.c.l.b16 %v291
      %v539 = vunpack.c.h.b16 %v291
      %v540 = vunpack.c.l.b16 %v292
      %v541 = vunpack.c.h.b16 %v292
      %v542 = vunpack.c.l.b16 %v293
      %v543 = vunpack.c.h.b16 %v293
      %v544 = vunpack.c.l.b16 %v294
      %v545 = vunpack.c.h.b16 %v294
      %v546 = vunpack.c.l.b16 %v295
      %v547 = vunpack.c.h.b16 %v295
      %v548 = vunpack.c.l.b16 %v296
      %v549 = vunpack.c.h.b16 %v296
      %v550 = vunpack.c.l.b16 %v297
      %v551 = vunpack.c.h.b16 %v297
      %v552 = vunpack.c.l.b16 %v298
      %v553 = vunpack.c.h.b16 %v298
      %v554 = vunpack.c.l.b16 %v299
      %v555 = vunpack.c.h.b16 %v299
      %v556 = vunpack.c.l.b16 %v300
      %v557 = vunpack.c.h.b16 %v300
      %v558 = vunpack.c.l.b16 %v301
      %v559 = vunpack.c.h.b16 %v301
      %v560 = vunpack.c.l.b16 %v302
      %v561 = vunpack.c.h.b16 %v302
      %v562 = vunpack.c.l.b16 %v303
      %v563 = vunpack.c.h.b16 %v303
      %v564 = vunpack.c.l.b16 %v304
      %v565 = vunpack.c.h.b16 %v304
      %v566 = vunpack.c.l.b16 %v305
      %v567 = vunpack.c.h.b16 %v305
      %v568 = vunpack.c.l.b16 %v306
      %v569 = vunpack.c.h.b16 %v306
      %v570 = vunpack.c.l.b16 %v307
      %v571 = vunpack.c.h.b16 %v307
      %v572 = vunpack.c.l.b16 %v308
      %v573 = vunpack.c.h.b16 %v308
      %v574 = vunpack.c.l.b16 %v309
      %v575 = vunpack.c.h.b16 %v309
      %v576 = vunpack.c.l.b16 %v310
      %v577 = vunpack.c.h.b16 %v310
      %v578 = vunpack.c.l.b16 %v311
      %v579 = vunpack.c.h.b16 %v311
      %v580 = vunpack.c.l.b16 %v312
      %v581 = vunpack.c.h.b16 %v312
      %v582 = vunpack.c.l.b16 %v313
      %v583 = vunpack.c.h.b16 %v313
      %v584 = vunpack.c.l.b16 %v314
      %v585 = vunpack.c.h.b16 %v314
      %v586 = vunpack.c.l.b16 %v315
      %v587 = vunpack.c.h.b16 %v315
      %v588 = vunpack.c.l.b16 %v316
      %v589 = vunpack.c.h.b16 %v316
      %v590 = vunpack.c.l.b16 %v317
      %v591 = vunpack.c.h.b16 %v317
      %v592 = vunpack.c.l.b16 %v318
      %v593 = vunpack.c.h.b16 %v318
      %v594 = vunpack.c.l.b16 %v319
      %v595 = vunpack.c.h.b16 %v319
      %v596 = vunpack.c.l.b16 %v320
      %v597 = vunpack.c.h.b16 %v320
      %v598 = vunpack.c.l.b16 %v321
      %v599 = vunpack.c.h.b16 %v321
      %v600 = vunpack.c.l.b16 %v322
      %v601 = vunpack.c.h.b16 %v322
      %v602 = vunpack.c.l.b16 %v323
      %v603 = vunpack.c.h.b16 %v323
      %v604 = vunpack.c.l.b16 %v324
      %v605 = vunpack.c.h.b16 %v324
      %v606 = vunpack.c.l.b16 %v325
      %v607 = vunpack.c.h.b16 %v325
      %v608 = vunpack.c.l.b16 %v326
      %v609 = vunpack.c.h.b16 %v326
      %v610 = vunpack.c.l.b16 %v327
      %v611 = vunpack.c.h.b16 %v327
      %v612 = vunpack.c.l.b16 %v328
      %v613 = vunpack.c.h.b16 %v328
      %v614 = vunpack.c.l.b16 %v329
      %v615 = vunpack.c.h.b16 %v329
      %v616 = vunpack.c.l.b16 %v330
      %v617 = vunpack.c.h.b16 %v330
      %v618 = vunpack.c.l.b16 %v331
      %v619 = vunpack.c.h.b16 %v331
      %v620 = vunpack.c.l.b16 %v332
      %v621 = vunpack.c.h.b16 %v332
      %v622 = vunpack.c.l.b16 %v333
      %v623 = vunpack.c.h.b16 %v333
      %v624 = vunpack.c.l.b16 %v334
      %v625 = vunpack.c.h.b16 %v334
      %v626 = vunpack.c.l.b16 %v335
      %v627 = vunpack.c.h.b16 %v335
      %v628 = vunpack.c.l.b16 %v336
      %v629 = vunpack.c.h.b16 %v336
      %v630 = vunpack.c.l.b16 %v337
      %v631 = vunpack.c.h.b16 %v337
      %v632 = vunpack.c.l.b16 %v338
      %v633 = vunpack.c.h.b16 %v338
      %v634 = vunpack.c.l.b16 %v339
      %v635 = vunpack.c.h.b16 %v339
      %v636 = vunpack.c.l.b16 %v340
      %v637 = vunpack.c.h.b16 %v340
      %v638 = vunpack.c.l.b16 %v341
      %v639 = vunpack.c.h.b16 %v341
      %v640 = vunpack.c.l.b16 %v342
      %v641 = vunpack.c.h.b16 %v342
      %v642 = vunpack.c.l.b16 %v343
      %v643 = vunpack.c.h.b16 %v343
      %v644 = vunpack.c.l.b16 %v344
      %v645 = vunpack.c.h.b16 %v344
      %v646 = vunpack.c.l.b16 %v345
      %v647 = vunpack.c.h.b16 %v345
      %v648 = vunpack.c.l.b16 %v346
      %v649 = vunpack.c.h.b16 %v346
      %v650 = vunpack.c.l.b16 %v347
      %v651 = vunpack.c.h.b16 %v347
      %v652 = vunpack.c.l.b16 %v348
      %v653 = vunpack.c.h.b16 %v348
      %v654 = vunpack.c.l.b16 %v349
      %v655 = vunpack.c.h.b16 %v349
      %v656 = vunpack.c.l.b16 %v350
      %v657 = vunpack.c.h.b16 %v350
      %v658 = vunpack.c.l.b16 %v351
      %v659 = vunpack.c.h.b16 %v351
      %v660 = vunpack.c.l.b16 %v352
      %v661 = vunpack.c.h.b16 %v352
      %v662 = vunpack.c.l.b16 %v353
      %v663 = vunpack.c.h.b16 %v353
      %v664 = vunpack.c.l.b16 %v354
      %v665 = vunpack.c.h.b16 %v354
      %v666 = vunpack.c.l.b16 %v355
      %v667 = vunpack.c.h.b16 %v355
      %v668 = vunpack.c.l.b16 %v356
      %v669 = vunpack.c.h.b16 %v356
      %v670 = vunpack.c.l.b16 %v357
      %v671 = vunpack.c.h.b16 %v357
      %v672 = vunpack.c.l.b16 %v358
      %v673 = vunpack.c.h.b16 %v358
      %v674 = vunpack.c.l.b16 %v359
      %v675 = vunpack.c.h.b16 %v359
      %v676 = vunpack.c.l.b16 %v360
      %v677 = vunpack.c.h.b16 %v360
      %v678 = vunpack.c.l.b16 %v361
      %v679 = vunpack.c.h.b16 %v361
      %v680 = vunpack.c.l.b16 %v362
      %v681 = vunpack.c.h.b16 %v362
      %v682 = vunpack.c.l.b16 %v363
      %v683 = vunpack.c.h.b16 %v363
      %v684 = vpack.c.b16 %v498, %v492
      %v685 = vpack.c.b16 %v499, %v493
      %v686 = vpack.c.b16 %v500, %v494
      %v687 = vpack.c.b16 %v501, %v495
      %v688 = vpack.c.b16 %v502, %v496
      %v689 = vpack.c.b16 %v503, %v497
      %v690 = vpack.c.b16 %v510, %v504
      %v691 = vpack.c.b16 %v511, %v505
      %v692 = vpack.c.b16 %v512, %v506
      %v693 = vpack.c.b16 %v513, %v507
      %v694 = vpack.c.b16 %v514, %v508
      %v695 = vpack.c.b16 %v515, %v509
      %v696 = vpack.c.b16 %v522, %v516
      %v697 = vpack.c.b16 %v523, %v517
      %v698 = vpack.c.b16 %v524, %v518
      %v699 = vpack.c.b16 %v525, %v519
      %v700 = vpack.c.b16 %v526, %v520
      %v701 = vpack.c.b16 %v527, %v521
      %v702 = vpack.c.b16 %v534, %v528
      %v703 = vpack.c.b16 %v535, %v529
      %v704 = vpack.c.b16 %v536, %v530
      %v705 = vpack.c.b16 %v537, %v531
      %v706 = vpack.c.b16 %v538, %v532
      %v707 = vpack.c.b16 %v539, %v533
      %v708 = vpack.c.b16 %v546, %v540
      %v709 = vpack.c.b16 %v547, %v541
      %v710 = vpack.c.b16 %v548, %v542
      %v711 = vpack.c.b16 %v549, %v543
      %v712 = vpack.c.b16 %v550, %v544
      %v713 = vpack.c.b16 %v551, %v545
      %v714 = vpack.c.b16 %v558, %v552
      %v715 = vpack.c.b16 %v559, %v553
      %v716 = vpack.c.b16 %v560, %v554
      %v717 = vpack.c.b16 %v561, %v555
      %v718 = vpack.c.b16 %v562, %v556
      %v719 = vpack.c.b16 %v563, %v557
      %v720 = vpack.c.b16 %v570, %v564
      %v721 = vpack.c.b16 %v571, %v565
      %v722 = vpack.c.b16 %v572, %v566
      %v723 = vpack.c.b16 %v573, %v567
      %v724 = vpack.c.b16 %v574, %v568
      %v725 = vpack.c.b16 %v575, %v569
      %v726 = vpack.c.b16 %v582, %v576
      %v727 = vpack.c.b16 %v583, %v577
      %v728 = vpack.c.b16 %v584, %v578
      %v729 = vpack.c.b16 %v585, %v579
      %v730 = vpack.c.b16 %v586, %v580
      %v731 = vpack.c.b16 %v587, %v581
      %v732 = vpack.c.b16 %v594, %v588
      %v733 = vpack.c.b16 %v595, %v589
      %v734 = vpack.c.b16 %v596, %v590
      %v735 = vpack.c.b16 %v597, %v591
      %v736 = vpack.c.b16 %v598, %v592
      %v737 = vpack.c.b16 %v599, %v593
      %v738 = vpack.c.b16 %v606, %v600
      %v739 = vpack.c.b16 %v607, %v601
      %v740 = vpack.c.b16 %v608, %v602
      %v741 = vpack.c.b16 %v609, %v603
      %v742 = vpack.c.b16 %v610, %v604
      %v743 = vpack.c.b16 %v611, %v605
      %v744 = vpack.c.b16 %v618, %v612
      %v745 = vpack.c.b16 %v619, %v613
      %v746 = vpack.c.b16 %v620, %v614
      %v747 = vpack.c.b16 %v621, %v615
      %v748 = vpack.c.b16 %v622, %v616
      %v749 = vpack.c.b16 %v623, %v617
      %v750 = vpack.c.b16 %v630, %v624
      %v751 = vpack.c.b16 %v631, %v625
      %v752 = vpack.c.b16 %v632, %v626
      %v753 = vpack.c.b16 %v633, %v627
      %v754 = vpack.c.b16 %v634, %v628
      %v755 = vpack.c.b16 %v635, %v629
      %v756 = vpack.c.b16 %v642, %v636
      %v757 = vpack.c.b16 %v643, %v637
      %v758 = vpack.c.b16 %v644, %v638
      %v759 = vpack.c.b16 %v645, %v639
      %v760 = vpack.c.b16 %v646, %v640
      %v761 = vpack.c.b16 %v647, %v641
      %v762 = vpack.c.b16 %v654, %v648
      %v763 = vpack.c.b16 %v655, %v649
      %v764 = vpack.c.b16 %v656, %v650
      %v765 = vpack.c.b16 %v657, %v651
      %v766 = vpack.c.b16 %v658, %v652
      %v767 = vpack.c.b16 %v659, %v653
      %v768 = vpack.c.b16 %v666, %v660
      %v769 = vpack.c.b16 %v667, %v661
      %v770 = vpack.c.b16 %v668, %v662
      %v771 = vpack.c.b16 %v669, %v663
      %v772 = vpack.c.b16 %v670, %v664
      %v773 = vpack.c.b16 %v671, %v665
      %v774 = vpack.c.b16 %v678, %v672
      %v775 = vpack.c.b16 %v679, %v673
      %v776 = vpack.c.b16 %v680, %v674
      %v777 = vpack.c.b16 %v681, %v675
      %v778 = vpack.c.b16 %v682, %v676
      %v779 = vpack.c.b16 %v683, %v677
      %876 = vmatprep.subr.bf16.mxu0 %v685
      %877 = vmatpush1.bf16.msra.mxu0 %v684
      %878 = vmatprep.subr.bf16.mxu0 %v691
      %879 = vmatpush1.bf16.msra.mxu0 %v690
      %880 = vmatprep.subr.bf16.mxu0 %v697
      %881 = vmatpush1.bf16.msra.mxu0 %v696
      %882 = vmatprep.subr.bf16.mxu0 %v703
      %883 = vmatpush1.bf16.msra.mxu0 %v702
      %884 = vmatprep.subr.bf16.mxu0 %v709
      %885 = vmatpush1.bf16.msra.mxu0 %v708
      %886 = vmatprep.subr.bf16.mxu0 %v715
      %887 = vmatpush1.bf16.msra.mxu0 %v714
      %888 = vmatprep.subr.bf16.mxu0 %v721
      %889 = vmatpush1.bf16.msra.mxu0 %v720
      %890 = vmatprep.subr.bf16.mxu0 %v727
      %891 = vmatpush1.bf16.msra.mxu0 %v726
      %892 = vmatprep.subr.bf16.mxu0 %v733
      %893 = vmatpush1.bf16.msra.mxu0 %v732
      %894 = vmatprep.subr.bf16.mxu0 %v739
      %895 = vmatpush1.bf16.msra.mxu0 %v738
      %896 = vmatprep.subr.bf16.mxu0 %v745
      %897 = vmatpush1.bf16.msra.mxu0 %v744
      %898 = vmatprep.subr.bf16.mxu0 %v751
      %899 = vmatpush1.bf16.msra.mxu0 %v750
      %900 = vmatprep.subr.bf16.mxu0 %v757
      %901 = vmatpush1.bf16.msra.mxu0 %v756
      %902 = vmatprep.subr.bf16.mxu0 %v763
      %903 = vmatpush1.bf16.msra.mxu0 %v762
      %904 = vmatprep.subr.bf16.mxu0 %v769
      %905 = vmatpush1.bf16.msra.mxu0 %v768
      %906 = vmatprep.subr.bf16.mxu0 %v775
      %907 = vmatpush1.bf16.msra.mxu0 %v774
      %908 = vmatprep.mubr.bf16.mxu0 %v267
      %909 = vmatmul.mubr.bf16.gmra.mrb[0].mxu0 %v266
      %v910 = vpop.f32.mrb[0].mxu0
      %v911 = vadd.f32 %v369, %v910
      %v912 = vpop.f32.mrb[0].mxu0
      %v913 = vadd.f32 %v373, %v912
      %v914 = vpop.f32.mrb[0].mxu0
      %v915 = vpop.f32.mrb[0].mxu0
      %916 = vdwg.mxu0
      %917 = vmatprep.subr.bf16.mxu0 %v687
      %918 = vmatpush1.bf16.msra.mxu0 %v686
      %919 = vmatprep.subr.bf16.mxu0 %v693
      %920 = vmatpush1.bf16.msra.mxu0 %v692
      %921 = vmatprep.subr.bf16.mxu0 %v699
      %922 = vmatpush1.bf16.msra.mxu0 %v698
      %923 = vmatprep.subr.bf16.mxu0 %v705
      %924 = vmatpush1.bf16.msra.mxu0 %v704
      %925 = vmatprep.subr.bf16.mxu0 %v711
      %926 = vmatpush1.bf16.msra.mxu0 %v710
      %927 = vmatprep.subr.bf16.mxu0 %v717
      %928 = vmatpush1.bf16.msra.mxu0 %v716
      %929 = vmatprep.subr.bf16.mxu0 %v723
      %930 = vmatpush1.bf16.msra.mxu0 %v722
      %931 = vmatprep.subr.bf16.mxu0 %v729
      %932 = vmatpush1.bf16.msra.mxu0 %v728
      %933 = vmatprep.subr.bf16.mxu0 %v735
      %934 = vmatpush1.bf16.msra.mxu0 %v734
      %935 = vmatprep.subr.bf16.mxu0 %v741
      %936 = vmatpush1.bf16.msra.mxu0 %v740
      %937 = vmatprep.subr.bf16.mxu0 %v747
      %938 = vmatpush1.bf16.msra.mxu0 %v746
      %939 = vmatprep.subr.bf16.mxu0 %v753
      %940 = vmatpush1.bf16.msra.mxu0 %v752
      %941 = vmatprep.subr.bf16.mxu0 %v759
      %942 = vmatpush1.bf16.msra.mxu0 %v758
      %943 = vmatprep.subr.bf16.mxu0 %v765
      %944 = vmatpush1.bf16.msra.mxu0 %v764
      %945 = vmatprep.subr.bf16.mxu0 %v771
      %946 = vmatpush1.bf16.msra.mxu0 %v770
      %947 = vmatprep.subr.bf16.mxu0 %v777
      %948 = vmatpush1.bf16.msra.mxu0 %v776
      %949 = vmatprep.mubr.bf16.mxu0 %v267
      %950 = vmatmul.mubr.bf16.gmra.mrb[0].mxu0 %v266
      %v951 = vpop.f32.mrb[0].mxu0
      %v952 = vadd.f32 %v377, %v951
      %v953 = vpop.f32.mrb[0].mxu0
      %v954 = vadd.f32 %v381, %v953
      %v955 = vpop.f32.mrb[0].mxu0
      %v956 = vpop.f32.mrb[0].mxu0
      %957 = vdwg.mxu0
      %958 = vmatprep.subr.bf16.mxu0 %v689
      %959 = vmatpush1.bf16.msra.mxu0 %v688
      %960 = vmatprep.subr.bf16.mxu0 %v695
      %961 = vmatpush1.bf16.msra.mxu0 %v694
      %962 = vmatprep.subr.bf16.mxu0 %v701
      %963 = vmatpush1.bf16.msra.mxu0 %v700
      %964 = vmatprep.subr.bf16.mxu0 %v707
      %965 = vmatpush1.bf16.msra.mxu0 %v706
      %966 = vmatprep.subr.bf16.mxu0 %v713
      %967 = vmatpush1.bf16.msra.mxu0 %v712
      %968 = vmatprep.subr.bf16.mxu0 %v719
      %969 = vmatpush1.bf16.msra.mxu0 %v718
      %970 = vmatprep.subr.bf16.mxu0 %v725
      %971 = vmatpush1.bf16.msra.mxu0 %v724
      %972 = vmatprep.subr.bf16.mxu0 %v731
      %973 = vmatpush1.bf16.msra.mxu0 %v730
      %974 = vmatprep.subr.bf16.mxu0 %v737
      %975 = vmatpush1.bf16.msra.mxu0 %v736
      %976 = vmatprep.subr.bf16.mxu0 %v743
      %977 = vmatpush1.bf16.msra.mxu0 %v742
      %978 = vmatprep.subr.bf16.mxu0 %v749
      %979 = vmatpush1.bf16.msra.mxu0 %v748
      %980 = vmatprep.subr.bf16.mxu0 %v755
      %981 = vmatpush1.bf16.msra.mxu0 %v754
      %982 = vmatprep.subr.bf16.mxu0 %v761
      %983 = vmatpush1.bf16.msra.mxu0 %v760
      %984 = vmatprep.subr.bf16.mxu0 %v767
      %985 = vmatpush1.bf16.msra.mxu0 %v766
      %986 = vmatprep.subr.bf16.mxu0 %v773
      %987 = vmatpush1.bf16.msra.mxu0 %v772
      %988 = vmatprep.subr.bf16.mxu0 %v779
      %989 = vmatpush1.bf16.msra.mxu0 %v778
      %990 = vmatprep.mubr.bf16.mxu0 %v267
      %991 = vmatmul.mubr.bf16.gmra.mrb[0].mxu0 %v266
      %v992 = vpop.f32.mrb[0].mxu0
      %v993 = vadd.f32 %v385, %v992
      %v994 = vpop.f32.mrb[0].mxu0
      %v995 = vadd.f32 %v389, %v994
      %v996 = vpop.f32.mrb[0].mxu0
      %v997 = vpop.f32.mrb[0].mxu0
      %998 = vdwg.mxu0
      %v999 = vadd.f32 %v260, %v911
      %v1000 = vadd.f32 %v261, %v913
      %v1001 = vxor.u32 %v999, 2147483648
      %v1002 = vxor.u32 %v1000, 2147483648
      %v1003 = vmul.f32 %v1001, 1.442695
      %v1004 = vpow.pop %v1003
      %v1005 = vmul.f32 %v1002, 1.442695
      %v1006 = vpow.pop %v1005
      %v1007 = vadd.f32 %v1004, 1.0
      %v1008 = vadd.f32 %v1006, 1.0
      %v1009 = vrcp.pop %v1007
      %v1010 = vmul.f32 1.0, %v1009
      %v1011 = vrcp.pop %v1008
      %v1012 = vmul.f32 1.0, %v1011
      %v1013 = vadd.f32 %v262, %v952
      %v1014 = vadd.f32 %v263, %v954
      %v1015 = vxor.u32 %v1013, 2147483648
      %v1016 = vxor.u32 %v1014, 2147483648
      %v1017 = vmul.f32 %v1015, 1.442695
      %v1018 = vpow.pop %v1017
      %v1019 = vmul.f32 %v1016, 1.442695
      %v1020 = vpow.pop %v1019
      %v1021 = vadd.f32 %v1018, 1.0
      %v1022 = vadd.f32 %v1020, 1.0
      %v1023 = vrcp.pop %v1021
      %v1024 = vmul.f32 1.0, %v1023
      %v1025 = vrcp.pop %v1022
      %v1026 = vmul.f32 1.0, %v1025
      %v1027 = vmul.f32 %v1010, %v993
      %v1028 = vmul.f32 %v1012, %v995
      %v1029 = vadd.f32 %v264, %v1027
      %v1030 = vadd.f32 %v265, %v1028
      %v1031 = vtanh.pop %v1029
      %v1032 = vtanh.pop %v1030
      %v1033 = vsub.f32 1.0, %v1024
      %v1034 = vsub.f32 1.0, %v1026
      %v1035 = vmul.f32 %v1033, %v1031
      %v1036 = vmul.f32 %v1034, %v1032
      %v1037 = vmul.f32 %v1024, %v258
      %v1038 = vmul.f32 %v1026, %v259
      %v1039 = vadd.f32 %v1035, %v1037
      %v1040 = vadd.f32 %v1036, %v1038
      %1041 = vst [vmem:[#allocation2] sm:$0xff] %v1039
      %1042 = vst [vmem:[#allocation2 + $0x8] sm:$0xff] %v1040
      %v1043 = vld [vmem:[%s242] sm:$0xff]
      %v1044 = vunpack.c.l.bf16 %v1043
      %v1045 = vunpack.c.h.bf16 %v1043
      %v1046 = vadd.f32 %v1039, %v1044
      %v1047 = vadd.f32 %v1040, %v1045
      %v1048 = vpack.c.bf16 %v1046, %v1046
      %v1049 = vpack.c.bf16 %v1047, %v1047
      %v1052 = vunpack.c.l.b16 %v1048
      %v1053 = vunpack.c.l.b16 %v1049
      %v1054 = vpack.c.b16 %v1053, %v1052
      %1056 = vst [vmem:[%s248] sm:$0xff] %v1054
      %s1057 = smul.u32 2, %s16
      %p1058 = scmp.lt.s32.totalorder %s1057, 15
      %s1059 = scalar_select %p1058, %s1057, 15
      %s1060 = smul.addr %s1059, 4
      %s1061 = scalar_lea.vmem %s5, %s1060
      // Predicated region
      $region45: #{event_track_net_forward.6} parent=39 // pred_check
        %p1062 = pneg %p149
      $region46: #{event_track_net_forward.6} parent=39 // pred_check_branch
        %1064 = sbr.rel (%p1062) target = $region48
      $region47: #{event_track_net_forward.6} parent=39 // pred_region
        %s1065 = smul.u32 2, %s16
      $region48: #{event_track_net_forward.6} parent=39 // pred_fallthru
        _
    $region40: #{event_track_net_forward.6} parent=5 // pred_fallthru
      _
    %p1066 = scmp.le.s32.totalorder 2, %s11
    // Predicated region
    $region49: #{event_track_net_forward.6} parent=5 // pred_check
      %p1067 = pneg %p1066
    $region50: #{event_track_net_forward.6} parent=5 // pred_check_branch
      %1069 = sbr.rel (%p1067) target = $region52
    $region51: #{event_track_net_forward.6} parent=5 // pred_region
      %s1070 = ssub.s32 %s11, 2
      // Predicated region
      $region53: #{event_track_net_forward.6} parent=51 // pred_check
        %p1071 = pneg %p155
      $region54: #{event_track_net_forward.6} parent=51 // pred_check_branch
        %1073 = sbr.rel (%p1071) target = $region56
      $region55: #{event_track_net_forward.6} parent=51 // pred_region
        %s1074 = smul.u32 2, %s17
        %p1075 = scmp.lt.s32.totalorder %s1074, 15
        %s1076 = scalar_select %p1075, %s1074, 15
        %s1077 = smul.addr %s1076, 4
        %s1078 = scalar_lea.vmem %s5, %s1077
      $region56: #{event_track_net_forward.6} parent=51 // pred_fallthru
        _
    $region52: #{event_track_net_forward.6} parent=5 // pred_fallthru
      _
  $region6: #{event_track_net_forward.6} parent=0 // loop_footer
    %s15 = sadd.s32 1, %s11
  $region7: #{event_track_net_forward.6} parent=0 // loop_footer_branch
    %10 = sbr.rel target = $region3
  $region8: #{event_track_net_forward.6} parent=0 // loop_exit
    _

// kernel: event_track_net_forward.7
$region0: #{event_track_net_forward.7}
  #allocation0 [shape = 'u32[]', space=smem, size = 0x4, offset = 0x4, fixed_abs, tag = 'smem constant byte address 0x4 - core index']
  #allocation1 [shape = 'u32[144,128]{1,0:T(1,128)}', space=vmem, size = 0x12000, scoped, tag = 'internal scratch']
  %s0 = inlined_call_operand.vmem [shape: bf16[16,256], index: 0, kind: input, shape index: {}]
  %s1 = inlined_call_operand.vmem [shape: bf16[256,256], index: 1, kind: input, shape index: {}]
  %s2 = inlined_call_operand.vmem [shape: f32[1,256], index: 2, kind: input, shape index: {}]
  %s3 = inlined_call_operand.vmem [shape: f32[16,256], index: 3, kind: output, shape index: {}]
  %s4 = sld [smem:[#allocation0]]
  $region22: #{event_track_net_forward.7} parent=0
    _
  %s6 = ssub.s32 1, %s4
  %s7 = scalar_select 0, %s6, %s4
  // Predicated region
  $region2: #{event_track_net_forward.7} parent=0 // pred_check
    _
  $region3: #{event_track_net_forward.7} parent=0 // pred_check_branch
    %9 = sbr.rel (0) target = $region5
  $region4: #{event_track_net_forward.7} parent=0 // pred_region
    _
  $region5: #{event_track_net_forward.7} parent=0 // pred_fallthru
    _
  // Predicated region
  $region6: #{event_track_net_forward.7} parent=0 // pred_check
    _
  $region7: #{event_track_net_forward.7} parent=0 // pred_check_branch
    %11 = sbr.rel (0) target = $region9
  $region8: #{event_track_net_forward.7} parent=0 // pred_region
    _
  $region9: #{event_track_net_forward.7} parent=0 // pred_fallthru
    _
  // Predicated region
  $region10: #{event_track_net_forward.7} parent=0 // pred_check
    _
  $region11: #{event_track_net_forward.7} parent=0 // pred_check_branch
    %13 = sbr.rel (0) target = $region13
  $region12: #{event_track_net_forward.7} parent=0 // pred_region
    _
  $region13: #{event_track_net_forward.7} parent=0 // pred_fallthru
    _
  %v14 = vld [vmem:[%s0] sm:$0xff]
  %v15 = vld [vmem:[%s0 + $0x8] sm:$0xff]
  %v16 = vld [vmem:[%s1] sm:$0xff]
  %v17 = vld [vmem:[%s1 + $0x8] sm:$0xff]
  %v18 = vld [vmem:[%s1 + $0x10] sm:$0xff]
  %v19 = vld [vmem:[%s1 + $0x18] sm:$0xff]
  %v20 = vld [vmem:[%s1 + $0x20] sm:$0xff]
  %v21 = vld [vmem:[%s1 + $0x28] sm:$0xff]
  %v22 = vld [vmem:[%s1 + $0x30] sm:$0xff]
  %v23 = vld [vmem:[%s1 + $0x38] sm:$0xff]
  %v24 = vld [vmem:[%s1 + $0x40] sm:$0xff]
  %v25 = vld [vmem:[%s1 + $0x48] sm:$0xff]
  %v26 = vld [vmem:[%s1 + $0x50] sm:$0xff]
  %v27 = vld [vmem:[%s1 + $0x58] sm:$0xff]
  %v28 = vld [vmem:[%s1 + $0x60] sm:$0xff]
  %v29 = vld [vmem:[%s1 + $0x68] sm:$0xff]
  %v30 = vld [vmem:[%s1 + $0x70] sm:$0xff]
  %v31 = vld [vmem:[%s1 + $0x78] sm:$0xff]
  %v32 = vld [vmem:[%s1 + $0x80] sm:$0xff]
  %v33 = vld [vmem:[%s1 + $0x88] sm:$0xff]
  %v34 = vld [vmem:[%s1 + $0x90] sm:$0xff]
  %v35 = vld [vmem:[%s1 + $0x98] sm:$0xff]
  %v36 = vld [vmem:[%s1 + $0xa0] sm:$0xff]
  %v37 = vld [vmem:[%s1 + $0xa8] sm:$0xff]
  %v38 = vld [vmem:[%s1 + $0xb0] sm:$0xff]
  %v39 = vld [vmem:[%s1 + $0xb8] sm:$0xff]
  %v40 = vld [vmem:[%s1 + $0xc0] sm:$0xff]
  %v41 = vld [vmem:[%s1 + $0xc8] sm:$0xff]
  %v42 = vld [vmem:[%s1 + $0xd0] sm:$0xff]
  %v43 = vld [vmem:[%s1 + $0xd8] sm:$0xff]
  %v44 = vld [vmem:[%s1 + $0xe0] sm:$0xff]
  %v45 = vld [vmem:[%s1 + $0xe8] sm:$0xff]
  %v46 = vld [vmem:[%s1 + $0xf0] sm:$0xff]
  %v47 = vld [vmem:[%s1 + $0xf8] sm:$0xff]
  %v48 = vld [vmem:[%s2] sm:$0x3]
  %v50 = vlaneseq
  %v51 = vshrl.u32 %v50, 7
  %v52 = vsub.s32 0, %v51
  %v53 = vrot.slane %v48, %v52
  %v54 = vlaneseq
  %v55 = vshrl.u32 %v54, 7
  %v56 = vsub.s32 1, %v55
  %v57 = vrot.slane %v48, %v56
  %v62 = vunpack.c.l.b16 %v14
  %v63 = vunpack.c.h.b16 %v14
  %v64 = vunpack.c.l.b16 %v15
  %v65 = vunpack.c.h.b16 %v15
  %v66 = vpack.c.b16 %v64, %v62
  %v67 = vpack.c.b16 %v65, %v63
  %v102 = vunpack.c.l.b16 %v16
  %v103 = vunpack.c.h.b16 %v16
  %v104 = vunpack.c.l.b16 %v17
  %v105 = vunpack.c.h.b16 %v17
  %v106 = vunpack.c.l.b16 %v18
  %v107 = vunpack.c.h.b16 %v18
  %v108 = vunpack.c.l.b16 %v19
  %v109 = vunpack.c.h.b16 %v19
  %v110 = vunpack.c.l.b16 %v20
  %v111 = vunpack.c.h.b16 %v20
  %v112 = vunpack.c.l.b16 %v21
  %v113 = vunpack.c.h.b16 %v21
  %v114 = vunpack.c.l.b16 %v22
  %v115 = vunpack.c.h.b16 %v22
  %v116 = vunpack.c.l.b16 %v23
  %v117 = vunpack.c.h.b16 %v23
  %v118 = vunpack.c.l.b16 %v24
  %v119 = vunpack.c.h.b16 %v24
  %v120 = vunpack.c.l.b16 %v25
  %v121 = vunpack.c.h.b16 %v25
  %v122 = vunpack.c.l.b16 %v26
  %v123 = vunpack.c.h.b16 %v26
  %v124 = vunpack.c.l.b16 %v27
  %v125 = vunpack.c.h.b16 %v27
  %v126 = vunpack.c.l.b16 %v28
  %v127 = vunpack.c.h.b16 %v28
  %v128 = vunpack.c.l.b16 %v29
  %v129 = vunpack.c.h.b16 %v29
  %v130 = vunpack.c.l.b16 %v30
  %v131 = vunpack.c.h.b16 %v30
  %v132 = vunpack.c.l.b16 %v31
  %v133 = vunpack.c.h.b16 %v31
  %v134 = vunpack.c.l.b16 %v32
  %v135 = vunpack.c.h.b16 %v32
  %v136 = vunpack.c.l.b16 %v33
  %v137 = vunpack.c.h.b16 %v33
  %v138 = vunpack.c.l.b16 %v34
  %v139 = vunpack.c.h.b16 %v34
  %v140 = vunpack.c.l.b16 %v35
  %v141 = vunpack.c.h.b16 %v35
  %v142 = vunpack.c.l.b16 %v36
  %v143 = vunpack.c.h.b16 %v36
  %v144 = vunpack.c.l.b16 %v37
  %v145 = vunpack.c.h.b16 %v37
  %v146 = vunpack.c.l.b16 %v38
  %v147 = vunpack.c.h.b16 %v38
  %v148 = vunpack.c.l.b16 %v39
  %v149 = vunpack.c.h.b16 %v39
  %v150 = vunpack.c.l.b16 %v40
  %v151 = vunpack.c.h.b16 %v40
  %v152 = vunpack.c.l.b16 %v41
  %v153 = vunpack.c.h.b16 %v41
  %v154 = vunpack.c.l.b16 %v42
  %v155 = vunpack.c.h.b16 %v42
  %v156 = vunpack.c.l.b16 %v43
  %v157 = vunpack.c.h.b16 %v43
  %v158 = vunpack.c.l.b16 %v44
  %v159 = vunpack.c.h.b16 %v44
  %v160 = vunpack.c.l.b16 %v45
  %v161 = vunpack.c.h.b16 %v45
  %v162 = vunpack.c.l.b16 %v46
  %v163 = vunpack.c.h.b16 %v46
  %v164 = vunpack.c.l.b16 %v47
  %v165 = vunpack.c.h.b16 %v47
  %v166 = vpack.c.b16 %v104, %v102
  %v167 = vpack.c.b16 %v105, %v103
  %v168 = vpack.c.b16 %v108, %v106
  %v169 = vpack.c.b16 %v109, %v107
  %v170 = vpack.c.b16 %v112, %v110
  %v171 = vpack.c.b16 %v113, %v111
  %v172 = vpack.c.b16 %v116, %v114
  %v173 = vpack.c.b16 %v117, %v115
  %v174 = vpack.c.b16 %v120, %v118
  %v175 = vpack.c.b16 %v121, %v119
  %v176 = vpack.c.b16 %v124, %v122
  %v177 = vpack.c.b16 %v125, %v123
  %v178 = vpack.c.b16 %v128, %v126
  %v179 = vpack.c.b16 %v129, %v127
  %v180 = vpack.c.b16 %v132, %v130
  %v181 = vpack.c.b16 %v133, %v131
  %v182 = vpack.c.b16 %v136, %v134
  %v183 = vpack.c.b16 %v137, %v135
  %v184 = vpack.c.b16 %v140, %v138
  %v185 = vpack.c.b16 %v141, %v139
  %v186 = vpack.c.b16 %v144, %v142
  %v187 = vpack.c.b16 %v145, %v143
  %v188 = vpack.c.b16 %v148, %v146
  %v189 = vpack.c.b16 %v149, %v147
  %v190 = vpack.c.b16 %v152, %v150
  %v191 = vpack.c.b16 %v153, %v151
  %v192 = vpack.c.b16 %v156, %v154
  %v193 = vpack.c.b16 %v157, %v155
  %v194 = vpack.c.b16 %v160, %v158
  %v195 = vpack.c.b16 %v161, %v159
  %v196 = vpack.c.b16 %v164, %v162
  %v197 = vpack.c.b16 %v165, %v163
  %230 = vmatprep.subr.bf16.mxu0 %v167
  %231 = vmatpush1.bf16.msra.mxu0 %v166
  %232 = vmatprep.subr.bf16.mxu0 %v169
  %233 = vmatpush1.bf16.msra.mxu0 %v168
  %234 = vmatprep.subr.bf16.mxu0 %v171
  %235 = vmatpush1.bf16.msra.mxu0 %v170
  %236 = vmatprep.subr.bf16.mxu0 %v173
  %237 = vmatpush1.bf16.msra.mxu0 %v172
  %238 = vmatprep.subr.bf16.mxu0 %v175
  %239 = vmatpush1.bf16.msra.mxu0 %v174
  %240 = vmatprep.subr.bf16.mxu0 %v177
  %241 = vmatpush1.bf16.msra.mxu0 %v176
  %242 = vmatprep.subr.bf16.mxu0 %v179
  %243 = vmatpush1.bf16.msra.mxu0 %v178
  %244 = vmatprep.subr.bf16.mxu0 %v181
  %245 = vmatpush1.bf16.msra.mxu0 %v180
  %246 = vmatprep.subr.bf16.mxu0 %v183
  %247 = vmatpush1.bf16.msra.mxu0 %v182
  %248 = vmatprep.subr.bf16.mxu0 %v185
  %249 = vmatpush1.bf16.msra.mxu0 %v184
  %250 = vmatprep.subr.bf16.mxu0 %v187
  %251 = vmatpush1.bf16.msra.mxu0 %v186
  %252 = vmatprep.subr.bf16.mxu0 %v189
  %253 = vmatpush1.bf16.msra.mxu0 %v188
  %254 = vmatprep.subr.bf16.mxu0 %v191
  %255 = vmatpush1.bf16.msra.mxu0 %v190
  %256 = vmatprep.subr.bf16.mxu0 %v193
  %257 = vmatpush1.bf16.msra.mxu0 %v192
  %258 = vmatprep.subr.bf16.mxu0 %v195
  %259 = vmatpush1.bf16.msra.mxu0 %v194
  %260 = vmatprep.subr.bf16.mxu0 %v197
  %261 = vmatpush1.bf16.msra.mxu0 %v196
  %262 = vmatprep.mubr.bf16.mxu0 %v67
  %263 = vmatmul.mubr.bf16.gmra.mrb[0].mxu0 %v66
  %v264 = vpop.f32.mrb[0].mxu0
  %v265 = vadd.f32 %v53, %v264
  %v266 = vpop.f32.mrb[0].mxu0
  %v267 = vadd.f32 %v57, %v266
  %v268 = vpop.f32.mrb[0].mxu0
  %v269 = vadd.f32 %v53, %v268
  %v270 = vpop.f32.mrb[0].mxu0
  %v271 = vadd.f32 %v57, %v270
  %272 = vdwg.mxu0
  %273 = vst [vmem:[%s3] sm:$0xff] %v265
  %274 = vst [vmem:[%s3 + $0x8] sm:$0xff] %v267
  %275 = vst [vmem:[%s3 + $0x10] sm:$0xff] %v269
  %276 = vst [vmem:[%s3 + $0x18] sm:$0xff] %v271
  // Predicated region
  $region14: #{event_track_net_forward.7} parent=0 // pred_check
    _
  $region15: #{event_track_net_forward.7} parent=0 // pred_check_branch
    %278 = sbr.rel (0) target = $region17
  $region16: #{event_track_net_forward.7} parent=0 // pred_region
    _
  $region17: #{event_track_net_forward.7} parent=0 // pred_fallthru
    _
  // Predicated region
  $region18: #{event_track_net_forward.7} parent=0 // pred_check
    _
  $region19: #{event_track_net_forward.7} parent=0 // pred_check_branch
    %280 = sbr.rel (0) target = $region21
  $region20: #{event_track_net_forward.7} parent=0 // pred_region
    _
  $region21: #{event_track_net_forward.7} parent=0 // pred_fallthru
    _

// kernel: squeeze.22
$region0: #{squeeze.22}
  %s0 = inlined_call_operand.vmem [shape: f32[2,72], index: 0, kind: input, shape index: {}]
  %s1 = inlined_call_operand.vmem [shape: f32[48,3], index: 1, kind: output, shape index: {}]
  $region1: #{squeeze.22} parent=0
    #allocation0 [shape = 'u8[4096]{0}', space=vmem, size = 0x1000, scoped, tag = 'scoped mem for input reshape']
    %s3 = sshllo.u32 0, 2
    %v4 = vld [vmem:[%s0] sm:%s3]
    %5 = vst [vmem:[#allocation0] sm:%s3] %v4
    %v6 = vld [vmem:[#allocation0] sm:$0x3]
    %vm7 = vcmask 23552
    %8 = vst.msk [vmem:[%s1] ss:$24 sm:$0x3] %vm7, %v6
    %v9 = vld [vmem:[#allocation0] sm:$0x3]
    %10 = vrot.lane.b32.xlu0 %v9, 125
    %v11 = vpop.permute.xlu0 %10
    %vm12 = vcmask 23552
    %s13 = scalar_lea.vmem %s1, 1
    %14 = vst.msk [vmem:[%s13] ss:$24 sm:$0x3] %vm12, %v11
    %v15 = vld [vmem:[#allocation0] sm:$0x3]
    %16 = vrot.lane.b32.xlu0 %v15, 122
    %v17 = vpop.permute.xlu0 %16
    %vm18 = vcmask 23552
    %s19 = scalar_lea.vmem %s1, 2
    %20 = vst.msk [vmem:[%s19] ss:$24 sm:$0x3] %vm18, %v17
    %v21 = vld [vmem:[#allocation0] sm:$0x3]
    %22 = vrot.lane.b32.xlu0 %v21, 119
    %v23 = vpop.permute.xlu0 %22
    %vm24 = vcmask 23552
    %s25 = scalar_lea.vmem %s1, 3
    %26 = vst.msk [vmem:[%s25] ss:$24 sm:$0x3] %vm24, %v23
    %v27 = vld [vmem:[#allocation0] sm:$0x3]
    %28 = vrot.lane.b32.xlu0 %v27, 116
    %v29 = vpop.permute.xlu0 %28
    %vm30 = vcmask 23552
    %s31 = scalar_lea.vmem %s1, 4
    %32 = vst.msk [vmem:[%s31] ss:$24 sm:$0x3] %vm30, %v29
    %v33 = vld [vmem:[#allocation0] sm:$0x3]
    %34 = vrot.lane.b32.xlu0 %v33, 113
    %v35 = vpop.permute.xlu0 %34
    %vm36 = vcmask 23552
    %s37 = scalar_lea.vmem %s1, 5
    %38 = vst.msk [vmem:[%s37] ss:$24 sm:$0x3] %vm36, %v35
    %v39 = vld [vmem:[#allocation0] sm:$0x3]
    %40 = vrot.lane.b32.xlu0 %v39, 110
    %v41 = vpop.permute.xlu0 %40
    %vm42 = vcmask 23552
    %s43 = scalar_lea.vmem %s1, 6
    %44 = vst.msk [vmem:[%s43] ss:$24 sm:$0x3] %vm42, %v41
    %v45 = vld [vmem:[#allocation0] sm:$0x3]
    %46 = vrot.lane.b32.xlu0 %v45, 107
    %v47 = vpop.permute.xlu0 %46
    %vm48 = vcmask 23552
    %s49 = scalar_lea.vmem %s1, 7
    %50 = vst.msk [vmem:[%s49] ss:$24 sm:$0x3] %vm48, %v47
    %s51 = scalar_lea.vmem [#allocation0], 1
    %s52 = smov 3
    %v53 = vld [vmem:[%s51] ss:$-1 sm:%s52]
    %54 = vrot.lane.b32.xlu0 %v53, 104
    %v55 = vpop.permute.xlu0 %54
    %vm56 = vcmask 23552
    %s57 = scalar_lea.vmem %s1, 32
    %58 = vst.msk [vmem:[%s57] ss:$-24 sm:$0x3] %vm56, %v55
    %s59 = scalar_lea.vmem [#allocation0], 1
    %s60 = smov 3
    %v61 = vld [vmem:[%s59] ss:$-1 sm:%s60]
    %62 = vrot.lane.b32.xlu0 %v61, 101
    %v63 = vpop.permute.xlu0 %62
    %vm64 = vcmask 23552
    %s65 = scalar_lea.vmem %s1, 33
    %66 = vst.msk [vmem:[%s65] ss:$-24 sm:$0x3] %vm64, %v63
    %s67 = scalar_lea.vmem [#allocation0], 1
    %s68 = smov 3
    %v69 = vld [vmem:[%s67] ss:$-1 sm:%s68]
    %70 = vrot.lane.b32.xlu0 %v69, 98
    %v71 = vpop.permute.xlu0 %70
    %vm72 = vcmask 23552
    %s73 = scalar_lea.vmem %s1, 34
    %74 = vst.msk [vmem:[%s73] ss:$-24 sm:$0x3] %vm72, %v71
    %s75 = scalar_lea.vmem [#allocation0], 1
    %s76 = smov 3
    %v77 = vld [vmem:[%s75] ss:$-1 sm:%s76]
    %78 = vrot.lane.b32.xlu0 %v77, 95
    %v79 = vpop.permute.xlu0 %78
    %vm80 = vcmask 23552
    %s81 = scalar_lea.vmem %s1, 35
    %82 = vst.msk [vmem:[%s81] ss:$-24 sm:$0x3] %vm80, %v79
    %s83 = scalar_lea.vmem [#allocation0], 1
    %s84 = smov 3
    %v85 = vld [vmem:[%s83] ss:$-1 sm:%s84]
    %86 = vrot.lane.b32.xlu0 %v85, 92
    %v87 = vpop.permute.xlu0 %86
    %vm88 = vcmask 23552
    %s89 = scalar_lea.vmem %s1, 36
    %90 = vst.msk [vmem:[%s89] ss:$-24 sm:$0x3] %vm88, %v87
    %s91 = scalar_lea.vmem [#allocation0], 1
    %s92 = smov 3
    %v93 = vld [vmem:[%s91] ss:$-1 sm:%s92]
    %94 = vrot.lane.b32.xlu0 %v93, 89
    %v95 = vpop.permute.xlu0 %94
    %vm96 = vcmask 23552
    %s97 = scalar_lea.vmem %s1, 37
    %98 = vst.msk [vmem:[%s97] ss:$-24 sm:$0x3] %vm96, %v95
    %s99 = scalar_lea.vmem [#allocation0], 1
    %s100 = smov 3
    %v101 = vld [vmem:[%s99] ss:$-1 sm:%s100]
    %102 = vrot.lane.b32.xlu0 %v101, 86
    %v103 = vpop.permute.xlu0 %102
    %vm104 = vcmask 23552
    %s105 = scalar_lea.vmem %s1, 38
    %106 = vst.msk [vmem:[%s105] ss:$-24 sm:$0x3] %vm104, %v103
    %s107 = scalar_lea.vmem [#allocation0], 1
    %s108 = smov 3
    %v109 = vld [vmem:[%s107] ss:$-1 sm:%s108]
    %110 = vrot.lane.b32.xlu0 %v109, 83
    %v111 = vpop.permute.xlu0 %110
    %vm112 = vcmask 23552
    %s113 = scalar_lea.vmem %s1, 39
    %114 = vst.msk [vmem:[%s113] ss:$-24 sm:$0x3] %vm112, %v111
    %s115 = scalar_lea.vmem [#allocation0], 1
    %s116 = smov 3
    %v117 = vld [vmem:[%s115] ss:$-1 sm:%s116]
    %118 = vrot.lane.b32.xlu0 %v117, 80
    %v119 = vpop.permute.xlu0 %118
    %vm120 = vcmask 23552
    %s121 = scalar_lea.vmem %s1, 40
    %122 = vst.msk [vmem:[%s121] ss:$-24 sm:$0x3] %vm120, %v119
    %s123 = scalar_lea.vmem [#allocation0], 1
    %s124 = smov 3
    %v125 = vld [vmem:[%s123] ss:$-1 sm:%s124]
    %126 = vrot.lane.b32.xlu0 %v125, 77
    %v127 = vpop.permute.xlu0 %126
    %vm128 = vcmask 23552
    %s129 = scalar_lea.vmem %s1, 41
    %130 = vst.msk [vmem:[%s129] ss:$-24 sm:$0x3] %vm128, %v127
    %s131 = scalar_lea.vmem [#allocation0], 1
    %s132 = smov 3
    %v133 = vld [vmem:[%s131] ss:$-1 sm:%s132]
    %134 = vrot.lane.b32.xlu0 %v133, 74
    %v135 = vpop.permute.xlu0 %134
    %vm136 = vcmask 23552
    %s137 = scalar_lea.vmem %s1, 42
    %138 = vst.msk [vmem:[%s137] ss:$-24 sm:$0x3] %vm136, %v135
    %s139 = scalar_lea.vmem [#allocation0], 1
    %s140 = smov 3
    %v141 = vld [vmem:[%s139] ss:$-1 sm:%s140]
    %142 = vrot.lane.b32.xlu0 %v141, 71
    %v143 = vpop.permute.xlu0 %142
    %vm144 = vcmask 23552
    %s145 = scalar_lea.vmem %s1, 43
    %146 = vst.msk [vmem:[%s145] ss:$-24 sm:$0x3] %vm144, %v143
    %s147 = scalar_lea.vmem [#allocation0], 1
    %s148 = smov 3
    %v149 = vld [vmem:[%s147] ss:$-1 sm:%s148]
    %150 = vrot.lane.b32.xlu0 %v149, 68
    %v151 = vpop.permute.xlu0 %150
    %vm152 = vcmask 23552
    %s153 = scalar_lea.vmem %s1, 44
    %154 = vst.msk [vmem:[%s153] ss:$-24 sm:$0x3] %vm152, %v151
    %s155 = scalar_lea.vmem [#allocation0], 1
    %s156 = smov 3
    %v157 = vld [vmem:[%s155] ss:$-1 sm:%s156]
    %158 = vrot.lane.b32.xlu0 %v157, 65
    %v159 = vpop.permute.xlu0 %158
    %vm160 = vcmask 23552
    %s161 = scalar_lea.vmem %s1, 45
    %162 = vst.msk [vmem:[%s161] ss:$-24 sm:$0x3] %vm160, %v159
    %s163 = scalar_lea.vmem [#allocation0], 1
    %s164 = smov 3
    %v165 = vld [vmem:[%s163] ss:$-1 sm:%s164]
    %166 = vrot.lane.b32.xlu0 %v165, 62
    %v167 = vpop.permute.xlu0 %166
    %vm168 = vcmask 23552
    %s169 = scalar_lea.vmem %s1, 46
    %170 = vst.msk [vmem:[%s169] ss:$-24 sm:$0x3] %vm168, %v167
    %s171 = scalar_lea.vmem [#allocation0], 1
    %s172 = smov 3
    %v173 = vld [vmem:[%s171] ss:$-1 sm:%s172]
    %174 = vrot.lane.b32.xlu0 %v173, 59
    %v175 = vpop.permute.xlu0 %174
    %vm176 = vcmask 23552
    %s177 = scalar_lea.vmem %s1, 47
    %178 = vst.msk [vmem:[%s177] ss:$-24 sm:$0x3] %vm176, %v175

// kernel: custom-call
$region0: #{custom-call}
  %s0 = inlined_call_operand.hbm [shape: f32[8,2,24,3,3], index: 0, kind: output, shape index: {}]

</llo_original>
